<compile_context>
chip_gen: v7x
topology: tpu7x:2x2x1
jax: 0.10.0
libtpu: 0.0.40
codegen_flags: <defaults>
</compile_context>

<pallas_src>
import math
import functools

import numpy as np
import jax
import jax.numpy as jnp
from jax import lax
from jax.experimental import pallas as pl
from jax.experimental.pallas import tpu as pltpu


# ----------------------------------------------------------------------------
# Positional timing signal (constant, computed once in plain JAX glue)
# ----------------------------------------------------------------------------
def timing_signal(length, channels, min_timescale=1.0, max_timescale=10000.0):
    position = jnp.arange(length, dtype=jnp.float32)
    num_timescales = channels // 2
    log_inc = math.log(float(max_timescale) / float(min_timescale)) / (num_timescales - 1)
    inv = min_timescale * jnp.exp(
        jnp.arange(num_timescales, dtype=jnp.float32) * -log_inc)
    scaled = position[:, None] * inv[None, :]
    signal = jnp.concatenate([jnp.sin(scaled), jnp.cos(scaled)], axis=1)
    if channels % 2:
        signal = jnp.pad(signal, ((0, 0), (0, channels % 2)))
    return signal  # (L, D)


def _layernorm(h, g, b, eps=1e-5):
    mu = jnp.mean(h, axis=-1, keepdims=True)
    var = jnp.mean(jnp.square(h - mu), axis=-1, keepdims=True)
    return (h - mu) * lax.rsqrt(var + eps) * g + b


# ----------------------------------------------------------------------------
# Fused encoder-block kernel (Bblk batch elements per grid step, lane-dense)
# ----------------------------------------------------------------------------
def encoder_block_kernel(x_ref, mask_ref, pos_ref,
                         lnc_g_ref, lnc_b_ref, dw_w_ref, pw_w_ref, pw_b_ref,
                         ln1_g_ref, ln1_b_ref, qkv_w_ref,
                         ln2_g_ref, ln2_b_ref, f1_w_ref, f1_b_ref,
                         f2_w_ref, f2_b_ref, out_ref,
                         *, num_conv, num_heads, k):
    bblk, L, D = x_ref.shape
    M = bblk * L
    dh = D // num_heads
    pad = k // 2
    bf16 = jnp.bfloat16

    # --- PosEncoder, then flatten (bblk, L, D) -> (bblk*L, D) lane-dense slab ---
    out = (x_ref[...] + pos_ref[...]).reshape(M, D)                   # f32

    # Per-tap validity masks for the roll-based depthwise conv.  Rolling the
    # flattened slab can only pull data across a sequence boundary on rows the
    # zero-padding mask kills anyway, so flattening is safe (needs k//2 < L).
    tap_mask = {}
    if num_conv > 0 and k > 1:
        row = lax.broadcasted_iota(jnp.int32, (M, 1), 0)
        row = row % L if bblk > 1 else row                            # pos within sequence
        for j in range(k):
            s = pad - j
            if s > 0:
                tap_mask[j] = (row >= s).astype(jnp.float32)
            elif s < 0:
                tap_mask[j] = (row < (L + s)).astype(jnp.float32)

    # --- depthwise-separable conv stack: LN -> dwconv -> pwconv+ReLU -> +res ---
    for i in range(num_conv):
        res = out
        h = _layernorm(out, lnc_g_ref[i], lnc_b_ref[i])               # f32 (M, D)
        dw = dw_w_ref[i]                                              # (k, D) f32
        acc = h * dw[pad:pad + 1, :]                                  # centre tap (shift 0)
        for j in range(k):
            if j == pad:
                continue
            s = pad - j
            shifted = pltpu.roll(h, shift=s % M, axis=0)              # XLU sublane rotate
            acc = acc + (shifted * dw[j:j + 1, :]) * tap_mask[j]
        hpw = jnp.dot(acc.astype(bf16), pw_w_ref[i],                  # pointwise conv (MXU)
                      preferred_element_type=jnp.float32) + pw_b_ref[i]
        out = jnp.maximum(hpw, 0.0) + res                             # ReLU + residual

    # --- multi-head self attention ---
    res = out
    h = _layernorm(out, ln1_g_ref[...], ln1_b_ref[...]).astype(bf16)
    # single fused QKV projection; dh**-0.5 is folded into the query columns
    qkv = jnp.dot(h, qkv_w_ref[...],
                  preferred_element_type=jnp.float32).astype(bf16)    # (M, 3D)

    att_parts = []
    for b in range(bblk):
        qkv_b = qkv[b * L:(b + 1) * L, :]                             # (L, 3D) bf16
        maskb = mask_ref[b]                                           # (1, L) f32 over keys
        fill = (1.0 - maskb) * (-1e30)                                # (1, L) f32
        # head-stacked Q/K/V: (H, L, dh); only static lane slices + leading stack
        qh = jnp.stack([qkv_b[:, hh * dh:(hh + 1) * dh]
                        for hh in range(num_heads)], axis=0)
        kh = jnp.stack([qkv_b[:, D + hh * dh:D + (hh + 1) * dh]
                        for hh in range(num_heads)], axis=0)
        vh = jnp.stack([qkv_b[:, 2 * D + hh * dh:2 * D + (hh + 1) * dh]
                        for hh in range(num_heads)], axis=0)
        # all heads in one batched MXU contraction each
        logits = lax.dot_general(qh, kh, (((2,), (2,)), ((0,), (0,))),
                                 preferred_element_type=jnp.float32)  # (H, L, L)
        logits = logits * maskb + fill                                # mask_logits (row bcast)
        mx = jnp.max(logits, axis=-1, keepdims=True)
        e = jnp.exp(logits - mx)
        w = e * pl.reciprocal(jnp.sum(e, axis=-1, keepdims=True), approx=True)
        pv = lax.dot_general(w.astype(bf16), vh, (((2,), (1,)), ((0,), (0,))),
                             preferred_element_type=jnp.float32)      # (H, L, dh)
        att_parts.append(
            jnp.concatenate([pv[hh] for hh in range(num_heads)], axis=-1))
    att = att_parts[0] if bblk == 1 else jnp.concatenate(att_parts, axis=0)
    out = att + res

    # --- FFN: LN -> conv1x1+ReLU -> conv1x1 -> +res ---
    res = out
    h = _layernorm(out, ln2_g_ref[...], ln2_b_ref[...]).astype(bf16)
    h1 = jnp.maximum(
        jnp.dot(h, f1_w_ref[...], preferred_element_type=jnp.float32) + f1_b_ref[...],
        0.0)
    h2 = jnp.dot(h1.astype(bf16), f2_w_ref[...],
                 preferred_element_type=jnp.float32) + f2_b_ref[...]
    out = h2 + res

    out_ref[...] = out.reshape(bblk, L, D).astype(out_ref.dtype)


# ----------------------------------------------------------------------------
# One-time parameter preparation (cast + fuse, done outside the forward)
# ----------------------------------------------------------------------------
_PARAM_ORDER = ("lnc_gamma", "lnc_beta", "dw_w", "pw_w", "pw_b",
                "ln1_gamma", "ln1_beta", "qkv_w",
                "ln2_gamma", "ln2_beta", "ffn1_w", "ffn1_b", "ffn2_w", "ffn2_b")


def prepare_params(params, num_heads):
    """Cast weights (bf16 for MXU operands), fold dh**-0.5 into the query
    projection and fuse query/key/value into one (D, 3D) weight — done once."""
    bf16, f32 = jnp.bfloat16, jnp.float32
    D = params["qry_w"].shape[0]
    scale = (D // num_heads) ** -0.5
    qkv_w = jnp.concatenate([params["qry_w"] * scale, params["mem_w"]], axis=1)
    return {
        "lnc_gamma": params["lnc_gamma"].astype(f32),
        "lnc_beta":  params["lnc_beta"].astype(f32),
        "dw_w":      params["dw_w"].astype(f32),       # depthwise taps stay f32 (VPU)
        "pw_w":      params["pw_w"].astype(bf16),
        "pw_b":      params["pw_b"].astype(f32),
        "ln1_gamma": params["ln1_gamma"].astype(f32),
        "ln1_beta":  params["ln1_beta"].astype(f32),
        "qkv_w":     qkv_w.astype(bf16),               # (D, 3D): [q*scale | key | value]
        "ln2_gamma": params["ln2_gamma"].astype(f32),
        "ln2_beta":  params["ln2_beta"].astype(f32),
        "ffn1_w":    params["ffn1_w"].astype(bf16),
        "ffn1_b":    params["ffn1_b"].astype(f32),
        "ffn2_w":    params["ffn2_w"].astype(bf16),
        "ffn2_b":    params["ffn2_b"].astype(f32),
    }


# ----------------------------------------------------------------------------
# Wrapper: NCL in / NCL out; lane-dense (B, L, D) inside the kernel
# ----------------------------------------------------------------------------
def encoder_block_forward(x_ncl, mask, prepared, *, num_conv, num_heads, k,
                          block_batch=4):
    B, D, L = x_ncl.shape

    x = jnp.transpose(x_ncl, (0, 2, 1)).astype(jnp.float32)   # (B, L, D) lane-dense
    mask3 = mask.astype(jnp.float32).reshape(B, 1, L)
    pos = timing_signal(L, D)                                  # (L, D)

    # batch elements per grid step (largest divisor of B up to block_batch)
    bblk = 1
    for c in range(min(B, block_batch), 0, -1):
        if B % c == 0:
            bblk = c
            break
    if L % 8 != 0:        # keep the (bblk*L, D) flatten layout-trivial
        bblk = 1

    pvals = [prepared[name] for name in _PARAM_ORDER]

    kernel = functools.partial(encoder_block_kernel,
                               num_conv=num_conv, num_heads=num_heads, k=k)

    # advisory cost estimate so XLA can schedule the wrapper transposes around us
    flops = B * (2 * L * D * D * num_conv        # pointwise convs
                 + 2 * L * D * 3 * D             # fused QKV projection
                 + 4 * L * L * D                 # logits + attn@V (all heads)
                 + 4 * L * D * D)                # FFN_1 + FFN_2
    weight_bytes = int(pos.size * 4 + sum(v.size * v.dtype.itemsize for v in pvals))
    cost = pl.CostEstimate(flops=int(flops),
                           transcendentals=int(B * num_heads * L * L),
                           bytes_accessed=int(2 * B * L * D * 4 + B * L * 4 + weight_bytes))

    def build(single_buffer_consts):
        def const_spec(a):
            zeros = (0,) * a.ndim
            if single_buffer_consts:
                # constant-index blocks are DMA'd once — no double buffering needed
                return pl.BlockSpec(a.shape, lambda b, _z=zeros: _z,
                                    pipeline_mode=pl.Buffered(1))
            return pl.BlockSpec(a.shape, lambda b, _z=zeros: _z)

        in_specs = [
            pl.BlockSpec((bblk, L, D), lambda b: (b, 0, 0)),   # x (lane-dense)
            pl.BlockSpec((bblk, 1, L), lambda b: (b, 0, 0)),   # key mask
            const_spec(pos),                                    # positional signal
        ] + [const_spec(v) for v in pvals]

        return pl.pallas_call(
            kernel,
            out_shape=jax.ShapeDtypeStruct((B, L, D), jnp.float32),
            grid=(B // bblk,),
            in_specs=in_specs,
            out_specs=pl.BlockSpec((bblk, L, D), lambda b: (b, 0, 0)),
            compiler_params=pltpu.CompilerParams(
                dimension_semantics=("parallel",),
                vmem_limit_bytes=48 * 1024 * 1024),
            cost_estimate=cost,
        )

    try:
        out_nld = build(True)(x, mask3, pos, *pvals)
    except Exception:
        # pipeline_mode single-buffering unsupported on this jax version -> default
        out_nld = build(False)(x, mask3, pos, *pvals)

    return jnp.transpose(out_nld, (0, 2, 1))                   # back to NCL (B, D, L)


# ----------------------------------------------------------------------------
# Deterministic parameter init (shapes follow the PyTorch module __init__)
# ----------------------------------------------------------------------------
def init_params(key, num_conv, D, k):
    ks = jax.random.split(key, 8)
    sd = 1.0 / math.sqrt(D)
    f32 = jnp.float32
    return {
        # per-conv LayerNorm (norm_C)
        "lnc_gamma": jnp.ones((num_conv, 1, D), f32),
        "lnc_beta":  jnp.zeros((num_conv, 1, D), f32),
        # depthwise weight: PyTorch (D, 1, k) -> stored (num_conv, k, D)
        "dw_w": (jax.random.normal(ks[0], (num_conv, k, D)) * 0.1).astype(f32),
        # pointwise weight: PyTorch (D_out, D_in, 1) -> stored transposed (D_in, D_out)
        "pw_w": (jax.random.normal(ks[1], (num_conv, D, D)) * sd).astype(f32),
        "pw_b": (jax.random.normal(ks[2], (num_conv, 1, D)) * 0.1).astype(f32),
        # self attention
        "ln1_gamma": jnp.ones((1, D), f32),
        "ln1_beta":  jnp.zeros((1, D), f32),
        "mem_w": (jax.random.normal(ks[3], (D, 2 * D)) * sd).astype(f32),  # W_mem.T
        "qry_w": (jax.random.normal(ks[4], (D, D)) * sd).astype(f32),      # W_query.T
        # FFN
        "ln2_gamma": jnp.ones((1, D), f32),
        "ln2_beta":  jnp.zeros((1, D), f32),
        "ffn1_w": (jax.random.normal(ks[5], (D, D)) * sd).astype(f32),
        "ffn1_b": jnp.zeros((1, D), f32),
        "ffn2_w": (jax.random.normal(ks[6], (D, D)) * sd).astype(f32),
        "ffn2_b": jnp.zeros((1, D), f32),
    }


# ----------------------------------------------------------------------------
# Pure-JAX f32 reference (mirrors the PyTorch forward in eval mode)
# ----------------------------------------------------------------------------
def encoder_block_ref(x_ncl, mask, params, *, num_conv, num_heads, k):
    B, D, L = x_ncl.shape
    x = jnp.transpose(x_ncl, (0, 2, 1)).astype(jnp.float32)
    pos = timing_signal(L, D)[None]
    maskf = mask.astype(jnp.float32)[:, None, None, :]            # (B,1,1,L)
    dh = D // num_heads
    pad = k // 2

    def ln(h, g, b, eps=1e-5):
        mu = jnp.mean(h, -1, keepdims=True)
        var = jnp.mean((h - mu) ** 2, -1, keepdims=True)
        return (h - mu) / jnp.sqrt(var + eps) * g + b

    out = x + pos
    for i in range(num_conv):
        res = out
        h = ln(out, params["lnc_gamma"][i], params["lnc_beta"][i])
        hp = jnp.pad(h, ((0, 0), (pad, pad), (0, 0)))
        acc = sum(hp[:, j:j + L, :] * params["dw_w"][i][j][None, None, :]
                  for j in range(k))
        h = jnp.maximum(
            jnp.einsum("bld,de->ble", acc, params["pw_w"][i]) + params["pw_b"][i], 0.0)
        out = h + res

    res = out
    h = ln(out, params["ln1_gamma"], params["ln1_beta"])
    mem = jnp.einsum("bld,de->ble", h, params["mem_w"])
    q = jnp.einsum("bld,de->ble", h, params["qry_w"])
    K = mem[..., :D].reshape(B, L, num_heads, dh).transpose(0, 2, 1, 3)
    V = mem[..., D:].reshape(B, L, num_heads, dh).transpose(0, 2, 1, 3)
    Q = q.reshape(B, L, num_heads, dh).transpose(0, 2, 1, 3) * dh ** -0.5
    logits = jnp.einsum("bhqd,bhkd->bhqk", Q, K)
    logits = logits * maskf + (1.0 - maskf) * (-1e30)
    w = jax.nn.softmax(logits, axis=-1)
    att = jnp.einsum("bhqk,bhkd->bhqd", w, V).transpose(0, 2, 1, 3).reshape(B, L, D)
    out = att + res

    res = out
    h = ln(out, params["ln2_gamma"], params["ln2_beta"])
    h = jnp.maximum(jnp.einsum("bld,de->ble", h, params["ffn1_w"]) + params["ffn1_b"], 0.0)
    h = jnp.einsum("bld,de->ble", h, params["ffn2_w"]) + params["ffn2_b"]
    out = h + res
    return jnp.transpose(out, (0, 2, 1))


# ----------------------------------------------------------------------------
if __name__ == "__main__":
    B, D, L = 2, 32, 16          # batch, model_dim, sequence length
    num_conv, num_heads, k = 2, 4, 5

    key = jax.random.PRNGKey(0)
    kx, kp = jax.random.split(key, 2)
    x = jax.random.normal(kx, (B, D, L), dtype=jnp.float32)       # PyTorch NCL input
    # mask: batch 0 fully valid, batch 1 has 4 padded positions at the end
    mask = jnp.concatenate(
        [jnp.ones((1, L), jnp.float32),
         jnp.concatenate([jnp.ones((1, L - 4), jnp.float32),
                          jnp.zeros((1, 4), jnp.float32)], axis=1)], axis=0)

    params = init_params(kp, num_conv, D, k)
    prepared = prepare_params(params, num_heads)                  # one-time cast/fuse

    out = encoder_block_forward(x, mask, prepared,
                                num_conv=num_conv, num_heads=num_heads, k=k)
    out = jax.block_until_ready(out)
    assert out.shape == (B, D, L)

    ref = encoder_block_ref(x, mask, params,
                            num_conv=num_conv, num_heads=num_heads, k=k)
    # bf16 MXU operands + approx reciprocal => looser tolerance than pure f32
    np.testing.assert_allclose(np.asarray(out), np.asarray(ref),
                               rtol=3e-2, atol=3e-2)
    print("KERNEL_OK")
</pallas_src>

<mosaic_0001>
module attributes {stable_mosaic.version = 11 : i64} {
  func.func @encoder_block_kernel(%arg0: i32, %arg1: memref<2x16x32xf32, #tpu.memory_space<vmem>>, %arg2: memref<2x1x16xf32, #tpu.memory_space<vmem>>, %arg3: memref<16x32xf32, #tpu.memory_space<vmem>>, %arg4: memref<2x1x32xf32, #tpu.memory_space<vmem>>, %arg5: memref<2x1x32xf32, #tpu.memory_space<vmem>>, %arg6: memref<2x5x32xf32, #tpu.memory_space<vmem>>, %arg7: memref<2x32x32xbf16, #tpu.memory_space<vmem>>, %arg8: memref<2x1x32xf32, #tpu.memory_space<vmem>>, %arg9: memref<1x32xf32, #tpu.memory_space<vmem>>, %arg10: memref<1x32xf32, #tpu.memory_space<vmem>>, %arg11: memref<32x96xbf16, #tpu.memory_space<vmem>>, %arg12: memref<1x32xf32, #tpu.memory_space<vmem>>, %arg13: memref<1x32xf32, #tpu.memory_space<vmem>>, %arg14: memref<32x32xbf16, #tpu.memory_space<vmem>>, %arg15: memref<1x32xf32, #tpu.memory_space<vmem>>, %arg16: memref<32x32xbf16, #tpu.memory_space<vmem>>, %arg17: memref<1x32xf32, #tpu.memory_space<vmem>>, %arg18: memref<2x16x32xf32, #tpu.memory_space<vmem>>) attributes {dimension_semantics = [#tpu.dimension_semantics<parallel>], iteration_bounds = array<i64: 1>, scalar_prefetch = 0 : i64, scratch_operands = 0 : i64, tpu.core_type = #tpu.core_type<tc>, window_params = [{transform_indices = @transform_0, window_bounds = array<i64: 2, 16, 32>}, {transform_indices = @transform_1, window_bounds = array<i64: 2, 1, 16>}, {pipeline_mode = #tpu.pipeline_mode<synchronous>, transform_indices = @transform_2, window_bounds = array<i64: 16, 32>}, {pipeline_mode = #tpu.pipeline_mode<synchronous>, transform_indices = @transform_3, window_bounds = array<i64: 2, 1, 32>}, {pipeline_mode = #tpu.pipeline_mode<synchronous>, transform_indices = @transform_4, window_bounds = array<i64: 2, 1, 32>}, {pipeline_mode = #tpu.pipeline_mode<synchronous>, transform_indices = @transform_5, window_bounds = array<i64: 2, 5, 32>}, {pipeline_mode = #tpu.pipeline_mode<synchronous>, transform_indices = @transform_6, window_bounds = array<i64: 2, 32, 32>}, {pipeline_mode = #tpu.pipeline_mode<synchronous>, transform_indices = @transform_7, window_bounds = array<i64: 2, 1, 32>}, {pipeline_mode = #tpu.pipeline_mode<synchronous>, transform_indices = @transform_8, window_bounds = array<i64: 1, 32>}, {pipeline_mode = #tpu.pipeline_mode<synchronous>, transform_indices = @transform_9, window_bounds = array<i64: 1, 32>}, {pipeline_mode = #tpu.pipeline_mode<synchronous>, transform_indices = @transform_10, window_bounds = array<i64: 32, 96>}, {pipeline_mode = #tpu.pipeline_mode<synchronous>, transform_indices = @transform_11, window_bounds = array<i64: 1, 32>}, {pipeline_mode = #tpu.pipeline_mode<synchronous>, transform_indices = @transform_12, window_bounds = array<i64: 1, 32>}, {pipeline_mode = #tpu.pipeline_mode<synchronous>, transform_indices = @transform_13, window_bounds = array<i64: 32, 32>}, {pipeline_mode = #tpu.pipeline_mode<synchronous>, transform_indices = @transform_14, window_bounds = array<i64: 1, 32>}, {pipeline_mode = #tpu.pipeline_mode<synchronous>, transform_indices = @transform_15, window_bounds = array<i64: 32, 32>}, {pipeline_mode = #tpu.pipeline_mode<synchronous>, transform_indices = @transform_16, window_bounds = array<i64: 1, 32>}, {transform_indices = @transform_17, window_bounds = array<i64: 2, 16, 32>}]} {
    %c0 = arith.constant 0 : index
    %c0_0 = arith.constant 0 : index
    %c0_1 = arith.constant 0 : index
    %0 = vector.load %arg1[%c0, %c0_0, %c0_1] : memref<2x16x32xf32, #tpu.memory_space<vmem>>, vector<2x16x32xf32>
    %c0_2 = arith.constant 0 : index
    %c0_3 = arith.constant 0 : index
    %1 = vector.load %arg3[%c0_2, %c0_3] : memref<16x32xf32, #tpu.memory_space<vmem>>, vector<16x32xf32>
    %2 = vector.shape_cast %1 : vector<16x32xf32> to vector<1x16x32xf32>
    %3 = vector.broadcast %2 : vector<1x16x32xf32> to vector<2x16x32xf32>
    %4 = arith.addf %0, %3 : vector<2x16x32xf32>
    %5 = vector.shape_cast %4 : vector<2x16x32xf32> to vector<32x32xf32>
    %6 = tpu.iota {dimensions = array<i32: 0>} : vector<32x1xi32>
    %c16_i32 = arith.constant 16 : i32
    %c0_i32 = arith.constant 0 : i32
    %7 = arith.cmpi eq, %c16_i32, %c0_i32 : i32
    %c1_i32 = arith.constant 1 : i32
    %8 = arith.select %7, %c1_i32, %c16_i32 : i32
    %9 = vector.broadcast %8 : i32 to vector<32x1xi32>
    %10 = arith.remsi %6, %9 : vector<32x1xi32>
    %c0_i32_4 = arith.constant 0 : i32
    %11 = vector.broadcast %c0_i32_4 : i32 to vector<32x1xi32>
    %12 = arith.cmpi ne, %10, %11 : vector<32x1xi32>
    %c0_i32_5 = arith.constant 0 : i32
    %13 = vector.broadcast %c0_i32_5 : i32 to vector<32x1xi32>
    %14 = arith.cmpi slt, %10, %13 : vector<32x1xi32>
    %c0_i32_6 = arith.constant 0 : i32
    %15 = arith.cmpi slt, %8, %c0_i32_6 : i32
    %16 = vector.broadcast %15 : i1 to vector<32x1xi1>
    %17 = vector.broadcast %16 : vector<32x1xi1> to vector<32x1xi1>
    %18 = arith.xori %14, %17 : vector<32x1xi1>
    %19 = arith.andi %18, %12 : vector<32x1xi1>
    %20 = vector.broadcast %8 : i32 to vector<32x1xi32>
    %21 = arith.addi %10, %20 : vector<32x1xi32>
    %22 = arith.select %19, %21, %10 : vector<32x1xi1>, vector<32x1xi32>
    %c2_i32 = arith.constant 2 : i32
    %23 = vector.broadcast %c2_i32 : i32 to vector<32x1xi32>
    %24 = arith.cmpi sge, %22, %23 : vector<32x1xi32>
    %25 = arith.extui %24 : vector<32x1xi1> to vector<32x1xi32>
    %26 = arith.sitofp %25 : vector<32x1xi32> to vector<32x1xf32>
    %c1_i32_7 = arith.constant 1 : i32
    %27 = vector.broadcast %c1_i32_7 : i32 to vector<32x1xi32>
    %28 = arith.cmpi sge, %22, %27 : vector<32x1xi32>
    %29 = arith.extui %28 : vector<32x1xi1> to vector<32x1xi32>
    %30 = arith.sitofp %29 : vector<32x1xi32> to vector<32x1xf32>
    %c15_i32 = arith.constant 15 : i32
    %31 = vector.broadcast %c15_i32 : i32 to vector<32x1xi32>
    %32 = arith.cmpi slt, %22, %31 : vector<32x1xi32>
    %33 = arith.extui %32 : vector<32x1xi1> to vector<32x1xi32>
    %34 = arith.sitofp %33 : vector<32x1xi32> to vector<32x1xf32>
    %c14_i32 = arith.constant 14 : i32
    %35 = vector.broadcast %c14_i32 : i32 to vector<32x1xi32>
    %36 = arith.cmpi slt, %22, %35 : vector<32x1xi32>
    %37 = arith.extui %36 : vector<32x1xi1> to vector<32x1xi32>
    %38 = arith.sitofp %37 : vector<32x1xi32> to vector<32x1xf32>
    %c0_8 = arith.constant 0 : index
    %c0_9 = arith.constant 0 : index
    %c0_10 = arith.constant 0 : index
    %39 = vector.load %arg4[%c0_8, %c0_9, %c0_10] : memref<2x1x32xf32, #tpu.memory_space<vmem>>, vector<1x1x32xf32>
    %40 = vector.shape_cast %39 : vector<1x1x32xf32> to vector<1x32xf32>
    %c0_11 = arith.constant 0 : index
    %c0_12 = arith.constant 0 : index
    %c0_13 = arith.constant 0 : index
    %41 = vector.load %arg5[%c0_11, %c0_12, %c0_13] : memref<2x1x32xf32, #tpu.memory_space<vmem>>, vector<1x1x32xf32>
    %42 = vector.shape_cast %41 : vector<1x1x32xf32> to vector<1x32xf32>
    %cst = arith.constant dense<0.000000e+00> : vector<32xf32>
    %43 = vector.multi_reduction <add>, %5, %cst [1] : vector<32x32xf32> to vector<32xf32>
    %44 = vector.shape_cast %43 : vector<32xf32> to vector<32x1xf32>
    %cst_14 = arith.constant 3.200000e+01 : f32
    %45 = vector.broadcast %cst_14 : f32 to vector<32x1xf32>
    %46 = arith.divf %44, %45 : vector<32x1xf32>
    %47 = vector.broadcast %46 : vector<32x1xf32> to vector<32x32xf32>
    %48 = arith.subf %5, %47 : vector<32x32xf32>
    %49 = arith.mulf %48, %48 : vector<32x32xf32>
    %cst_15 = arith.constant dense<0.000000e+00> : vector<32xf32>
    %50 = vector.multi_reduction <add>, %49, %cst_15 [1] : vector<32x32xf32> to vector<32xf32>
    %51 = vector.shape_cast %50 : vector<32xf32> to vector<32x1xf32>
    %cst_16 = arith.constant 3.200000e+01 : f32
    %52 = vector.broadcast %cst_16 : f32 to vector<32x1xf32>
    %53 = arith.divf %51, %52 : vector<32x1xf32>
    %54 = vector.broadcast %46 : vector<32x1xf32> to vector<32x32xf32>
    %55 = arith.subf %5, %54 : vector<32x32xf32>
    %cst_17 = arith.constant 9.99999974E-6 : f32
    %56 = vector.broadcast %cst_17 : f32 to vector<32x1xf32>
    %57 = arith.addf %53, %56 : vector<32x1xf32>
    %58 = math.rsqrt %57 : vector<32x1xf32>
    %59 = vector.broadcast %58 : vector<32x1xf32> to vector<32x32xf32>
    %60 = arith.mulf %55, %59 : vector<32x32xf32>
    %61 = vector.broadcast %40 : vector<1x32xf32> to vector<32x32xf32>
    %62 = arith.mulf %60, %61 : vector<32x32xf32>
    %63 = vector.broadcast %42 : vector<1x32xf32> to vector<32x32xf32>
    %64 = arith.addf %62, %63 : vector<32x32xf32>
    %c0_18 = arith.constant 0 : index
    %c0_19 = arith.constant 0 : index
    %c0_20 = arith.constant 0 : index
    %65 = vector.load %arg6[%c0_18, %c0_19, %c0_20] : memref<2x5x32xf32, #tpu.memory_space<vmem>>, vector<1x5x32xf32>
    %66 = vector.shape_cast %65 : vector<1x5x32xf32> to vector<5x32xf32>
    %67 = vector.extract_strided_slice %66 {offsets = [2, 0], sizes = [1, 32], strides = [1, 1]} : vector<5x32xf32> to vector<1x32xf32>
    %68 = vector.broadcast %67 : vector<1x32xf32> to vector<32x32xf32>
    %69 = arith.mulf %64, %68 : vector<32x32xf32>
    %c2_i32_21 = arith.constant 2 : i32
    %70 = tpu.dynamic_rotate %64 by %c2_i32_21 dim 0 : vector<32x32xf32>, i32 -> vector<32x32xf32>
    %71 = vector.extract_strided_slice %66 {offsets = [0, 0], sizes = [1, 32], strides = [1, 1]} : vector<5x32xf32> to vector<1x32xf32>
    %72 = vector.broadcast %71 : vector<1x32xf32> to vector<32x32xf32>
    %73 = arith.mulf %70, %72 : vector<32x32xf32>
    %74 = vector.broadcast %26 : vector<32x1xf32> to vector<32x32xf32>
    %75 = arith.mulf %73, %74 : vector<32x32xf32>
    %76 = arith.addf %69, %75 : vector<32x32xf32>
    %c1_i32_22 = arith.constant 1 : i32
    %77 = tpu.dynamic_rotate %64 by %c1_i32_22 dim 0 : vector<32x32xf32>, i32 -> vector<32x32xf32>
    %78 = vector.extract_strided_slice %66 {offsets = [1, 0], sizes = [1, 32], strides = [1, 1]} : vector<5x32xf32> to vector<1x32xf32>
    %79 = vector.broadcast %78 : vector<1x32xf32> to vector<32x32xf32>
    %80 = arith.mulf %77, %79 : vector<32x32xf32>
    %81 = vector.broadcast %30 : vector<32x1xf32> to vector<32x32xf32>
    %82 = arith.mulf %80, %81 : vector<32x32xf32>
    %83 = arith.addf %76, %82 : vector<32x32xf32>
    %c31_i32 = arith.constant 31 : i32
    %84 = tpu.dynamic_rotate %64 by %c31_i32 dim 0 : vector<32x32xf32>, i32 -> vector<32x32xf32>
    %85 = vector.extract_strided_slice %66 {offsets = [3, 0], sizes = [1, 32], strides = [1, 1]} : vector<5x32xf32> to vector<1x32xf32>
    %86 = vector.broadcast %85 : vector<1x32xf32> to vector<32x32xf32>
    %87 = arith.mulf %84, %86 : vector<32x32xf32>
    %88 = vector.broadcast %34 : vector<32x1xf32> to vector<32x32xf32>
    %89 = arith.mulf %87, %88 : vector<32x32xf32>
    %90 = arith.addf %83, %89 : vector<32x32xf32>
    %c30_i32 = arith.constant 30 : i32
    %91 = tpu.dynamic_rotate %64 by %c30_i32 dim 0 : vector<32x32xf32>, i32 -> vector<32x32xf32>
    %92 = vector.extract_strided_slice %66 {offsets = [4, 0], sizes = [1, 32], strides = [1, 1]} : vector<5x32xf32> to vector<1x32xf32>
    %93 = vector.broadcast %92 : vector<1x32xf32> to vector<32x32xf32>
    %94 = arith.mulf %91, %93 : vector<32x32xf32>
    %95 = vector.broadcast %38 : vector<32x1xf32> to vector<32x32xf32>
    %96 = arith.mulf %94, %95 : vector<32x32xf32>
    %97 = arith.addf %90, %96 : vector<32x32xf32>
    %98 = arith.truncf %97 : vector<32x32xf32> to vector<32x32xbf16>
    %c0_23 = arith.constant 0 : index
    %c0_24 = arith.constant 0 : index
    %c0_25 = arith.constant 0 : index
    %99 = vector.load %arg7[%c0_23, %c0_24, %c0_25] : memref<2x32x32xbf16, #tpu.memory_space<vmem>>, vector<1x32x32xbf16>
    %100 = vector.shape_cast %99 : vector<1x32x32xbf16> to vector<32x32xbf16>
    %cst_26 = arith.constant dense<0.000000e+00> : vector<32x32xf32>
    %101 = tpu.matmul %98, %100, %cst_26 {dimension_numbers = #tpu.dot_dimension_numbers<[1], [0], [0], [1], [0, 0, 1, 1], [], []>} : vector<32x32xbf16>, vector<32x32xbf16>, vector<32x32xf32> -> vector<32x32xf32>
    %c0_27 = arith.constant 0 : index
    %c0_28 = arith.constant 0 : index
    %c0_29 = arith.constant 0 : index
    %102 = vector.load %arg8[%c0_27, %c0_28, %c0_29] : memref<2x1x32xf32, #tpu.memory_space<vmem>>, vector<1x1x32xf32>
    %103 = vector.shape_cast %102 : vector<1x1x32xf32> to vector<1x32xf32>
    %104 = vector.broadcast %103 : vector<1x32xf32> to vector<32x32xf32>
    %105 = arith.addf %101, %104 : vector<32x32xf32>
    %cst_30 = arith.constant 0.000000e+00 : f32
    %106 = vector.broadcast %cst_30 : f32 to vector<32x32xf32>
    %107 = arith.maximumf %105, %106 : vector<32x32xf32>
    %108 = arith.addf %107, %5 : vector<32x32xf32>
    %c1 = arith.constant 1 : index
    %c0_31 = arith.constant 0 : index
    %c0_32 = arith.constant 0 : index
    %109 = vector.load %arg4[%c1, %c0_31, %c0_32] : memref<2x1x32xf32, #tpu.memory_space<vmem>>, vector<1x1x32xf32>
    %110 = vector.shape_cast %109 : vector<1x1x32xf32> to vector<1x32xf32>
    %c1_33 = arith.constant 1 : index
    %c0_34 = arith.constant 0 : index
    %c0_35 = arith.constant 0 : index
    %111 = vector.load %arg5[%c1_33, %c0_34, %c0_35] : memref<2x1x32xf32, #tpu.memory_space<vmem>>, vector<1x1x32xf32>
    %112 = vector.shape_cast %111 : vector<1x1x32xf32> to vector<1x32xf32>
    %cst_36 = arith.constant dense<0.000000e+00> : vector<32xf32>
    %113 = vector.multi_reduction <add>, %108, %cst_36 [1] : vector<32x32xf32> to vector<32xf32>
    %114 = vector.shape_cast %113 : vector<32xf32> to vector<32x1xf32>
    %cst_37 = arith.constant 3.200000e+01 : f32
    %115 = vector.broadcast %cst_37 : f32 to vector<32x1xf32>
    %116 = arith.divf %114, %115 : vector<32x1xf32>
    %117 = vector.broadcast %116 : vector<32x1xf32> to vector<32x32xf32>
    %118 = arith.subf %108, %117 : vector<32x32xf32>
    %119 = arith.mulf %118, %118 : vector<32x32xf32>
    %cst_38 = arith.constant dense<0.000000e+00> : vector<32xf32>
    %120 = vector.multi_reduction <add>, %119, %cst_38 [1] : vector<32x32xf32> to vector<32xf32>
    %121 = vector.shape_cast %120 : vector<32xf32> to vector<32x1xf32>
    %cst_39 = arith.constant 3.200000e+01 : f32
    %122 = vector.broadcast %cst_39 : f32 to vector<32x1xf32>
    %123 = arith.divf %121, %122 : vector<32x1xf32>
    %124 = vector.broadcast %116 : vector<32x1xf32> to vector<32x32xf32>
    %125 = arith.subf %108, %124 : vector<32x32xf32>
    %cst_40 = arith.constant 9.99999974E-6 : f32
    %126 = vector.broadcast %cst_40 : f32 to vector<32x1xf32>
    %127 = arith.addf %123, %126 : vector<32x1xf32>
    %128 = math.rsqrt %127 : vector<32x1xf32>
    %129 = vector.broadcast %128 : vector<32x1xf32> to vector<32x32xf32>
    %130 = arith.mulf %125, %129 : vector<32x32xf32>
    %131 = vector.broadcast %110 : vector<1x32xf32> to vector<32x32xf32>
    %132 = arith.mulf %130, %131 : vector<32x32xf32>
    %133 = vector.broadcast %112 : vector<1x32xf32> to vector<32x32xf32>
    %134 = arith.addf %132, %133 : vector<32x32xf32>
    %c1_41 = arith.constant 1 : index
    %c0_42 = arith.constant 0 : index
    %c0_43 = arith.constant 0 : index
    %135 = vector.load %arg6[%c1_41, %c0_42, %c0_43] : memref<2x5x32xf32, #tpu.memory_space<vmem>>, vector<1x5x32xf32>
    %136 = vector.shape_cast %135 : vector<1x5x32xf32> to vector<5x32xf32>
    %137 = vector.extract_strided_slice %136 {offsets = [2, 0], sizes = [1, 32], strides = [1, 1]} : vector<5x32xf32> to vector<1x32xf32>
    %138 = vector.broadcast %137 : vector<1x32xf32> to vector<32x32xf32>
    %139 = arith.mulf %134, %138 : vector<32x32xf32>
    %c2_i32_44 = arith.constant 2 : i32
    %140 = tpu.dynamic_rotate %134 by %c2_i32_44 dim 0 : vector<32x32xf32>, i32 -> vector<32x32xf32>
    %141 = vector.extract_strided_slice %136 {offsets = [0, 0], sizes = [1, 32], strides = [1, 1]} : vector<5x32xf32> to vector<1x32xf32>
    %142 = vector.broadcast %141 : vector<1x32xf32> to vector<32x32xf32>
    %143 = arith.mulf %140, %142 : vector<32x32xf32>
    %144 = vector.broadcast %26 : vector<32x1xf32> to vector<32x32xf32>
    %145 = arith.mulf %143, %144 : vector<32x32xf32>
    %146 = arith.addf %139, %145 : vector<32x32xf32>
    %c1_i32_45 = arith.constant 1 : i32
    %147 = tpu.dynamic_rotate %134 by %c1_i32_45 dim 0 : vector<32x32xf32>, i32 -> vector<32x32xf32>
    %148 = vector.extract_strided_slice %136 {offsets = [1, 0], sizes = [1, 32], strides = [1, 1]} : vector<5x32xf32> to vector<1x32xf32>
    %149 = vector.broadcast %148 : vector<1x32xf32> to vector<32x32xf32>
    %150 = arith.mulf %147, %149 : vector<32x32xf32>
    %151 = vector.broadcast %30 : vector<32x1xf32> to vector<32x32xf32>
    %152 = arith.mulf %150, %151 : vector<32x32xf32>
    %153 = arith.addf %146, %152 : vector<32x32xf32>
    %c31_i32_46 = arith.constant 31 : i32
    %154 = tpu.dynamic_rotate %134 by %c31_i32_46 dim 0 : vector<32x32xf32>, i32 -> vector<32x32xf32>
    %155 = vector.extract_strided_slice %136 {offsets = [3, 0], sizes = [1, 32], strides = [1, 1]} : vector<5x32xf32> to vector<1x32xf32>
    %156 = vector.broadcast %155 : vector<1x32xf32> to vector<32x32xf32>
    %157 = arith.mulf %154, %156 : vector<32x32xf32>
    %158 = vector.broadcast %34 : vector<32x1xf32> to vector<32x32xf32>
    %159 = arith.mulf %157, %158 : vector<32x32xf32>
    %160 = arith.addf %153, %159 : vector<32x32xf32>
    %c30_i32_47 = arith.constant 30 : i32
    %161 = tpu.dynamic_rotate %134 by %c30_i32_47 dim 0 : vector<32x32xf32>, i32 -> vector<32x32xf32>
    %162 = vector.extract_strided_slice %136 {offsets = [4, 0], sizes = [1, 32], strides = [1, 1]} : vector<5x32xf32> to vector<1x32xf32>
    %163 = vector.broadcast %162 : vector<1x32xf32> to vector<32x32xf32>
    %164 = arith.mulf %161, %163 : vector<32x32xf32>
    %165 = vector.broadcast %38 : vector<32x1xf32> to vector<32x32xf32>
    %166 = arith.mulf %164, %165 : vector<32x32xf32>
    %167 = arith.addf %160, %166 : vector<32x32xf32>
    %168 = arith.truncf %167 : vector<32x32xf32> to vector<32x32xbf16>
    %c1_48 = arith.constant 1 : index
    %c0_49 = arith.constant 0 : index
    %c0_50 = arith.constant 0 : index
    %169 = vector.load %arg7[%c1_48, %c0_49, %c0_50] : memref<2x32x32xbf16, #tpu.memory_space<vmem>>, vector<1x32x32xbf16>
    %170 = vector.shape_cast %169 : vector<1x32x32xbf16> to vector<32x32xbf16>
    %cst_51 = arith.constant dense<0.000000e+00> : vector<32x32xf32>
    %171 = tpu.matmul %168, %170, %cst_51 {dimension_numbers = #tpu.dot_dimension_numbers<[1], [0], [0], [1], [0, 0, 1, 1], [], []>} : vector<32x32xbf16>, vector<32x32xbf16>, vector<32x32xf32> -> vector<32x32xf32>
    %c1_52 = arith.constant 1 : index
    %c0_53 = arith.constant 0 : index
    %c0_54 = arith.constant 0 : index
    %172 = vector.load %arg8[%c1_52, %c0_53, %c0_54] : memref<2x1x32xf32, #tpu.memory_space<vmem>>, vector<1x1x32xf32>
    %173 = vector.shape_cast %172 : vector<1x1x32xf32> to vector<1x32xf32>
    %174 = vector.broadcast %173 : vector<1x32xf32> to vector<32x32xf32>
    %175 = arith.addf %171, %174 : vector<32x32xf32>
    %cst_55 = arith.constant 0.000000e+00 : f32
    %176 = vector.broadcast %cst_55 : f32 to vector<32x32xf32>
    %177 = arith.maximumf %175, %176 : vector<32x32xf32>
    %178 = arith.addf %177, %108 : vector<32x32xf32>
    %c0_56 = arith.constant 0 : index
    %c0_57 = arith.constant 0 : index
    %179 = vector.load %arg9[%c0_56, %c0_57] : memref<1x32xf32, #tpu.memory_space<vmem>>, vector<1x32xf32>
    %c0_58 = arith.constant 0 : index
    %c0_59 = arith.constant 0 : index
    %180 = vector.load %arg10[%c0_58, %c0_59] : memref<1x32xf32, #tpu.memory_space<vmem>>, vector<1x32xf32>
    %cst_60 = arith.constant dense<0.000000e+00> : vector<32xf32>
    %181 = vector.multi_reduction <add>, %178, %cst_60 [1] : vector<32x32xf32> to vector<32xf32>
    %182 = vector.shape_cast %181 : vector<32xf32> to vector<32x1xf32>
    %cst_61 = arith.constant 3.200000e+01 : f32
    %183 = vector.broadcast %cst_61 : f32 to vector<32x1xf32>
    %184 = arith.divf %182, %183 : vector<32x1xf32>
    %185 = vector.broadcast %184 : vector<32x1xf32> to vector<32x32xf32>
    %186 = arith.subf %178, %185 : vector<32x32xf32>
    %187 = arith.mulf %186, %186 : vector<32x32xf32>
    %cst_62 = arith.constant dense<0.000000e+00> : vector<32xf32>
    %188 = vector.multi_reduction <add>, %187, %cst_62 [1] : vector<32x32xf32> to vector<32xf32>
    %189 = vector.shape_cast %188 : vector<32xf32> to vector<32x1xf32>
    %cst_63 = arith.constant 3.200000e+01 : f32
    %190 = vector.broadcast %cst_63 : f32 to vector<32x1xf32>
    %191 = arith.divf %189, %190 : vector<32x1xf32>
    %192 = vector.broadcast %184 : vector<32x1xf32> to vector<32x32xf32>
    %193 = arith.subf %178, %192 : vector<32x32xf32>
    %cst_64 = arith.constant 9.99999974E-6 : f32
    %194 = vector.broadcast %cst_64 : f32 to vector<32x1xf32>
    %195 = arith.addf %191, %194 : vector<32x1xf32>
    %196 = math.rsqrt %195 : vector<32x1xf32>
    %197 = vector.broadcast %196 : vector<32x1xf32> to vector<32x32xf32>
    %198 = arith.mulf %193, %197 : vector<32x32xf32>
    %199 = vector.broadcast %179 : vector<1x32xf32> to vector<32x32xf32>
    %200 = arith.mulf %198, %199 : vector<32x32xf32>
    %201 = vector.broadcast %180 : vector<1x32xf32> to vector<32x32xf32>
    %202 = arith.addf %200, %201 : vector<32x32xf32>
    %203 = arith.truncf %202 : vector<32x32xf32> to vector<32x32xbf16>
    %c0_65 = arith.constant 0 : index
    %c0_66 = arith.constant 0 : index
    %204 = vector.load %arg11[%c0_65, %c0_66] : memref<32x96xbf16, #tpu.memory_space<vmem>>, vector<32x96xbf16>
    %cst_67 = arith.constant dense<0.000000e+00> : vector<32x96xf32>
    %205 = tpu.matmul %203, %204, %cst_67 {dimension_numbers = #tpu.dot_dimension_numbers<[1], [0], [0], [1], [0, 0, 1, 1], [], []>} : vector<32x32xbf16>, vector<32x96xbf16>, vector<32x96xf32> -> vector<32x96xf32>
    %206 = arith.truncf %205 : vector<32x96xf32> to vector<32x96xbf16>
    %207 = vector.extract_strided_slice %206 {offsets = [0, 0], sizes = [16, 96], strides = [1, 1]} : vector<32x96xbf16> to vector<16x96xbf16>
    %c0_68 = arith.constant 0 : index
    %c0_69 = arith.constant 0 : index
    %c0_70 = arith.constant 0 : index
    %208 = vector.load %arg2[%c0_68, %c0_69, %c0_70] : memref<2x1x16xf32, #tpu.memory_space<vmem>>, vector<1x1x16xf32>
    %209 = vector.shape_cast %208 : vector<1x1x16xf32> to vector<1x16xf32>
    %cst_71 = arith.constant 1.000000e+00 : f32
    %210 = vector.broadcast %cst_71 : f32 to vector<1x16xf32>
    %211 = arith.subf %210, %209 : vector<1x16xf32>
    %cst_72 = arith.constant -1.000000e+30 : f32
    %212 = vector.broadcast %cst_72 : f32 to vector<1x16xf32>
    %213 = arith.mulf %211, %212 : vector<1x16xf32>
    %214 = vector.extract_strided_slice %207 {offsets = [0, 0], sizes = [16, 8], strides = [1, 1]} : vector<16x96xbf16> to vector<16x8xbf16>
    %215 = vector.extract_strided_slice %207 {offsets = [0, 8], sizes = [16, 8], strides = [1, 1]} : vector<16x96xbf16> to vector<16x8xbf16>
    %216 = vector.extract_strided_slice %207 {offsets = [0, 16], sizes = [16, 8], strides = [1, 1]} : vector<16x96xbf16> to vector<16x8xbf16>
    %217 = vector.extract_strided_slice %207 {offsets = [0, 24], sizes = [16, 8], strides = [1, 1]} : vector<16x96xbf16> to vector<16x8xbf16>
    %218 = vector.shape_cast %214 : vector<16x8xbf16> to vector<1x16x8xbf16>
    %219 = vector.shape_cast %215 : vector<16x8xbf16> to vector<1x16x8xbf16>
    %220 = vector.shape_cast %216 : vector<16x8xbf16> to vector<1x16x8xbf16>
    %221 = vector.shape_cast %217 : vector<16x8xbf16> to vector<1x16x8xbf16>
    %222 = tpu.concatenate %218, %219, %220, %221 in 0 : vector<1x16x8xbf16>, vector<1x16x8xbf16>, vector<1x16x8xbf16>, vector<1x16x8xbf16> -> vector<4x16x8xbf16>
    %223 = vector.extract_strided_slice %207 {offsets = [0, 32], sizes = [16, 8], strides = [1, 1]} : vector<16x96xbf16> to vector<16x8xbf16>
    %224 = vector.extract_strided_slice %207 {offsets = [0, 40], sizes = [16, 8], strides = [1, 1]} : vector<16x96xbf16> to vector<16x8xbf16>
    %225 = vector.extract_strided_slice %207 {offsets = [0, 48], sizes = [16, 8], strides = [1, 1]} : vector<16x96xbf16> to vector<16x8xbf16>
    %226 = vector.extract_strided_slice %207 {offsets = [0, 56], sizes = [16, 8], strides = [1, 1]} : vector<16x96xbf16> to vector<16x8xbf16>
    %227 = vector.shape_cast %223 : vector<16x8xbf16> to vector<1x16x8xbf16>
    %228 = vector.shape_cast %224 : vector<16x8xbf16> to vector<1x16x8xbf16>
    %229 = vector.shape_cast %225 : vector<16x8xbf16> to vector<1x16x8xbf16>
    %230 = vector.shape_cast %226 : vector<16x8xbf16> to vector<1x16x8xbf16>
    %231 = tpu.concatenate %227, %228, %229, %230 in 0 : vector<1x16x8xbf16>, vector<1x16x8xbf16>, vector<1x16x8xbf16>, vector<1x16x8xbf16> -> vector<4x16x8xbf16>
    %232 = vector.extract_strided_slice %207 {offsets = [0, 64], sizes = [16, 8], strides = [1, 1]} : vector<16x96xbf16> to vector<16x8xbf16>
    %233 = vector.extract_strided_slice %207 {offsets = [0, 72], sizes = [16, 8], strides = [1, 1]} : vector<16x96xbf16> to vector<16x8xbf16>
    %234 = vector.extract_strided_slice %207 {offsets = [0, 80], sizes = [16, 8], strides = [1, 1]} : vector<16x96xbf16> to vector<16x8xbf16>
    %235 = vector.extract_strided_slice %207 {offsets = [0, 88], sizes = [16, 8], strides = [1, 1]} : vector<16x96xbf16> to vector<16x8xbf16>
    %236 = vector.shape_cast %232 : vector<16x8xbf16> to vector<1x16x8xbf16>
    %237 = vector.shape_cast %233 : vector<16x8xbf16> to vector<1x16x8xbf16>
    %238 = vector.shape_cast %234 : vector<16x8xbf16> to vector<1x16x8xbf16>
    %239 = vector.shape_cast %235 : vector<16x8xbf16> to vector<1x16x8xbf16>
    %240 = tpu.concatenate %236, %237, %238, %239 in 0 : vector<1x16x8xbf16>, vector<1x16x8xbf16>, vector<1x16x8xbf16>, vector<1x16x8xbf16> -> vector<4x16x8xbf16>
    %cst_73 = arith.constant dense<0.000000e+00> : vector<4x16x16xf32>
    %241 = tpu.matmul %222, %231, %cst_73 {dimension_numbers = #tpu.dot_dimension_numbers<[2], [2], [1], [1], [0, 0, 0, 1, 1, 1], [0], [0]>} : vector<4x16x8xbf16>, vector<4x16x8xbf16>, vector<4x16x16xf32> -> vector<4x16x16xf32>
    %242 = vector.shape_cast %209 : vector<1x16xf32> to vector<1x1x16xf32>
    %243 = vector.broadcast %242 : vector<1x1x16xf32> to vector<4x16x16xf32>
    %244 = arith.mulf %241, %243 : vector<4x16x16xf32>
    %245 = vector.shape_cast %213 : vector<1x16xf32> to vector<1x1x16xf32>
    %246 = vector.broadcast %245 : vector<1x1x16xf32> to vector<4x16x16xf32>
    %247 = arith.addf %244, %246 : vector<4x16x16xf32>
    %cst_74 = arith.constant dense<0xFF800000> : vector<4x16xf32>
    %248 = vector.multi_reduction <maximumf>, %247, %cst_74 [2] : vector<4x16x16xf32> to vector<4x16xf32>
    %249 = vector.shape_cast %248 : vector<4x16xf32> to vector<4x16x1xf32>
    %250 = vector.broadcast %249 : vector<4x16x1xf32> to vector<4x16x16xf32>
    %251 = arith.subf %247, %250 : vector<4x16x16xf32>
    %252 = math.exp %251 : vector<4x16x16xf32>
    %cst_75 = arith.constant dense<0.000000e+00> : vector<4x16xf32>
    %253 = vector.multi_reduction <add>, %252, %cst_75 [2] : vector<4x16x16xf32> to vector<4x16xf32>
    %254 = vector.shape_cast %253 : vector<4x16xf32> to vector<4x16x1xf32>
    %255 = tpu.reciprocal %254 {approx = true} : vector<4x16x1xf32> -> vector<4x16x1xf32>
    %256 = vector.broadcast %255 : vector<4x16x1xf32> to vector<4x16x16xf32>
    %257 = arith.mulf %252, %256 : vector<4x16x16xf32>
    %258 = arith.truncf %257 : vector<4x16x16xf32> to vector<4x16x16xbf16>
    %cst_76 = arith.constant dense<0.000000e+00> : vector<4x16x8xf32>
    %259 = tpu.matmul %258, %240, %cst_76 {dimension_numbers = #tpu.dot_dimension_numbers<[2], [1], [1], [2], [0, 0, 0, 1, 1, 2], [0], [0]>} : vector<4x16x16xbf16>, vector<4x16x8xbf16>, vector<4x16x8xf32> -> vector<4x16x8xf32>
    %260 = vector.extract_strided_slice %259 {offsets = [0, 0, 0], sizes = [1, 16, 8], strides = [1, 1, 1]} : vector<4x16x8xf32> to vector<1x16x8xf32>
    %261 = vector.shape_cast %260 : vector<1x16x8xf32> to vector<16x8xf32>
    %262 = vector.extract_strided_slice %259 {offsets = [1, 0, 0], sizes = [1, 16, 8], strides = [1, 1, 1]} : vector<4x16x8xf32> to vector<1x16x8xf32>
    %263 = vector.shape_cast %262 : vector<1x16x8xf32> to vector<16x8xf32>
    %264 = vector.extract_strided_slice %259 {offsets = [2, 0, 0], sizes = [1, 16, 8], strides = [1, 1, 1]} : vector<4x16x8xf32> to vector<1x16x8xf32>
    %265 = vector.shape_cast %264 : vector<1x16x8xf32> to vector<16x8xf32>
    %266 = vector.extract_strided_slice %259 {offsets = [3, 0, 0], sizes = [1, 16, 8], strides = [1, 1, 1]} : vector<4x16x8xf32> to vector<1x16x8xf32>
    %267 = vector.shape_cast %266 : vector<1x16x8xf32> to vector<16x8xf32>
    %268 = tpu.concatenate %261, %263, %265, %267 in 1 : vector<16x8xf32>, vector<16x8xf32>, vector<16x8xf32>, vector<16x8xf32> -> vector<16x32xf32>
    %269 = vector.extract_strided_slice %206 {offsets = [16, 0], sizes = [16, 96], strides = [1, 1]} : vector<32x96xbf16> to vector<16x96xbf16>
    %c1_77 = arith.constant 1 : index
    %c0_78 = arith.constant 0 : index
    %c0_79 = arith.constant 0 : index
    %270 = vector.load %arg2[%c1_77, %c0_78, %c0_79] : memref<2x1x16xf32, #tpu.memory_space<vmem>>, vector<1x1x16xf32>
    %271 = vector.shape_cast %270 : vector<1x1x16xf32> to vector<1x16xf32>
    %cst_80 = arith.constant 1.000000e+00 : f32
    %272 = vector.broadcast %cst_80 : f32 to vector<1x16xf32>
    %273 = arith.subf %272, %271 : vector<1x16xf32>
    %cst_81 = arith.constant -1.000000e+30 : f32
    %274 = vector.broadcast %cst_81 : f32 to vector<1x16xf32>
    %275 = arith.mulf %273, %274 : vector<1x16xf32>
    %276 = vector.extract_strided_slice %269 {offsets = [0, 0], sizes = [16, 8], strides = [1, 1]} : vector<16x96xbf16> to vector<16x8xbf16>
    %277 = vector.extract_strided_slice %269 {offsets = [0, 8], sizes = [16, 8], strides = [1, 1]} : vector<16x96xbf16> to vector<16x8xbf16>
    %278 = vector.extract_strided_slice %269 {offsets = [0, 16], sizes = [16, 8], strides = [1, 1]} : vector<16x96xbf16> to vector<16x8xbf16>
    %279 = vector.extract_strided_slice %269 {offsets = [0, 24], sizes = [16, 8], strides = [1, 1]} : vector<16x96xbf16> to vector<16x8xbf16>
    %280 = vector.shape_cast %276 : vector<16x8xbf16> to vector<1x16x8xbf16>
    %281 = vector.shape_cast %277 : vector<16x8xbf16> to vector<1x16x8xbf16>
    %282 = vector.shape_cast %278 : vector<16x8xbf16> to vector<1x16x8xbf16>
    %283 = vector.shape_cast %279 : vector<16x8xbf16> to vector<1x16x8xbf16>
    %284 = tpu.concatenate %280, %281, %282, %283 in 0 : vector<1x16x8xbf16>, vector<1x16x8xbf16>, vector<1x16x8xbf16>, vector<1x16x8xbf16> -> vector<4x16x8xbf16>
    %285 = vector.extract_strided_slice %269 {offsets = [0, 32], sizes = [16, 8], strides = [1, 1]} : vector<16x96xbf16> to vector<16x8xbf16>
    %286 = vector.extract_strided_slice %269 {offsets = [0, 40], sizes = [16, 8], strides = [1, 1]} : vector<16x96xbf16> to vector<16x8xbf16>
    %287 = vector.extract_strided_slice %269 {offsets = [0, 48], sizes = [16, 8], strides = [1, 1]} : vector<16x96xbf16> to vector<16x8xbf16>
    %288 = vector.extract_strided_slice %269 {offsets = [0, 56], sizes = [16, 8], strides = [1, 1]} : vector<16x96xbf16> to vector<16x8xbf16>
    %289 = vector.shape_cast %285 : vector<16x8xbf16> to vector<1x16x8xbf16>
    %290 = vector.shape_cast %286 : vector<16x8xbf16> to vector<1x16x8xbf16>
    %291 = vector.shape_cast %287 : vector<16x8xbf16> to vector<1x16x8xbf16>
    %292 = vector.shape_cast %288 : vector<16x8xbf16> to vector<1x16x8xbf16>
    %293 = tpu.concatenate %289, %290, %291, %292 in 0 : vector<1x16x8xbf16>, vector<1x16x8xbf16>, vector<1x16x8xbf16>, vector<1x16x8xbf16> -> vector<4x16x8xbf16>
    %294 = vector.extract_strided_slice %269 {offsets = [0, 64], sizes = [16, 8], strides = [1, 1]} : vector<16x96xbf16> to vector<16x8xbf16>
    %295 = vector.extract_strided_slice %269 {offsets = [0, 72], sizes = [16, 8], strides = [1, 1]} : vector<16x96xbf16> to vector<16x8xbf16>
    %296 = vector.extract_strided_slice %269 {offsets = [0, 80], sizes = [16, 8], strides = [1, 1]} : vector<16x96xbf16> to vector<16x8xbf16>
    %297 = vector.extract_strided_slice %269 {offsets = [0, 88], sizes = [16, 8], strides = [1, 1]} : vector<16x96xbf16> to vector<16x8xbf16>
    %298 = vector.shape_cast %294 : vector<16x8xbf16> to vector<1x16x8xbf16>
    %299 = vector.shape_cast %295 : vector<16x8xbf16> to vector<1x16x8xbf16>
    %300 = vector.shape_cast %296 : vector<16x8xbf16> to vector<1x16x8xbf16>
    %301 = vector.shape_cast %297 : vector<16x8xbf16> to vector<1x16x8xbf16>
    %302 = tpu.concatenate %298, %299, %300, %301 in 0 : vector<1x16x8xbf16>, vector<1x16x8xbf16>, vector<1x16x8xbf16>, vector<1x16x8xbf16> -> vector<4x16x8xbf16>
    %cst_82 = arith.constant dense<0.000000e+00> : vector<4x16x16xf32>
    %303 = tpu.matmul %284, %293, %cst_82 {dimension_numbers = #tpu.dot_dimension_numbers<[2], [2], [1], [1], [0, 0, 0, 1, 1, 1], [0], [0]>} : vector<4x16x8xbf16>, vector<4x16x8xbf16>, vector<4x16x16xf32> -> vector<4x16x16xf32>
    %304 = vector.shape_cast %271 : vector<1x16xf32> to vector<1x1x16xf32>
    %305 = vector.broadcast %304 : vector<1x1x16xf32> to vector<4x16x16xf32>
    %306 = arith.mulf %303, %305 : vector<4x16x16xf32>
    %307 = vector.shape_cast %275 : vector<1x16xf32> to vector<1x1x16xf32>
    %308 = vector.broadcast %307 : vector<1x1x16xf32> to vector<4x16x16xf32>
    %309 = arith.addf %306, %308 : vector<4x16x16xf32>
    %cst_83 = arith.constant dense<0xFF800000> : vector<4x16xf32>
    %310 = vector.multi_reduction <maximumf>, %309, %cst_83 [2] : vector<4x16x16xf32> to vector<4x16xf32>
    %311 = vector.shape_cast %310 : vector<4x16xf32> to vector<4x16x1xf32>
    %312 = vector.broadcast %311 : vector<4x16x1xf32> to vector<4x16x16xf32>
    %313 = arith.subf %309, %312 : vector<4x16x16xf32>
    %314 = math.exp %313 : vector<4x16x16xf32>
    %cst_84 = arith.constant dense<0.000000e+00> : vector<4x16xf32>
    %315 = vector.multi_reduction <add>, %314, %cst_84 [2] : vector<4x16x16xf32> to vector<4x16xf32>
    %316 = vector.shape_cast %315 : vector<4x16xf32> to vector<4x16x1xf32>
    %317 = tpu.reciprocal %316 {approx = true} : vector<4x16x1xf32> -> vector<4x16x1xf32>
    %318 = vector.broadcast %317 : vector<4x16x1xf32> to vector<4x16x16xf32>
    %319 = arith.mulf %314, %318 : vector<4x16x16xf32>
    %320 = arith.truncf %319 : vector<4x16x16xf32> to vector<4x16x16xbf16>
    %cst_85 = arith.constant dense<0.000000e+00> : vector<4x16x8xf32>
    %321 = tpu.matmul %320, %302, %cst_85 {dimension_numbers = #tpu.dot_dimension_numbers<[2], [1], [1], [2], [0, 0, 0, 1, 1, 2], [0], [0]>} : vector<4x16x16xbf16>, vector<4x16x8xbf16>, vector<4x16x8xf32> -> vector<4x16x8xf32>
    %322 = vector.extract_strided_slice %321 {offsets = [0, 0, 0], sizes = [1, 16, 8], strides = [1, 1, 1]} : vector<4x16x8xf32> to vector<1x16x8xf32>
    %323 = vector.shape_cast %322 : vector<1x16x8xf32> to vector<16x8xf32>
    %324 = vector.extract_strided_slice %321 {offsets = [1, 0, 0], sizes = [1, 16, 8], strides = [1, 1, 1]} : vector<4x16x8xf32> to vector<1x16x8xf32>
    %325 = vector.shape_cast %324 : vector<1x16x8xf32> to vector<16x8xf32>
    %326 = vector.extract_strided_slice %321 {offsets = [2, 0, 0], sizes = [1, 16, 8], strides = [1, 1, 1]} : vector<4x16x8xf32> to vector<1x16x8xf32>
    %327 = vector.shape_cast %326 : vector<1x16x8xf32> to vector<16x8xf32>
    %328 = vector.extract_strided_slice %321 {offsets = [3, 0, 0], sizes = [1, 16, 8], strides = [1, 1, 1]} : vector<4x16x8xf32> to vector<1x16x8xf32>
    %329 = vector.shape_cast %328 : vector<1x16x8xf32> to vector<16x8xf32>
    %330 = tpu.concatenate %323, %325, %327, %329 in 1 : vector<16x8xf32>, vector<16x8xf32>, vector<16x8xf32>, vector<16x8xf32> -> vector<16x32xf32>
    %331 = tpu.concatenate %268, %330 in 0 : vector<16x32xf32>, vector<16x32xf32> -> vector<32x32xf32>
    %332 = arith.addf %331, %178 : vector<32x32xf32>
    %c0_86 = arith.constant 0 : index
    %c0_87 = arith.constant 0 : index
    %333 = vector.load %arg12[%c0_86, %c0_87] : memref<1x32xf32, #tpu.memory_space<vmem>>, vector<1x32xf32>
    %c0_88 = arith.constant 0 : index
    %c0_89 = arith.constant 0 : index
    %334 = vector.load %arg13[%c0_88, %c0_89] : memref<1x32xf32, #tpu.memory_space<vmem>>, vector<1x32xf32>
    %cst_90 = arith.constant dense<0.000000e+00> : vector<32xf32>
    %335 = vector.multi_reduction <add>, %332, %cst_90 [1] : vector<32x32xf32> to vector<32xf32>
    %336 = vector.shape_cast %335 : vector<32xf32> to vector<32x1xf32>
    %cst_91 = arith.constant 3.200000e+01 : f32
    %337 = vector.broadcast %cst_91 : f32 to vector<32x1xf32>
    %338 = arith.divf %336, %337 : vector<32x1xf32>
    %339 = vector.broadcast %338 : vector<32x1xf32> to vector<32x32xf32>
    %340 = arith.subf %332, %339 : vector<32x32xf32>
    %341 = arith.mulf %340, %340 : vector<32x32xf32>
    %cst_92 = arith.constant dense<0.000000e+00> : vector<32xf32>
    %342 = vector.multi_reduction <add>, %341, %cst_92 [1] : vector<32x32xf32> to vector<32xf32>
    %343 = vector.shape_cast %342 : vector<32xf32> to vector<32x1xf32>
    %cst_93 = arith.constant 3.200000e+01 : f32
    %344 = vector.broadcast %cst_93 : f32 to vector<32x1xf32>
    %345 = arith.divf %343, %344 : vector<32x1xf32>
    %346 = vector.broadcast %338 : vector<32x1xf32> to vector<32x32xf32>
    %347 = arith.subf %332, %346 : vector<32x32xf32>
    %cst_94 = arith.constant 9.99999974E-6 : f32
    %348 = vector.broadcast %cst_94 : f32 to vector<32x1xf32>
    %349 = arith.addf %345, %348 : vector<32x1xf32>
    %350 = math.rsqrt %349 : vector<32x1xf32>
    %351 = vector.broadcast %350 : vector<32x1xf32> to vector<32x32xf32>
    %352 = arith.mulf %347, %351 : vector<32x32xf32>
    %353 = vector.broadcast %333 : vector<1x32xf32> to vector<32x32xf32>
    %354 = arith.mulf %352, %353 : vector<32x32xf32>
    %355 = vector.broadcast %334 : vector<1x32xf32> to vector<32x32xf32>
    %356 = arith.addf %354, %355 : vector<32x32xf32>
    %357 = arith.truncf %356 : vector<32x32xf32> to vector<32x32xbf16>
    %c0_95 = arith.constant 0 : index
    %c0_96 = arith.constant 0 : index
    %358 = vector.load %arg14[%c0_95, %c0_96] : memref<32x32xbf16, #tpu.memory_space<vmem>>, vector<32x32xbf16>
    %cst_97 = arith.constant dense<0.000000e+00> : vector<32x32xf32>
    %359 = tpu.matmul %357, %358, %cst_97 {dimension_numbers = #tpu.dot_dimension_numbers<[1], [0], [0], [1], [0, 0, 1, 1], [], []>} : vector<32x32xbf16>, vector<32x32xbf16>, vector<32x32xf32> -> vector<32x32xf32>
    %c0_98 = arith.constant 0 : index
    %c0_99 = arith.constant 0 : index
    %360 = vector.load %arg15[%c0_98, %c0_99] : memref<1x32xf32, #tpu.memory_space<vmem>>, vector<1x32xf32>
    %361 = vector.broadcast %360 : vector<1x32xf32> to vector<32x32xf32>
    %362 = arith.addf %359, %361 : vector<32x32xf32>
    %cst_100 = arith.constant 0.000000e+00 : f32
    %363 = vector.broadcast %cst_100 : f32 to vector<32x32xf32>
    %364 = arith.maximumf %362, %363 : vector<32x32xf32>
    %365 = arith.truncf %364 : vector<32x32xf32> to vector<32x32xbf16>
    %c0_101 = arith.constant 0 : index
    %c0_102 = arith.constant 0 : index
    %366 = vector.load %arg16[%c0_101, %c0_102] : memref<32x32xbf16, #tpu.memory_space<vmem>>, vector<32x32xbf16>
    %cst_103 = arith.constant dense<0.000000e+00> : vector<32x32xf32>
    %367 = tpu.matmul %365, %366, %cst_103 {dimension_numbers = #tpu.dot_dimension_numbers<[1], [0], [0], [1], [0, 0, 1, 1], [], []>} : vector<32x32xbf16>, vector<32x32xbf16>, vector<32x32xf32> -> vector<32x32xf32>
    %c0_104 = arith.constant 0 : index
    %c0_105 = arith.constant 0 : index
    %368 = vector.load %arg17[%c0_104, %c0_105] : memref<1x32xf32, #tpu.memory_space<vmem>>, vector<1x32xf32>
    %369 = vector.broadcast %368 : vector<1x32xf32> to vector<32x32xf32>
    %370 = arith.addf %367, %369 : vector<32x32xf32>
    %371 = arith.addf %370, %332 : vector<32x32xf32>
    %372 = vector.shape_cast %371 : vector<32x32xf32> to vector<2x16x32xf32>
    %c0_106 = arith.constant 0 : index
    %c0_107 = arith.constant 0 : index
    %c0_108 = arith.constant 0 : index
    %373 = vector.load %arg18[%c0_106, %c0_107, %c0_108] : memref<2x16x32xf32, #tpu.memory_space<vmem>>, vector<2x16x32xf32>
    tpu.vector_store %arg18[%c0_106, %c0_107, %c0_108], %372 {strides = array<i32>} : memref<2x16x32xf32, #tpu.memory_space<vmem>>, vector<2x16x32xf32>,
    return
  }
  func.func @transform_0(%arg0: i32) -> (i32, i32, i32) {
    %c0_i32 = arith.constant 0 : i32
    %c0_i32_0 = arith.constant 0 : i32
    %c0_i32_1 = arith.constant 0 : i32
    return %arg0, %c0_i32, %c0_i32_0 : i32, i32, i32
  }
  func.func @transform_1(%arg0: i32) -> (i32, i32, i32) {
    %c0_i32 = arith.constant 0 : i32
    %c0_i32_0 = arith.constant 0 : i32
    %c0_i32_1 = arith.constant 0 : i32
    return %arg0, %c0_i32, %c0_i32_0 : i32, i32, i32
  }
  func.func @transform_2(%arg0: i32) -> (i32, i32) {
    %c0_i32 = arith.constant 0 : i32
    %c0_i32_0 = arith.constant 0 : i32
    %c0_i32_1 = arith.constant 0 : i32
    return %c0_i32, %c0_i32_0 : i32, i32
  }
  func.func @transform_3(%arg0: i32) -> (i32, i32, i32) {
    %c0_i32 = arith.constant 0 : i32
    %c0_i32_0 = arith.constant 0 : i32
    %c0_i32_1 = arith.constant 0 : i32
    %c0_i32_2 = arith.constant 0 : i32
    return %c0_i32, %c0_i32_0, %c0_i32_1 : i32, i32, i32
  }
  func.func @transform_4(%arg0: i32) -> (i32, i32, i32) {
    %c0_i32 = arith.constant 0 : i32
    %c0_i32_0 = arith.constant 0 : i32
    %c0_i32_1 = arith.constant 0 : i32
    %c0_i32_2 = arith.constant 0 : i32
    return %c0_i32, %c0_i32_0, %c0_i32_1 : i32, i32, i32
  }
  func.func @transform_5(%arg0: i32) -> (i32, i32, i32) {
    %c0_i32 = arith.constant 0 : i32
    %c0_i32_0 = arith.constant 0 : i32
    %c0_i32_1 = arith.constant 0 : i32
    %c0_i32_2 = arith.constant 0 : i32
    return %c0_i32, %c0_i32_0, %c0_i32_1 : i32, i32, i32
  }
  func.func @transform_6(%arg0: i32) -> (i32, i32, i32) {
    %c0_i32 = arith.constant 0 : i32
    %c0_i32_0 = arith.constant 0 : i32
    %c0_i32_1 = arith.constant 0 : i32
    %c0_i32_2 = arith.constant 0 : i32
    return %c0_i32, %c0_i32_0, %c0_i32_1 : i32, i32, i32
  }
  func.func @transform_7(%arg0: i32) -> (i32, i32, i32) {
    %c0_i32 = arith.constant 0 : i32
    %c0_i32_0 = arith.constant 0 : i32
    %c0_i32_1 = arith.constant 0 : i32
    %c0_i32_2 = arith.constant 0 : i32
    return %c0_i32, %c0_i32_0, %c0_i32_1 : i32, i32, i32
  }
  func.func @transform_8(%arg0: i32) -> (i32, i32) {
    %c0_i32 = arith.constant 0 : i32
    %c0_i32_0 = arith.constant 0 : i32
    %c0_i32_1 = arith.constant 0 : i32
    return %c0_i32, %c0_i32_0 : i32, i32
  }
  func.func @transform_9(%arg0: i32) -> (i32, i32) {
    %c0_i32 = arith.constant 0 : i32
    %c0_i32_0 = arith.constant 0 : i32
    %c0_i32_1 = arith.constant 0 : i32
    return %c0_i32, %c0_i32_0 : i32, i32
  }
  func.func @transform_10(%arg0: i32) -> (i32, i32) {
    %c0_i32 = arith.constant 0 : i32
    %c0_i32_0 = arith.constant 0 : i32
    %c0_i32_1 = arith.constant 0 : i32
    return %c0_i32, %c0_i32_0 : i32, i32
  }
  func.func @transform_11(%arg0: i32) -> (i32, i32) {
    %c0_i32 = arith.constant 0 : i32
    %c0_i32_0 = arith.constant 0 : i32
    %c0_i32_1 = arith.constant 0 : i32
    return %c0_i32, %c0_i32_0 : i32, i32
  }
  func.func @transform_12(%arg0: i32) -> (i32, i32) {
    %c0_i32 = arith.constant 0 : i32
    %c0_i32_0 = arith.constant 0 : i32
    %c0_i32_1 = arith.constant 0 : i32
    return %c0_i32, %c0_i32_0 : i32, i32
  }
  func.func @transform_13(%arg0: i32) -> (i32, i32) {
    %c0_i32 = arith.constant 0 : i32
    %c0_i32_0 = arith.constant 0 : i32
    %c0_i32_1 = arith.constant 0 : i32
    return %c0_i32, %c0_i32_0 : i32, i32
  }
  func.func @transform_14(%arg0: i32) -> (i32, i32) {
    %c0_i32 = arith.constant 0 : i32
    %c0_i32_0 = arith.constant 0 : i32
    %c0_i32_1 = arith.constant 0 : i32
    return %c0_i32, %c0_i32_0 : i32, i32
  }
  func.func @transform_15(%arg0: i32) -> (i32, i32) {
    %c0_i32 = arith.constant 0 : i32
    %c0_i32_0 = arith.constant 0 : i32
    %c0_i32_1 = arith.constant 0 : i32
    return %c0_i32, %c0_i32_0 : i32, i32
  }
  func.func @transform_16(%arg0: i32) -> (i32, i32) {
    %c0_i32 = arith.constant 0 : i32
    %c0_i32_0 = arith.constant 0 : i32
    %c0_i32_1 = arith.constant 0 : i32
    return %c0_i32, %c0_i32_0 : i32, i32
  }
  func.func @transform_17(%arg0: i32) -> (i32, i32, i32) {
    %c0_i32 = arith.constant 0 : i32
    %c0_i32_0 = arith.constant 0 : i32
    %c0_i32_1 = arith.constant 0 : i32
    return %arg0, %c0_i32, %c0_i32_0 : i32, i32, i32
  }
}

module attributes {stable_mosaic.version = 11 : i64} {
  func.func @encoder_block_kernel(%arg0: i32, %arg1: memref<2x16x32xf32, #tpu.memory_space<vmem>>, %arg2: memref<2x1x16xf32, #tpu.memory_space<vmem>>, %arg3: memref<16x32xf32, #tpu.memory_space<vmem>>, %arg4: memref<2x1x32xf32, #tpu.memory_space<vmem>>, %arg5: memref<2x1x32xf32, #tpu.memory_space<vmem>>, %arg6: memref<2x5x32xf32, #tpu.memory_space<vmem>>, %arg7: memref<2x32x32xbf16, #tpu.memory_space<vmem>>, %arg8: memref<2x1x32xf32, #tpu.memory_space<vmem>>, %arg9: memref<1x32xf32, #tpu.memory_space<vmem>>, %arg10: memref<1x32xf32, #tpu.memory_space<vmem>>, %arg11: memref<32x96xbf16, #tpu.memory_space<vmem>>, %arg12: memref<1x32xf32, #tpu.memory_space<vmem>>, %arg13: memref<1x32xf32, #tpu.memory_space<vmem>>, %arg14: memref<32x32xbf16, #tpu.memory_space<vmem>>, %arg15: memref<1x32xf32, #tpu.memory_space<vmem>>, %arg16: memref<32x32xbf16, #tpu.memory_space<vmem>>, %arg17: memref<1x32xf32, #tpu.memory_space<vmem>>, %arg18: memref<2x16x32xf32, #tpu.memory_space<vmem>>) attributes {dimension_semantics = [#tpu.dimension_semantics<parallel>], iteration_bounds = array<i64: 1>, scalar_prefetch = 0 : i64, scratch_operands = 0 : i64, tpu.core_type = #tpu.core_type<tc>, window_params = [{transform_indices = @transform_0, window_bounds = array<i64: 2, 16, 32>}, {transform_indices = @transform_1, window_bounds = array<i64: 2, 1, 16>}, {pipeline_mode = #tpu.pipeline_mode<synchronous>, transform_indices = @transform_2, window_bounds = array<i64: 16, 32>}, {pipeline_mode = #tpu.pipeline_mode<synchronous>, transform_indices = @transform_3, window_bounds = array<i64: 2, 1, 32>}, {pipeline_mode = #tpu.pipeline_mode<synchronous>, transform_indices = @transform_4, window_bounds = array<i64: 2, 1, 32>}, {pipeline_mode = #tpu.pipeline_mode<synchronous>, transform_indices = @transform_5, window_bounds = array<i64: 2, 5, 32>}, {pipeline_mode = #tpu.pipeline_mode<synchronous>, transform_indices = @transform_6, window_bounds = array<i64: 2, 32, 32>}, {pipeline_mode = #tpu.pipeline_mode<synchronous>, transform_indices = @transform_7, window_bounds = array<i64: 2, 1, 32>}, {pipeline_mode = #tpu.pipeline_mode<synchronous>, transform_indices = @transform_8, window_bounds = array<i64: 1, 32>}, {pipeline_mode = #tpu.pipeline_mode<synchronous>, transform_indices = @transform_9, window_bounds = array<i64: 1, 32>}, {pipeline_mode = #tpu.pipeline_mode<synchronous>, transform_indices = @transform_10, window_bounds = array<i64: 32, 96>}, {pipeline_mode = #tpu.pipeline_mode<synchronous>, transform_indices = @transform_11, window_bounds = array<i64: 1, 32>}, {pipeline_mode = #tpu.pipeline_mode<synchronous>, transform_indices = @transform_12, window_bounds = array<i64: 1, 32>}, {pipeline_mode = #tpu.pipeline_mode<synchronous>, transform_indices = @transform_13, window_bounds = array<i64: 32, 32>}, {pipeline_mode = #tpu.pipeline_mode<synchronous>, transform_indices = @transform_14, window_bounds = array<i64: 1, 32>}, {pipeline_mode = #tpu.pipeline_mode<synchronous>, transform_indices = @transform_15, window_bounds = array<i64: 32, 32>}, {pipeline_mode = #tpu.pipeline_mode<synchronous>, transform_indices = @transform_16, window_bounds = array<i64: 1, 32>}, {transform_indices = @transform_17, window_bounds = array<i64: 2, 16, 32>}]} {
    %c0 = arith.constant 0 : index
    %c0_0 = arith.constant 0 : index
    %c0_1 = arith.constant 0 : index
    %0 = vector.load %arg1[%c0, %c0_0, %c0_1] : memref<2x16x32xf32, #tpu.memory_space<vmem>>, vector<2x16x32xf32>
    %c0_2 = arith.constant 0 : index
    %c0_3 = arith.constant 0 : index
    %1 = vector.load %arg3[%c0_2, %c0_3] : memref<16x32xf32, #tpu.memory_space<vmem>>, vector<16x32xf32>
    %2 = vector.shape_cast %1 : vector<16x32xf32> to vector<1x16x32xf32>
    %3 = vector.broadcast %2 : vector<1x16x32xf32> to vector<2x16x32xf32>
    %4 = arith.addf %0, %3 : vector<2x16x32xf32>
    %5 = vector.shape_cast %4 : vector<2x16x32xf32> to vector<32x32xf32>
    %6 = tpu.iota {dimensions = array<i32: 0>} : vector<32x1xi32>
    %c16_i32 = arith.constant 16 : i32
    %c0_i32 = arith.constant 0 : i32
    %7 = arith.cmpi eq, %c16_i32, %c0_i32 : i32
    %c1_i32 = arith.constant 1 : i32
    %8 = arith.select %7, %c1_i32, %c16_i32 : i32
    %9 = vector.broadcast %8 : i32 to vector<32x1xi32>
    %10 = arith.remsi %6, %9 : vector<32x1xi32>
    %c0_i32_4 = arith.constant 0 : i32
    %11 = vector.broadcast %c0_i32_4 : i32 to vector<32x1xi32>
    %12 = arith.cmpi ne, %10, %11 : vector<32x1xi32>
    %c0_i32_5 = arith.constant 0 : i32
    %13 = vector.broadcast %c0_i32_5 : i32 to vector<32x1xi32>
    %14 = arith.cmpi slt, %10, %13 : vector<32x1xi32>
    %c0_i32_6 = arith.constant 0 : i32
    %15 = arith.cmpi slt, %8, %c0_i32_6 : i32
    %16 = vector.broadcast %15 : i1 to vector<32x1xi1>
    %17 = vector.broadcast %16 : vector<32x1xi1> to vector<32x1xi1>
    %18 = arith.xori %14, %17 : vector<32x1xi1>
    %19 = arith.andi %18, %12 : vector<32x1xi1>
    %20 = vector.broadcast %8 : i32 to vector<32x1xi32>
    %21 = arith.addi %10, %20 : vector<32x1xi32>
    %22 = arith.select %19, %21, %10 : vector<32x1xi1>, vector<32x1xi32>
    %c2_i32 = arith.constant 2 : i32
    %23 = vector.broadcast %c2_i32 : i32 to vector<32x1xi32>
    %24 = arith.cmpi sge, %22, %23 : vector<32x1xi32>
    %25 = arith.extui %24 : vector<32x1xi1> to vector<32x1xi32>
    %26 = arith.sitofp %25 : vector<32x1xi32> to vector<32x1xf32>
    %c1_i32_7 = arith.constant 1 : i32
    %27 = vector.broadcast %c1_i32_7 : i32 to vector<32x1xi32>
    %28 = arith.cmpi sge, %22, %27 : vector<32x1xi32>
    %29 = arith.extui %28 : vector<32x1xi1> to vector<32x1xi32>
    %30 = arith.sitofp %29 : vector<32x1xi32> to vector<32x1xf32>
    %c15_i32 = arith.constant 15 : i32
    %31 = vector.broadcast %c15_i32 : i32 to vector<32x1xi32>
    %32 = arith.cmpi slt, %22, %31 : vector<32x1xi32>
    %33 = arith.extui %32 : vector<32x1xi1> to vector<32x1xi32>
    %34 = arith.sitofp %33 : vector<32x1xi32> to vector<32x1xf32>
    %c14_i32 = arith.constant 14 : i32
    %35 = vector.broadcast %c14_i32 : i32 to vector<32x1xi32>
    %36 = arith.cmpi slt, %22, %35 : vector<32x1xi32>
    %37 = arith.extui %36 : vector<32x1xi1> to vector<32x1xi32>
    %38 = arith.sitofp %37 : vector<32x1xi32> to vector<32x1xf32>
    %c0_8 = arith.constant 0 : index
    %c0_9 = arith.constant 0 : index
    %c0_10 = arith.constant 0 : index
    %39 = vector.load %arg4[%c0_8, %c0_9, %c0_10] : memref<2x1x32xf32, #tpu.memory_space<vmem>>, vector<1x1x32xf32>
    %40 = vector.shape_cast %39 : vector<1x1x32xf32> to vector<1x32xf32>
    %c0_11 = arith.constant 0 : index
    %c0_12 = arith.constant 0 : index
    %c0_13 = arith.constant 0 : index
    %41 = vector.load %arg5[%c0_11, %c0_12, %c0_13] : memref<2x1x32xf32, #tpu.memory_space<vmem>>, vector<1x1x32xf32>
    %42 = vector.shape_cast %41 : vector<1x1x32xf32> to vector<1x32xf32>
    %cst = arith.constant dense<0.000000e+00> : vector<32xf32>
    %43 = vector.multi_reduction <add>, %5, %cst [1] : vector<32x32xf32> to vector<32xf32>
    %44 = vector.shape_cast %43 : vector<32xf32> to vector<32x1xf32>
    %cst_14 = arith.constant 3.200000e+01 : f32
    %45 = vector.broadcast %cst_14 : f32 to vector<32x1xf32>
    %46 = arith.divf %44, %45 : vector<32x1xf32>
    %47 = vector.broadcast %46 : vector<32x1xf32> to vector<32x32xf32>
    %48 = arith.subf %5, %47 : vector<32x32xf32>
    %49 = arith.mulf %48, %48 : vector<32x32xf32>
    %cst_15 = arith.constant dense<0.000000e+00> : vector<32xf32>
    %50 = vector.multi_reduction <add>, %49, %cst_15 [1] : vector<32x32xf32> to vector<32xf32>
    %51 = vector.shape_cast %50 : vector<32xf32> to vector<32x1xf32>
    %cst_16 = arith.constant 3.200000e+01 : f32
    %52 = vector.broadcast %cst_16 : f32 to vector<32x1xf32>
    %53 = arith.divf %51, %52 : vector<32x1xf32>
    %54 = vector.broadcast %46 : vector<32x1xf32> to vector<32x32xf32>
    %55 = arith.subf %5, %54 : vector<32x32xf32>
    %cst_17 = arith.constant 9.99999974E-6 : f32
    %56 = vector.broadcast %cst_17 : f32 to vector<32x1xf32>
    %57 = arith.addf %53, %56 : vector<32x1xf32>
    %58 = math.rsqrt %57 : vector<32x1xf32>
    %59 = vector.broadcast %58 : vector<32x1xf32> to vector<32x32xf32>
    %60 = arith.mulf %55, %59 : vector<32x32xf32>
    %61 = vector.broadcast %40 : vector<1x32xf32> to vector<32x32xf32>
    %62 = arith.mulf %60, %61 : vector<32x32xf32>
    %63 = vector.broadcast %42 : vector<1x32xf32> to vector<32x32xf32>
    %64 = arith.addf %62, %63 : vector<32x32xf32>
    %c0_18 = arith.constant 0 : index
    %c0_19 = arith.constant 0 : index
    %c0_20 = arith.constant 0 : index
    %65 = vector.load %arg6[%c0_18, %c0_19, %c0_20] : memref<2x5x32xf32, #tpu.memory_space<vmem>>, vector<1x5x32xf32>
    %66 = vector.shape_cast %65 : vector<1x5x32xf32> to vector<5x32xf32>
    %67 = vector.extract_strided_slice %66 {offsets = [2, 0], sizes = [1, 32], strides = [1, 1]} : vector<5x32xf32> to vector<1x32xf32>
    %68 = vector.broadcast %67 : vector<1x32xf32> to vector<32x32xf32>
    %69 = arith.mulf %64, %68 : vector<32x32xf32>
    %c2_i32_21 = arith.constant 2 : i32
    %70 = tpu.dynamic_rotate %64 by %c2_i32_21 dim 0 : vector<32x32xf32>, i32 -> vector<32x32xf32>
    %71 = vector.extract_strided_slice %66 {offsets = [0, 0], sizes = [1, 32], strides = [1, 1]} : vector<5x32xf32> to vector<1x32xf32>
    %72 = vector.broadcast %71 : vector<1x32xf32> to vector<32x32xf32>
    %73 = arith.mulf %70, %72 : vector<32x32xf32>
    %74 = vector.broadcast %26 : vector<32x1xf32> to vector<32x32xf32>
    %75 = arith.mulf %73, %74 : vector<32x32xf32>
    %76 = arith.addf %69, %75 : vector<32x32xf32>
    %c1_i32_22 = arith.constant 1 : i32
    %77 = tpu.dynamic_rotate %64 by %c1_i32_22 dim 0 : vector<32x32xf32>, i32 -> vector<32x32xf32>
    %78 = vector.extract_strided_slice %66 {offsets = [1, 0], sizes = [1, 32], strides = [1, 1]} : vector<5x32xf32> to vector<1x32xf32>
    %79 = vector.broadcast %78 : vector<1x32xf32> to vector<32x32xf32>
    %80 = arith.mulf %77, %79 : vector<32x32xf32>
    %81 = vector.broadcast %30 : vector<32x1xf32> to vector<32x32xf32>
    %82 = arith.mulf %80, %81 : vector<32x32xf32>
    %83 = arith.addf %76, %82 : vector<32x32xf32>
    %c31_i32 = arith.constant 31 : i32
    %84 = tpu.dynamic_rotate %64 by %c31_i32 dim 0 : vector<32x32xf32>, i32 -> vector<32x32xf32>
    %85 = vector.extract_strided_slice %66 {offsets = [3, 0], sizes = [1, 32], strides = [1, 1]} : vector<5x32xf32> to vector<1x32xf32>
    %86 = vector.broadcast %85 : vector<1x32xf32> to vector<32x32xf32>
    %87 = arith.mulf %84, %86 : vector<32x32xf32>
    %88 = vector.broadcast %34 : vector<32x1xf32> to vector<32x32xf32>
    %89 = arith.mulf %87, %88 : vector<32x32xf32>
    %90 = arith.addf %83, %89 : vector<32x32xf32>
    %c30_i32 = arith.constant 30 : i32
    %91 = tpu.dynamic_rotate %64 by %c30_i32 dim 0 : vector<32x32xf32>, i32 -> vector<32x32xf32>
    %92 = vector.extract_strided_slice %66 {offsets = [4, 0], sizes = [1, 32], strides = [1, 1]} : vector<5x32xf32> to vector<1x32xf32>
    %93 = vector.broadcast %92 : vector<1x32xf32> to vector<32x32xf32>
    %94 = arith.mulf %91, %93 : vector<32x32xf32>
    %95 = vector.broadcast %38 : vector<32x1xf32> to vector<32x32xf32>
    %96 = arith.mulf %94, %95 : vector<32x32xf32>
    %97 = arith.addf %90, %96 : vector<32x32xf32>
    %98 = arith.truncf %97 : vector<32x32xf32> to vector<32x32xbf16>
    %c0_23 = arith.constant 0 : index
    %c0_24 = arith.constant 0 : index
    %c0_25 = arith.constant 0 : index
    %99 = vector.load %arg7[%c0_23, %c0_24, %c0_25] : memref<2x32x32xbf16, #tpu.memory_space<vmem>>, vector<1x32x32xbf16>
    %100 = vector.shape_cast %99 : vector<1x32x32xbf16> to vector<32x32xbf16>
    %cst_26 = arith.constant dense<0.000000e+00> : vector<32x32xf32>
    %101 = tpu.matmul %98, %100, %cst_26 {dimension_numbers = #tpu.dot_dimension_numbers<[1], [0], [0], [1], [0, 0, 1, 1], [], []>} : vector<32x32xbf16>, vector<32x32xbf16>, vector<32x32xf32> -> vector<32x32xf32>
    %c0_27 = arith.constant 0 : index
    %c0_28 = arith.constant 0 : index
    %c0_29 = arith.constant 0 : index
    %102 = vector.load %arg8[%c0_27, %c0_28, %c0_29] : memref<2x1x32xf32, #tpu.memory_space<vmem>>, vector<1x1x32xf32>
    %103 = vector.shape_cast %102 : vector<1x1x32xf32> to vector<1x32xf32>
    %104 = vector.broadcast %103 : vector<1x32xf32> to vector<32x32xf32>
    %105 = arith.addf %101, %104 : vector<32x32xf32>
    %cst_30 = arith.constant 0.000000e+00 : f32
    %106 = vector.broadcast %cst_30 : f32 to vector<32x32xf32>
    %107 = arith.maximumf %105, %106 : vector<32x32xf32>
    %108 = arith.addf %107, %5 : vector<32x32xf32>
    %c1 = arith.constant 1 : index
    %c0_31 = arith.constant 0 : index
    %c0_32 = arith.constant 0 : index
    %109 = vector.load %arg4[%c1, %c0_31, %c0_32] : memref<2x1x32xf32, #tpu.memory_space<vmem>>, vector<1x1x32xf32>
    %110 = vector.shape_cast %109 : vector<1x1x32xf32> to vector<1x32xf32>
    %c1_33 = arith.constant 1 : index
    %c0_34 = arith.constant 0 : index
    %c0_35 = arith.constant 0 : index
    %111 = vector.load %arg5[%c1_33, %c0_34, %c0_35] : memref<2x1x32xf32, #tpu.memory_space<vmem>>, vector<1x1x32xf32>
    %112 = vector.shape_cast %111 : vector<1x1x32xf32> to vector<1x32xf32>
    %cst_36 = arith.constant dense<0.000000e+00> : vector<32xf32>
    %113 = vector.multi_reduction <add>, %108, %cst_36 [1] : vector<32x32xf32> to vector<32xf32>
    %114 = vector.shape_cast %113 : vector<32xf32> to vector<32x1xf32>
    %cst_37 = arith.constant 3.200000e+01 : f32
    %115 = vector.broadcast %cst_37 : f32 to vector<32x1xf32>
    %116 = arith.divf %114, %115 : vector<32x1xf32>
    %117 = vector.broadcast %116 : vector<32x1xf32> to vector<32x32xf32>
    %118 = arith.subf %108, %117 : vector<32x32xf32>
    %119 = arith.mulf %118, %118 : vector<32x32xf32>
    %cst_38 = arith.constant dense<0.000000e+00> : vector<32xf32>
    %120 = vector.multi_reduction <add>, %119, %cst_38 [1] : vector<32x32xf32> to vector<32xf32>
    %121 = vector.shape_cast %120 : vector<32xf32> to vector<32x1xf32>
    %cst_39 = arith.constant 3.200000e+01 : f32
    %122 = vector.broadcast %cst_39 : f32 to vector<32x1xf32>
    %123 = arith.divf %121, %122 : vector<32x1xf32>
    %124 = vector.broadcast %116 : vector<32x1xf32> to vector<32x32xf32>
    %125 = arith.subf %108, %124 : vector<32x32xf32>
    %cst_40 = arith.constant 9.99999974E-6 : f32
    %126 = vector.broadcast %cst_40 : f32 to vector<32x1xf32>
    %127 = arith.addf %123, %126 : vector<32x1xf32>
    %128 = math.rsqrt %127 : vector<32x1xf32>
    %129 = vector.broadcast %128 : vector<32x1xf32> to vector<32x32xf32>
    %130 = arith.mulf %125, %129 : vector<32x32xf32>
    %131 = vector.broadcast %110 : vector<1x32xf32> to vector<32x32xf32>
    %132 = arith.mulf %130, %131 : vector<32x32xf32>
    %133 = vector.broadcast %112 : vector<1x32xf32> to vector<32x32xf32>
    %134 = arith.addf %132, %133 : vector<32x32xf32>
    %c1_41 = arith.constant 1 : index
    %c0_42 = arith.constant 0 : index
    %c0_43 = arith.constant 0 : index
    %135 = vector.load %arg6[%c1_41, %c0_42, %c0_43] : memref<2x5x32xf32, #tpu.memory_space<vmem>>, vector<1x5x32xf32>
    %136 = vector.shape_cast %135 : vector<1x5x32xf32> to vector<5x32xf32>
    %137 = vector.extract_strided_slice %136 {offsets = [2, 0], sizes = [1, 32], strides = [1, 1]} : vector<5x32xf32> to vector<1x32xf32>
    %138 = vector.broadcast %137 : vector<1x32xf32> to vector<32x32xf32>
    %139 = arith.mulf %134, %138 : vector<32x32xf32>
    %c2_i32_44 = arith.constant 2 : i32
    %140 = tpu.dynamic_rotate %134 by %c2_i32_44 dim 0 : vector<32x32xf32>, i32 -> vector<32x32xf32>
    %141 = vector.extract_strided_slice %136 {offsets = [0, 0], sizes = [1, 32], strides = [1, 1]} : vector<5x32xf32> to vector<1x32xf32>
    %142 = vector.broadcast %141 : vector<1x32xf32> to vector<32x32xf32>
    %143 = arith.mulf %140, %142 : vector<32x32xf32>
    %144 = vector.broadcast %26 : vector<32x1xf32> to vector<32x32xf32>
    %145 = arith.mulf %143, %144 : vector<32x32xf32>
    %146 = arith.addf %139, %145 : vector<32x32xf32>
    %c1_i32_45 = arith.constant 1 : i32
    %147 = tpu.dynamic_rotate %134 by %c1_i32_45 dim 0 : vector<32x32xf32>, i32 -> vector<32x32xf32>
    %148 = vector.extract_strided_slice %136 {offsets = [1, 0], sizes = [1, 32], strides = [1, 1]} : vector<5x32xf32> to vector<1x32xf32>
    %149 = vector.broadcast %148 : vector<1x32xf32> to vector<32x32xf32>
    %150 = arith.mulf %147, %149 : vector<32x32xf32>
    %151 = vector.broadcast %30 : vector<32x1xf32> to vector<32x32xf32>
    %152 = arith.mulf %150, %151 : vector<32x32xf32>
    %153 = arith.addf %146, %152 : vector<32x32xf32>
    %c31_i32_46 = arith.constant 31 : i32
    %154 = tpu.dynamic_rotate %134 by %c31_i32_46 dim 0 : vector<32x32xf32>, i32 -> vector<32x32xf32>
    %155 = vector.extract_strided_slice %136 {offsets = [3, 0], sizes = [1, 32], strides = [1, 1]} : vector<5x32xf32> to vector<1x32xf32>
    %156 = vector.broadcast %155 : vector<1x32xf32> to vector<32x32xf32>
    %157 = arith.mulf %154, %156 : vector<32x32xf32>
    %158 = vector.broadcast %34 : vector<32x1xf32> to vector<32x32xf32>
    %159 = arith.mulf %157, %158 : vector<32x32xf32>
    %160 = arith.addf %153, %159 : vector<32x32xf32>
    %c30_i32_47 = arith.constant 30 : i32
    %161 = tpu.dynamic_rotate %134 by %c30_i32_47 dim 0 : vector<32x32xf32>, i32 -> vector<32x32xf32>
    %162 = vector.extract_strided_slice %136 {offsets = [4, 0], sizes = [1, 32], strides = [1, 1]} : vector<5x32xf32> to vector<1x32xf32>
    %163 = vector.broadcast %162 : vector<1x32xf32> to vector<32x32xf32>
    %164 = arith.mulf %161, %163 : vector<32x32xf32>
    %165 = vector.broadcast %38 : vector<32x1xf32> to vector<32x32xf32>
    %166 = arith.mulf %164, %165 : vector<32x32xf32>
    %167 = arith.addf %160, %166 : vector<32x32xf32>
    %168 = arith.truncf %167 : vector<32x32xf32> to vector<32x32xbf16>
    %c1_48 = arith.constant 1 : index
    %c0_49 = arith.constant 0 : index
    %c0_50 = arith.constant 0 : index
    %169 = vector.load %arg7[%c1_48, %c0_49, %c0_50] : memref<2x32x32xbf16, #tpu.memory_space<vmem>>, vector<1x32x32xbf16>
    %170 = vector.shape_cast %169 : vector<1x32x32xbf16> to vector<32x32xbf16>
    %cst_51 = arith.constant dense<0.000000e+00> : vector<32x32xf32>
    %171 = tpu.matmul %168, %170, %cst_51 {dimension_numbers = #tpu.dot_dimension_numbers<[1], [0], [0], [1], [0, 0, 1, 1], [], []>} : vector<32x32xbf16>, vector<32x32xbf16>, vector<32x32xf32> -> vector<32x32xf32>
    %c1_52 = arith.constant 1 : index
    %c0_53 = arith.constant 0 : index
    %c0_54 = arith.constant 0 : index
    %172 = vector.load %arg8[%c1_52, %c0_53, %c0_54] : memref<2x1x32xf32, #tpu.memory_space<vmem>>, vector<1x1x32xf32>
    %173 = vector.shape_cast %172 : vector<1x1x32xf32> to vector<1x32xf32>
    %174 = vector.broadcast %173 : vector<1x32xf32> to vector<32x32xf32>
    %175 = arith.addf %171, %174 : vector<32x32xf32>
    %cst_55 = arith.constant 0.000000e+00 : f32
    %176 = vector.broadcast %cst_55 : f32 to vector<32x32xf32>
    %177 = arith.maximumf %175, %176 : vector<32x32xf32>
    %178 = arith.addf %177, %108 : vector<32x32xf32>
    %c0_56 = arith.constant 0 : index
    %c0_57 = arith.constant 0 : index
    %179 = vector.load %arg9[%c0_56, %c0_57] : memref<1x32xf32, #tpu.memory_space<vmem>>, vector<1x32xf32>
    %c0_58 = arith.constant 0 : index
    %c0_59 = arith.constant 0 : index
    %180 = vector.load %arg10[%c0_58, %c0_59] : memref<1x32xf32, #tpu.memory_space<vmem>>, vector<1x32xf32>
    %cst_60 = arith.constant dense<0.000000e+00> : vector<32xf32>
    %181 = vector.multi_reduction <add>, %178, %cst_60 [1] : vector<32x32xf32> to vector<32xf32>
    %182 = vector.shape_cast %181 : vector<32xf32> to vector<32x1xf32>
    %cst_61 = arith.constant 3.200000e+01 : f32
    %183 = vector.broadcast %cst_61 : f32 to vector<32x1xf32>
    %184 = arith.divf %182, %183 : vector<32x1xf32>
    %185 = vector.broadcast %184 : vector<32x1xf32> to vector<32x32xf32>
    %186 = arith.subf %178, %185 : vector<32x32xf32>
    %187 = arith.mulf %186, %186 : vector<32x32xf32>
    %cst_62 = arith.constant dense<0.000000e+00> : vector<32xf32>
    %188 = vector.multi_reduction <add>, %187, %cst_62 [1] : vector<32x32xf32> to vector<32xf32>
    %189 = vector.shape_cast %188 : vector<32xf32> to vector<32x1xf32>
    %cst_63 = arith.constant 3.200000e+01 : f32
    %190 = vector.broadcast %cst_63 : f32 to vector<32x1xf32>
    %191 = arith.divf %189, %190 : vector<32x1xf32>
    %192 = vector.broadcast %184 : vector<32x1xf32> to vector<32x32xf32>
    %193 = arith.subf %178, %192 : vector<32x32xf32>
    %cst_64 = arith.constant 9.99999974E-6 : f32
    %194 = vector.broadcast %cst_64 : f32 to vector<32x1xf32>
    %195 = arith.addf %191, %194 : vector<32x1xf32>
    %196 = math.rsqrt %195 : vector<32x1xf32>
    %197 = vector.broadcast %196 : vector<32x1xf32> to vector<32x32xf32>
    %198 = arith.mulf %193, %197 : vector<32x32xf32>
    %199 = vector.broadcast %179 : vector<1x32xf32> to vector<32x32xf32>
    %200 = arith.mulf %198, %199 : vector<32x32xf32>
    %201 = vector.broadcast %180 : vector<1x32xf32> to vector<32x32xf32>
    %202 = arith.addf %200, %201 : vector<32x32xf32>
    %203 = arith.truncf %202 : vector<32x32xf32> to vector<32x32xbf16>
    %c0_65 = arith.constant 0 : index
    %c0_66 = arith.constant 0 : index
    %204 = vector.load %arg11[%c0_65, %c0_66] : memref<32x96xbf16, #tpu.memory_space<vmem>>, vector<32x96xbf16>
    %cst_67 = arith.constant dense<0.000000e+00> : vector<32x96xf32>
    %205 = tpu.matmul %203, %204, %cst_67 {dimension_numbers = #tpu.dot_dimension_numbers<[1], [0], [0], [1], [0, 0, 1, 1], [], []>} : vector<32x32xbf16>, vector<32x96xbf16>, vector<32x96xf32> -> vector<32x96xf32>
    %206 = arith.truncf %205 : vector<32x96xf32> to vector<32x96xbf16>
    %207 = vector.extract_strided_slice %206 {offsets = [0, 0], sizes = [16, 96], strides = [1, 1]} : vector<32x96xbf16> to vector<16x96xbf16>
    %c0_68 = arith.constant 0 : index
    %c0_69 = arith.constant 0 : index
    %c0_70 = arith.constant 0 : index
    %208 = vector.load %arg2[%c0_68, %c0_69, %c0_70] : memref<2x1x16xf32, #tpu.memory_space<vmem>>, vector<1x1x16xf32>
    %209 = vector.shape_cast %208 : vector<1x1x16xf32> to vector<1x16xf32>
    %cst_71 = arith.constant 1.000000e+00 : f32
    %210 = vector.broadcast %cst_71 : f32 to vector<1x16xf32>
    %211 = arith.subf %210, %209 : vector<1x16xf32>
    %cst_72 = arith.constant -1.000000e+30 : f32
    %212 = vector.broadcast %cst_72 : f32 to vector<1x16xf32>
    %213 = arith.mulf %211, %212 : vector<1x16xf32>
    %214 = vector.extract_strided_slice %207 {offsets = [0, 0], sizes = [16, 8], strides = [1, 1]} : vector<16x96xbf16> to vector<16x8xbf16>
    %215 = vector.extract_strided_slice %207 {offsets = [0, 8], sizes = [16, 8], strides = [1, 1]} : vector<16x96xbf16> to vector<16x8xbf16>
    %216 = vector.extract_strided_slice %207 {offsets = [0, 16], sizes = [16, 8], strides = [1, 1]} : vector<16x96xbf16> to vector<16x8xbf16>
    %217 = vector.extract_strided_slice %207 {offsets = [0, 24], sizes = [16, 8], strides = [1, 1]} : vector<16x96xbf16> to vector<16x8xbf16>
    %218 = vector.shape_cast %214 : vector<16x8xbf16> to vector<1x16x8xbf16>
    %219 = vector.shape_cast %215 : vector<16x8xbf16> to vector<1x16x8xbf16>
    %220 = vector.shape_cast %216 : vector<16x8xbf16> to vector<1x16x8xbf16>
    %221 = vector.shape_cast %217 : vector<16x8xbf16> to vector<1x16x8xbf16>
    %222 = tpu.concatenate %218, %219, %220, %221 in 0 : vector<1x16x8xbf16>, vector<1x16x8xbf16>, vector<1x16x8xbf16>, vector<1x16x8xbf16> -> vector<4x16x8xbf16>
    %223 = vector.extract_strided_slice %207 {offsets = [0, 32], sizes = [16, 8], strides = [1, 1]} : vector<16x96xbf16> to vector<16x8xbf16>
    %224 = vector.extract_strided_slice %207 {offsets = [0, 40], sizes = [16, 8], strides = [1, 1]} : vector<16x96xbf16> to vector<16x8xbf16>
    %225 = vector.extract_strided_slice %207 {offsets = [0, 48], sizes = [16, 8], strides = [1, 1]} : vector<16x96xbf16> to vector<16x8xbf16>
    %226 = vector.extract_strided_slice %207 {offsets = [0, 56], sizes = [16, 8], strides = [1, 1]} : vector<16x96xbf16> to vector<16x8xbf16>
    %227 = vector.shape_cast %223 : vector<16x8xbf16> to vector<1x16x8xbf16>
    %228 = vector.shape_cast %224 : vector<16x8xbf16> to vector<1x16x8xbf16>
    %229 = vector.shape_cast %225 : vector<16x8xbf16> to vector<1x16x8xbf16>
    %230 = vector.shape_cast %226 : vector<16x8xbf16> to vector<1x16x8xbf16>
    %231 = tpu.concatenate %227, %228, %229, %230 in 0 : vector<1x16x8xbf16>, vector<1x16x8xbf16>, vector<1x16x8xbf16>, vector<1x16x8xbf16> -> vector<4x16x8xbf16>
    %232 = vector.extract_strided_slice %207 {offsets = [0, 64], sizes = [16, 8], strides = [1, 1]} : vector<16x96xbf16> to vector<16x8xbf16>
    %233 = vector.extract_strided_slice %207 {offsets = [0, 72], sizes = [16, 8], strides = [1, 1]} : vector<16x96xbf16> to vector<16x8xbf16>
    %234 = vector.extract_strided_slice %207 {offsets = [0, 80], sizes = [16, 8], strides = [1, 1]} : vector<16x96xbf16> to vector<16x8xbf16>
    %235 = vector.extract_strided_slice %207 {offsets = [0, 88], sizes = [16, 8], strides = [1, 1]} : vector<16x96xbf16> to vector<16x8xbf16>
    %236 = vector.shape_cast %232 : vector<16x8xbf16> to vector<1x16x8xbf16>
    %237 = vector.shape_cast %233 : vector<16x8xbf16> to vector<1x16x8xbf16>
    %238 = vector.shape_cast %234 : vector<16x8xbf16> to vector<1x16x8xbf16>
    %239 = vector.shape_cast %235 : vector<16x8xbf16> to vector<1x16x8xbf16>
    %240 = tpu.concatenate %236, %237, %238, %239 in 0 : vector<1x16x8xbf16>, vector<1x16x8xbf16>, vector<1x16x8xbf16>, vector<1x16x8xbf16> -> vector<4x16x8xbf16>
    %cst_73 = arith.constant dense<0.000000e+00> : vector<4x16x16xf32>
    %241 = tpu.matmul %222, %231, %cst_73 {dimension_numbers = #tpu.dot_dimension_numbers<[2], [2], [1], [1], [0, 0, 0, 1, 1, 1], [0], [0]>} : vector<4x16x8xbf16>, vector<4x16x8xbf16>, vector<4x16x16xf32> -> vector<4x16x16xf32>
    %242 = vector.shape_cast %209 : vector<1x16xf32> to vector<1x1x16xf32>
    %243 = vector.broadcast %242 : vector<1x1x16xf32> to vector<4x16x16xf32>
    %244 = arith.mulf %241, %243 : vector<4x16x16xf32>
    %245 = vector.shape_cast %213 : vector<1x16xf32> to vector<1x1x16xf32>
    %246 = vector.broadcast %245 : vector<1x1x16xf32> to vector<4x16x16xf32>
    %247 = arith.addf %244, %246 : vector<4x16x16xf32>
    %cst_74 = arith.constant dense<0xFF800000> : vector<4x16xf32>
    %248 = vector.multi_reduction <maximumf>, %247, %cst_74 [2] : vector<4x16x16xf32> to vector<4x16xf32>
    %249 = vector.shape_cast %248 : vector<4x16xf32> to vector<4x16x1xf32>
    %250 = vector.broadcast %249 : vector<4x16x1xf32> to vector<4x16x16xf32>
    %251 = arith.subf %247, %250 : vector<4x16x16xf32>
    %252 = math.exp %251 : vector<4x16x16xf32>
    %cst_75 = arith.constant dense<0.000000e+00> : vector<4x16xf32>
    %253 = vector.multi_reduction <add>, %252, %cst_75 [2] : vector<4x16x16xf32> to vector<4x16xf32>
    %254 = vector.shape_cast %253 : vector<4x16xf32> to vector<4x16x1xf32>
    %255 = tpu.reciprocal %254 {approx = true} : vector<4x16x1xf32> -> vector<4x16x1xf32>
    %256 = vector.broadcast %255 : vector<4x16x1xf32> to vector<4x16x16xf32>
    %257 = arith.mulf %252, %256 : vector<4x16x16xf32>
    %258 = arith.truncf %257 : vector<4x16x16xf32> to vector<4x16x16xbf16>
    %cst_76 = arith.constant dense<0.000000e+00> : vector<4x16x8xf32>
    %259 = tpu.matmul %258, %240, %cst_76 {dimension_numbers = #tpu.dot_dimension_numbers<[2], [1], [1], [2], [0, 0, 0, 1, 1, 2], [0], [0]>} : vector<4x16x16xbf16>, vector<4x16x8xbf16>, vector<4x16x8xf32> -> vector<4x16x8xf32>
    %260 = vector.extract_strided_slice %259 {offsets = [0, 0, 0], sizes = [1, 16, 8], strides = [1, 1, 1]} : vector<4x16x8xf32> to vector<1x16x8xf32>
    %261 = vector.shape_cast %260 : vector<1x16x8xf32> to vector<16x8xf32>
    %262 = vector.extract_strided_slice %259 {offsets = [1, 0, 0], sizes = [1, 16, 8], strides = [1, 1, 1]} : vector<4x16x8xf32> to vector<1x16x8xf32>
    %263 = vector.shape_cast %262 : vector<1x16x8xf32> to vector<16x8xf32>
    %264 = vector.extract_strided_slice %259 {offsets = [2, 0, 0], sizes = [1, 16, 8], strides = [1, 1, 1]} : vector<4x16x8xf32> to vector<1x16x8xf32>
    %265 = vector.shape_cast %264 : vector<1x16x8xf32> to vector<16x8xf32>
    %266 = vector.extract_strided_slice %259 {offsets = [3, 0, 0], sizes = [1, 16, 8], strides = [1, 1, 1]} : vector<4x16x8xf32> to vector<1x16x8xf32>
    %267 = vector.shape_cast %266 : vector<1x16x8xf32> to vector<16x8xf32>
    %268 = tpu.concatenate %261, %263, %265, %267 in 1 : vector<16x8xf32>, vector<16x8xf32>, vector<16x8xf32>, vector<16x8xf32> -> vector<16x32xf32>
    %269 = vector.extract_strided_slice %206 {offsets = [16, 0], sizes = [16, 96], strides = [1, 1]} : vector<32x96xbf16> to vector<16x96xbf16>
    %c1_77 = arith.constant 1 : index
    %c0_78 = arith.constant 0 : index
    %c0_79 = arith.constant 0 : index
    %270 = vector.load %arg2[%c1_77, %c0_78, %c0_79] : memref<2x1x16xf32, #tpu.memory_space<vmem>>, vector<1x1x16xf32>
    %271 = vector.shape_cast %270 : vector<1x1x16xf32> to vector<1x16xf32>
    %cst_80 = arith.constant 1.000000e+00 : f32
    %272 = vector.broadcast %cst_80 : f32 to vector<1x16xf32>
    %273 = arith.subf %272, %271 : vector<1x16xf32>
    %cst_81 = arith.constant -1.000000e+30 : f32
    %274 = vector.broadcast %cst_81 : f32 to vector<1x16xf32>
    %275 = arith.mulf %273, %274 : vector<1x16xf32>
    %276 = vector.extract_strided_slice %269 {offsets = [0, 0], sizes = [16, 8], strides = [1, 1]} : vector<16x96xbf16> to vector<16x8xbf16>
    %277 = vector.extract_strided_slice %269 {offsets = [0, 8], sizes = [16, 8], strides = [1, 1]} : vector<16x96xbf16> to vector<16x8xbf16>
    %278 = vector.extract_strided_slice %269 {offsets = [0, 16], sizes = [16, 8], strides = [1, 1]} : vector<16x96xbf16> to vector<16x8xbf16>
    %279 = vector.extract_strided_slice %269 {offsets = [0, 24], sizes = [16, 8], strides = [1, 1]} : vector<16x96xbf16> to vector<16x8xbf16>
    %280 = vector.shape_cast %276 : vector<16x8xbf16> to vector<1x16x8xbf16>
    %281 = vector.shape_cast %277 : vector<16x8xbf16> to vector<1x16x8xbf16>
    %282 = vector.shape_cast %278 : vector<16x8xbf16> to vector<1x16x8xbf16>
    %283 = vector.shape_cast %279 : vector<16x8xbf16> to vector<1x16x8xbf16>
    %284 = tpu.concatenate %280, %281, %282, %283 in 0 : vector<1x16x8xbf16>, vector<1x16x8xbf16>, vector<1x16x8xbf16>, vector<1x16x8xbf16> -> vector<4x16x8xbf16>
    %285 = vector.extract_strided_slice %269 {offsets = [0, 32], sizes = [16, 8], strides = [1, 1]} : vector<16x96xbf16> to vector<16x8xbf16>
    %286 = vector.extract_strided_slice %269 {offsets = [0, 40], sizes = [16, 8], strides = [1, 1]} : vector<16x96xbf16> to vector<16x8xbf16>
    %287 = vector.extract_strided_slice %269 {offsets = [0, 48], sizes = [16, 8], strides = [1, 1]} : vector<16x96xbf16> to vector<16x8xbf16>
    %288 = vector.extract_strided_slice %269 {offsets = [0, 56], sizes = [16, 8], strides = [1, 1]} : vector<16x96xbf16> to vector<16x8xbf16>
    %289 = vector.shape_cast %285 : vector<16x8xbf16> to vector<1x16x8xbf16>
    %290 = vector.shape_cast %286 : vector<16x8xbf16> to vector<1x16x8xbf16>
    %291 = vector.shape_cast %287 : vector<16x8xbf16> to vector<1x16x8xbf16>
    %292 = vector.shape_cast %288 : vector<16x8xbf16> to vector<1x16x8xbf16>
    %293 = tpu.concatenate %289, %290, %291, %292 in 0 : vector<1x16x8xbf16>, vector<1x16x8xbf16>, vector<1x16x8xbf16>, vector<1x16x8xbf16> -> vector<4x16x8xbf16>
    %294 = vector.extract_strided_slice %269 {offsets = [0, 64], sizes = [16, 8], strides = [1, 1]} : vector<16x96xbf16> to vector<16x8xbf16>
    %295 = vector.extract_strided_slice %269 {offsets = [0, 72], sizes = [16, 8], strides = [1, 1]} : vector<16x96xbf16> to vector<16x8xbf16>
    %296 = vector.extract_strided_slice %269 {offsets = [0, 80], sizes = [16, 8], strides = [1, 1]} : vector<16x96xbf16> to vector<16x8xbf16>
    %297 = vector.extract_strided_slice %269 {offsets = [0, 88], sizes = [16, 8], strides = [1, 1]} : vector<16x96xbf16> to vector<16x8xbf16>
    %298 = vector.shape_cast %294 : vector<16x8xbf16> to vector<1x16x8xbf16>
    %299 = vector.shape_cast %295 : vector<16x8xbf16> to vector<1x16x8xbf16>
    %300 = vector.shape_cast %296 : vector<16x8xbf16> to vector<1x16x8xbf16>
    %301 = vector.shape_cast %297 : vector<16x8xbf16> to vector<1x16x8xbf16>
    %302 = tpu.concatenate %298, %299, %300, %301 in 0 : vector<1x16x8xbf16>, vector<1x16x8xbf16>, vector<1x16x8xbf16>, vector<1x16x8xbf16> -> vector<4x16x8xbf16>
    %cst_82 = arith.constant dense<0.000000e+00> : vector<4x16x16xf32>
    %303 = tpu.matmul %284, %293, %cst_82 {dimension_numbers = #tpu.dot_dimension_numbers<[2], [2], [1], [1], [0, 0, 0, 1, 1, 1], [0], [0]>} : vector<4x16x8xbf16>, vector<4x16x8xbf16>, vector<4x16x16xf32> -> vector<4x16x16xf32>
    %304 = vector.shape_cast %271 : vector<1x16xf32> to vector<1x1x16xf32>
    %305 = vector.broadcast %304 : vector<1x1x16xf32> to vector<4x16x16xf32>
    %306 = arith.mulf %303, %305 : vector<4x16x16xf32>
    %307 = vector.shape_cast %275 : vector<1x16xf32> to vector<1x1x16xf32>
    %308 = vector.broadcast %307 : vector<1x1x16xf32> to vector<4x16x16xf32>
    %309 = arith.addf %306, %308 : vector<4x16x16xf32>
    %cst_83 = arith.constant dense<0xFF800000> : vector<4x16xf32>
    %310 = vector.multi_reduction <maximumf>, %309, %cst_83 [2] : vector<4x16x16xf32> to vector<4x16xf32>
    %311 = vector.shape_cast %310 : vector<4x16xf32> to vector<4x16x1xf32>
    %312 = vector.broadcast %311 : vector<4x16x1xf32> to vector<4x16x16xf32>
    %313 = arith.subf %309, %312 : vector<4x16x16xf32>
    %314 = math.exp %313 : vector<4x16x16xf32>
    %cst_84 = arith.constant dense<0.000000e+00> : vector<4x16xf32>
    %315 = vector.multi_reduction <add>, %314, %cst_84 [2] : vector<4x16x16xf32> to vector<4x16xf32>
    %316 = vector.shape_cast %315 : vector<4x16xf32> to vector<4x16x1xf32>
    %317 = tpu.reciprocal %316 {approx = true} : vector<4x16x1xf32> -> vector<4x16x1xf32>
    %318 = vector.broadcast %317 : vector<4x16x1xf32> to vector<4x16x16xf32>
    %319 = arith.mulf %314, %318 : vector<4x16x16xf32>
    %320 = arith.truncf %319 : vector<4x16x16xf32> to vector<4x16x16xbf16>
    %cst_85 = arith.constant dense<0.000000e+00> : vector<4x16x8xf32>
    %321 = tpu.matmul %320, %302, %cst_85 {dimension_numbers = #tpu.dot_dimension_numbers<[2], [1], [1], [2], [0, 0, 0, 1, 1, 2], [0], [0]>} : vector<4x16x16xbf16>, vector<4x16x8xbf16>, vector<4x16x8xf32> -> vector<4x16x8xf32>
    %322 = vector.extract_strided_slice %321 {offsets = [0, 0, 0], sizes = [1, 16, 8], strides = [1, 1, 1]} : vector<4x16x8xf32> to vector<1x16x8xf32>
    %323 = vector.shape_cast %322 : vector<1x16x8xf32> to vector<16x8xf32>
    %324 = vector.extract_strided_slice %321 {offsets = [1, 0, 0], sizes = [1, 16, 8], strides = [1, 1, 1]} : vector<4x16x8xf32> to vector<1x16x8xf32>
    %325 = vector.shape_cast %324 : vector<1x16x8xf32> to vector<16x8xf32>
    %326 = vector.extract_strided_slice %321 {offsets = [2, 0, 0], sizes = [1, 16, 8], strides = [1, 1, 1]} : vector<4x16x8xf32> to vector<1x16x8xf32>
    %327 = vector.shape_cast %326 : vector<1x16x8xf32> to vector<16x8xf32>
    %328 = vector.extract_strided_slice %321 {offsets = [3, 0, 0], sizes = [1, 16, 8], strides = [1, 1, 1]} : vector<4x16x8xf32> to vector<1x16x8xf32>
    %329 = vector.shape_cast %328 : vector<1x16x8xf32> to vector<16x8xf32>
    %330 = tpu.concatenate %323, %325, %327, %329 in 1 : vector<16x8xf32>, vector<16x8xf32>, vector<16x8xf32>, vector<16x8xf32> -> vector<16x32xf32>
    %331 = tpu.concatenate %268, %330 in 0 : vector<16x32xf32>, vector<16x32xf32> -> vector<32x32xf32>
    %332 = arith.addf %331, %178 : vector<32x32xf32>
    %c0_86 = arith.constant 0 : index
    %c0_87 = arith.constant 0 : index
    %333 = vector.load %arg12[%c0_86, %c0_87] : memref<1x32xf32, #tpu.memory_space<vmem>>, vector<1x32xf32>
    %c0_88 = arith.constant 0 : index
    %c0_89 = arith.constant 0 : index
    %334 = vector.load %arg13[%c0_88, %c0_89] : memref<1x32xf32, #tpu.memory_space<vmem>>, vector<1x32xf32>
    %cst_90 = arith.constant dense<0.000000e+00> : vector<32xf32>
    %335 = vector.multi_reduction <add>, %332, %cst_90 [1] : vector<32x32xf32> to vector<32xf32>
    %336 = vector.shape_cast %335 : vector<32xf32> to vector<32x1xf32>
    %cst_91 = arith.constant 3.200000e+01 : f32
    %337 = vector.broadcast %cst_91 : f32 to vector<32x1xf32>
    %338 = arith.divf %336, %337 : vector<32x1xf32>
    %339 = vector.broadcast %338 : vector<32x1xf32> to vector<32x32xf32>
    %340 = arith.subf %332, %339 : vector<32x32xf32>
    %341 = arith.mulf %340, %340 : vector<32x32xf32>
    %cst_92 = arith.constant dense<0.000000e+00> : vector<32xf32>
    %342 = vector.multi_reduction <add>, %341, %cst_92 [1] : vector<32x32xf32> to vector<32xf32>
    %343 = vector.shape_cast %342 : vector<32xf32> to vector<32x1xf32>
    %cst_93 = arith.constant 3.200000e+01 : f32
    %344 = vector.broadcast %cst_93 : f32 to vector<32x1xf32>
    %345 = arith.divf %343, %344 : vector<32x1xf32>
    %346 = vector.broadcast %338 : vector<32x1xf32> to vector<32x32xf32>
    %347 = arith.subf %332, %346 : vector<32x32xf32>
    %cst_94 = arith.constant 9.99999974E-6 : f32
    %348 = vector.broadcast %cst_94 : f32 to vector<32x1xf32>
    %349 = arith.addf %345, %348 : vector<32x1xf32>
    %350 = math.rsqrt %349 : vector<32x1xf32>
    %351 = vector.broadcast %350 : vector<32x1xf32> to vector<32x32xf32>
    %352 = arith.mulf %347, %351 : vector<32x32xf32>
    %353 = vector.broadcast %333 : vector<1x32xf32> to vector<32x32xf32>
    %354 = arith.mulf %352, %353 : vector<32x32xf32>
    %355 = vector.broadcast %334 : vector<1x32xf32> to vector<32x32xf32>
    %356 = arith.addf %354, %355 : vector<32x32xf32>
    %357 = arith.truncf %356 : vector<32x32xf32> to vector<32x32xbf16>
    %c0_95 = arith.constant 0 : index
    %c0_96 = arith.constant 0 : index
    %358 = vector.load %arg14[%c0_95, %c0_96] : memref<32x32xbf16, #tpu.memory_space<vmem>>, vector<32x32xbf16>
    %cst_97 = arith.constant dense<0.000000e+00> : vector<32x32xf32>
    %359 = tpu.matmul %357, %358, %cst_97 {dimension_numbers = #tpu.dot_dimension_numbers<[1], [0], [0], [1], [0, 0, 1, 1], [], []>} : vector<32x32xbf16>, vector<32x32xbf16>, vector<32x32xf32> -> vector<32x32xf32>
    %c0_98 = arith.constant 0 : index
    %c0_99 = arith.constant 0 : index
    %360 = vector.load %arg15[%c0_98, %c0_99] : memref<1x32xf32, #tpu.memory_space<vmem>>, vector<1x32xf32>
    %361 = vector.broadcast %360 : vector<1x32xf32> to vector<32x32xf32>
    %362 = arith.addf %359, %361 : vector<32x32xf32>
    %cst_100 = arith.constant 0.000000e+00 : f32
    %363 = vector.broadcast %cst_100 : f32 to vector<32x32xf32>
    %364 = arith.maximumf %362, %363 : vector<32x32xf32>
    %365 = arith.truncf %364 : vector<32x32xf32> to vector<32x32xbf16>
    %c0_101 = arith.constant 0 : index
    %c0_102 = arith.constant 0 : index
    %366 = vector.load %arg16[%c0_101, %c0_102] : memref<32x32xbf16, #tpu.memory_space<vmem>>, vector<32x32xbf16>
    %cst_103 = arith.constant dense<0.000000e+00> : vector<32x32xf32>
    %367 = tpu.matmul %365, %366, %cst_103 {dimension_numbers = #tpu.dot_dimension_numbers<[1], [0], [0], [1], [0, 0, 1, 1], [], []>} : vector<32x32xbf16>, vector<32x32xbf16>, vector<32x32xf32> -> vector<32x32xf32>
    %c0_104 = arith.constant 0 : index
    %c0_105 = arith.constant 0 : index
    %368 = vector.load %arg17[%c0_104, %c0_105] : memref<1x32xf32, #tpu.memory_space<vmem>>, vector<1x32xf32>
    %369 = vector.broadcast %368 : vector<1x32xf32> to vector<32x32xf32>
    %370 = arith.addf %367, %369 : vector<32x32xf32>
    %371 = arith.addf %370, %332 : vector<32x32xf32>
    %372 = vector.shape_cast %371 : vector<32x32xf32> to vector<2x16x32xf32>
    %c0_106 = arith.constant 0 : index
    %c0_107 = arith.constant 0 : index
    %c0_108 = arith.constant 0 : index
    %373 = vector.load %arg18[%c0_106, %c0_107, %c0_108] : memref<2x16x32xf32, #tpu.memory_space<vmem>>, vector<2x16x32xf32>
    tpu.vector_store %arg18[%c0_106, %c0_107, %c0_108], %372 {strides = array<i32>} : memref<2x16x32xf32, #tpu.memory_space<vmem>>, vector<2x16x32xf32>,
    return
  }
  func.func @transform_0(%arg0: i32) -> (i32, i32, i32) {
    %c0_i32 = arith.constant 0 : i32
    %c0_i32_0 = arith.constant 0 : i32
    %c0_i32_1 = arith.constant 0 : i32
    return %arg0, %c0_i32, %c0_i32_0 : i32, i32, i32
  }
  func.func @transform_1(%arg0: i32) -> (i32, i32, i32) {
    %c0_i32 = arith.constant 0 : i32
    %c0_i32_0 = arith.constant 0 : i32
    %c0_i32_1 = arith.constant 0 : i32
    return %arg0, %c0_i32, %c0_i32_0 : i32, i32, i32
  }
  func.func @transform_2(%arg0: i32) -> (i32, i32) {
    %c0_i32 = arith.constant 0 : i32
    %c0_i32_0 = arith.constant 0 : i32
    %c0_i32_1 = arith.constant 0 : i32
    return %c0_i32, %c0_i32_0 : i32, i32
  }
  func.func @transform_3(%arg0: i32) -> (i32, i32, i32) {
    %c0_i32 = arith.constant 0 : i32
    %c0_i32_0 = arith.constant 0 : i32
    %c0_i32_1 = arith.constant 0 : i32
    %c0_i32_2 = arith.constant 0 : i32
    return %c0_i32, %c0_i32_0, %c0_i32_1 : i32, i32, i32
  }
  func.func @transform_4(%arg0: i32) -> (i32, i32, i32) {
    %c0_i32 = arith.constant 0 : i32
    %c0_i32_0 = arith.constant 0 : i32
    %c0_i32_1 = arith.constant 0 : i32
    %c0_i32_2 = arith.constant 0 : i32
    return %c0_i32, %c0_i32_0, %c0_i32_1 : i32, i32, i32
  }
  func.func @transform_5(%arg0: i32) -> (i32, i32, i32) {
    %c0_i32 = arith.constant 0 : i32
    %c0_i32_0 = arith.constant 0 : i32
    %c0_i32_1 = arith.constant 0 : i32
    %c0_i32_2 = arith.constant 0 : i32
    return %c0_i32, %c0_i32_0, %c0_i32_1 : i32, i32, i32
  }
  func.func @transform_6(%arg0: i32) -> (i32, i32, i32) {
    %c0_i32 = arith.constant 0 : i32
    %c0_i32_0 = arith.constant 0 : i32
    %c0_i32_1 = arith.constant 0 : i32
    %c0_i32_2 = arith.constant 0 : i32
    return %c0_i32, %c0_i32_0, %c0_i32_1 : i32, i32, i32
  }
  func.func @transform_7(%arg0: i32) -> (i32, i32, i32) {
    %c0_i32 = arith.constant 0 : i32
    %c0_i32_0 = arith.constant 0 : i32
    %c0_i32_1 = arith.constant 0 : i32
    %c0_i32_2 = arith.constant 0 : i32
    return %c0_i32, %c0_i32_0, %c0_i32_1 : i32, i32, i32
  }
  func.func @transform_8(%arg0: i32) -> (i32, i32) {
    %c0_i32 = arith.constant 0 : i32
    %c0_i32_0 = arith.constant 0 : i32
    %c0_i32_1 = arith.constant 0 : i32
    return %c0_i32, %c0_i32_0 : i32, i32
  }
  func.func @transform_9(%arg0: i32) -> (i32, i32) {
    %c0_i32 = arith.constant 0 : i32
    %c0_i32_0 = arith.constant 0 : i32
    %c0_i32_1 = arith.constant 0 : i32
    return %c0_i32, %c0_i32_0 : i32, i32
  }
  func.func @transform_10(%arg0: i32) -> (i32, i32) {
    %c0_i32 = arith.constant 0 : i32
    %c0_i32_0 = arith.constant 0 : i32
    %c0_i32_1 = arith.constant 0 : i32
    return %c0_i32, %c0_i32_0 : i32, i32
  }
  func.func @transform_11(%arg0: i32) -> (i32, i32) {
    %c0_i32 = arith.constant 0 : i32
    %c0_i32_0 = arith.constant 0 : i32
    %c0_i32_1 = arith.constant 0 : i32
    return %c0_i32, %c0_i32_0 : i32, i32
  }
  func.func @transform_12(%arg0: i32) -> (i32, i32) {
    %c0_i32 = arith.constant 0 : i32
    %c0_i32_0 = arith.constant 0 : i32
    %c0_i32_1 = arith.constant 0 : i32
    return %c0_i32, %c0_i32_0 : i32, i32
  }
  func.func @transform_13(%arg0: i32) -> (i32, i32) {
    %c0_i32 = arith.constant 0 : i32
    %c0_i32_0 = arith.constant 0 : i32
    %c0_i32_1 = arith.constant 0 : i32
    return %c0_i32, %c0_i32_0 : i32, i32
  }
  func.func @transform_14(%arg0: i32) -> (i32, i32) {
    %c0_i32 = arith.constant 0 : i32
    %c0_i32_0 = arith.constant 0 : i32
    %c0_i32_1 = arith.constant 0 : i32
    return %c0_i32, %c0_i32_0 : i32, i32
  }
  func.func @transform_15(%arg0: i32) -> (i32, i32) {
    %c0_i32 = arith.constant 0 : i32
    %c0_i32_0 = arith.constant 0 : i32
    %c0_i32_1 = arith.constant 0 : i32
    return %c0_i32, %c0_i32_0 : i32, i32
  }
  func.func @transform_16(%arg0: i32) -> (i32, i32) {
    %c0_i32 = arith.constant 0 : i32
    %c0_i32_0 = arith.constant 0 : i32
    %c0_i32_1 = arith.constant 0 : i32
    return %c0_i32, %c0_i32_0 : i32, i32
  }
  func.func @transform_17(%arg0: i32) -> (i32, i32, i32) {
    %c0_i32 = arith.constant 0 : i32
    %c0_i32_0 = arith.constant 0 : i32
    %c0_i32_1 = arith.constant 0 : i32
    return %arg0, %c0_i32, %c0_i32_0 : i32, i32, i32
  }
}

</mosaic_0001>

<llo_original>
// kernel: tpu_custom_call.1
$region0: #{tpu_custom_call.1}
  #allocation0 [shape = 'u32[]', space=smem, size = 0x4, offset = 0x4, fixed_abs, tag = 'smem constant byte address 0x4 - core index']
  #allocation1 [shape = 'u32[144,128]{1,0:T(1,128)}', space=vmem, size = 0x12000, scoped, tag = 'internal scratch']
  %s0 = inlined_call_operand.hbm [shape: f32[2,16,32], index: 0, kind: input, shape index: {}]
  %s1 = inlined_call_operand.hbm [shape: f32[2,1,16], index: 1, kind: input, shape index: {}]
  %s2 = inlined_call_operand.vmem [shape: f32[16,32], index: 2, kind: input, shape index: {}]
  %s3 = inlined_call_operand.hbm [shape: f32[2,1,32], index: 3, kind: input, shape index: {}]
  %s4 = inlined_call_operand.hbm [shape: f32[2,1,32], index: 4, kind: input, shape index: {}]
  %s5 = inlined_call_operand.vmem [shape: f32[2,5,32], index: 5, kind: input, shape index: {}]
  %s6 = inlined_call_operand.vmem [shape: bf16[2,32,32], index: 6, kind: input, shape index: {}]
  %s7 = inlined_call_operand.vmem [shape: f32[2,1,32], index: 7, kind: input, shape index: {}]
  %s8 = inlined_call_operand.hbm [shape: f32[1,32], index: 8, kind: input, shape index: {}]
  %s9 = inlined_call_operand.hbm [shape: f32[1,32], index: 9, kind: input, shape index: {}]
  %s10 = inlined_call_operand.hbm [shape: bf16[32,96], index: 10, kind: input, shape index: {}]
  %s11 = inlined_call_operand.hbm [shape: f32[1,32], index: 11, kind: input, shape index: {}]
  %s12 = inlined_call_operand.hbm [shape: f32[1,32], index: 12, kind: input, shape index: {}]
  %s13 = inlined_call_operand.vmem [shape: bf16[32,32], index: 13, kind: input, shape index: {}]
  %s14 = inlined_call_operand.hbm [shape: f32[1,32], index: 14, kind: input, shape index: {}]
  %s15 = inlined_call_operand.vmem [shape: bf16[32,32], index: 15, kind: input, shape index: {}]
  %s16 = inlined_call_operand.vmem [shape: f32[1,32], index: 16, kind: input, shape index: {}]
  %s17 = inlined_call_operand.hbm [shape: f32[2,16,32], index: 17, kind: output, shape index: {}]
  %s18 = sld [smem:[#allocation0]]
  $region118: #{tpu_custom_call.1} parent=0
    _
  %s20 = ssub.s32 1, %s18
  %s21 = scalar_select 0, %s20, %s18
  $region1: #{tpu_custom_call.1} parent=0
    #allocation2 [shape = 'u8[16384]{0}', space=vmem, size = 0x4000, scoped, tag = 'input window, operand 0, single buffered']
    #allocation3 [shape = 's32[1]{0}', space=sflag, size = 0x4, scoped, tag = 'scoped memory for tpu_custom_call.1']
    #allocation4 [shape = 's32[1]{0}', space=sflag, size = 0x4, scoped, tag = 'scoped memory for tpu_custom_call.1']
    #allocation5 [shape = 'u8[1024]{0}', space=vmem, size = 0x400, scoped, tag = 'input window, operand 1, single buffered']
    #allocation6 [shape = 's32[1]{0}', space=sflag, size = 0x4, scoped, tag = 'scoped memory for tpu_custom_call.1']
    #allocation7 [shape = 'u8[1024]{0}', space=vmem, size = 0x400, scoped, tag = 'input window, operand 3, single buffered']
    #allocation8 [shape = 'u8[1024]{0}', space=vmem, size = 0x400, scoped, tag = 'input window, operand 4, single buffered']
    #allocation9 [shape = 's32[1]{0}', space=sflag, size = 0x4, scoped, tag = 'scoped memory for tpu_custom_call.1']
    #allocation10 [shape = 'u8[512]{0}', space=vmem, size = 0x400, scoped, tag = 'input window, operand 8, single buffered']
    #allocation11 [shape = 'u8[512]{0}', space=vmem, size = 0x400, scoped, tag = 'input window, operand 9, single buffered']
    #allocation12 [shape = 's32[1]{0}', space=sflag, size = 0x4, scoped, tag = 'scoped memory for tpu_custom_call.1']
    #allocation13 [shape = 'u8[8192]{0}', space=vmem, size = 0x2000, scoped, tag = 'input window, operand 10, single buffered']
    #allocation14 [shape = 'u8[512]{0}', space=vmem, size = 0x400, scoped, tag = 'input window, operand 11, single buffered']
    #allocation15 [shape = 's32[1]{0}', space=sflag, size = 0x4, scoped, tag = 'scoped memory for tpu_custom_call.1']
    #allocation16 [shape = 'u8[512]{0}', space=vmem, size = 0x400, scoped, tag = 'input window, operand 12, single buffered']
    #allocation17 [shape = 'u8[512]{0}', space=vmem, size = 0x400, scoped, tag = 'input window, operand 14, single buffered']
    #allocation18 [shape = 's32[1]{0}', space=sflag, size = 0x4, scoped, tag = 'scoped memory for tpu_custom_call.1']
    #allocation19 [shape = 'u8[16384]{0}', space=vmem, size = 0x4000, scoped, tag = 'output window, operand 0, single buffered']
    %22 = vsyncpa [#allocation3], 0
    %23 = vsyncpa [#allocation6], 0
    %24 = vsyncpa [#allocation9], 0
    %25 = vsyncpa [#allocation12], 0
    %26 = vsyncpa [#allocation15], 0
    %27 = vsyncpa [#allocation18], 0
    %28 = vsyncpa [#allocation4], 0
    // Predicated region
    $region2: #{tpu_custom_call.1} parent=1 // pred_check
      _
    $region3: #{tpu_custom_call.1} parent=1 // pred_check_branch
      %30 = sbr.rel (0) target = $region5
    $region4: #{tpu_custom_call.1} parent=1 // pred_region
      %s32 = ssub.s32 512, 512
      %33 = vsyncadd [#allocation3], %s32
      %s34 = sshll.u32 [#allocation2], 4
      %s35 = int_to_ptr.vmem [resolvable:$true] %s34
      %40 = dma.hbm_to_vmem [thread:$0]  %s0, 512, %s35, [#allocation3], 128, 128, 8
    $region5: #{tpu_custom_call.1} parent=1 // pred_fallthru
      _
    // Predicated region
    $region6: #{tpu_custom_call.1} parent=1 // pred_check
      _
    $region7: #{tpu_custom_call.1} parent=1 // pred_check_branch
      %42 = sbr.rel (0) target = $region9
    $region8: #{tpu_custom_call.1} parent=1 // pred_region
      %s44 = ssub.s32 32, 32
      %45 = vsyncadd [#allocation6], %s44
      %s46 = sshll.u32 [#allocation5], 4
      %s47 = int_to_ptr.vmem [resolvable:$true] %s46
      %52 = dma.hbm_to_vmem [thread:$0]  %s1, 32, %s47, [#allocation6], 16, 16, 1
    $region9: #{tpu_custom_call.1} parent=1 // pred_fallthru
      _
    // Predicated region
    $region10: #{tpu_custom_call.1} parent=1 // pred_check
      _
    $region11: #{tpu_custom_call.1} parent=1 // pred_check_branch
      %54 = sbr.rel (0) target = $region13
    $region12: #{tpu_custom_call.1} parent=1 // pred_region
      _
    $region13: #{tpu_custom_call.1} parent=1 // pred_fallthru
      _
    // Predicated region
    $region14: #{tpu_custom_call.1} parent=1 // pred_check
      _
    $region15: #{tpu_custom_call.1} parent=1 // pred_check_branch
      %56 = sbr.rel (0) target = $region17
    $region16: #{tpu_custom_call.1} parent=1 // pred_region
      %s58 = ssub.s32 32, 32
      %59 = vsyncadd [#allocation6], %s58
      %s60 = sshll.u32 [#allocation7], 4
      %s61 = int_to_ptr.vmem [resolvable:$true] %s60
      %66 = dma.hbm_to_vmem [thread:$0]  %s3, 32, %s61, [#allocation6], 16, 16, 1
    $region17: #{tpu_custom_call.1} parent=1 // pred_fallthru
      _
    // Predicated region
    $region18: #{tpu_custom_call.1} parent=1 // pred_check
      _
    $region19: #{tpu_custom_call.1} parent=1 // pred_check_branch
      %68 = sbr.rel (0) target = $region21
    $region20: #{tpu_custom_call.1} parent=1 // pred_region
      %s70 = ssub.s32 32, 32
      %71 = vsyncadd [#allocation9], %s70
      %s72 = sshll.u32 [#allocation8], 4
      %s73 = int_to_ptr.vmem [resolvable:$true] %s72
      %78 = dma.hbm_to_vmem [thread:$0]  %s4, 32, %s73, [#allocation9], 16, 16, 1
    $region21: #{tpu_custom_call.1} parent=1 // pred_fallthru
      _
    // Predicated region
    $region22: #{tpu_custom_call.1} parent=1 // pred_check
      _
    $region23: #{tpu_custom_call.1} parent=1 // pred_check_branch
      %80 = sbr.rel (0) target = $region25
    $region24: #{tpu_custom_call.1} parent=1 // pred_region
      _
    $region25: #{tpu_custom_call.1} parent=1 // pred_fallthru
      _
    // Predicated region
    $region26: #{tpu_custom_call.1} parent=1 // pred_check
      _
    $region27: #{tpu_custom_call.1} parent=1 // pred_check_branch
      %82 = sbr.rel (0) target = $region29
    $region28: #{tpu_custom_call.1} parent=1 // pred_region
      _
    $region29: #{tpu_custom_call.1} parent=1 // pred_fallthru
      _
    // Predicated region
    $region30: #{tpu_custom_call.1} parent=1 // pred_check
      _
    $region31: #{tpu_custom_call.1} parent=1 // pred_check_branch
      %84 = sbr.rel (0) target = $region33
    $region32: #{tpu_custom_call.1} parent=1 // pred_region
      _
    $region33: #{tpu_custom_call.1} parent=1 // pred_fallthru
      _
    // Predicated region
    $region34: #{tpu_custom_call.1} parent=1 // pred_check
      _
    $region35: #{tpu_custom_call.1} parent=1 // pred_check_branch
      %86 = sbr.rel (0) target = $region37
    $region36: #{tpu_custom_call.1} parent=1 // pred_region
      %s88 = ssub.s32 16, 16
      %89 = vsyncadd [#allocation9], %s88
      %s91 = sshll.u32 [#allocation10], 4
      %s92 = int_to_ptr.vmem [resolvable:$true] %s91
      %94 = dma.hbm_to_vmem [thread:$0]  %s8, 16, %s92, [#allocation9]
    $region37: #{tpu_custom_call.1} parent=1 // pred_fallthru
      _
    // Predicated region
    $region38: #{tpu_custom_call.1} parent=1 // pred_check
      _
    $region39: #{tpu_custom_call.1} parent=1 // pred_check_branch
      %96 = sbr.rel (0) target = $region41
    $region40: #{tpu_custom_call.1} parent=1 // pred_region
      %s98 = ssub.s32 16, 16
      %99 = vsyncadd [#allocation12], %s98
      %s101 = sshll.u32 [#allocation11], 4
      %s102 = int_to_ptr.vmem [resolvable:$true] %s101
      %104 = dma.hbm_to_vmem [thread:$0]  %s9, 16, %s102, [#allocation12]
    $region41: #{tpu_custom_call.1} parent=1 // pred_fallthru
      _
    // Predicated region
    $region42: #{tpu_custom_call.1} parent=1 // pred_check
      _
    $region43: #{tpu_custom_call.1} parent=1 // pred_check_branch
      %106 = sbr.rel (0) target = $region45
    $region44: #{tpu_custom_call.1} parent=1 // pred_region
      %s108 = ssub.s32 256, 256
      %109 = vsyncadd [#allocation12], %s108
      %s110 = sshll.u32 [#allocation13], 4
      %s111 = int_to_ptr.vmem [resolvable:$true] %s110
      %116 = dma.hbm_to_vmem [thread:$0]  %s10, 256, %s111, [#allocation12], 64, 64, 4
    $region45: #{tpu_custom_call.1} parent=1 // pred_fallthru
      _
    // Predicated region
    $region46: #{tpu_custom_call.1} parent=1 // pred_check
      _
    $region47: #{tpu_custom_call.1} parent=1 // pred_check_branch
      %118 = sbr.rel (0) target = $region49
    $region48: #{tpu_custom_call.1} parent=1 // pred_region
      %s120 = ssub.s32 16, 16
      %121 = vsyncadd [#allocation15], %s120
      %s123 = sshll.u32 [#allocation14], 4
      %s124 = int_to_ptr.vmem [resolvable:$true] %s123
      %126 = dma.hbm_to_vmem [thread:$0]  %s11, 16, %s124, [#allocation15]
    $region49: #{tpu_custom_call.1} parent=1 // pred_fallthru
      _
    // Predicated region
    $region50: #{tpu_custom_call.1} parent=1 // pred_check
      _
    $region51: #{tpu_custom_call.1} parent=1 // pred_check_branch
      %128 = sbr.rel (0) target = $region53
    $region52: #{tpu_custom_call.1} parent=1 // pred_region
      %s130 = ssub.s32 16, 16
      %131 = vsyncadd [#allocation15], %s130
      %s133 = sshll.u32 [#allocation16], 4
      %s134 = int_to_ptr.vmem [resolvable:$true] %s133
      %136 = dma.hbm_to_vmem [thread:$0]  %s12, 16, %s134, [#allocation15]
    $region53: #{tpu_custom_call.1} parent=1 // pred_fallthru
      _
    // Predicated region
    $region54: #{tpu_custom_call.1} parent=1 // pred_check
      _
    $region55: #{tpu_custom_call.1} parent=1 // pred_check_branch
      %138 = sbr.rel (0) target = $region57
    $region56: #{tpu_custom_call.1} parent=1 // pred_region
      _
    $region57: #{tpu_custom_call.1} parent=1 // pred_fallthru
      _
    // Predicated region
    $region58: #{tpu_custom_call.1} parent=1 // pred_check
      _
    $region59: #{tpu_custom_call.1} parent=1 // pred_check_branch
      %140 = sbr.rel (0) target = $region61
    $region60: #{tpu_custom_call.1} parent=1 // pred_region
      %s142 = ssub.s32 16, 16
      %143 = vsyncadd [#allocation18], %s142
      %s145 = sshll.u32 [#allocation17], 4
      %s146 = int_to_ptr.vmem [resolvable:$true] %s145
      %148 = dma.hbm_to_vmem [thread:$0]  %s14, 16, %s146, [#allocation18]
    $region61: #{tpu_custom_call.1} parent=1 // pred_fallthru
      _
    // Predicated region
    $region62: #{tpu_custom_call.1} parent=1 // pred_check
      _
    $region63: #{tpu_custom_call.1} parent=1 // pred_check_branch
      %150 = sbr.rel (0) target = $region65
    $region64: #{tpu_custom_call.1} parent=1 // pred_region
      _
    $region65: #{tpu_custom_call.1} parent=1 // pred_fallthru
      _
    // Predicated region
    $region66: #{tpu_custom_call.1} parent=1 // pred_check
      _
    $region67: #{tpu_custom_call.1} parent=1 // pred_check_branch
      %152 = sbr.rel (0) target = $region69
    $region68: #{tpu_custom_call.1} parent=1 // pred_region
      _
    $region69: #{tpu_custom_call.1} parent=1 // pred_fallthru
      _
    // Predicated region
    $region70: #{tpu_custom_call.1} parent=1 // pred_check
      _
    $region71: #{tpu_custom_call.1} parent=1 // pred_check_branch
      %154 = sbr.rel (0) target = $region73
    $region72: #{tpu_custom_call.1} parent=1 // pred_region
      %155 = dma.done [#allocation3], 512
    $region73: #{tpu_custom_call.1} parent=1 // pred_fallthru
      _
    // Predicated region
    $region74: #{tpu_custom_call.1} parent=1 // pred_check
      _
    $region75: #{tpu_custom_call.1} parent=1 // pred_check_branch
      %157 = sbr.rel (0) target = $region77
    $region76: #{tpu_custom_call.1} parent=1 // pred_region
      %158 = dma.done [#allocation6], 32
    $region77: #{tpu_custom_call.1} parent=1 // pred_fallthru
      _
    // Predicated region
    $region78: #{tpu_custom_call.1} parent=1 // pred_check
      _
    $region79: #{tpu_custom_call.1} parent=1 // pred_check_branch
      %160 = sbr.rel (0) target = $region81
    $region80: #{tpu_custom_call.1} parent=1 // pred_region
      %161 = dma.done [#allocation6], 32
    $region81: #{tpu_custom_call.1} parent=1 // pred_fallthru
      _
    // Predicated region
    $region82: #{tpu_custom_call.1} parent=1 // pred_check
      _
    $region83: #{tpu_custom_call.1} parent=1 // pred_check_branch
      %163 = sbr.rel (0) target = $region85
    $region84: #{tpu_custom_call.1} parent=1 // pred_region
      %164 = dma.done [#allocation9], 32
    $region85: #{tpu_custom_call.1} parent=1 // pred_fallthru
      _
    // Predicated region
    $region86: #{tpu_custom_call.1} parent=1 // pred_check
      _
    $region87: #{tpu_custom_call.1} parent=1 // pred_check_branch
      %166 = sbr.rel (0) target = $region89
    $region88: #{tpu_custom_call.1} parent=1 // pred_region
      %167 = dma.done [#allocation9], 16
    $region89: #{tpu_custom_call.1} parent=1 // pred_fallthru
      _
    // Predicated region
    $region90: #{tpu_custom_call.1} parent=1 // pred_check
      _
    $region91: #{tpu_custom_call.1} parent=1 // pred_check_branch
      %169 = sbr.rel (0) target = $region93
    $region92: #{tpu_custom_call.1} parent=1 // pred_region
      %170 = dma.done [#allocation12], 16
    $region93: #{tpu_custom_call.1} parent=1 // pred_fallthru
      _
    // Predicated region
    $region94: #{tpu_custom_call.1} parent=1 // pred_check
      _
    $region95: #{tpu_custom_call.1} parent=1 // pred_check_branch
      %172 = sbr.rel (0) target = $region97
    $region96: #{tpu_custom_call.1} parent=1 // pred_region
      %173 = dma.done [#allocation12], 256
    $region97: #{tpu_custom_call.1} parent=1 // pred_fallthru
      _
    // Predicated region
    $region98: #{tpu_custom_call.1} parent=1 // pred_check
      _
    $region99: #{tpu_custom_call.1} parent=1 // pred_check_branch
      %175 = sbr.rel (0) target = $region101
    $region100: #{tpu_custom_call.1} parent=1 // pred_region
      %176 = dma.done [#allocation15], 16
    $region101: #{tpu_custom_call.1} parent=1 // pred_fallthru
      _
    // Predicated region
    $region102: #{tpu_custom_call.1} parent=1 // pred_check
      _
    $region103: #{tpu_custom_call.1} parent=1 // pred_check_branch
      %178 = sbr.rel (0) target = $region105
    $region104: #{tpu_custom_call.1} parent=1 // pred_region
      %179 = dma.done [#allocation15], 16
    $region105: #{tpu_custom_call.1} parent=1 // pred_fallthru
      _
    // Predicated region
    $region106: #{tpu_custom_call.1} parent=1 // pred_check
      _
    $region107: #{tpu_custom_call.1} parent=1 // pred_check_branch
      %181 = sbr.rel (0) target = $region109
    $region108: #{tpu_custom_call.1} parent=1 // pred_region
      %182 = dma.done [#allocation18], 16
    $region109: #{tpu_custom_call.1} parent=1 // pred_fallthru
      _
    %v184 = vld [vmem:[#allocation2] sm:$0xff]
    %v185 = vld [vmem:[#allocation2 + $0x8] sm:$0xff]
    %v186 = vld [vmem:[#allocation2 + $0x10] sm:$0xff]
    %v187 = vld [vmem:[#allocation2 + $0x18] sm:$0xff]
    %v188 = vld [vmem:[%s2] sm:$0xff]
    %v189 = vld [vmem:[%s2 + $0x8] sm:$0xff]
    %v190 = vadd.f32 %v184, %v188
    %v191 = vadd.f32 %v185, %v189
    %v192 = vadd.f32 %v186, %v188
    %v193 = vadd.f32 %v187, %v189
    %v194 = vlaneseq
    %v195 = vshrl.u32 %v194, 7
    %v196 = vadd.s32 %v195, 8
    %v197 = vadd.s32 %v195, 16
    %v198 = vadd.s32 %v195, 24
    %vm199 = vcmp.lt.s32.totalorder %v195, 0
    %v200 = vsub.s32 0, %v195
    %v201 = vsel %vm199, %v200, %v195
    %v202 = vshrl.u32 %v201, 4
    %v203 = vand.u32 %v201, 15
    %v204 = vsub.s32 0, %v203
    %v205 = vsel %vm199, %v204, %v203
    %vm206 = vcmp.lt.s32.totalorder %v196, 0
    %v207 = vsub.s32 0, %v196
    %v208 = vsel %vm206, %v207, %v196
    %v209 = vshrl.u32 %v208, 4
    %v210 = vand.u32 %v208, 15
    %v211 = vsub.s32 0, %v210
    %v212 = vsel %vm206, %v211, %v210
    %vm213 = vcmp.lt.s32.totalorder %v197, 0
    %v214 = vsub.s32 0, %v197
    %v215 = vsel %vm213, %v214, %v197
    %v216 = vshrl.u32 %v215, 4
    %v217 = vand.u32 %v215, 15
    %v218 = vsub.s32 0, %v217
    %v219 = vsel %vm213, %v218, %v217
    %vm220 = vcmp.lt.s32.totalorder %v198, 0
    %v221 = vsub.s32 0, %v198
    %v222 = vsel %vm220, %v221, %v198
    %v223 = vshrl.u32 %v222, 4
    %v224 = vand.u32 %v222, 15
    %v225 = vsub.s32 0, %v224
    %v226 = vsel %vm220, %v225, %v224
    %vm227 = vcmp.ne.s32.totalorder %v205, 0
    %vm228 = vcmp.ne.s32.totalorder %v212, 0
    %vm229 = vcmp.ne.s32.totalorder %v219, 0
    %vm230 = vcmp.ne.s32.totalorder %v226, 0
    %vm231 = vcmp.lt.s32.totalorder %v205, 0
    %vm232 = vcmp.lt.s32.totalorder %v212, 0
    %vm233 = vcmp.lt.s32.totalorder %v219, 0
    %vm234 = vcmp.lt.s32.totalorder %v226, 0
    %vm235 = vmand %vm231, %vm227
    %vm236 = vmand %vm232, %vm228
    %vm237 = vmand %vm233, %vm229
    %vm238 = vmand %vm234, %vm230
    %v239 = vadd.s32 %v205, 16
    %v240 = vadd.s32 %v212, 16
    %v241 = vadd.s32 %v219, 16
    %v242 = vadd.s32 %v226, 16
    %v243 = vsel %vm235, %v239, %v205
    %v244 = vsel %vm236, %v240, %v212
    %v245 = vsel %vm237, %v241, %v219
    %v246 = vsel %vm238, %v242, %v226
    %vm247 = vcmp.ge.s32.totalorder %v243, 2
    %vm248 = vcmp.ge.s32.totalorder %v244, 2
    %vm249 = vcmp.ge.s32.totalorder %v245, 2
    %vm250 = vcmp.ge.s32.totalorder %v246, 2
    %v251 = vsel %vm247, 1, 0
    %v252 = vsel %vm248, 1, 0
    %v253 = vsel %vm249, 1, 0
    %v254 = vsel %vm250, 1, 0
    %v255 = vcvt.s32.f32 %v251
    %v256 = vcvt.s32.f32 %v252
    %v257 = vcvt.s32.f32 %v253
    %v258 = vcvt.s32.f32 %v254
    %vm259 = vcmp.ge.s32.totalorder %v243, 1
    %vm260 = vcmp.ge.s32.totalorder %v244, 1
    %vm261 = vcmp.ge.s32.totalorder %v245, 1
    %vm262 = vcmp.ge.s32.totalorder %v246, 1
    %v263 = vsel %vm259, 1, 0
    %v264 = vsel %vm260, 1, 0
    %v265 = vsel %vm261, 1, 0
    %v266 = vsel %vm262, 1, 0
    %v267 = vcvt.s32.f32 %v263
    %v268 = vcvt.s32.f32 %v264
    %v269 = vcvt.s32.f32 %v265
    %v270 = vcvt.s32.f32 %v266
    %vm271 = vcmp.lt.s32.totalorder %v243, 15
    %vm272 = vcmp.lt.s32.totalorder %v244, 15
    %vm273 = vcmp.lt.s32.totalorder %v245, 15
    %vm274 = vcmp.lt.s32.totalorder %v246, 15
    %v275 = vsel %vm271, 1, 0
    %v276 = vsel %vm272, 1, 0
    %v277 = vsel %vm273, 1, 0
    %v278 = vsel %vm274, 1, 0
    %v279 = vcvt.s32.f32 %v275
    %v280 = vcvt.s32.f32 %v276
    %v281 = vcvt.s32.f32 %v277
    %v282 = vcvt.s32.f32 %v278
    %vm283 = vcmp.lt.s32.totalorder %v243, 14
    %vm284 = vcmp.lt.s32.totalorder %v244, 14
    %vm285 = vcmp.lt.s32.totalorder %v245, 14
    %vm286 = vcmp.lt.s32.totalorder %v246, 14
    %v287 = vsel %vm283, 1, 0
    %v288 = vsel %vm284, 1, 0
    %v289 = vsel %vm285, 1, 0
    %v290 = vsel %vm286, 1, 0
    %v291 = vcvt.s32.f32 %v287
    %v292 = vcvt.s32.f32 %v288
    %v293 = vcvt.s32.f32 %v289
    %v294 = vcvt.s32.f32 %v290
    %v295 = vld [vmem:[#allocation7] sm:$0x1]
    %v296 = vld [vmem:[#allocation8] sm:$0x1]
    %vm297 = vcmask 261120
    %v298 = vsel %vm297, %v190, 0.0
    %299 = vadd.xlane.f32.xlu0 %v298
    %v300 = vpop.xlane.xlu0 %299
    %v301 = vsel %vm297, %v191, 0.0
    %302 = vadd.xlane.f32.xlu0 %v301
    %v303 = vpop.xlane.xlu0 %302
    %v304 = vsel %vm297, %v192, 0.0
    %305 = vadd.xlane.f32.xlu0 %v304
    %v306 = vpop.xlane.xlu0 %305
    %v307 = vsel %vm297, %v193, 0.0
    %308 = vadd.xlane.f32.xlu0 %v307
    %v309 = vpop.xlane.xlu0 %308
    %v310 = vrcp.pop 32.0
    %v311 = vmul.f32 %v300, %v310
    %v312 = vmul.f32 %v303, %v310
    %v313 = vmul.f32 %v306, %v310
    %v314 = vmul.f32 %v309, %v310
    %v315 = vsub.f32 %v190, %v311
    %v316 = vsub.f32 %v191, %v312
    %v317 = vsub.f32 %v192, %v313
    %v318 = vsub.f32 %v193, %v314
    %v319 = vmul.f32 %v315, %v315
    %v320 = vmul.f32 %v316, %v316
    %v321 = vmul.f32 %v317, %v317
    %v322 = vmul.f32 %v318, %v318
    %v323 = vsel %vm297, %v319, 0.0
    %324 = vadd.xlane.f32.xlu0 %v323
    %v325 = vpop.xlane.xlu0 %324
    %v326 = vsel %vm297, %v320, 0.0
    %327 = vadd.xlane.f32.xlu0 %v326
    %v328 = vpop.xlane.xlu0 %327
    %v329 = vsel %vm297, %v321, 0.0
    %330 = vadd.xlane.f32.xlu0 %v329
    %v331 = vpop.xlane.xlu0 %330
    %v332 = vsel %vm297, %v322, 0.0
    %333 = vadd.xlane.f32.xlu0 %v332
    %v334 = vpop.xlane.xlu0 %333
    %v335 = vmul.f32 %v325, %v310
    %v336 = vmul.f32 %v328, %v310
    %v337 = vmul.f32 %v331, %v310
    %v338 = vmul.f32 %v334, %v310
    %v339 = vadd.f32 %v335, 1e-05
    %v340 = vadd.f32 %v336, 1e-05
    %v341 = vadd.f32 %v337, 1e-05
    %v342 = vadd.f32 %v338, 1e-05
    %v343 = vrsqrt.pop %v339
    %v344 = vrsqrt.pop %v340
    %v345 = vrsqrt.pop %v341
    %v346 = vrsqrt.pop %v342
    %v347 = vmul.f32 %v315, %v343
    %v348 = vmul.f32 %v316, %v344
    %v349 = vmul.f32 %v317, %v345
    %v350 = vmul.f32 %v318, %v346
    %v352 = vlaneseq
    %v353 = vshrl.u32 %v352, 7
    %v354 = vsub.s32 0, %v353
    %v355 = vrot.slane %v295, %v354
    %v357 = vmul.f32 %v347, %v355
    %v358 = vmul.f32 %v348, %v355
    %v359 = vmul.f32 %v349, %v355
    %v360 = vmul.f32 %v350, %v355
    %v362 = vlaneseq
    %v363 = vshrl.u32 %v362, 7
    %v364 = vsub.s32 0, %v363
    %v365 = vrot.slane %v296, %v364
    %v367 = vadd.f32 %v357, %v365
    %v368 = vadd.f32 %v358, %v365
    %v369 = vadd.f32 %v359, %v365
    %v370 = vadd.f32 %v360, %v365
    %v371 = vld [vmem:[%s5] sm:$0x1f]
    %v372 = vlaneseq
    %v373 = vshrl.u32 %v372, 7
    %v374 = vsub.s32 2, %v373
    %v375 = vrot.slane %v371, %v374
    %v376 = vmul.f32 %v367, %v375
    %v377 = vmul.f32 %v368, %v375
    %v378 = vmul.f32 %v369, %v375
    %v379 = vmul.f32 %v370, %v375
    %v380 = vrot.slane %v367, 6
    %v381 = vrot.slane %v368, 6
    %v382 = vrot.slane %v369, 6
    %v383 = vrot.slane %v370, 6
    %vm384 = vcmp.lt.s32.totalorder %v195, 2
    %v385 = vsel %vm384, %v382, %v383
    %v386 = vsel %vm384, %v381, %v382
    %v387 = vsel %vm384, %v380, %v381
    %v388 = vsel %vm384, %v383, %v380
    %v389 = vlaneseq
    %v390 = vshrl.u32 %v389, 7
    %v391 = vsub.s32 0, %v390
    %v392 = vrot.slane %v371, %v391
    %v393 = vmul.f32 %v388, %v392
    %v394 = vmul.f32 %v387, %v392
    %v395 = vmul.f32 %v386, %v392
    %v396 = vmul.f32 %v385, %v392
    %v397 = vmul.f32 %v393, %v255
    %v398 = vmul.f32 %v394, %v256
    %v399 = vmul.f32 %v395, %v257
    %v400 = vmul.f32 %v396, %v258
    %v401 = vadd.f32 %v376, %v397
    %v402 = vadd.f32 %v377, %v398
    %v403 = vadd.f32 %v378, %v399
    %v404 = vadd.f32 %v379, %v400
    %v405 = vrot.slane %v367, 7
    %v406 = vrot.slane %v368, 7
    %v407 = vrot.slane %v369, 7
    %v408 = vrot.slane %v370, 7
    %vm409 = vcmp.lt.s32.totalorder %v195, 1
    %v410 = vsel %vm409, %v407, %v408
    %v411 = vsel %vm409, %v406, %v407
    %v412 = vsel %vm409, %v405, %v406
    %v413 = vsel %vm409, %v408, %v405
    %v414 = vlaneseq
    %v415 = vshrl.u32 %v414, 7
    %v416 = vsub.s32 1, %v415
    %v417 = vrot.slane %v371, %v416
    %v418 = vmul.f32 %v413, %v417
    %v419 = vmul.f32 %v412, %v417
    %v420 = vmul.f32 %v411, %v417
    %v421 = vmul.f32 %v410, %v417
    %v422 = vmul.f32 %v418, %v267
    %v423 = vmul.f32 %v419, %v268
    %v424 = vmul.f32 %v420, %v269
    %v425 = vmul.f32 %v421, %v270
    %v426 = vadd.f32 %v401, %v422
    %v427 = vadd.f32 %v402, %v423
    %v428 = vadd.f32 %v403, %v424
    %v429 = vadd.f32 %v404, %v425
    %v430 = vrot.slane %v367, 1
    %v431 = vrot.slane %v368, 1
    %v432 = vrot.slane %v369, 1
    %v433 = vrot.slane %v370, 1
    %vm434 = vcmp.lt.s32.totalorder %v195, 7
    %v435 = vsel %vm434, %v432, %v433
    %v436 = vsel %vm434, %v431, %v432
    %v437 = vsel %vm434, %v430, %v431
    %v438 = vsel %vm434, %v433, %v430
    %v439 = vlaneseq
    %v440 = vshrl.u32 %v439, 7
    %v441 = vsub.s32 3, %v440
    %v442 = vrot.slane %v371, %v441
    %v443 = vmul.f32 %v437, %v442
    %v444 = vmul.f32 %v436, %v442
    %v445 = vmul.f32 %v435, %v442
    %v446 = vmul.f32 %v438, %v442
    %v447 = vmul.f32 %v443, %v279
    %v448 = vmul.f32 %v444, %v280
    %v449 = vmul.f32 %v445, %v281
    %v450 = vmul.f32 %v446, %v282
    %v451 = vadd.f32 %v426, %v447
    %v452 = vadd.f32 %v427, %v448
    %v453 = vadd.f32 %v428, %v449
    %v454 = vadd.f32 %v429, %v450
    %v455 = vrot.slane %v367, 2
    %v456 = vrot.slane %v368, 2
    %v457 = vrot.slane %v369, 2
    %v458 = vrot.slane %v370, 2
    %vm459 = vcmp.lt.s32.totalorder %v195, 6
    %v460 = vsel %vm459, %v457, %v458
    %v461 = vsel %vm459, %v456, %v457
    %v462 = vsel %vm459, %v455, %v456
    %v463 = vsel %vm459, %v458, %v455
    %v464 = vlaneseq
    %v465 = vshrl.u32 %v464, 7
    %v466 = vsub.s32 4, %v465
    %v467 = vrot.slane %v371, %v466
    %v468 = vmul.f32 %v462, %v467
    %v469 = vmul.f32 %v461, %v467
    %v470 = vmul.f32 %v460, %v467
    %v471 = vmul.f32 %v463, %v467
    %v472 = vmul.f32 %v468, %v291
    %v473 = vmul.f32 %v469, %v292
    %v474 = vmul.f32 %v470, %v293
    %v475 = vmul.f32 %v471, %v294
    %v476 = vadd.f32 %v451, %v472
    %v477 = vadd.f32 %v452, %v473
    %v478 = vadd.f32 %v453, %v474
    %v479 = vadd.f32 %v454, %v475
    %v480 = vpack.c.bf16 %v477, %v476
    %v481 = vpack.c.bf16 %v479, %v478
    %v482 = vld [vmem:[%s6] sm:$0xf]
    %v483 = vld [vmem:[%s6 + $0x4] sm:$0xf]
    %v484 = vld [vmem:[%s6 + $0x8] sm:$0xf]
    %v485 = vld [vmem:[%s6 + $0xc] sm:$0xf]
    %v486 = vld [vmem:[%s7] sm:$0x1]
    %v488 = vlaneseq
    %v489 = vshrl.u32 %v488, 7
    %v490 = vsub.s32 0, %v489
    %v491 = vrot.slane %v486, %v490
    %v497 = vunpack.c.l.b16 %v482
    %v498 = vunpack.c.l.b16 %v483
    %v499 = vunpack.c.l.b16 %v484
    %v500 = vunpack.c.l.b16 %v485
    %v501 = vpack.c.b16 %v498, %v497
    %v502 = vpack.c.b16 %v500, %v499
    %v506 = vsel %vm297, %v480, 0
    %v509 = vsel %vm297, %v481, 0
    %511 = vmatprep.subr.bf16.mxu0 0
    %512 = vmatpush1.bf16.msra.mxu0 %v501
    %513 = vmatprep.subr.bf16.mxu0 0
    %514 = vmatpush1.bf16.msra.mxu0 %v502
    %515 = vmatprep.subr.bf16.mxu0 0
    %516 = vmatpush1.bf16.msra.mxu0 0
    %517 = vmatprep.subr.bf16.mxu0 0
    %518 = vmatpush1.bf16.msra.mxu0 0
    %519 = vmatprep.subr.bf16.mxu0 0
    %520 = vmatpush1.bf16.msra.mxu0 0
    %521 = vmatprep.subr.bf16.mxu0 0
    %522 = vmatpush1.bf16.msra.mxu0 0
    %523 = vmatprep.subr.bf16.mxu0 0
    %524 = vmatpush1.bf16.msra.mxu0 0
    %525 = vmatprep.subr.bf16.mxu0 0
    %526 = vmatpush1.bf16.msra.mxu0 0
    %527 = vmatprep.subr.bf16.mxu0 0
    %528 = vmatpush1.bf16.msra.mxu0 0
    %529 = vmatprep.subr.bf16.mxu0 0
    %530 = vmatpush1.bf16.msra.mxu0 0
    %531 = vmatprep.subr.bf16.mxu0 0
    %532 = vmatpush1.bf16.msra.mxu0 0
    %533 = vmatprep.subr.bf16.mxu0 0
    %534 = vmatpush1.bf16.msra.mxu0 0
    %535 = vmatprep.subr.bf16.mxu0 0
    %536 = vmatpush1.bf16.msra.mxu0 0
    %537 = vmatprep.subr.bf16.mxu0 0
    %538 = vmatpush1.bf16.msra.mxu0 0
    %539 = vmatprep.subr.bf16.mxu0 0
    %540 = vmatpush1.bf16.msra.mxu0 0
    %541 = vmatprep.subr.bf16.mxu0 0
    %542 = vmatpush1.bf16.msra.mxu0 0
    %543 = vmatprep.mubr.bf16.mxu0 0
    %544 = vmatmul.mubr.bf16.gmra.mrb[0].mxu0 %v506
    %v545 = vpop.f32.mrb[0].mxu0
    %v546 = vadd.f32 %v491, %v545
    %v547 = vpop.f32.mrb[0].mxu0
    %v548 = vpop.f32.mrb[0].mxu0
    %v549 = vadd.f32 %v491, %v548
    %v550 = vpop.f32.mrb[0].mxu0
    %551 = vmatprep.mubr.bf16.mxu0 0
    %552 = vmatmul.mubr.bf16.gmra.mrb[0].mxu0 %v509
    %v553 = vpop.f32.mrb[0].mxu0
    %v554 = vadd.f32 %v491, %v553
    %v555 = vpop.f32.mrb[0].mxu0
    %v556 = vpop.f32.mrb[0].mxu0
    %v557 = vadd.f32 %v491, %v556
    %v558 = vpop.f32.mrb[0].mxu0
    %559 = vdwg.mxu0
    %v560 = vmax.f32 %v546, 0.0
    %v561 = vmax.f32 %v549, 0.0
    %v562 = vmax.f32 %v554, 0.0
    %v563 = vmax.f32 %v557, 0.0
    %v564 = vadd.f32 %v560, %v190
    %v565 = vadd.f32 %v561, %v191
    %v566 = vadd.f32 %v562, %v192
    %v567 = vadd.f32 %v563, %v193
    %s568 = scalar_lea.vmem [#allocation7], 1
    %v569 = vld [vmem:[%s568] sm:$0x1]
    %s570 = scalar_lea.vmem [#allocation8], 1
    %v571 = vld [vmem:[%s570] sm:$0x1]
    %v572 = vsel %vm297, %v564, 0.0
    %573 = vadd.xlane.f32.xlu0 %v572
    %v574 = vpop.xlane.xlu0 %573
    %v575 = vsel %vm297, %v565, 0.0
    %576 = vadd.xlane.f32.xlu0 %v575
    %v577 = vpop.xlane.xlu0 %576
    %v578 = vsel %vm297, %v566, 0.0
    %579 = vadd.xlane.f32.xlu0 %v578
    %v580 = vpop.xlane.xlu0 %579
    %v581 = vsel %vm297, %v567, 0.0
    %582 = vadd.xlane.f32.xlu0 %v581
    %v583 = vpop.xlane.xlu0 %582
    %v584 = vmul.f32 %v574, %v310
    %v585 = vmul.f32 %v577, %v310
    %v586 = vmul.f32 %v580, %v310
    %v587 = vmul.f32 %v583, %v310
    %v588 = vsub.f32 %v564, %v584
    %v589 = vsub.f32 %v565, %v585
    %v590 = vsub.f32 %v566, %v586
    %v591 = vsub.f32 %v567, %v587
    %v592 = vmul.f32 %v588, %v588
    %v593 = vmul.f32 %v589, %v589
    %v594 = vmul.f32 %v590, %v590
    %v595 = vmul.f32 %v591, %v591
    %v596 = vsel %vm297, %v592, 0.0
    %597 = vadd.xlane.f32.xlu0 %v596
    %v598 = vpop.xlane.xlu0 %597
    %v599 = vsel %vm297, %v593, 0.0
    %600 = vadd.xlane.f32.xlu0 %v599
    %v601 = vpop.xlane.xlu0 %600
    %v602 = vsel %vm297, %v594, 0.0
    %603 = vadd.xlane.f32.xlu0 %v602
    %v604 = vpop.xlane.xlu0 %603
    %v605 = vsel %vm297, %v595, 0.0
    %606 = vadd.xlane.f32.xlu0 %v605
    %v607 = vpop.xlane.xlu0 %606
    %v608 = vmul.f32 %v598, %v310
    %v609 = vmul.f32 %v601, %v310
    %v610 = vmul.f32 %v604, %v310
    %v611 = vmul.f32 %v607, %v310
    %v612 = vadd.f32 %v608, 1e-05
    %v613 = vadd.f32 %v609, 1e-05
    %v614 = vadd.f32 %v610, 1e-05
    %v615 = vadd.f32 %v611, 1e-05
    %v616 = vrsqrt.pop %v612
    %v617 = vrsqrt.pop %v613
    %v618 = vrsqrt.pop %v614
    %v619 = vrsqrt.pop %v615
    %v620 = vmul.f32 %v588, %v616
    %v621 = vmul.f32 %v589, %v617
    %v622 = vmul.f32 %v590, %v618
    %v623 = vmul.f32 %v591, %v619
    %v625 = vlaneseq
    %v626 = vshrl.u32 %v625, 7
    %v627 = vsub.s32 0, %v626
    %v628 = vrot.slane %v569, %v627
    %v630 = vmul.f32 %v620, %v628
    %v631 = vmul.f32 %v621, %v628
    %v632 = vmul.f32 %v622, %v628
    %v633 = vmul.f32 %v623, %v628
    %v635 = vlaneseq
    %v636 = vshrl.u32 %v635, 7
    %v637 = vsub.s32 0, %v636
    %v638 = vrot.slane %v571, %v637
    %v640 = vadd.f32 %v630, %v638
    %v641 = vadd.f32 %v631, %v638
    %v642 = vadd.f32 %v632, %v638
    %v643 = vadd.f32 %v633, %v638
    %s644 = scalar_lea.vmem %s5, 8
    %v645 = vld [vmem:[%s644] sm:$0x1f]
    %v646 = vlaneseq
    %v647 = vshrl.u32 %v646, 7
    %v648 = vsub.s32 2, %v647
    %v649 = vrot.slane %v645, %v648
    %v650 = vmul.f32 %v640, %v649
    %v651 = vmul.f32 %v641, %v649
    %v652 = vmul.f32 %v642, %v649
    %v653 = vmul.f32 %v643, %v649
    %v654 = vrot.slane %v640, 6
    %v655 = vrot.slane %v641, 6
    %v656 = vrot.slane %v642, 6
    %v657 = vrot.slane %v643, 6
    %v658 = vsel %vm384, %v656, %v657
    %v659 = vsel %vm384, %v655, %v656
    %v660 = vsel %vm384, %v654, %v655
    %v661 = vsel %vm384, %v657, %v654
    %v662 = vlaneseq
    %v663 = vshrl.u32 %v662, 7
    %v664 = vsub.s32 0, %v663
    %v665 = vrot.slane %v645, %v664
    %v666 = vmul.f32 %v661, %v665
    %v667 = vmul.f32 %v660, %v665
    %v668 = vmul.f32 %v659, %v665
    %v669 = vmul.f32 %v658, %v665
    %v670 = vmul.f32 %v666, %v255
    %v671 = vmul.f32 %v667, %v256
    %v672 = vmul.f32 %v668, %v257
    %v673 = vmul.f32 %v669, %v258
    %v674 = vadd.f32 %v650, %v670
    %v675 = vadd.f32 %v651, %v671
    %v676 = vadd.f32 %v652, %v672
    %v677 = vadd.f32 %v653, %v673
    %v678 = vrot.slane %v640, 7
    %v679 = vrot.slane %v641, 7
    %v680 = vrot.slane %v642, 7
    %v681 = vrot.slane %v643, 7
    %v682 = vsel %vm409, %v680, %v681
    %v683 = vsel %vm409, %v679, %v680
    %v684 = vsel %vm409, %v678, %v679
    %v685 = vsel %vm409, %v681, %v678
    %v686 = vlaneseq
    %v687 = vshrl.u32 %v686, 7
    %v688 = vsub.s32 1, %v687
    %v689 = vrot.slane %v645, %v688
    %v690 = vmul.f32 %v685, %v689
    %v691 = vmul.f32 %v684, %v689
    %v692 = vmul.f32 %v683, %v689
    %v693 = vmul.f32 %v682, %v689
    %v694 = vmul.f32 %v690, %v267
    %v695 = vmul.f32 %v691, %v268
    %v696 = vmul.f32 %v692, %v269
    %v697 = vmul.f32 %v693, %v270
    %v698 = vadd.f32 %v674, %v694
    %v699 = vadd.f32 %v675, %v695
    %v700 = vadd.f32 %v676, %v696
    %v701 = vadd.f32 %v677, %v697
    %v702 = vrot.slane %v640, 1
    %v703 = vrot.slane %v641, 1
    %v704 = vrot.slane %v642, 1
    %v705 = vrot.slane %v643, 1
    %v706 = vsel %vm434, %v704, %v705
    %v707 = vsel %vm434, %v703, %v704
    %v708 = vsel %vm434, %v702, %v703
    %v709 = vsel %vm434, %v705, %v702
    %v710 = vlaneseq
    %v711 = vshrl.u32 %v710, 7
    %v712 = vsub.s32 3, %v711
    %v713 = vrot.slane %v645, %v712
    %v714 = vmul.f32 %v708, %v713
    %v715 = vmul.f32 %v707, %v713
    %v716 = vmul.f32 %v706, %v713
    %v717 = vmul.f32 %v709, %v713
    %v718 = vmul.f32 %v714, %v279
    %v719 = vmul.f32 %v715, %v280
    %v720 = vmul.f32 %v716, %v281
    %v721 = vmul.f32 %v717, %v282
    %v722 = vadd.f32 %v698, %v718
    %v723 = vadd.f32 %v699, %v719
    %v724 = vadd.f32 %v700, %v720
    %v725 = vadd.f32 %v701, %v721
    %v726 = vrot.slane %v640, 2
    %v727 = vrot.slane %v641, 2
    %v728 = vrot.slane %v642, 2
    %v729 = vrot.slane %v643, 2
    %v730 = vsel %vm459, %v728, %v729
    %v731 = vsel %vm459, %v727, %v728
    %v732 = vsel %vm459, %v726, %v727
    %v733 = vsel %vm459, %v729, %v726
    %v734 = vlaneseq
    %v735 = vshrl.u32 %v734, 7
    %v736 = vsub.s32 4, %v735
    %v737 = vrot.slane %v645, %v736
    %v738 = vmul.f32 %v732, %v737
    %v739 = vmul.f32 %v731, %v737
    %v740 = vmul.f32 %v730, %v737
    %v741 = vmul.f32 %v733, %v737
    %v742 = vmul.f32 %v738, %v291
    %v743 = vmul.f32 %v739, %v292
    %v744 = vmul.f32 %v740, %v293
    %v745 = vmul.f32 %v741, %v294
    %v746 = vadd.f32 %v722, %v742
    %v747 = vadd.f32 %v723, %v743
    %v748 = vadd.f32 %v724, %v744
    %v749 = vadd.f32 %v725, %v745
    %v750 = vpack.c.bf16 %v747, %v746
    %v751 = vpack.c.bf16 %v749, %v748
    %s752 = scalar_lea.vmem %s6, 16
    %v753 = vld [vmem:[%s752] sm:$0xf]
    %v754 = vld [vmem:[%s752 + $0x4] sm:$0xf]
    %v755 = vld [vmem:[%s752 + $0x8] sm:$0xf]
    %v756 = vld [vmem:[%s752 + $0xc] sm:$0xf]
    %s757 = scalar_lea.vmem %s7, 1
    %v758 = vld [vmem:[%s757] sm:$0x1]
    %v760 = vlaneseq
    %v761 = vshrl.u32 %v760, 7
    %v762 = vsub.s32 0, %v761
    %v763 = vrot.slane %v758, %v762
    %v769 = vunpack.c.l.b16 %v753
    %v770 = vunpack.c.l.b16 %v754
    %v771 = vunpack.c.l.b16 %v755
    %v772 = vunpack.c.l.b16 %v756
    %v773 = vpack.c.b16 %v770, %v769
    %v774 = vpack.c.b16 %v772, %v771
    %v778 = vsel %vm297, %v750, 0
    %v781 = vsel %vm297, %v751, 0
    %783 = vmatprep.subr.bf16.mxu0 0
    %784 = vmatpush1.bf16.msra.mxu0 %v773
    %785 = vmatprep.subr.bf16.mxu0 0
    %786 = vmatpush1.bf16.msra.mxu0 %v774
    %787 = vmatprep.subr.bf16.mxu0 0
    %788 = vmatpush1.bf16.msra.mxu0 0
    %789 = vmatprep.subr.bf16.mxu0 0
    %790 = vmatpush1.bf16.msra.mxu0 0
    %791 = vmatprep.subr.bf16.mxu0 0
    %792 = vmatpush1.bf16.msra.mxu0 0
    %793 = vmatprep.subr.bf16.mxu0 0
    %794 = vmatpush1.bf16.msra.mxu0 0
    %795 = vmatprep.subr.bf16.mxu0 0
    %796 = vmatpush1.bf16.msra.mxu0 0
    %797 = vmatprep.subr.bf16.mxu0 0
    %798 = vmatpush1.bf16.msra.mxu0 0
    %799 = vmatprep.subr.bf16.mxu0 0
    %800 = vmatpush1.bf16.msra.mxu0 0
    %801 = vmatprep.subr.bf16.mxu0 0
    %802 = vmatpush1.bf16.msra.mxu0 0
    %803 = vmatprep.subr.bf16.mxu0 0
    %804 = vmatpush1.bf16.msra.mxu0 0
    %805 = vmatprep.subr.bf16.mxu0 0
    %806 = vmatpush1.bf16.msra.mxu0 0
    %807 = vmatprep.subr.bf16.mxu0 0
    %808 = vmatpush1.bf16.msra.mxu0 0
    %809 = vmatprep.subr.bf16.mxu0 0
    %810 = vmatpush1.bf16.msra.mxu0 0
    %811 = vmatprep.subr.bf16.mxu0 0
    %812 = vmatpush1.bf16.msra.mxu0 0
    %813 = vmatprep.subr.bf16.mxu0 0
    %814 = vmatpush1.bf16.msra.mxu0 0
    %815 = vmatprep.mubr.bf16.mxu0 0
    %816 = vmatmul.mubr.bf16.gmra.mrb[0].mxu0 %v778
    %v817 = vpop.f32.mrb[0].mxu0
    %v818 = vadd.f32 %v763, %v817
    %v819 = vpop.f32.mrb[0].mxu0
    %v820 = vpop.f32.mrb[0].mxu0
    %v821 = vadd.f32 %v763, %v820
    %v822 = vpop.f32.mrb[0].mxu0
    %823 = vmatprep.mubr.bf16.mxu0 0
    %824 = vmatmul.mubr.bf16.gmra.mrb[0].mxu0 %v781
    %v825 = vpop.f32.mrb[0].mxu0
    %v826 = vadd.f32 %v763, %v825
    %v827 = vpop.f32.mrb[0].mxu0
    %v828 = vpop.f32.mrb[0].mxu0
    %v829 = vadd.f32 %v763, %v828
    %v830 = vpop.f32.mrb[0].mxu0
    %831 = vdwg.mxu0
    %v832 = vmax.f32 %v818, 0.0
    %v833 = vmax.f32 %v821, 0.0
    %v834 = vmax.f32 %v826, 0.0
    %v835 = vmax.f32 %v829, 0.0
    %v836 = vadd.f32 %v832, %v564
    %v837 = vadd.f32 %v833, %v565
    %v838 = vadd.f32 %v834, %v566
    %v839 = vadd.f32 %v835, %v567
    %v840 = vld [vmem:[#allocation10] sm:$0x1]
    %v841 = vld [vmem:[#allocation11] sm:$0x1]
    %v842 = vsel %vm297, %v836, 0.0
    %843 = vadd.xlane.f32.xlu0 %v842
    %v844 = vpop.xlane.xlu0 %843
    %v845 = vsel %vm297, %v837, 0.0
    %846 = vadd.xlane.f32.xlu0 %v845
    %v847 = vpop.xlane.xlu0 %846
    %v848 = vsel %vm297, %v838, 0.0
    %849 = vadd.xlane.f32.xlu0 %v848
    %v850 = vpop.xlane.xlu0 %849
    %v851 = vsel %vm297, %v839, 0.0
    %852 = vadd.xlane.f32.xlu0 %v851
    %v853 = vpop.xlane.xlu0 %852
    %v854 = vmul.f32 %v844, %v310
    %v855 = vmul.f32 %v847, %v310
    %v856 = vmul.f32 %v850, %v310
    %v857 = vmul.f32 %v853, %v310
    %v858 = vsub.f32 %v836, %v854
    %v859 = vsub.f32 %v837, %v855
    %v860 = vsub.f32 %v838, %v856
    %v861 = vsub.f32 %v839, %v857
    %v862 = vmul.f32 %v858, %v858
    %v863 = vmul.f32 %v859, %v859
    %v864 = vmul.f32 %v860, %v860
    %v865 = vmul.f32 %v861, %v861
    %v866 = vsel %vm297, %v862, 0.0
    %867 = vadd.xlane.f32.xlu0 %v866
    %v868 = vpop.xlane.xlu0 %867
    %v869 = vsel %vm297, %v863, 0.0
    %870 = vadd.xlane.f32.xlu0 %v869
    %v871 = vpop.xlane.xlu0 %870
    %v872 = vsel %vm297, %v864, 0.0
    %873 = vadd.xlane.f32.xlu0 %v872
    %v874 = vpop.xlane.xlu0 %873
    %v875 = vsel %vm297, %v865, 0.0
    %876 = vadd.xlane.f32.xlu0 %v875
    %v877 = vpop.xlane.xlu0 %876
    %v878 = vmul.f32 %v868, %v310
    %v879 = vmul.f32 %v871, %v310
    %v880 = vmul.f32 %v874, %v310
    %v881 = vmul.f32 %v877, %v310
    %v882 = vadd.f32 %v878, 1e-05
    %v883 = vadd.f32 %v879, 1e-05
    %v884 = vadd.f32 %v880, 1e-05
    %v885 = vadd.f32 %v881, 1e-05
    %v886 = vrsqrt.pop %v882
    %v887 = vrsqrt.pop %v883
    %v888 = vrsqrt.pop %v884
    %v889 = vrsqrt.pop %v885
    %v890 = vmul.f32 %v858, %v886
    %v891 = vmul.f32 %v859, %v887
    %v892 = vmul.f32 %v860, %v888
    %v893 = vmul.f32 %v861, %v889
    %v895 = vlaneseq
    %v896 = vshrl.u32 %v895, 7
    %v897 = vsub.s32 0, %v896
    %v898 = vrot.slane %v840, %v897
    %v900 = vmul.f32 %v890, %v898
    %v901 = vmul.f32 %v891, %v898
    %v902 = vmul.f32 %v892, %v898
    %v903 = vmul.f32 %v893, %v898
    %v905 = vlaneseq
    %v906 = vshrl.u32 %v905, 7
    %v907 = vsub.s32 0, %v906
    %v908 = vrot.slane %v841, %v907
    %v910 = vadd.f32 %v900, %v908
    %v911 = vadd.f32 %v901, %v908
    %v912 = vadd.f32 %v902, %v908
    %v913 = vadd.f32 %v903, %v908
    %v914 = vpack.c.bf16 %v911, %v910
    %v915 = vpack.c.bf16 %v913, %v912
    %v916 = vld [vmem:[#allocation13] sm:$0xf]
    %v917 = vld [vmem:[#allocation13 + $0x4] sm:$0xf]
    %v918 = vld [vmem:[#allocation13 + $0x8] sm:$0xf]
    %v919 = vld [vmem:[#allocation13 + $0xc] sm:$0xf]
    %v924 = vunpack.c.l.b16 %v916
    %v925 = vunpack.c.l.b16 %v917
    %v926 = vunpack.c.l.b16 %v918
    %v927 = vunpack.c.l.b16 %v919
    %v928 = vpack.c.b16 %v925, %v924
    %v929 = vpack.c.b16 %v927, %v926
    %v933 = vsel %vm297, %v914, 0
    %v936 = vsel %vm297, %v915, 0
    %938 = vmatprep.subr.bf16.mxu0 0
    %939 = vmatpush1.bf16.msra.mxu0 %v928
    %940 = vmatprep.subr.bf16.mxu0 0
    %941 = vmatpush1.bf16.msra.mxu0 %v929
    %942 = vmatprep.subr.bf16.mxu0 0
    %943 = vmatpush1.bf16.msra.mxu0 0
    %944 = vmatprep.subr.bf16.mxu0 0
    %945 = vmatpush1.bf16.msra.mxu0 0
    %946 = vmatprep.subr.bf16.mxu0 0
    %947 = vmatpush1.bf16.msra.mxu0 0
    %948 = vmatprep.subr.bf16.mxu0 0
    %949 = vmatpush1.bf16.msra.mxu0 0
    %950 = vmatprep.subr.bf16.mxu0 0
    %951 = vmatpush1.bf16.msra.mxu0 0
    %952 = vmatprep.subr.bf16.mxu0 0
    %953 = vmatpush1.bf16.msra.mxu0 0
    %954 = vmatprep.subr.bf16.mxu0 0
    %955 = vmatpush1.bf16.msra.mxu0 0
    %956 = vmatprep.subr.bf16.mxu0 0
    %957 = vmatpush1.bf16.msra.mxu0 0
    %958 = vmatprep.subr.bf16.mxu0 0
    %959 = vmatpush1.bf16.msra.mxu0 0
    %960 = vmatprep.subr.bf16.mxu0 0
    %961 = vmatpush1.bf16.msra.mxu0 0
    %962 = vmatprep.subr.bf16.mxu0 0
    %963 = vmatpush1.bf16.msra.mxu0 0
    %964 = vmatprep.subr.bf16.mxu0 0
    %965 = vmatpush1.bf16.msra.mxu0 0
    %966 = vmatprep.subr.bf16.mxu0 0
    %967 = vmatpush1.bf16.msra.mxu0 0
    %968 = vmatprep.subr.bf16.mxu0 0
    %969 = vmatpush1.bf16.msra.mxu0 0
    %970 = vmatprep.mubr.bf16.mxu0 0
    %971 = vmatmul.mubr.bf16.gmra.mrb[0].mxu0 %v933
    %v972 = vpop.f32.mrb[0].mxu0
    %v973 = vadd.f32 0.0, %v972
    %v974 = vpop.f32.mrb[0].mxu0
    %v975 = vpop.f32.mrb[0].mxu0
    %v976 = vadd.f32 0.0, %v975
    %v977 = vpop.f32.mrb[0].mxu0
    %978 = vmatprep.mubr.bf16.mxu0 0
    %979 = vmatmul.mubr.bf16.gmra.mrb[0].mxu0 %v936
    %v980 = vpop.f32.mrb[0].mxu0
    %v981 = vadd.f32 0.0, %v980
    %v982 = vpop.f32.mrb[0].mxu0
    %v983 = vpop.f32.mrb[0].mxu0
    %v984 = vadd.f32 0.0, %v983
    %v985 = vpop.f32.mrb[0].mxu0
    %986 = vdwg.mxu0
    %v987 = vpack.c.bf16 %v976, %v973
    %v988 = vpack.c.bf16 %v984, %v981
    %v989 = vld [vmem:[#allocation5] sm:$0x1]
    %v990 = vsub.f32 1.0, %v989
    %v991 = vmul.f32 %v990, -1e+30
    %993 = vrot.lane.b32.xlu0 %v987, 120
    %v994 = vpop.permute.xlu0 %993
    %995 = vrot.lane.b32.xlu0 %v987, 112
    %v996 = vpop.permute.xlu0 %995
    %997 = vrot.lane.b32.xlu0 %v987, 104
    %v998 = vpop.permute.xlu0 %997
    %999 = vrot.lane.b32.xlu0 %v987, 96
    %v1000 = vpop.permute.xlu0 %999
    %vm1001 = vcmask 64512
    %v1003 = vsel %vm1001, %v987, 0
    %v1006 = vsel %vm1001, %v1000, 0
    %1008 = vmatprep.subr.bf16.mxu0 0
    %1009 = vmatpush1.bf16.xpose.msra.mxu0 %v1006
    %1010 = vmatprep.subr.bf16.mxu0 0
    %1011 = vmatpush1.bf16.xpose.msra.mxu0 0
    %1012 = vmatprep.subr.bf16.mxu0 0
    %1013 = vmatpush1.bf16.xpose.msra.mxu0 0
    %1014 = vmatprep.subr.bf16.mxu0 0
    %1015 = vmatpush1.bf16.xpose.msra.mxu0 0
    %1016 = vmatprep.subr.bf16.mxu0 0
    %1017 = vmatpush1.bf16.xpose.msra.mxu0 0
    %1018 = vmatprep.subr.bf16.mxu0 0
    %1019 = vmatpush1.bf16.xpose.msra.mxu0 0
    %1020 = vmatprep.subr.bf16.mxu0 0
    %1021 = vmatpush1.bf16.xpose.msra.mxu0 0
    %1022 = vmatprep.subr.bf16.mxu0 0
    %1023 = vmatpush1.bf16.xpose.msra.mxu0 0
    %1024 = vmatprep.subr.bf16.mxu0 0
    %1025 = vmatpush1.bf16.xpose.msra.mxu0 0
    %1026 = vmatprep.subr.bf16.mxu0 0
    %1027 = vmatpush1.bf16.xpose.msra.mxu0 0
    %1028 = vmatprep.subr.bf16.mxu0 0
    %1029 = vmatpush1.bf16.xpose.msra.mxu0 0
    %1030 = vmatprep.subr.bf16.mxu0 0
    %1031 = vmatpush1.bf16.xpose.msra.mxu0 0
    %1032 = vmatprep.subr.bf16.mxu0 0
    %1033 = vmatpush1.bf16.xpose.msra.mxu0 0
    %1034 = vmatprep.subr.bf16.mxu0 0
    %1035 = vmatpush1.bf16.xpose.msra.mxu0 0
    %1036 = vmatprep.subr.bf16.mxu0 0
    %1037 = vmatpush1.bf16.xpose.msra.mxu0 0
    %1038 = vmatprep.subr.bf16.mxu0 0
    %1039 = vmatpush1.bf16.xpose.msra.mxu0 0
    %1040 = vmatprep.mubr.bf16.mxu0 0
    %1041 = vmatmul.mubr.bf16.gmra.mrb[0].mxu0 %v1003
    %v1042 = vpop.f32.mrb[0].mxu0
    %v1043 = vadd.f32 0.0, %v1042
    %v1044 = vpop.f32.mrb[0].mxu0
    %v1045 = vpop.f32.mrb[0].mxu0
    %v1046 = vadd.f32 0.0, %v1045
    %v1047 = vpop.f32.mrb[0].mxu0
    %1048 = vdwg.mxu0
    %1049 = vrot.lane.b32.xlu0 %v994, 96
    %v1050 = vpop.permute.xlu0 %1049
    %v1052 = vsel %vm1001, %v994, 0
    %v1055 = vsel %vm1001, %v1050, 0
    %1057 = vmatprep.subr.bf16.mxu0 0
    %1058 = vmatpush1.bf16.xpose.msra.mxu0 %v1055
    %1059 = vmatprep.subr.bf16.mxu0 0
    %1060 = vmatpush1.bf16.xpose.msra.mxu0 0
    %1061 = vmatprep.subr.bf16.mxu0 0
    %1062 = vmatpush1.bf16.xpose.msra.mxu0 0
    %1063 = vmatprep.subr.bf16.mxu0 0
    %1064 = vmatpush1.bf16.xpose.msra.mxu0 0
    %1065 = vmatprep.subr.bf16.mxu0 0
    %1066 = vmatpush1.bf16.xpose.msra.mxu0 0
    %1067 = vmatprep.subr.bf16.mxu0 0
    %1068 = vmatpush1.bf16.xpose.msra.mxu0 0
    %1069 = vmatprep.subr.bf16.mxu0 0
    %1070 = vmatpush1.bf16.xpose.msra.mxu0 0
    %1071 = vmatprep.subr.bf16.mxu0 0
    %1072 = vmatpush1.bf16.xpose.msra.mxu0 0
    %1073 = vmatprep.subr.bf16.mxu0 0
    %1074 = vmatpush1.bf16.xpose.msra.mxu0 0
    %1075 = vmatprep.subr.bf16.mxu0 0
    %1076 = vmatpush1.bf16.xpose.msra.mxu0 0
    %1077 = vmatprep.subr.bf16.mxu0 0
    %1078 = vmatpush1.bf16.xpose.msra.mxu0 0
    %1079 = vmatprep.subr.bf16.mxu0 0
    %1080 = vmatpush1.bf16.xpose.msra.mxu0 0
    %1081 = vmatprep.subr.bf16.mxu0 0
    %1082 = vmatpush1.bf16.xpose.msra.mxu0 0
    %1083 = vmatprep.subr.bf16.mxu0 0
    %1084 = vmatpush1.bf16.xpose.msra.mxu0 0
    %1085 = vmatprep.subr.bf16.mxu0 0
    %1086 = vmatpush1.bf16.xpose.msra.mxu0 0
    %1087 = vmatprep.subr.bf16.mxu0 0
    %1088 = vmatpush1.bf16.xpose.msra.mxu0 0
    %1089 = vmatprep.mubr.bf16.mxu0 0
    %1090 = vmatmul.mubr.bf16.gmra.mrb[0].mxu0 %v1052
    %v1091 = vpop.f32.mrb[0].mxu0
    %v1092 = vadd.f32 0.0, %v1091
    %v1093 = vpop.f32.mrb[0].mxu0
    %v1094 = vpop.f32.mrb[0].mxu0
    %v1095 = vadd.f32 0.0, %v1094
    %v1096 = vpop.f32.mrb[0].mxu0
    %1097 = vdwg.mxu0
    %1098 = vrot.lane.b32.xlu0 %v996, 96
    %v1099 = vpop.permute.xlu0 %1098
    %v1101 = vsel %vm1001, %v996, 0
    %v1104 = vsel %vm1001, %v1099, 0
    %1106 = vmatprep.subr.bf16.mxu0 0
    %1107 = vmatpush1.bf16.xpose.msra.mxu0 %v1104
    %1108 = vmatprep.subr.bf16.mxu0 0
    %1109 = vmatpush1.bf16.xpose.msra.mxu0 0
    %1110 = vmatprep.subr.bf16.mxu0 0
    %1111 = vmatpush1.bf16.xpose.msra.mxu0 0
    %1112 = vmatprep.subr.bf16.mxu0 0
    %1113 = vmatpush1.bf16.xpose.msra.mxu0 0
    %1114 = vmatprep.subr.bf16.mxu0 0
    %1115 = vmatpush1.bf16.xpose.msra.mxu0 0
    %1116 = vmatprep.subr.bf16.mxu0 0
    %1117 = vmatpush1.bf16.xpose.msra.mxu0 0
    %1118 = vmatprep.subr.bf16.mxu0 0
    %1119 = vmatpush1.bf16.xpose.msra.mxu0 0
    %1120 = vmatprep.subr.bf16.mxu0 0
    %1121 = vmatpush1.bf16.xpose.msra.mxu0 0
    %1122 = vmatprep.subr.bf16.mxu0 0
    %1123 = vmatpush1.bf16.xpose.msra.mxu0 0
    %1124 = vmatprep.subr.bf16.mxu0 0
    %1125 = vmatpush1.bf16.xpose.msra.mxu0 0
    %1126 = vmatprep.subr.bf16.mxu0 0
    %1127 = vmatpush1.bf16.xpose.msra.mxu0 0
    %1128 = vmatprep.subr.bf16.mxu0 0
    %1129 = vmatpush1.bf16.xpose.msra.mxu0 0
    %1130 = vmatprep.subr.bf16.mxu0 0
    %1131 = vmatpush1.bf16.xpose.msra.mxu0 0
    %1132 = vmatprep.subr.bf16.mxu0 0
    %1133 = vmatpush1.bf16.xpose.msra.mxu0 0
    %1134 = vmatprep.subr.bf16.mxu0 0
    %1135 = vmatpush1.bf16.xpose.msra.mxu0 0
    %1136 = vmatprep.subr.bf16.mxu0 0
    %1137 = vmatpush1.bf16.xpose.msra.mxu0 0
    %1138 = vmatprep.mubr.bf16.mxu0 0
    %1139 = vmatmul.mubr.bf16.gmra.mrb[0].mxu0 %v1101
    %v1140 = vpop.f32.mrb[0].mxu0
    %v1141 = vadd.f32 0.0, %v1140
    %v1142 = vpop.f32.mrb[0].mxu0
    %v1143 = vpop.f32.mrb[0].mxu0
    %v1144 = vadd.f32 0.0, %v1143
    %v1145 = vpop.f32.mrb[0].mxu0
    %1146 = vdwg.mxu0
    %1147 = vrot.lane.b32.xlu0 %v998, 96
    %v1148 = vpop.permute.xlu0 %1147
    %v1150 = vsel %vm1001, %v998, 0
    %v1153 = vsel %vm1001, %v1148, 0
    %1155 = vmatprep.subr.bf16.mxu0 0
    %1156 = vmatpush1.bf16.xpose.msra.mxu0 %v1153
    %1157 = vmatprep.subr.bf16.mxu0 0
    %1158 = vmatpush1.bf16.xpose.msra.mxu0 0
    %1159 = vmatprep.subr.bf16.mxu0 0
    %1160 = vmatpush1.bf16.xpose.msra.mxu0 0
    %1161 = vmatprep.subr.bf16.mxu0 0
    %1162 = vmatpush1.bf16.xpose.msra.mxu0 0
    %1163 = vmatprep.subr.bf16.mxu0 0
    %1164 = vmatpush1.bf16.xpose.msra.mxu0 0
    %1165 = vmatprep.subr.bf16.mxu0 0
    %1166 = vmatpush1.bf16.xpose.msra.mxu0 0
    %1167 = vmatprep.subr.bf16.mxu0 0
    %1168 = vmatpush1.bf16.xpose.msra.mxu0 0
    %1169 = vmatprep.subr.bf16.mxu0 0
    %1170 = vmatpush1.bf16.xpose.msra.mxu0 0
    %1171 = vmatprep.subr.bf16.mxu0 0
    %1172 = vmatpush1.bf16.xpose.msra.mxu0 0
    %1173 = vmatprep.subr.bf16.mxu0 0
    %1174 = vmatpush1.bf16.xpose.msra.mxu0 0
    %1175 = vmatprep.subr.bf16.mxu0 0
    %1176 = vmatpush1.bf16.xpose.msra.mxu0 0
    %1177 = vmatprep.subr.bf16.mxu0 0
    %1178 = vmatpush1.bf16.xpose.msra.mxu0 0
    %1179 = vmatprep.subr.bf16.mxu0 0
    %1180 = vmatpush1.bf16.xpose.msra.mxu0 0
    %1181 = vmatprep.subr.bf16.mxu0 0
    %1182 = vmatpush1.bf16.xpose.msra.mxu0 0
    %1183 = vmatprep.subr.bf16.mxu0 0
    %1184 = vmatpush1.bf16.xpose.msra.mxu0 0
    %1185 = vmatprep.subr.bf16.mxu0 0
    %1186 = vmatpush1.bf16.xpose.msra.mxu0 0
    %1187 = vmatprep.mubr.bf16.mxu0 0
    %1188 = vmatmul.mubr.bf16.gmra.mrb[0].mxu0 %v1150
    %v1189 = vpop.f32.mrb[0].mxu0
    %v1190 = vadd.f32 0.0, %v1189
    %v1191 = vpop.f32.mrb[0].mxu0
    %v1192 = vpop.f32.mrb[0].mxu0
    %v1193 = vadd.f32 0.0, %v1192
    %v1194 = vpop.f32.mrb[0].mxu0
    %1195 = vdwg.mxu0
    %v1197 = vlaneseq
    %v1198 = vshrl.u32 %v1197, 7
    %v1199 = vsub.s32 0, %v1198
    %v1200 = vrot.slane %v989, %v1199
    %v1202 = vmul.f32 %v1043, %v1200
    %v1203 = vmul.f32 %v1046, %v1200
    %v1204 = vmul.f32 %v1092, %v1200
    %v1205 = vmul.f32 %v1095, %v1200
    %v1206 = vmul.f32 %v1141, %v1200
    %v1207 = vmul.f32 %v1144, %v1200
    %v1208 = vmul.f32 %v1190, %v1200
    %v1209 = vmul.f32 %v1193, %v1200
    %v1211 = vlaneseq
    %v1212 = vshrl.u32 %v1211, 7
    %v1213 = vsub.s32 0, %v1212
    %v1214 = vrot.slane %v991, %v1213
    %v1216 = vadd.f32 %v1202, %v1214
    %v1217 = vadd.f32 %v1203, %v1214
    %v1218 = vadd.f32 %v1204, %v1214
    %v1219 = vadd.f32 %v1205, %v1214
    %v1220 = vadd.f32 %v1206, %v1214
    %v1221 = vadd.f32 %v1207, %v1214
    %v1222 = vadd.f32 %v1208, %v1214
    %v1223 = vadd.f32 %v1209, %v1214
    %vm1224 = vcmask 130048
    %v1225 = vsel %vm1224, %v1216, -inf
    %1226 = vmax.xlane.f32.xlu0 %v1225
    %v1227 = vpop.xlane.xlu0 %1226
    %v1228 = vsel %vm1224, %v1217, -inf
    %1229 = vmax.xlane.f32.xlu0 %v1228
    %v1230 = vpop.xlane.xlu0 %1229
    %v1231 = vsel %vm1224, %v1218, -inf
    %1232 = vmax.xlane.f32.xlu0 %v1231
    %v1233 = vpop.xlane.xlu0 %1232
    %v1234 = vsel %vm1224, %v1219, -inf
    %1235 = vmax.xlane.f32.xlu0 %v1234
    %v1236 = vpop.xlane.xlu0 %1235
    %v1237 = vsel %vm1224, %v1220, -inf
    %1238 = vmax.xlane.f32.xlu0 %v1237
    %v1239 = vpop.xlane.xlu0 %1238
    %v1240 = vsel %vm1224, %v1221, -inf
    %1241 = vmax.xlane.f32.xlu0 %v1240
    %v1242 = vpop.xlane.xlu0 %1241
    %v1243 = vsel %vm1224, %v1222, -inf
    %1244 = vmax.xlane.f32.xlu0 %v1243
    %v1245 = vpop.xlane.xlu0 %1244
    %v1246 = vsel %vm1224, %v1223, -inf
    %1247 = vmax.xlane.f32.xlu0 %v1246
    %v1248 = vpop.xlane.xlu0 %1247
    %v1249 = vsub.f32 %v1216, %v1227
    %v1250 = vsub.f32 %v1217, %v1230
    %v1251 = vsub.f32 %v1218, %v1233
    %v1252 = vsub.f32 %v1219, %v1236
    %v1253 = vsub.f32 %v1220, %v1239
    %v1254 = vsub.f32 %v1221, %v1242
    %v1255 = vsub.f32 %v1222, %v1245
    %v1256 = vsub.f32 %v1223, %v1248
    %v1257 = vmul.f32 %v1249, 1.442695
    %v1258 = vpow.pop %v1257
    %v1259 = vmul.f32 %v1250, 1.442695
    %v1260 = vpow.pop %v1259
    %v1261 = vmul.f32 %v1251, 1.442695
    %v1262 = vpow.pop %v1261
    %v1263 = vmul.f32 %v1252, 1.442695
    %v1264 = vpow.pop %v1263
    %v1265 = vmul.f32 %v1253, 1.442695
    %v1266 = vpow.pop %v1265
    %v1267 = vmul.f32 %v1254, 1.442695
    %v1268 = vpow.pop %v1267
    %v1269 = vmul.f32 %v1255, 1.442695
    %v1270 = vpow.pop %v1269
    %v1271 = vmul.f32 %v1256, 1.442695
    %v1272 = vpow.pop %v1271
    %v1273 = vsel %vm1224, %v1258, 0.0
    %1274 = vadd.xlane.f32.xlu0 %v1273
    %v1275 = vpop.xlane.xlu0 %1274
    %v1276 = vsel %vm1224, %v1260, 0.0
    %1277 = vadd.xlane.f32.xlu0 %v1276
    %v1278 = vpop.xlane.xlu0 %1277
    %v1279 = vsel %vm1224, %v1262, 0.0
    %1280 = vadd.xlane.f32.xlu0 %v1279
    %v1281 = vpop.xlane.xlu0 %1280
    %v1282 = vsel %vm1224, %v1264, 0.0
    %1283 = vadd.xlane.f32.xlu0 %v1282
    %v1284 = vpop.xlane.xlu0 %1283
    %v1285 = vsel %vm1224, %v1266, 0.0
    %1286 = vadd.xlane.f32.xlu0 %v1285
    %v1287 = vpop.xlane.xlu0 %1286
    %v1288 = vsel %vm1224, %v1268, 0.0
    %1289 = vadd.xlane.f32.xlu0 %v1288
    %v1290 = vpop.xlane.xlu0 %1289
    %v1291 = vsel %vm1224, %v1270, 0.0
    %1292 = vadd.xlane.f32.xlu0 %v1291
    %v1293 = vpop.xlane.xlu0 %1292
    %v1294 = vsel %vm1224, %v1272, 0.0
    %1295 = vadd.xlane.f32.xlu0 %v1294
    %v1296 = vpop.xlane.xlu0 %1295
    %v1297 = vrcp.pop %v1275
    %v1298 = vrcp.pop %v1278
    %v1299 = vrcp.pop %v1281
    %v1300 = vrcp.pop %v1284
    %v1301 = vrcp.pop %v1287
    %v1302 = vrcp.pop %v1290
    %v1303 = vrcp.pop %v1293
    %v1304 = vrcp.pop %v1296
    %v1305 = vmul.f32 %v1258, %v1297
    %v1306 = vmul.f32 %v1260, %v1298
    %v1307 = vmul.f32 %v1262, %v1299
    %v1308 = vmul.f32 %v1264, %v1300
    %v1309 = vmul.f32 %v1266, %v1301
    %v1310 = vmul.f32 %v1268, %v1302
    %v1311 = vmul.f32 %v1270, %v1303
    %v1312 = vmul.f32 %v1272, %v1304
    %v1313 = vpack.c.bf16 %v1306, %v1305
    %v1314 = vpack.c.bf16 %v1308, %v1307
    %v1315 = vpack.c.bf16 %v1310, %v1309
    %v1316 = vpack.c.bf16 %v1312, %v1311
    %1317 = vrot.lane.b32.xlu0 %v987, 64
    %v1318 = vpop.permute.xlu0 %1317
    %v1321 = vsel %vm1224, %v1313, 0
    %1323 = vmatprep.subr.bf16.mxu0 0
    %1324 = vmatpush1.bf16.msra.mxu0 %v1318
    %1325 = vmatprep.subr.bf16.mxu0 0
    %1326 = vmatpush1.bf16.msra.mxu0 0
    %1327 = vmatprep.subr.bf16.mxu0 0
    %1328 = vmatpush1.bf16.msra.mxu0 0
    %1329 = vmatprep.subr.bf16.mxu0 0
    %1330 = vmatpush1.bf16.msra.mxu0 0
    %1331 = vmatprep.subr.bf16.mxu0 0
    %1332 = vmatpush1.bf16.msra.mxu0 0
    %1333 = vmatprep.subr.bf16.mxu0 0
    %1334 = vmatpush1.bf16.msra.mxu0 0
    %1335 = vmatprep.subr.bf16.mxu0 0
    %1336 = vmatpush1.bf16.msra.mxu0 0
    %1337 = vmatprep.subr.bf16.mxu0 0
    %1338 = vmatpush1.bf16.msra.mxu0 0
    %1339 = vmatprep.subr.bf16.mxu0 0
    %1340 = vmatpush1.bf16.msra.mxu0 0
    %1341 = vmatprep.subr.bf16.mxu0 0
    %1342 = vmatpush1.bf16.msra.mxu0 0
    %1343 = vmatprep.subr.bf16.mxu0 0
    %1344 = vmatpush1.bf16.msra.mxu0 0
    %1345 = vmatprep.subr.bf16.mxu0 0
    %1346 = vmatpush1.bf16.msra.mxu0 0
    %1347 = vmatprep.subr.bf16.mxu0 0
    %1348 = vmatpush1.bf16.msra.mxu0 0
    %1349 = vmatprep.subr.bf16.mxu0 0
    %1350 = vmatpush1.bf16.msra.mxu0 0
    %1351 = vmatprep.subr.bf16.mxu0 0
    %1352 = vmatpush1.bf16.msra.mxu0 0
    %1353 = vmatprep.subr.bf16.mxu0 0
    %1354 = vmatpush1.bf16.msra.mxu0 0
    %1355 = vmatprep.mubr.bf16.mxu0 0
    %1356 = vmatmul.mubr.bf16.gmra.mrb[0].mxu0 %v1321
    %v1357 = vpop.f32.mrb[0].mxu0
    %v1358 = vadd.f32 0.0, %v1357
    %v1359 = vpop.f32.mrb[0].mxu0
    %v1360 = vpop.f32.mrb[0].mxu0
    %v1361 = vadd.f32 0.0, %v1360
    %v1362 = vpop.f32.mrb[0].mxu0
    %1363 = vdwg.mxu0
    %1364 = vrot.lane.b32.xlu0 %v994, 64
    %v1365 = vpop.permute.xlu0 %1364
    %v1368 = vsel %vm1224, %v1314, 0
    %1370 = vmatprep.subr.bf16.mxu0 0
    %1371 = vmatpush1.bf16.msra.mxu0 %v1365
    %1372 = vmatprep.subr.bf16.mxu0 0
    %1373 = vmatpush1.bf16.msra.mxu0 0
    %1374 = vmatprep.subr.bf16.mxu0 0
    %1375 = vmatpush1.bf16.msra.mxu0 0
    %1376 = vmatprep.subr.bf16.mxu0 0
    %1377 = vmatpush1.bf16.msra.mxu0 0
    %1378 = vmatprep.subr.bf16.mxu0 0
    %1379 = vmatpush1.bf16.msra.mxu0 0
    %1380 = vmatprep.subr.bf16.mxu0 0
    %1381 = vmatpush1.bf16.msra.mxu0 0
    %1382 = vmatprep.subr.bf16.mxu0 0
    %1383 = vmatpush1.bf16.msra.mxu0 0
    %1384 = vmatprep.subr.bf16.mxu0 0
    %1385 = vmatpush1.bf16.msra.mxu0 0
    %1386 = vmatprep.subr.bf16.mxu0 0
    %1387 = vmatpush1.bf16.msra.mxu0 0
    %1388 = vmatprep.subr.bf16.mxu0 0
    %1389 = vmatpush1.bf16.msra.mxu0 0
    %1390 = vmatprep.subr.bf16.mxu0 0
    %1391 = vmatpush1.bf16.msra.mxu0 0
    %1392 = vmatprep.subr.bf16.mxu0 0
    %1393 = vmatpush1.bf16.msra.mxu0 0
    %1394 = vmatprep.subr.bf16.mxu0 0
    %1395 = vmatpush1.bf16.msra.mxu0 0
    %1396 = vmatprep.subr.bf16.mxu0 0
    %1397 = vmatpush1.bf16.msra.mxu0 0
    %1398 = vmatprep.subr.bf16.mxu0 0
    %1399 = vmatpush1.bf16.msra.mxu0 0
    %1400 = vmatprep.subr.bf16.mxu0 0
    %1401 = vmatpush1.bf16.msra.mxu0 0
    %1402 = vmatprep.mubr.bf16.mxu0 0
    %1403 = vmatmul.mubr.bf16.gmra.mrb[0].mxu0 %v1368
    %v1404 = vpop.f32.mrb[0].mxu0
    %v1405 = vadd.f32 0.0, %v1404
    %v1406 = vpop.f32.mrb[0].mxu0
    %v1407 = vpop.f32.mrb[0].mxu0
    %v1408 = vadd.f32 0.0, %v1407
    %v1409 = vpop.f32.mrb[0].mxu0
    %1410 = vdwg.mxu0
    %1411 = vrot.lane.b32.xlu0 %v996, 64
    %v1412 = vpop.permute.xlu0 %1411
    %v1415 = vsel %vm1224, %v1315, 0
    %1417 = vmatprep.subr.bf16.mxu0 0
    %1418 = vmatpush1.bf16.msra.mxu0 %v1412
    %1419 = vmatprep.subr.bf16.mxu0 0
    %1420 = vmatpush1.bf16.msra.mxu0 0
    %1421 = vmatprep.subr.bf16.mxu0 0
    %1422 = vmatpush1.bf16.msra.mxu0 0
    %1423 = vmatprep.subr.bf16.mxu0 0
    %1424 = vmatpush1.bf16.msra.mxu0 0
    %1425 = vmatprep.subr.bf16.mxu0 0
    %1426 = vmatpush1.bf16.msra.mxu0 0
    %1427 = vmatprep.subr.bf16.mxu0 0
    %1428 = vmatpush1.bf16.msra.mxu0 0
    %1429 = vmatprep.subr.bf16.mxu0 0
    %1430 = vmatpush1.bf16.msra.mxu0 0
    %1431 = vmatprep.subr.bf16.mxu0 0
    %1432 = vmatpush1.bf16.msra.mxu0 0
    %1433 = vmatprep.subr.bf16.mxu0 0
    %1434 = vmatpush1.bf16.msra.mxu0 0
    %1435 = vmatprep.subr.bf16.mxu0 0
    %1436 = vmatpush1.bf16.msra.mxu0 0
    %1437 = vmatprep.subr.bf16.mxu0 0
    %1438 = vmatpush1.bf16.msra.mxu0 0
    %1439 = vmatprep.subr.bf16.mxu0 0
    %1440 = vmatpush1.bf16.msra.mxu0 0
    %1441 = vmatprep.subr.bf16.mxu0 0
    %1442 = vmatpush1.bf16.msra.mxu0 0
    %1443 = vmatprep.subr.bf16.mxu0 0
    %1444 = vmatpush1.bf16.msra.mxu0 0
    %1445 = vmatprep.subr.bf16.mxu0 0
    %1446 = vmatpush1.bf16.msra.mxu0 0
    %1447 = vmatprep.subr.bf16.mxu0 0
    %1448 = vmatpush1.bf16.msra.mxu0 0
    %1449 = vmatprep.mubr.bf16.mxu0 0
    %1450 = vmatmul.mubr.bf16.gmra.mrb[0].mxu0 %v1415
    %v1451 = vpop.f32.mrb[0].mxu0
    %v1452 = vadd.f32 0.0, %v1451
    %v1453 = vpop.f32.mrb[0].mxu0
    %v1454 = vpop.f32.mrb[0].mxu0
    %v1455 = vadd.f32 0.0, %v1454
    %v1456 = vpop.f32.mrb[0].mxu0
    %1457 = vdwg.mxu0
    %1458 = vrot.lane.b32.xlu0 %v998, 64
    %v1459 = vpop.permute.xlu0 %1458
    %v1462 = vsel %vm1224, %v1316, 0
    %1464 = vmatprep.subr.bf16.mxu0 0
    %1465 = vmatpush1.bf16.msra.mxu0 %v1459
    %1466 = vmatprep.subr.bf16.mxu0 0
    %1467 = vmatpush1.bf16.msra.mxu0 0
    %1468 = vmatprep.subr.bf16.mxu0 0
    %1469 = vmatpush1.bf16.msra.mxu0 0
    %1470 = vmatprep.subr.bf16.mxu0 0
    %1471 = vmatpush1.bf16.msra.mxu0 0
    %1472 = vmatprep.subr.bf16.mxu0 0
    %1473 = vmatpush1.bf16.msra.mxu0 0
    %1474 = vmatprep.subr.bf16.mxu0 0
    %1475 = vmatpush1.bf16.msra.mxu0 0
    %1476 = vmatprep.subr.bf16.mxu0 0
    %1477 = vmatpush1.bf16.msra.mxu0 0
    %1478 = vmatprep.subr.bf16.mxu0 0
    %1479 = vmatpush1.bf16.msra.mxu0 0
    %1480 = vmatprep.subr.bf16.mxu0 0
    %1481 = vmatpush1.bf16.msra.mxu0 0
    %1482 = vmatprep.subr.bf16.mxu0 0
    %1483 = vmatpush1.bf16.msra.mxu0 0
    %1484 = vmatprep.subr.bf16.mxu0 0
    %1485 = vmatpush1.bf16.msra.mxu0 0
    %1486 = vmatprep.subr.bf16.mxu0 0
    %1487 = vmatpush1.bf16.msra.mxu0 0
    %1488 = vmatprep.subr.bf16.mxu0 0
    %1489 = vmatpush1.bf16.msra.mxu0 0
    %1490 = vmatprep.subr.bf16.mxu0 0
    %1491 = vmatpush1.bf16.msra.mxu0 0
    %1492 = vmatprep.subr.bf16.mxu0 0
    %1493 = vmatpush1.bf16.msra.mxu0 0
    %1494 = vmatprep.subr.bf16.mxu0 0
    %1495 = vmatpush1.bf16.msra.mxu0 0
    %1496 = vmatprep.mubr.bf16.mxu0 0
    %1497 = vmatmul.mubr.bf16.gmra.mrb[0].mxu0 %v1462
    %v1498 = vpop.f32.mrb[0].mxu0
    %v1499 = vadd.f32 0.0, %v1498
    %v1500 = vpop.f32.mrb[0].mxu0
    %v1501 = vpop.f32.mrb[0].mxu0
    %v1502 = vadd.f32 0.0, %v1501
    %v1503 = vpop.f32.mrb[0].mxu0
    %1504 = vdwg.mxu0
    %1507 = vrot.lane.b32.xlu0 %v1405, 8
    %v1508 = vpop.permute.xlu0 %1507
    %1509 = vrot.lane.b32.xlu0 %v1408, 8
    %v1510 = vpop.permute.xlu0 %1509
    %1515 = vrot.lane.b32.xlu0 %v1452, 16
    %v1516 = vpop.permute.xlu0 %1515
    %1517 = vrot.lane.b32.xlu0 %v1455, 16
    %v1518 = vpop.permute.xlu0 %1517
    %1523 = vrot.lane.b32.xlu0 %v1499, 24
    %v1524 = vpop.permute.xlu0 %1523
    %1525 = vrot.lane.b32.xlu0 %v1502, 24
    %v1526 = vpop.permute.xlu0 %1525
    %v1529 = vsel %vm1001, %v1358, %v1508
    %v1530 = vsel %vm1001, %v1361, %v1510
    %v1531 = vsel %vm1224, %v1529, %v1516
    %v1532 = vsel %vm1224, %v1530, %v1518
    %vm1533 = vcmask 195584
    %v1534 = vsel %vm1533, %v1531, %v1524
    %v1535 = vsel %vm1533, %v1532, %v1526
    %s1536 = scalar_lea.vmem [#allocation5], 1
    %v1537 = vld [vmem:[%s1536] sm:$0x1]
    %v1538 = vsub.f32 1.0, %v1537
    %v1539 = vmul.f32 %v1538, -1e+30
    %1541 = vrot.lane.b32.xlu0 %v988, 120
    %v1542 = vpop.permute.xlu0 %1541
    %1543 = vrot.lane.b32.xlu0 %v988, 112
    %v1544 = vpop.permute.xlu0 %1543
    %1545 = vrot.lane.b32.xlu0 %v988, 104
    %v1546 = vpop.permute.xlu0 %1545
    %1547 = vrot.lane.b32.xlu0 %v988, 96
    %v1548 = vpop.permute.xlu0 %1547
    %v1550 = vsel %vm1001, %v988, 0
    %v1553 = vsel %vm1001, %v1548, 0
    %1555 = vmatprep.subr.bf16.mxu0 0
    %1556 = vmatpush1.bf16.xpose.msra.mxu0 %v1553
    %1557 = vmatprep.subr.bf16.mxu0 0
    %1558 = vmatpush1.bf16.xpose.msra.mxu0 0
    %1559 = vmatprep.subr.bf16.mxu0 0
    %1560 = vmatpush1.bf16.xpose.msra.mxu0 0
    %1561 = vmatprep.subr.bf16.mxu0 0
    %1562 = vmatpush1.bf16.xpose.msra.mxu0 0
    %1563 = vmatprep.subr.bf16.mxu0 0
    %1564 = vmatpush1.bf16.xpose.msra.mxu0 0
    %1565 = vmatprep.subr.bf16.mxu0 0
    %1566 = vmatpush1.bf16.xpose.msra.mxu0 0
    %1567 = vmatprep.subr.bf16.mxu0 0
    %1568 = vmatpush1.bf16.xpose.msra.mxu0 0
    %1569 = vmatprep.subr.bf16.mxu0 0
    %1570 = vmatpush1.bf16.xpose.msra.mxu0 0
    %1571 = vmatprep.subr.bf16.mxu0 0
    %1572 = vmatpush1.bf16.xpose.msra.mxu0 0
    %1573 = vmatprep.subr.bf16.mxu0 0
    %1574 = vmatpush1.bf16.xpose.msra.mxu0 0
    %1575 = vmatprep.subr.bf16.mxu0 0
    %1576 = vmatpush1.bf16.xpose.msra.mxu0 0
    %1577 = vmatprep.subr.bf16.mxu0 0
    %1578 = vmatpush1.bf16.xpose.msra.mxu0 0
    %1579 = vmatprep.subr.bf16.mxu0 0
    %1580 = vmatpush1.bf16.xpose.msra.mxu0 0
    %1581 = vmatprep.subr.bf16.mxu0 0
    %1582 = vmatpush1.bf16.xpose.msra.mxu0 0
    %1583 = vmatprep.subr.bf16.mxu0 0
    %1584 = vmatpush1.bf16.xpose.msra.mxu0 0
    %1585 = vmatprep.subr.bf16.mxu0 0
    %1586 = vmatpush1.bf16.xpose.msra.mxu0 0
    %1587 = vmatprep.mubr.bf16.mxu0 0
    %1588 = vmatmul.mubr.bf16.gmra.mrb[0].mxu0 %v1550
    %v1589 = vpop.f32.mrb[0].mxu0
    %v1590 = vadd.f32 0.0, %v1589
    %v1591 = vpop.f32.mrb[0].mxu0
    %v1592 = vpop.f32.mrb[0].mxu0
    %v1593 = vadd.f32 0.0, %v1592
    %v1594 = vpop.f32.mrb[0].mxu0
    %1595 = vdwg.mxu0
    %1596 = vrot.lane.b32.xlu0 %v1542, 96
    %v1597 = vpop.permute.xlu0 %1596
    %v1599 = vsel %vm1001, %v1542, 0
    %v1602 = vsel %vm1001, %v1597, 0
    %1604 = vmatprep.subr.bf16.mxu0 0
    %1605 = vmatpush1.bf16.xpose.msra.mxu0 %v1602
    %1606 = vmatprep.subr.bf16.mxu0 0
    %1607 = vmatpush1.bf16.xpose.msra.mxu0 0
    %1608 = vmatprep.subr.bf16.mxu0 0
    %1609 = vmatpush1.bf16.xpose.msra.mxu0 0
    %1610 = vmatprep.subr.bf16.mxu0 0
    %1611 = vmatpush1.bf16.xpose.msra.mxu0 0
    %1612 = vmatprep.subr.bf16.mxu0 0
    %1613 = vmatpush1.bf16.xpose.msra.mxu0 0
    %1614 = vmatprep.subr.bf16.mxu0 0
    %1615 = vmatpush1.bf16.xpose.msra.mxu0 0
    %1616 = vmatprep.subr.bf16.mxu0 0
    %1617 = vmatpush1.bf16.xpose.msra.mxu0 0
    %1618 = vmatprep.subr.bf16.mxu0 0
    %1619 = vmatpush1.bf16.xpose.msra.mxu0 0
    %1620 = vmatprep.subr.bf16.mxu0 0
    %1621 = vmatpush1.bf16.xpose.msra.mxu0 0
    %1622 = vmatprep.subr.bf16.mxu0 0
    %1623 = vmatpush1.bf16.xpose.msra.mxu0 0
    %1624 = vmatprep.subr.bf16.mxu0 0
    %1625 = vmatpush1.bf16.xpose.msra.mxu0 0
    %1626 = vmatprep.subr.bf16.mxu0 0
    %1627 = vmatpush1.bf16.xpose.msra.mxu0 0
    %1628 = vmatprep.subr.bf16.mxu0 0
    %1629 = vmatpush1.bf16.xpose.msra.mxu0 0
    %1630 = vmatprep.subr.bf16.mxu0 0
    %1631 = vmatpush1.bf16.xpose.msra.mxu0 0
    %1632 = vmatprep.subr.bf16.mxu0 0
    %1633 = vmatpush1.bf16.xpose.msra.mxu0 0
    %1634 = vmatprep.subr.bf16.mxu0 0
    %1635 = vmatpush1.bf16.xpose.msra.mxu0 0
    %1636 = vmatprep.mubr.bf16.mxu0 0
    %1637 = vmatmul.mubr.bf16.gmra.mrb[0].mxu0 %v1599
    %v1638 = vpop.f32.mrb[0].mxu0
    %v1639 = vadd.f32 0.0, %v1638
    %v1640 = vpop.f32.mrb[0].mxu0
    %v1641 = vpop.f32.mrb[0].mxu0
    %v1642 = vadd.f32 0.0, %v1641
    %v1643 = vpop.f32.mrb[0].mxu0
    %1644 = vdwg.mxu0
    %1645 = vrot.lane.b32.xlu0 %v1544, 96
    %v1646 = vpop.permute.xlu0 %1645
    %v1648 = vsel %vm1001, %v1544, 0
    %v1651 = vsel %vm1001, %v1646, 0
    %1653 = vmatprep.subr.bf16.mxu0 0
    %1654 = vmatpush1.bf16.xpose.msra.mxu0 %v1651
    %1655 = vmatprep.subr.bf16.mxu0 0
    %1656 = vmatpush1.bf16.xpose.msra.mxu0 0
    %1657 = vmatprep.subr.bf16.mxu0 0
    %1658 = vmatpush1.bf16.xpose.msra.mxu0 0
    %1659 = vmatprep.subr.bf16.mxu0 0
    %1660 = vmatpush1.bf16.xpose.msra.mxu0 0
    %1661 = vmatprep.subr.bf16.mxu0 0
    %1662 = vmatpush1.bf16.xpose.msra.mxu0 0
    %1663 = vmatprep.subr.bf16.mxu0 0
    %1664 = vmatpush1.bf16.xpose.msra.mxu0 0
    %1665 = vmatprep.subr.bf16.mxu0 0
    %1666 = vmatpush1.bf16.xpose.msra.mxu0 0
    %1667 = vmatprep.subr.bf16.mxu0 0
    %1668 = vmatpush1.bf16.xpose.msra.mxu0 0
    %1669 = vmatprep.subr.bf16.mxu0 0
    %1670 = vmatpush1.bf16.xpose.msra.mxu0 0
    %1671 = vmatprep.subr.bf16.mxu0 0
    %1672 = vmatpush1.bf16.xpose.msra.mxu0 0
    %1673 = vmatprep.subr.bf16.mxu0 0
    %1674 = vmatpush1.bf16.xpose.msra.mxu0 0
    %1675 = vmatprep.subr.bf16.mxu0 0
    %1676 = vmatpush1.bf16.xpose.msra.mxu0 0
    %1677 = vmatprep.subr.bf16.mxu0 0
    %1678 = vmatpush1.bf16.xpose.msra.mxu0 0
    %1679 = vmatprep.subr.bf16.mxu0 0
    %1680 = vmatpush1.bf16.xpose.msra.mxu0 0
    %1681 = vmatprep.subr.bf16.mxu0 0
    %1682 = vmatpush1.bf16.xpose.msra.mxu0 0
    %1683 = vmatprep.subr.bf16.mxu0 0
    %1684 = vmatpush1.bf16.xpose.msra.mxu0 0
    %1685 = vmatprep.mubr.bf16.mxu0 0
    %1686 = vmatmul.mubr.bf16.gmra.mrb[0].mxu0 %v1648
    %v1687 = vpop.f32.mrb[0].mxu0
    %v1688 = vadd.f32 0.0, %v1687
    %v1689 = vpop.f32.mrb[0].mxu0
    %v1690 = vpop.f32.mrb[0].mxu0
    %v1691 = vadd.f32 0.0, %v1690
    %v1692 = vpop.f32.mrb[0].mxu0
    %1693 = vdwg.mxu0
    %1694 = vrot.lane.b32.xlu0 %v1546, 96
    %v1695 = vpop.permute.xlu0 %1694
    %v1697 = vsel %vm1001, %v1546, 0
    %v1700 = vsel %vm1001, %v1695, 0
    %1702 = vmatprep.subr.bf16.mxu0 0
    %1703 = vmatpush1.bf16.xpose.msra.mxu0 %v1700
    %1704 = vmatprep.subr.bf16.mxu0 0
    %1705 = vmatpush1.bf16.xpose.msra.mxu0 0
    %1706 = vmatprep.subr.bf16.mxu0 0
    %1707 = vmatpush1.bf16.xpose.msra.mxu0 0
    %1708 = vmatprep.subr.bf16.mxu0 0
    %1709 = vmatpush1.bf16.xpose.msra.mxu0 0
    %1710 = vmatprep.subr.bf16.mxu0 0
    %1711 = vmatpush1.bf16.xpose.msra.mxu0 0
    %1712 = vmatprep.subr.bf16.mxu0 0
    %1713 = vmatpush1.bf16.xpose.msra.mxu0 0
    %1714 = vmatprep.subr.bf16.mxu0 0
    %1715 = vmatpush1.bf16.xpose.msra.mxu0 0
    %1716 = vmatprep.subr.bf16.mxu0 0
    %1717 = vmatpush1.bf16.xpose.msra.mxu0 0
    %1718 = vmatprep.subr.bf16.mxu0 0
    %1719 = vmatpush1.bf16.xpose.msra.mxu0 0
    %1720 = vmatprep.subr.bf16.mxu0 0
    %1721 = vmatpush1.bf16.xpose.msra.mxu0 0
    %1722 = vmatprep.subr.bf16.mxu0 0
    %1723 = vmatpush1.bf16.xpose.msra.mxu0 0
    %1724 = vmatprep.subr.bf16.mxu0 0
    %1725 = vmatpush1.bf16.xpose.msra.mxu0 0
    %1726 = vmatprep.subr.bf16.mxu0 0
    %1727 = vmatpush1.bf16.xpose.msra.mxu0 0
    %1728 = vmatprep.subr.bf16.mxu0 0
    %1729 = vmatpush1.bf16.xpose.msra.mxu0 0
    %1730 = vmatprep.subr.bf16.mxu0 0
    %1731 = vmatpush1.bf16.xpose.msra.mxu0 0
    %1732 = vmatprep.subr.bf16.mxu0 0
    %1733 = vmatpush1.bf16.xpose.msra.mxu0 0
    %1734 = vmatprep.mubr.bf16.mxu0 0
    %1735 = vmatmul.mubr.bf16.gmra.mrb[0].mxu0 %v1697
    %v1736 = vpop.f32.mrb[0].mxu0
    %v1737 = vadd.f32 0.0, %v1736
    %v1738 = vpop.f32.mrb[0].mxu0
    %v1739 = vpop.f32.mrb[0].mxu0
    %v1740 = vadd.f32 0.0, %v1739
    %v1741 = vpop.f32.mrb[0].mxu0
    %1742 = vdwg.mxu0
    %v1744 = vlaneseq
    %v1745 = vshrl.u32 %v1744, 7
    %v1746 = vsub.s32 0, %v1745
    %v1747 = vrot.slane %v1537, %v1746
    %v1749 = vmul.f32 %v1590, %v1747
    %v1750 = vmul.f32 %v1593, %v1747
    %v1751 = vmul.f32 %v1639, %v1747
    %v1752 = vmul.f32 %v1642, %v1747
    %v1753 = vmul.f32 %v1688, %v1747
    %v1754 = vmul.f32 %v1691, %v1747
    %v1755 = vmul.f32 %v1737, %v1747
    %v1756 = vmul.f32 %v1740, %v1747
    %v1758 = vlaneseq
    %v1759 = vshrl.u32 %v1758, 7
    %v1760 = vsub.s32 0, %v1759
    %v1761 = vrot.slane %v1539, %v1760
    %v1763 = vadd.f32 %v1749, %v1761
    %v1764 = vadd.f32 %v1750, %v1761
    %v1765 = vadd.f32 %v1751, %v1761
    %v1766 = vadd.f32 %v1752, %v1761
    %v1767 = vadd.f32 %v1753, %v1761
    %v1768 = vadd.f32 %v1754, %v1761
    %v1769 = vadd.f32 %v1755, %v1761
    %v1770 = vadd.f32 %v1756, %v1761
    %v1771 = vsel %vm1224, %v1763, -inf
    %1772 = vmax.xlane.f32.xlu0 %v1771
    %v1773 = vpop.xlane.xlu0 %1772
    %v1774 = vsel %vm1224, %v1764, -inf
    %1775 = vmax.xlane.f32.xlu0 %v1774
    %v1776 = vpop.xlane.xlu0 %1775
    %v1777 = vsel %vm1224, %v1765, -inf
    %1778 = vmax.xlane.f32.xlu0 %v1777
    %v1779 = vpop.xlane.xlu0 %1778
    %v1780 = vsel %vm1224, %v1766, -inf
    %1781 = vmax.xlane.f32.xlu0 %v1780
    %v1782 = vpop.xlane.xlu0 %1781
    %v1783 = vsel %vm1224, %v1767, -inf
    %1784 = vmax.xlane.f32.xlu0 %v1783
    %v1785 = vpop.xlane.xlu0 %1784
    %v1786 = vsel %vm1224, %v1768, -inf
    %1787 = vmax.xlane.f32.xlu0 %v1786
    %v1788 = vpop.xlane.xlu0 %1787
    %v1789 = vsel %vm1224, %v1769, -inf
    %1790 = vmax.xlane.f32.xlu0 %v1789
    %v1791 = vpop.xlane.xlu0 %1790
    %v1792 = vsel %vm1224, %v1770, -inf
    %1793 = vmax.xlane.f32.xlu0 %v1792
    %v1794 = vpop.xlane.xlu0 %1793
    %v1795 = vsub.f32 %v1763, %v1773
    %v1796 = vsub.f32 %v1764, %v1776
    %v1797 = vsub.f32 %v1765, %v1779
    %v1798 = vsub.f32 %v1766, %v1782
    %v1799 = vsub.f32 %v1767, %v1785
    %v1800 = vsub.f32 %v1768, %v1788
    %v1801 = vsub.f32 %v1769, %v1791
    %v1802 = vsub.f32 %v1770, %v1794
    %v1803 = vmul.f32 %v1795, 1.442695
    %v1804 = vpow.pop %v1803
    %v1805 = vmul.f32 %v1796, 1.442695
    %v1806 = vpow.pop %v1805
    %v1807 = vmul.f32 %v1797, 1.442695
    %v1808 = vpow.pop %v1807
    %v1809 = vmul.f32 %v1798, 1.442695
    %v1810 = vpow.pop %v1809
    %v1811 = vmul.f32 %v1799, 1.442695
    %v1812 = vpow.pop %v1811
    %v1813 = vmul.f32 %v1800, 1.442695
    %v1814 = vpow.pop %v1813
    %v1815 = vmul.f32 %v1801, 1.442695
    %v1816 = vpow.pop %v1815
    %v1817 = vmul.f32 %v1802, 1.442695
    %v1818 = vpow.pop %v1817
    %v1819 = vsel %vm1224, %v1804, 0.0
    %1820 = vadd.xlane.f32.xlu0 %v1819
    %v1821 = vpop.xlane.xlu0 %1820
    %v1822 = vsel %vm1224, %v1806, 0.0
    %1823 = vadd.xlane.f32.xlu0 %v1822
    %v1824 = vpop.xlane.xlu0 %1823
    %v1825 = vsel %vm1224, %v1808, 0.0
    %1826 = vadd.xlane.f32.xlu0 %v1825
    %v1827 = vpop.xlane.xlu0 %1826
    %v1828 = vsel %vm1224, %v1810, 0.0
    %1829 = vadd.xlane.f32.xlu0 %v1828
    %v1830 = vpop.xlane.xlu0 %1829
    %v1831 = vsel %vm1224, %v1812, 0.0
    %1832 = vadd.xlane.f32.xlu0 %v1831
    %v1833 = vpop.xlane.xlu0 %1832
    %v1834 = vsel %vm1224, %v1814, 0.0
    %1835 = vadd.xlane.f32.xlu0 %v1834
    %v1836 = vpop.xlane.xlu0 %1835
    %v1837 = vsel %vm1224, %v1816, 0.0
    %1838 = vadd.xlane.f32.xlu0 %v1837
    %v1839 = vpop.xlane.xlu0 %1838
    %v1840 = vsel %vm1224, %v1818, 0.0
    %1841 = vadd.xlane.f32.xlu0 %v1840
    %v1842 = vpop.xlane.xlu0 %1841
    %v1843 = vrcp.pop %v1821
    %v1844 = vrcp.pop %v1824
    %v1845 = vrcp.pop %v1827
    %v1846 = vrcp.pop %v1830
    %v1847 = vrcp.pop %v1833
    %v1848 = vrcp.pop %v1836
    %v1849 = vrcp.pop %v1839
    %v1850 = vrcp.pop %v1842
    %v1851 = vmul.f32 %v1804, %v1843
    %v1852 = vmul.f32 %v1806, %v1844
    %v1853 = vmul.f32 %v1808, %v1845
    %v1854 = vmul.f32 %v1810, %v1846
    %v1855 = vmul.f32 %v1812, %v1847
    %v1856 = vmul.f32 %v1814, %v1848
    %v1857 = vmul.f32 %v1816, %v1849
    %v1858 = vmul.f32 %v1818, %v1850
    %v1859 = vpack.c.bf16 %v1852, %v1851
    %v1860 = vpack.c.bf16 %v1854, %v1853
    %v1861 = vpack.c.bf16 %v1856, %v1855
    %v1862 = vpack.c.bf16 %v1858, %v1857
    %1863 = vrot.lane.b32.xlu0 %v988, 64
    %v1864 = vpop.permute.xlu0 %1863
    %v1867 = vsel %vm1224, %v1859, 0
    %1869 = vmatprep.subr.bf16.mxu0 0
    %1870 = vmatpush1.bf16.msra.mxu0 %v1864
    %1871 = vmatprep.subr.bf16.mxu0 0
    %1872 = vmatpush1.bf16.msra.mxu0 0
    %1873 = vmatprep.subr.bf16.mxu0 0
    %1874 = vmatpush1.bf16.msra.mxu0 0
    %1875 = vmatprep.subr.bf16.mxu0 0
    %1876 = vmatpush1.bf16.msra.mxu0 0
    %1877 = vmatprep.subr.bf16.mxu0 0
    %1878 = vmatpush1.bf16.msra.mxu0 0
    %1879 = vmatprep.subr.bf16.mxu0 0
    %1880 = vmatpush1.bf16.msra.mxu0 0
    %1881 = vmatprep.subr.bf16.mxu0 0
    %1882 = vmatpush1.bf16.msra.mxu0 0
    %1883 = vmatprep.subr.bf16.mxu0 0
    %1884 = vmatpush1.bf16.msra.mxu0 0
    %1885 = vmatprep.subr.bf16.mxu0 0
    %1886 = vmatpush1.bf16.msra.mxu0 0
    %1887 = vmatprep.subr.bf16.mxu0 0
    %1888 = vmatpush1.bf16.msra.mxu0 0
    %1889 = vmatprep.subr.bf16.mxu0 0
    %1890 = vmatpush1.bf16.msra.mxu0 0
    %1891 = vmatprep.subr.bf16.mxu0 0
    %1892 = vmatpush1.bf16.msra.mxu0 0
    %1893 = vmatprep.subr.bf16.mxu0 0
    %1894 = vmatpush1.bf16.msra.mxu0 0
    %1895 = vmatprep.subr.bf16.mxu0 0
    %1896 = vmatpush1.bf16.msra.mxu0 0
    %1897 = vmatprep.subr.bf16.mxu0 0
    %1898 = vmatpush1.bf16.msra.mxu0 0
    %1899 = vmatprep.subr.bf16.mxu0 0
    %1900 = vmatpush1.bf16.msra.mxu0 0
    %1901 = vmatprep.mubr.bf16.mxu0 0
    %1902 = vmatmul.mubr.bf16.gmra.mrb[0].mxu0 %v1867
    %v1903 = vpop.f32.mrb[0].mxu0
    %v1904 = vadd.f32 0.0, %v1903
    %v1905 = vpop.f32.mrb[0].mxu0
    %v1906 = vpop.f32.mrb[0].mxu0
    %v1907 = vadd.f32 0.0, %v1906
    %v1908 = vpop.f32.mrb[0].mxu0
    %1909 = vdwg.mxu0
    %1910 = vrot.lane.b32.xlu0 %v1542, 64
    %v1911 = vpop.permute.xlu0 %1910
    %v1914 = vsel %vm1224, %v1860, 0
    %1916 = vmatprep.subr.bf16.mxu0 0
    %1917 = vmatpush1.bf16.msra.mxu0 %v1911
    %1918 = vmatprep.subr.bf16.mxu0 0
    %1919 = vmatpush1.bf16.msra.mxu0 0
    %1920 = vmatprep.subr.bf16.mxu0 0
    %1921 = vmatpush1.bf16.msra.mxu0 0
    %1922 = vmatprep.subr.bf16.mxu0 0
    %1923 = vmatpush1.bf16.msra.mxu0 0
    %1924 = vmatprep.subr.bf16.mxu0 0
    %1925 = vmatpush1.bf16.msra.mxu0 0
    %1926 = vmatprep.subr.bf16.mxu0 0
    %1927 = vmatpush1.bf16.msra.mxu0 0
    %1928 = vmatprep.subr.bf16.mxu0 0
    %1929 = vmatpush1.bf16.msra.mxu0 0
    %1930 = vmatprep.subr.bf16.mxu0 0
    %1931 = vmatpush1.bf16.msra.mxu0 0
    %1932 = vmatprep.subr.bf16.mxu0 0
    %1933 = vmatpush1.bf16.msra.mxu0 0
    %1934 = vmatprep.subr.bf16.mxu0 0
    %1935 = vmatpush1.bf16.msra.mxu0 0
    %1936 = vmatprep.subr.bf16.mxu0 0
    %1937 = vmatpush1.bf16.msra.mxu0 0
    %1938 = vmatprep.subr.bf16.mxu0 0
    %1939 = vmatpush1.bf16.msra.mxu0 0
    %1940 = vmatprep.subr.bf16.mxu0 0
    %1941 = vmatpush1.bf16.msra.mxu0 0
    %1942 = vmatprep.subr.bf16.mxu0 0
    %1943 = vmatpush1.bf16.msra.mxu0 0
    %1944 = vmatprep.subr.bf16.mxu0 0
    %1945 = vmatpush1.bf16.msra.mxu0 0
    %1946 = vmatprep.subr.bf16.mxu0 0
    %1947 = vmatpush1.bf16.msra.mxu0 0
    %1948 = vmatprep.mubr.bf16.mxu0 0
    %1949 = vmatmul.mubr.bf16.gmra.mrb[0].mxu0 %v1914
    %v1950 = vpop.f32.mrb[0].mxu0
    %v1951 = vadd.f32 0.0, %v1950
    %v1952 = vpop.f32.mrb[0].mxu0
    %v1953 = vpop.f32.mrb[0].mxu0
    %v1954 = vadd.f32 0.0, %v1953
    %v1955 = vpop.f32.mrb[0].mxu0
    %1956 = vdwg.mxu0
    %1957 = vrot.lane.b32.xlu0 %v1544, 64
    %v1958 = vpop.permute.xlu0 %1957
    %v1961 = vsel %vm1224, %v1861, 0
    %1963 = vmatprep.subr.bf16.mxu0 0
    %1964 = vmatpush1.bf16.msra.mxu0 %v1958
    %1965 = vmatprep.subr.bf16.mxu0 0
    %1966 = vmatpush1.bf16.msra.mxu0 0
    %1967 = vmatprep.subr.bf16.mxu0 0
    %1968 = vmatpush1.bf16.msra.mxu0 0
    %1969 = vmatprep.subr.bf16.mxu0 0
    %1970 = vmatpush1.bf16.msra.mxu0 0
    %1971 = vmatprep.subr.bf16.mxu0 0
    %1972 = vmatpush1.bf16.msra.mxu0 0
    %1973 = vmatprep.subr.bf16.mxu0 0
    %1974 = vmatpush1.bf16.msra.mxu0 0
    %1975 = vmatprep.subr.bf16.mxu0 0
    %1976 = vmatpush1.bf16.msra.mxu0 0
    %1977 = vmatprep.subr.bf16.mxu0 0
    %1978 = vmatpush1.bf16.msra.mxu0 0
    %1979 = vmatprep.subr.bf16.mxu0 0
    %1980 = vmatpush1.bf16.msra.mxu0 0
    %1981 = vmatprep.subr.bf16.mxu0 0
    %1982 = vmatpush1.bf16.msra.mxu0 0
    %1983 = vmatprep.subr.bf16.mxu0 0
    %1984 = vmatpush1.bf16.msra.mxu0 0
    %1985 = vmatprep.subr.bf16.mxu0 0
    %1986 = vmatpush1.bf16.msra.mxu0 0
    %1987 = vmatprep.subr.bf16.mxu0 0
    %1988 = vmatpush1.bf16.msra.mxu0 0
    %1989 = vmatprep.subr.bf16.mxu0 0
    %1990 = vmatpush1.bf16.msra.mxu0 0
    %1991 = vmatprep.subr.bf16.mxu0 0
    %1992 = vmatpush1.bf16.msra.mxu0 0
    %1993 = vmatprep.subr.bf16.mxu0 0
    %1994 = vmatpush1.bf16.msra.mxu0 0
    %1995 = vmatprep.mubr.bf16.mxu0 0
    %1996 = vmatmul.mubr.bf16.gmra.mrb[0].mxu0 %v1961
    %v1997 = vpop.f32.mrb[0].mxu0
    %v1998 = vadd.f32 0.0, %v1997
    %v1999 = vpop.f32.mrb[0].mxu0
    %v2000 = vpop.f32.mrb[0].mxu0
    %v2001 = vadd.f32 0.0, %v2000
    %v2002 = vpop.f32.mrb[0].mxu0
    %2003 = vdwg.mxu0
    %2004 = vrot.lane.b32.xlu0 %v1546, 64
    %v2005 = vpop.permute.xlu0 %2004
    %v2008 = vsel %vm1224, %v1862, 0
    %2010 = vmatprep.subr.bf16.mxu0 0
    %2011 = vmatpush1.bf16.msra.mxu0 %v2005
    %2012 = vmatprep.subr.bf16.mxu0 0
    %2013 = vmatpush1.bf16.msra.mxu0 0
    %2014 = vmatprep.subr.bf16.mxu0 0
    %2015 = vmatpush1.bf16.msra.mxu0 0
    %2016 = vmatprep.subr.bf16.mxu0 0
    %2017 = vmatpush1.bf16.msra.mxu0 0
    %2018 = vmatprep.subr.bf16.mxu0 0
    %2019 = vmatpush1.bf16.msra.mxu0 0
    %2020 = vmatprep.subr.bf16.mxu0 0
    %2021 = vmatpush1.bf16.msra.mxu0 0
    %2022 = vmatprep.subr.bf16.mxu0 0
    %2023 = vmatpush1.bf16.msra.mxu0 0
    %2024 = vmatprep.subr.bf16.mxu0 0
    %2025 = vmatpush1.bf16.msra.mxu0 0
    %2026 = vmatprep.subr.bf16.mxu0 0
    %2027 = vmatpush1.bf16.msra.mxu0 0
    %2028 = vmatprep.subr.bf16.mxu0 0
    %2029 = vmatpush1.bf16.msra.mxu0 0
    %2030 = vmatprep.subr.bf16.mxu0 0
    %2031 = vmatpush1.bf16.msra.mxu0 0
    %2032 = vmatprep.subr.bf16.mxu0 0
    %2033 = vmatpush1.bf16.msra.mxu0 0
    %2034 = vmatprep.subr.bf16.mxu0 0
    %2035 = vmatpush1.bf16.msra.mxu0 0
    %2036 = vmatprep.subr.bf16.mxu0 0
    %2037 = vmatpush1.bf16.msra.mxu0 0
    %2038 = vmatprep.subr.bf16.mxu0 0
    %2039 = vmatpush1.bf16.msra.mxu0 0
    %2040 = vmatprep.subr.bf16.mxu0 0
    %2041 = vmatpush1.bf16.msra.mxu0 0
    %2042 = vmatprep.mubr.bf16.mxu0 0
    %2043 = vmatmul.mubr.bf16.gmra.mrb[0].mxu0 %v2008
    %v2044 = vpop.f32.mrb[0].mxu0
    %v2045 = vadd.f32 0.0, %v2044
    %v2046 = vpop.f32.mrb[0].mxu0
    %v2047 = vpop.f32.mrb[0].mxu0
    %v2048 = vadd.f32 0.0, %v2047
    %v2049 = vpop.f32.mrb[0].mxu0
    %2050 = vdwg.mxu0
    %2053 = vrot.lane.b32.xlu0 %v1951, 8
    %v2054 = vpop.permute.xlu0 %2053
    %2055 = vrot.lane.b32.xlu0 %v1954, 8
    %v2056 = vpop.permute.xlu0 %2055
    %2061 = vrot.lane.b32.xlu0 %v1998, 16
    %v2062 = vpop.permute.xlu0 %2061
    %2063 = vrot.lane.b32.xlu0 %v2001, 16
    %v2064 = vpop.permute.xlu0 %2063
    %2069 = vrot.lane.b32.xlu0 %v2045, 24
    %v2070 = vpop.permute.xlu0 %2069
    %2071 = vrot.lane.b32.xlu0 %v2048, 24
    %v2072 = vpop.permute.xlu0 %2071
    %v2075 = vsel %vm1001, %v1904, %v2054
    %v2076 = vsel %vm1001, %v1907, %v2056
    %v2077 = vsel %vm1224, %v2075, %v2062
    %v2078 = vsel %vm1224, %v2076, %v2064
    %v2079 = vsel %vm1533, %v2077, %v2070
    %v2080 = vsel %vm1533, %v2078, %v2072
    %v2081 = vadd.f32 %v1534, %v836
    %v2082 = vadd.f32 %v1535, %v837
    %v2083 = vadd.f32 %v2079, %v838
    %v2084 = vadd.f32 %v2080, %v839
    %v2085 = vld [vmem:[#allocation14] sm:$0x1]
    %v2086 = vld [vmem:[#allocation16] sm:$0x1]
    %v2087 = vsel %vm297, %v2081, 0.0
    %2088 = vadd.xlane.f32.xlu0 %v2087
    %v2089 = vpop.xlane.xlu0 %2088
    %v2090 = vsel %vm297, %v2082, 0.0
    %2091 = vadd.xlane.f32.xlu0 %v2090
    %v2092 = vpop.xlane.xlu0 %2091
    %v2093 = vsel %vm297, %v2083, 0.0
    %2094 = vadd.xlane.f32.xlu0 %v2093
    %v2095 = vpop.xlane.xlu0 %2094
    %v2096 = vsel %vm297, %v2084, 0.0
    %2097 = vadd.xlane.f32.xlu0 %v2096
    %v2098 = vpop.xlane.xlu0 %2097
    %v2099 = vmul.f32 %v2089, %v310
    %v2100 = vmul.f32 %v2092, %v310
    %v2101 = vmul.f32 %v2095, %v310
    %v2102 = vmul.f32 %v2098, %v310
    %v2103 = vsub.f32 %v2081, %v2099
    %v2104 = vsub.f32 %v2082, %v2100
    %v2105 = vsub.f32 %v2083, %v2101
    %v2106 = vsub.f32 %v2084, %v2102
    %v2107 = vmul.f32 %v2103, %v2103
    %v2108 = vmul.f32 %v2104, %v2104
    %v2109 = vmul.f32 %v2105, %v2105
    %v2110 = vmul.f32 %v2106, %v2106
    %v2111 = vsel %vm297, %v2107, 0.0
    %2112 = vadd.xlane.f32.xlu0 %v2111
    %v2113 = vpop.xlane.xlu0 %2112
    %v2114 = vsel %vm297, %v2108, 0.0
    %2115 = vadd.xlane.f32.xlu0 %v2114
    %v2116 = vpop.xlane.xlu0 %2115
    %v2117 = vsel %vm297, %v2109, 0.0
    %2118 = vadd.xlane.f32.xlu0 %v2117
    %v2119 = vpop.xlane.xlu0 %2118
    %v2120 = vsel %vm297, %v2110, 0.0
    %2121 = vadd.xlane.f32.xlu0 %v2120
    %v2122 = vpop.xlane.xlu0 %2121
    %v2123 = vmul.f32 %v2113, %v310
    %v2124 = vmul.f32 %v2116, %v310
    %v2125 = vmul.f32 %v2119, %v310
    %v2126 = vmul.f32 %v2122, %v310
    %v2127 = vadd.f32 %v2123, 1e-05
    %v2128 = vadd.f32 %v2124, 1e-05
    %v2129 = vadd.f32 %v2125, 1e-05
    %v2130 = vadd.f32 %v2126, 1e-05
    %v2131 = vrsqrt.pop %v2127
    %v2132 = vrsqrt.pop %v2128
    %v2133 = vrsqrt.pop %v2129
    %v2134 = vrsqrt.pop %v2130
    %v2135 = vmul.f32 %v2103, %v2131
    %v2136 = vmul.f32 %v2104, %v2132
    %v2137 = vmul.f32 %v2105, %v2133
    %v2138 = vmul.f32 %v2106, %v2134
    %v2140 = vlaneseq
    %v2141 = vshrl.u32 %v2140, 7
    %v2142 = vsub.s32 0, %v2141
    %v2143 = vrot.slane %v2085, %v2142
    %v2145 = vmul.f32 %v2135, %v2143
    %v2146 = vmul.f32 %v2136, %v2143
    %v2147 = vmul.f32 %v2137, %v2143
    %v2148 = vmul.f32 %v2138, %v2143
    %v2150 = vlaneseq
    %v2151 = vshrl.u32 %v2150, 7
    %v2152 = vsub.s32 0, %v2151
    %v2153 = vrot.slane %v2086, %v2152
    %v2155 = vadd.f32 %v2145, %v2153
    %v2156 = vadd.f32 %v2146, %v2153
    %v2157 = vadd.f32 %v2147, %v2153
    %v2158 = vadd.f32 %v2148, %v2153
    %v2159 = vpack.c.bf16 %v2156, %v2155
    %v2160 = vpack.c.bf16 %v2158, %v2157
    %v2161 = vld [vmem:[%s13] sm:$0xf]
    %v2162 = vld [vmem:[%s13 + $0x4] sm:$0xf]
    %v2163 = vld [vmem:[%s13 + $0x8] sm:$0xf]
    %v2164 = vld [vmem:[%s13 + $0xc] sm:$0xf]
    %v2165 = vld [vmem:[#allocation17] sm:$0x1]
    %v2167 = vlaneseq
    %v2168 = vshrl.u32 %v2167, 7
    %v2169 = vsub.s32 0, %v2168
    %v2170 = vrot.slane %v2165, %v2169
    %v2176 = vunpack.c.l.b16 %v2161
    %v2177 = vunpack.c.l.b16 %v2162
    %v2178 = vunpack.c.l.b16 %v2163
    %v2179 = vunpack.c.l.b16 %v2164
    %v2180 = vpack.c.b16 %v2177, %v2176
    %v2181 = vpack.c.b16 %v2179, %v2178
    %v2185 = vsel %vm297, %v2159, 0
    %v2188 = vsel %vm297, %v2160, 0
    %2190 = vmatprep.subr.bf16.mxu0 0
    %2191 = vmatpush1.bf16.msra.mxu0 %v2180
    %2192 = vmatprep.subr.bf16.mxu0 0
    %2193 = vmatpush1.bf16.msra.mxu0 %v2181
    %2194 = vmatprep.subr.bf16.mxu0 0
    %2195 = vmatpush1.bf16.msra.mxu0 0
    %2196 = vmatprep.subr.bf16.mxu0 0
    %2197 = vmatpush1.bf16.msra.mxu0 0
    %2198 = vmatprep.subr.bf16.mxu0 0
    %2199 = vmatpush1.bf16.msra.mxu0 0
    %2200 = vmatprep.subr.bf16.mxu0 0
    %2201 = vmatpush1.bf16.msra.mxu0 0
    %2202 = vmatprep.subr.bf16.mxu0 0
    %2203 = vmatpush1.bf16.msra.mxu0 0
    %2204 = vmatprep.subr.bf16.mxu0 0
    %2205 = vmatpush1.bf16.msra.mxu0 0
    %2206 = vmatprep.subr.bf16.mxu0 0
    %2207 = vmatpush1.bf16.msra.mxu0 0
    %2208 = vmatprep.subr.bf16.mxu0 0
    %2209 = vmatpush1.bf16.msra.mxu0 0
    %2210 = vmatprep.subr.bf16.mxu0 0
    %2211 = vmatpush1.bf16.msra.mxu0 0
    %2212 = vmatprep.subr.bf16.mxu0 0
    %2213 = vmatpush1.bf16.msra.mxu0 0
    %2214 = vmatprep.subr.bf16.mxu0 0
    %2215 = vmatpush1.bf16.msra.mxu0 0
    %2216 = vmatprep.subr.bf16.mxu0 0
    %2217 = vmatpush1.bf16.msra.mxu0 0
    %2218 = vmatprep.subr.bf16.mxu0 0
    %2219 = vmatpush1.bf16.msra.mxu0 0
    %2220 = vmatprep.subr.bf16.mxu0 0
    %2221 = vmatpush1.bf16.msra.mxu0 0
    %2222 = vmatprep.mubr.bf16.mxu0 0
    %2223 = vmatmul.mubr.bf16.gmra.mrb[0].mxu0 %v2185
    %v2224 = vpop.f32.mrb[0].mxu0
    %v2225 = vadd.f32 %v2170, %v2224
    %v2226 = vpop.f32.mrb[0].mxu0
    %v2227 = vpop.f32.mrb[0].mxu0
    %v2228 = vadd.f32 %v2170, %v2227
    %v2229 = vpop.f32.mrb[0].mxu0
    %2230 = vmatprep.mubr.bf16.mxu0 0
    %2231 = vmatmul.mubr.bf16.gmra.mrb[0].mxu0 %v2188
    %v2232 = vpop.f32.mrb[0].mxu0
    %v2233 = vadd.f32 %v2170, %v2232
    %v2234 = vpop.f32.mrb[0].mxu0
    %v2235 = vpop.f32.mrb[0].mxu0
    %v2236 = vadd.f32 %v2170, %v2235
    %v2237 = vpop.f32.mrb[0].mxu0
    %2238 = vdwg.mxu0
    %v2239 = vmax.f32 %v2225, 0.0
    %v2240 = vmax.f32 %v2228, 0.0
    %v2241 = vmax.f32 %v2233, 0.0
    %v2242 = vmax.f32 %v2236, 0.0
    %v2243 = vpack.c.bf16 %v2240, %v2239
    %v2244 = vpack.c.bf16 %v2242, %v2241
    %v2245 = vld [vmem:[%s15] sm:$0xf]
    %v2246 = vld [vmem:[%s15 + $0x4] sm:$0xf]
    %v2247 = vld [vmem:[%s15 + $0x8] sm:$0xf]
    %v2248 = vld [vmem:[%s15 + $0xc] sm:$0xf]
    %v2249 = vld [vmem:[%s16] sm:$0x1]
    %v2251 = vlaneseq
    %v2252 = vshrl.u32 %v2251, 7
    %v2253 = vsub.s32 0, %v2252
    %v2254 = vrot.slane %v2249, %v2253
    %v2260 = vunpack.c.l.b16 %v2245
    %v2261 = vunpack.c.l.b16 %v2246
    %v2262 = vunpack.c.l.b16 %v2247
    %v2263 = vunpack.c.l.b16 %v2248
    %v2264 = vpack.c.b16 %v2261, %v2260
    %v2265 = vpack.c.b16 %v2263, %v2262
    %v2269 = vsel %vm297, %v2243, 0
    %v2272 = vsel %vm297, %v2244, 0
    %2274 = vmatprep.subr.bf16.mxu0 0
    %2275 = vmatpush1.bf16.msra.mxu0 %v2264
    %2276 = vmatprep.subr.bf16.mxu0 0
    %2277 = vmatpush1.bf16.msra.mxu0 %v2265
    %2278 = vmatprep.subr.bf16.mxu0 0
    %2279 = vmatpush1.bf16.msra.mxu0 0
    %2280 = vmatprep.subr.bf16.mxu0 0
    %2281 = vmatpush1.bf16.msra.mxu0 0
    %2282 = vmatprep.subr.bf16.mxu0 0
    %2283 = vmatpush1.bf16.msra.mxu0 0
    %2284 = vmatprep.subr.bf16.mxu0 0
    %2285 = vmatpush1.bf16.msra.mxu0 0
    %2286 = vmatprep.subr.bf16.mxu0 0
    %2287 = vmatpush1.bf16.msra.mxu0 0
    %2288 = vmatprep.subr.bf16.mxu0 0
    %2289 = vmatpush1.bf16.msra.mxu0 0
    %2290 = vmatprep.subr.bf16.mxu0 0
    %2291 = vmatpush1.bf16.msra.mxu0 0
    %2292 = vmatprep.subr.bf16.mxu0 0
    %2293 = vmatpush1.bf16.msra.mxu0 0
    %2294 = vmatprep.subr.bf16.mxu0 0
    %2295 = vmatpush1.bf16.msra.mxu0 0
    %2296 = vmatprep.subr.bf16.mxu0 0
    %2297 = vmatpush1.bf16.msra.mxu0 0
    %2298 = vmatprep.subr.bf16.mxu0 0
    %2299 = vmatpush1.bf16.msra.mxu0 0
    %2300 = vmatprep.subr.bf16.mxu0 0
    %2301 = vmatpush1.bf16.msra.mxu0 0
    %2302 = vmatprep.subr.bf16.mxu0 0
    %2303 = vmatpush1.bf16.msra.mxu0 0
    %2304 = vmatprep.subr.bf16.mxu0 0
    %2305 = vmatpush1.bf16.msra.mxu0 0
    %2306 = vmatprep.mubr.bf16.mxu0 0
    %2307 = vmatmul.mubr.bf16.gmra.mrb[0].mxu0 %v2269
    %v2308 = vpop.f32.mrb[0].mxu0
    %v2309 = vadd.f32 %v2254, %v2308
    %v2310 = vpop.f32.mrb[0].mxu0
    %v2311 = vpop.f32.mrb[0].mxu0
    %v2312 = vadd.f32 %v2254, %v2311
    %v2313 = vpop.f32.mrb[0].mxu0
    %2314 = vmatprep.mubr.bf16.mxu0 0
    %2315 = vmatmul.mubr.bf16.gmra.mrb[0].mxu0 %v2272
    %v2316 = vpop.f32.mrb[0].mxu0
    %v2317 = vadd.f32 %v2254, %v2316
    %v2318 = vpop.f32.mrb[0].mxu0
    %v2319 = vpop.f32.mrb[0].mxu0
    %v2320 = vadd.f32 %v2254, %v2319
    %v2321 = vpop.f32.mrb[0].mxu0
    %2322 = vdwg.mxu0
    %v2323 = vadd.f32 %v2309, %v2081
    %v2324 = vadd.f32 %v2312, %v2082
    %v2325 = vadd.f32 %v2317, %v2083
    %v2326 = vadd.f32 %v2320, %v2084
    %2327 = vst.msk [vmem:[#allocation19] sm:$0xff] %vm297, %v2323
    %2328 = vst.msk [vmem:[#allocation19 + $0x8] sm:$0xff] %vm297, %v2324
    %2329 = vst.msk [vmem:[#allocation19 + $0x10] sm:$0xff] %vm297, %v2325
    %2330 = vst.msk [vmem:[#allocation19 + $0x18] sm:$0xff] %vm297, %v2326
    // Predicated region
    $region110: #{tpu_custom_call.1} parent=1 // pred_check
      _
    $region111: #{tpu_custom_call.1} parent=1 // pred_check_branch
      %2332 = sbr.rel (0) target = $region113
    $region112: #{tpu_custom_call.1} parent=1 // pred_region
      %s2334 = ssub.s32 512, 512
      %2335 = vsyncadd [#allocation4], %s2334
      %s2336 = sshll.u32 [#allocation19], 4
      %s2337 = int_to_ptr.vmem [resolvable:$true] %s2336
      %2342 = dma.vmem_to_hbm [thread:$0]  %s2337, 512, %s17, [#allocation4], 128, 128, 8
    $region113: #{tpu_custom_call.1} parent=1 // pred_fallthru
      _
    // Predicated region
    $region114: #{tpu_custom_call.1} parent=1 // pred_check
      _
    $region115: #{tpu_custom_call.1} parent=1 // pred_check_branch
      %2344 = sbr.rel (0) target = $region117
    $region116: #{tpu_custom_call.1} parent=1 // pred_region
      %2345 = dma.done [#allocation4], 512
    $region117: #{tpu_custom_call.1} parent=1 // pred_fallthru
      _
    %2346 = vsyncpa [#allocation3], 1
    %2347 = vsyncpa [#allocation6], 1
    %2348 = vsyncpa [#allocation9], 1
    %2349 = vsyncpa [#allocation12], 1
    %2350 = vsyncpa [#allocation15], 1
    %2351 = vsyncpa [#allocation18], 1
    %2352 = vsyncpa [#allocation4], 1

// kernel: tpu_custom_call.1
$region0: #{tpu_custom_call.1}
  #allocation0 [shape = 'u32[]', space=smem, size = 0x4, offset = 0x4, fixed_abs, tag = 'smem constant byte address 0x4 - core index']
  #allocation1 [shape = 'u32[144,128]{1,0:T(1,128)}', space=vmem, size = 0x12000, scoped, tag = 'internal scratch']
  %s0 = inlined_call_operand.hbm [shape: f32[2,16,32], index: 0, kind: input, shape index: {}]
  %s1 = inlined_call_operand.hbm [shape: f32[2,1,16], index: 1, kind: input, shape index: {}]
  %s2 = inlined_call_operand.vmem [shape: f32[16,32], index: 2, kind: input, shape index: {}]
  %s3 = inlined_call_operand.hbm [shape: f32[2,1,32], index: 3, kind: input, shape index: {}]
  %s4 = inlined_call_operand.hbm [shape: f32[2,1,32], index: 4, kind: input, shape index: {}]
  %s5 = inlined_call_operand.vmem [shape: f32[2,5,32], index: 5, kind: input, shape index: {}]
  %s6 = inlined_call_operand.vmem [shape: bf16[2,32,32], index: 6, kind: input, shape index: {}]
  %s7 = inlined_call_operand.vmem [shape: f32[2,1,32], index: 7, kind: input, shape index: {}]
  %s8 = inlined_call_operand.hbm [shape: f32[1,32], index: 8, kind: input, shape index: {}]
  %s9 = inlined_call_operand.hbm [shape: f32[1,32], index: 9, kind: input, shape index: {}]
  %s10 = inlined_call_operand.hbm [shape: bf16[32,96], index: 10, kind: input, shape index: {}]
  %s11 = inlined_call_operand.hbm [shape: f32[1,32], index: 11, kind: input, shape index: {}]
  %s12 = inlined_call_operand.hbm [shape: f32[1,32], index: 12, kind: input, shape index: {}]
  %s13 = inlined_call_operand.vmem [shape: bf16[32,32], index: 13, kind: input, shape index: {}]
  %s14 = inlined_call_operand.hbm [shape: f32[1,32], index: 14, kind: input, shape index: {}]
  %s15 = inlined_call_operand.vmem [shape: bf16[32,32], index: 15, kind: input, shape index: {}]
  %s16 = inlined_call_operand.vmem [shape: f32[1,32], index: 16, kind: input, shape index: {}]
  %s17 = inlined_call_operand.hbm [shape: f32[2,16,32], index: 17, kind: output, shape index: {}]
  %s18 = sld [smem:[#allocation0]]
  $region118: #{tpu_custom_call.1} parent=0
    _
  %s20 = ssub.s32 1, %s18
  %s21 = scalar_select 0, %s20, %s18
  $region1: #{tpu_custom_call.1} parent=0
    #allocation2 [shape = 'u8[16384]{0}', space=vmem, size = 0x4000, scoped, tag = 'input window, operand 0, single buffered']
    #allocation3 [shape = 's32[1]{0}', space=sflag, size = 0x4, scoped, tag = 'scoped memory for tpu_custom_call.1']
    #allocation4 [shape = 's32[1]{0}', space=sflag, size = 0x4, scoped, tag = 'scoped memory for tpu_custom_call.1']
    #allocation5 [shape = 'u8[1024]{0}', space=vmem, size = 0x400, scoped, tag = 'input window, operand 1, single buffered']
    #allocation6 [shape = 's32[1]{0}', space=sflag, size = 0x4, scoped, tag = 'scoped memory for tpu_custom_call.1']
    #allocation7 [shape = 'u8[1024]{0}', space=vmem, size = 0x400, scoped, tag = 'input window, operand 3, single buffered']
    #allocation8 [shape = 'u8[1024]{0}', space=vmem, size = 0x400, scoped, tag = 'input window, operand 4, single buffered']
    #allocation9 [shape = 's32[1]{0}', space=sflag, size = 0x4, scoped, tag = 'scoped memory for tpu_custom_call.1']
    #allocation10 [shape = 'u8[512]{0}', space=vmem, size = 0x400, scoped, tag = 'input window, operand 8, single buffered']
    #allocation11 [shape = 'u8[512]{0}', space=vmem, size = 0x400, scoped, tag = 'input window, operand 9, single buffered']
    #allocation12 [shape = 's32[1]{0}', space=sflag, size = 0x4, scoped, tag = 'scoped memory for tpu_custom_call.1']
    #allocation13 [shape = 'u8[8192]{0}', space=vmem, size = 0x2000, scoped, tag = 'input window, operand 10, single buffered']
    #allocation14 [shape = 'u8[512]{0}', space=vmem, size = 0x400, scoped, tag = 'input window, operand 11, single buffered']
    #allocation15 [shape = 's32[1]{0}', space=sflag, size = 0x4, scoped, tag = 'scoped memory for tpu_custom_call.1']
    #allocation16 [shape = 'u8[512]{0}', space=vmem, size = 0x400, scoped, tag = 'input window, operand 12, single buffered']
    #allocation17 [shape = 'u8[512]{0}', space=vmem, size = 0x400, scoped, tag = 'input window, operand 14, single buffered']
    #allocation18 [shape = 's32[1]{0}', space=sflag, size = 0x4, scoped, tag = 'scoped memory for tpu_custom_call.1']
    #allocation19 [shape = 'u8[16384]{0}', space=vmem, size = 0x4000, scoped, tag = 'output window, operand 0, single buffered']
    %22 = vsyncpa [#allocation3], 0
    %23 = vsyncpa [#allocation6], 0
    %24 = vsyncpa [#allocation9], 0
    %25 = vsyncpa [#allocation12], 0
    %26 = vsyncpa [#allocation15], 0
    %27 = vsyncpa [#allocation18], 0
    %28 = vsyncpa [#allocation4], 0
    // Predicated region
    $region2: #{tpu_custom_call.1} parent=1 // pred_check
      _
    $region3: #{tpu_custom_call.1} parent=1 // pred_check_branch
      %30 = sbr.rel (0) target = $region5
    $region4: #{tpu_custom_call.1} parent=1 // pred_region
      %s32 = ssub.s32 512, 512
      %33 = vsyncadd [#allocation3], %s32
      %s34 = sshll.u32 [#allocation2], 4
      %s35 = int_to_ptr.vmem [resolvable:$true] %s34
      %40 = dma.hbm_to_vmem [thread:$0]  %s0, 512, %s35, [#allocation3], 128, 128, 8
    $region5: #{tpu_custom_call.1} parent=1 // pred_fallthru
      _
    // Predicated region
    $region6: #{tpu_custom_call.1} parent=1 // pred_check
      _
    $region7: #{tpu_custom_call.1} parent=1 // pred_check_branch
      %42 = sbr.rel (0) target = $region9
    $region8: #{tpu_custom_call.1} parent=1 // pred_region
      %s44 = ssub.s32 32, 32
      %45 = vsyncadd [#allocation6], %s44
      %s46 = sshll.u32 [#allocation5], 4
      %s47 = int_to_ptr.vmem [resolvable:$true] %s46
      %52 = dma.hbm_to_vmem [thread:$0]  %s1, 32, %s47, [#allocation6], 16, 16, 1
    $region9: #{tpu_custom_call.1} parent=1 // pred_fallthru
      _
    // Predicated region
    $region10: #{tpu_custom_call.1} parent=1 // pred_check
      _
    $region11: #{tpu_custom_call.1} parent=1 // pred_check_branch
      %54 = sbr.rel (0) target = $region13
    $region12: #{tpu_custom_call.1} parent=1 // pred_region
      _
    $region13: #{tpu_custom_call.1} parent=1 // pred_fallthru
      _
    // Predicated region
    $region14: #{tpu_custom_call.1} parent=1 // pred_check
      _
    $region15: #{tpu_custom_call.1} parent=1 // pred_check_branch
      %56 = sbr.rel (0) target = $region17
    $region16: #{tpu_custom_call.1} parent=1 // pred_region
      %s58 = ssub.s32 32, 32
      %59 = vsyncadd [#allocation6], %s58
      %s60 = sshll.u32 [#allocation7], 4
      %s61 = int_to_ptr.vmem [resolvable:$true] %s60
      %66 = dma.hbm_to_vmem [thread:$0]  %s3, 32, %s61, [#allocation6], 16, 16, 1
    $region17: #{tpu_custom_call.1} parent=1 // pred_fallthru
      _
    // Predicated region
    $region18: #{tpu_custom_call.1} parent=1 // pred_check
      _
    $region19: #{tpu_custom_call.1} parent=1 // pred_check_branch
      %68 = sbr.rel (0) target = $region21
    $region20: #{tpu_custom_call.1} parent=1 // pred_region
      %s70 = ssub.s32 32, 32
      %71 = vsyncadd [#allocation9], %s70
      %s72 = sshll.u32 [#allocation8], 4
      %s73 = int_to_ptr.vmem [resolvable:$true] %s72
      %78 = dma.hbm_to_vmem [thread:$0]  %s4, 32, %s73, [#allocation9], 16, 16, 1
    $region21: #{tpu_custom_call.1} parent=1 // pred_fallthru
      _
    // Predicated region
    $region22: #{tpu_custom_call.1} parent=1 // pred_check
      _
    $region23: #{tpu_custom_call.1} parent=1 // pred_check_branch
      %80 = sbr.rel (0) target = $region25
    $region24: #{tpu_custom_call.1} parent=1 // pred_region
      _
    $region25: #{tpu_custom_call.1} parent=1 // pred_fallthru
      _
    // Predicated region
    $region26: #{tpu_custom_call.1} parent=1 // pred_check
      _
    $region27: #{tpu_custom_call.1} parent=1 // pred_check_branch
      %82 = sbr.rel (0) target = $region29
    $region28: #{tpu_custom_call.1} parent=1 // pred_region
      _
    $region29: #{tpu_custom_call.1} parent=1 // pred_fallthru
      _
    // Predicated region
    $region30: #{tpu_custom_call.1} parent=1 // pred_check
      _
    $region31: #{tpu_custom_call.1} parent=1 // pred_check_branch
      %84 = sbr.rel (0) target = $region33
    $region32: #{tpu_custom_call.1} parent=1 // pred_region
      _
    $region33: #{tpu_custom_call.1} parent=1 // pred_fallthru
      _
    // Predicated region
    $region34: #{tpu_custom_call.1} parent=1 // pred_check
      _
    $region35: #{tpu_custom_call.1} parent=1 // pred_check_branch
      %86 = sbr.rel (0) target = $region37
    $region36: #{tpu_custom_call.1} parent=1 // pred_region
      %s88 = ssub.s32 16, 16
      %89 = vsyncadd [#allocation9], %s88
      %s91 = sshll.u32 [#allocation10], 4
      %s92 = int_to_ptr.vmem [resolvable:$true] %s91
      %94 = dma.hbm_to_vmem [thread:$0]  %s8, 16, %s92, [#allocation9]
    $region37: #{tpu_custom_call.1} parent=1 // pred_fallthru
      _
    // Predicated region
    $region38: #{tpu_custom_call.1} parent=1 // pred_check
      _
    $region39: #{tpu_custom_call.1} parent=1 // pred_check_branch
      %96 = sbr.rel (0) target = $region41
    $region40: #{tpu_custom_call.1} parent=1 // pred_region
      %s98 = ssub.s32 16, 16
      %99 = vsyncadd [#allocation12], %s98
      %s101 = sshll.u32 [#allocation11], 4
      %s102 = int_to_ptr.vmem [resolvable:$true] %s101
      %104 = dma.hbm_to_vmem [thread:$0]  %s9, 16, %s102, [#allocation12]
    $region41: #{tpu_custom_call.1} parent=1 // pred_fallthru
      _
    // Predicated region
    $region42: #{tpu_custom_call.1} parent=1 // pred_check
      _
    $region43: #{tpu_custom_call.1} parent=1 // pred_check_branch
      %106 = sbr.rel (0) target = $region45
    $region44: #{tpu_custom_call.1} parent=1 // pred_region
      %s108 = ssub.s32 256, 256
      %109 = vsyncadd [#allocation12], %s108
      %s110 = sshll.u32 [#allocation13], 4
      %s111 = int_to_ptr.vmem [resolvable:$true] %s110
      %116 = dma.hbm_to_vmem [thread:$0]  %s10, 256, %s111, [#allocation12], 64, 64, 4
    $region45: #{tpu_custom_call.1} parent=1 // pred_fallthru
      _
    // Predicated region
    $region46: #{tpu_custom_call.1} parent=1 // pred_check
      _
    $region47: #{tpu_custom_call.1} parent=1 // pred_check_branch
      %118 = sbr.rel (0) target = $region49
    $region48: #{tpu_custom_call.1} parent=1 // pred_region
      %s120 = ssub.s32 16, 16
      %121 = vsyncadd [#allocation15], %s120
      %s123 = sshll.u32 [#allocation14], 4
      %s124 = int_to_ptr.vmem [resolvable:$true] %s123
      %126 = dma.hbm_to_vmem [thread:$0]  %s11, 16, %s124, [#allocation15]
    $region49: #{tpu_custom_call.1} parent=1 // pred_fallthru
      _
    // Predicated region
    $region50: #{tpu_custom_call.1} parent=1 // pred_check
      _
    $region51: #{tpu_custom_call.1} parent=1 // pred_check_branch
      %128 = sbr.rel (0) target = $region53
    $region52: #{tpu_custom_call.1} parent=1 // pred_region
      %s130 = ssub.s32 16, 16
      %131 = vsyncadd [#allocation15], %s130
      %s133 = sshll.u32 [#allocation16], 4
      %s134 = int_to_ptr.vmem [resolvable:$true] %s133
      %136 = dma.hbm_to_vmem [thread:$0]  %s12, 16, %s134, [#allocation15]
    $region53: #{tpu_custom_call.1} parent=1 // pred_fallthru
      _
    // Predicated region
    $region54: #{tpu_custom_call.1} parent=1 // pred_check
      _
    $region55: #{tpu_custom_call.1} parent=1 // pred_check_branch
      %138 = sbr.rel (0) target = $region57
    $region56: #{tpu_custom_call.1} parent=1 // pred_region
      _
    $region57: #{tpu_custom_call.1} parent=1 // pred_fallthru
      _
    // Predicated region
    $region58: #{tpu_custom_call.1} parent=1 // pred_check
      _
    $region59: #{tpu_custom_call.1} parent=1 // pred_check_branch
      %140 = sbr.rel (0) target = $region61
    $region60: #{tpu_custom_call.1} parent=1 // pred_region
      %s142 = ssub.s32 16, 16
      %143 = vsyncadd [#allocation18], %s142
      %s145 = sshll.u32 [#allocation17], 4
      %s146 = int_to_ptr.vmem [resolvable:$true] %s145
      %148 = dma.hbm_to_vmem [thread:$0]  %s14, 16, %s146, [#allocation18]
    $region61: #{tpu_custom_call.1} parent=1 // pred_fallthru
      _
    // Predicated region
    $region62: #{tpu_custom_call.1} parent=1 // pred_check
      _
    $region63: #{tpu_custom_call.1} parent=1 // pred_check_branch
      %150 = sbr.rel (0) target = $region65
    $region64: #{tpu_custom_call.1} parent=1 // pred_region
      _
    $region65: #{tpu_custom_call.1} parent=1 // pred_fallthru
      _
    // Predicated region
    $region66: #{tpu_custom_call.1} parent=1 // pred_check
      _
    $region67: #{tpu_custom_call.1} parent=1 // pred_check_branch
      %152 = sbr.rel (0) target = $region69
    $region68: #{tpu_custom_call.1} parent=1 // pred_region
      _
    $region69: #{tpu_custom_call.1} parent=1 // pred_fallthru
      _
    // Predicated region
    $region70: #{tpu_custom_call.1} parent=1 // pred_check
      _
    $region71: #{tpu_custom_call.1} parent=1 // pred_check_branch
      %154 = sbr.rel (0) target = $region73
    $region72: #{tpu_custom_call.1} parent=1 // pred_region
      %155 = dma.done [#allocation3], 512
    $region73: #{tpu_custom_call.1} parent=1 // pred_fallthru
      _
    // Predicated region
    $region74: #{tpu_custom_call.1} parent=1 // pred_check
      _
    $region75: #{tpu_custom_call.1} parent=1 // pred_check_branch
      %157 = sbr.rel (0) target = $region77
    $region76: #{tpu_custom_call.1} parent=1 // pred_region
      %158 = dma.done [#allocation6], 32
    $region77: #{tpu_custom_call.1} parent=1 // pred_fallthru
      _
    // Predicated region
    $region78: #{tpu_custom_call.1} parent=1 // pred_check
      _
    $region79: #{tpu_custom_call.1} parent=1 // pred_check_branch
      %160 = sbr.rel (0) target = $region81
    $region80: #{tpu_custom_call.1} parent=1 // pred_region
      %161 = dma.done [#allocation6], 32
    $region81: #{tpu_custom_call.1} parent=1 // pred_fallthru
      _
    // Predicated region
    $region82: #{tpu_custom_call.1} parent=1 // pred_check
      _
    $region83: #{tpu_custom_call.1} parent=1 // pred_check_branch
      %163 = sbr.rel (0) target = $region85
    $region84: #{tpu_custom_call.1} parent=1 // pred_region
      %164 = dma.done [#allocation9], 32
    $region85: #{tpu_custom_call.1} parent=1 // pred_fallthru
      _
    // Predicated region
    $region86: #{tpu_custom_call.1} parent=1 // pred_check
      _
    $region87: #{tpu_custom_call.1} parent=1 // pred_check_branch
      %166 = sbr.rel (0) target = $region89
    $region88: #{tpu_custom_call.1} parent=1 // pred_region
      %167 = dma.done [#allocation9], 16
    $region89: #{tpu_custom_call.1} parent=1 // pred_fallthru
      _
    // Predicated region
    $region90: #{tpu_custom_call.1} parent=1 // pred_check
      _
    $region91: #{tpu_custom_call.1} parent=1 // pred_check_branch
      %169 = sbr.rel (0) target = $region93
    $region92: #{tpu_custom_call.1} parent=1 // pred_region
      %170 = dma.done [#allocation12], 16
    $region93: #{tpu_custom_call.1} parent=1 // pred_fallthru
      _
    // Predicated region
    $region94: #{tpu_custom_call.1} parent=1 // pred_check
      _
    $region95: #{tpu_custom_call.1} parent=1 // pred_check_branch
      %172 = sbr.rel (0) target = $region97
    $region96: #{tpu_custom_call.1} parent=1 // pred_region
      %173 = dma.done [#allocation12], 256
    $region97: #{tpu_custom_call.1} parent=1 // pred_fallthru
      _
    // Predicated region
    $region98: #{tpu_custom_call.1} parent=1 // pred_check
      _
    $region99: #{tpu_custom_call.1} parent=1 // pred_check_branch
      %175 = sbr.rel (0) target = $region101
    $region100: #{tpu_custom_call.1} parent=1 // pred_region
      %176 = dma.done [#allocation15], 16
    $region101: #{tpu_custom_call.1} parent=1 // pred_fallthru
      _
    // Predicated region
    $region102: #{tpu_custom_call.1} parent=1 // pred_check
      _
    $region103: #{tpu_custom_call.1} parent=1 // pred_check_branch
      %178 = sbr.rel (0) target = $region105
    $region104: #{tpu_custom_call.1} parent=1 // pred_region
      %179 = dma.done [#allocation15], 16
    $region105: #{tpu_custom_call.1} parent=1 // pred_fallthru
      _
    // Predicated region
    $region106: #{tpu_custom_call.1} parent=1 // pred_check
      _
    $region107: #{tpu_custom_call.1} parent=1 // pred_check_branch
      %181 = sbr.rel (0) target = $region109
    $region108: #{tpu_custom_call.1} parent=1 // pred_region
      %182 = dma.done [#allocation18], 16
    $region109: #{tpu_custom_call.1} parent=1 // pred_fallthru
      _
    %v184 = vld [vmem:[#allocation2] sm:$0xff]
    %v185 = vld [vmem:[#allocation2 + $0x8] sm:$0xff]
    %v186 = vld [vmem:[#allocation2 + $0x10] sm:$0xff]
    %v187 = vld [vmem:[#allocation2 + $0x18] sm:$0xff]
    %v188 = vld [vmem:[%s2] sm:$0xff]
    %v189 = vld [vmem:[%s2 + $0x8] sm:$0xff]
    %v190 = vadd.f32 %v184, %v188
    %v191 = vadd.f32 %v185, %v189
    %v192 = vadd.f32 %v186, %v188
    %v193 = vadd.f32 %v187, %v189
    %v194 = vlaneseq
    %v195 = vshrl.u32 %v194, 7
    %v196 = vadd.s32 %v195, 8
    %v197 = vadd.s32 %v195, 16
    %v198 = vadd.s32 %v195, 24
    %vm199 = vcmp.lt.s32.totalorder %v195, 0
    %v200 = vsub.s32 0, %v195
    %v201 = vsel %vm199, %v200, %v195
    %v202 = vshrl.u32 %v201, 4
    %v203 = vand.u32 %v201, 15
    %v204 = vsub.s32 0, %v203
    %v205 = vsel %vm199, %v204, %v203
    %vm206 = vcmp.lt.s32.totalorder %v196, 0
    %v207 = vsub.s32 0, %v196
    %v208 = vsel %vm206, %v207, %v196
    %v209 = vshrl.u32 %v208, 4
    %v210 = vand.u32 %v208, 15
    %v211 = vsub.s32 0, %v210
    %v212 = vsel %vm206, %v211, %v210
    %vm213 = vcmp.lt.s32.totalorder %v197, 0
    %v214 = vsub.s32 0, %v197
    %v215 = vsel %vm213, %v214, %v197
    %v216 = vshrl.u32 %v215, 4
    %v217 = vand.u32 %v215, 15
    %v218 = vsub.s32 0, %v217
    %v219 = vsel %vm213, %v218, %v217
    %vm220 = vcmp.lt.s32.totalorder %v198, 0
    %v221 = vsub.s32 0, %v198
    %v222 = vsel %vm220, %v221, %v198
    %v223 = vshrl.u32 %v222, 4
    %v224 = vand.u32 %v222, 15
    %v225 = vsub.s32 0, %v224
    %v226 = vsel %vm220, %v225, %v224
    %vm227 = vcmp.ne.s32.totalorder %v205, 0
    %vm228 = vcmp.ne.s32.totalorder %v212, 0
    %vm229 = vcmp.ne.s32.totalorder %v219, 0
    %vm230 = vcmp.ne.s32.totalorder %v226, 0
    %vm231 = vcmp.lt.s32.totalorder %v205, 0
    %vm232 = vcmp.lt.s32.totalorder %v212, 0
    %vm233 = vcmp.lt.s32.totalorder %v219, 0
    %vm234 = vcmp.lt.s32.totalorder %v226, 0
    %vm235 = vmand %vm231, %vm227
    %vm236 = vmand %vm232, %vm228
    %vm237 = vmand %vm233, %vm229
    %vm238 = vmand %vm234, %vm230
    %v239 = vadd.s32 %v205, 16
    %v240 = vadd.s32 %v212, 16
    %v241 = vadd.s32 %v219, 16
    %v242 = vadd.s32 %v226, 16
    %v243 = vsel %vm235, %v239, %v205
    %v244 = vsel %vm236, %v240, %v212
    %v245 = vsel %vm237, %v241, %v219
    %v246 = vsel %vm238, %v242, %v226
    %vm247 = vcmp.ge.s32.totalorder %v243, 2
    %vm248 = vcmp.ge.s32.totalorder %v244, 2
    %vm249 = vcmp.ge.s32.totalorder %v245, 2
    %vm250 = vcmp.ge.s32.totalorder %v246, 2
    %v251 = vsel %vm247, 1, 0
    %v252 = vsel %vm248, 1, 0
    %v253 = vsel %vm249, 1, 0
    %v254 = vsel %vm250, 1, 0
    %v255 = vcvt.s32.f32 %v251
    %v256 = vcvt.s32.f32 %v252
    %v257 = vcvt.s32.f32 %v253
    %v258 = vcvt.s32.f32 %v254
    %vm259 = vcmp.ge.s32.totalorder %v243, 1
    %vm260 = vcmp.ge.s32.totalorder %v244, 1
    %vm261 = vcmp.ge.s32.totalorder %v245, 1
    %vm262 = vcmp.ge.s32.totalorder %v246, 1
    %v263 = vsel %vm259, 1, 0
    %v264 = vsel %vm260, 1, 0
    %v265 = vsel %vm261, 1, 0
    %v266 = vsel %vm262, 1, 0
    %v267 = vcvt.s32.f32 %v263
    %v268 = vcvt.s32.f32 %v264
    %v269 = vcvt.s32.f32 %v265
    %v270 = vcvt.s32.f32 %v266
    %vm271 = vcmp.lt.s32.totalorder %v243, 15
    %vm272 = vcmp.lt.s32.totalorder %v244, 15
    %vm273 = vcmp.lt.s32.totalorder %v245, 15
    %vm274 = vcmp.lt.s32.totalorder %v246, 15
    %v275 = vsel %vm271, 1, 0
    %v276 = vsel %vm272, 1, 0
    %v277 = vsel %vm273, 1, 0
    %v278 = vsel %vm274, 1, 0
    %v279 = vcvt.s32.f32 %v275
    %v280 = vcvt.s32.f32 %v276
    %v281 = vcvt.s32.f32 %v277
    %v282 = vcvt.s32.f32 %v278
    %vm283 = vcmp.lt.s32.totalorder %v243, 14
    %vm284 = vcmp.lt.s32.totalorder %v244, 14
    %vm285 = vcmp.lt.s32.totalorder %v245, 14
    %vm286 = vcmp.lt.s32.totalorder %v246, 14
    %v287 = vsel %vm283, 1, 0
    %v288 = vsel %vm284, 1, 0
    %v289 = vsel %vm285, 1, 0
    %v290 = vsel %vm286, 1, 0
    %v291 = vcvt.s32.f32 %v287
    %v292 = vcvt.s32.f32 %v288
    %v293 = vcvt.s32.f32 %v289
    %v294 = vcvt.s32.f32 %v290
    %v295 = vld [vmem:[#allocation7] sm:$0x1]
    %v296 = vld [vmem:[#allocation8] sm:$0x1]
    %vm297 = vcmask 261120
    %v298 = vsel %vm297, %v190, 0.0
    %299 = vadd.xlane.f32.xlu0 %v298
    %v300 = vpop.xlane.xlu0 %299
    %v301 = vsel %vm297, %v191, 0.0
    %302 = vadd.xlane.f32.xlu0 %v301
    %v303 = vpop.xlane.xlu0 %302
    %v304 = vsel %vm297, %v192, 0.0
    %305 = vadd.xlane.f32.xlu0 %v304
    %v306 = vpop.xlane.xlu0 %305
    %v307 = vsel %vm297, %v193, 0.0
    %308 = vadd.xlane.f32.xlu0 %v307
    %v309 = vpop.xlane.xlu0 %308
    %v310 = vrcp.pop 32.0
    %v311 = vmul.f32 %v300, %v310
    %v312 = vmul.f32 %v303, %v310
    %v313 = vmul.f32 %v306, %v310
    %v314 = vmul.f32 %v309, %v310
    %v315 = vsub.f32 %v190, %v311
    %v316 = vsub.f32 %v191, %v312
    %v317 = vsub.f32 %v192, %v313
    %v318 = vsub.f32 %v193, %v314
    %v319 = vmul.f32 %v315, %v315
    %v320 = vmul.f32 %v316, %v316
    %v321 = vmul.f32 %v317, %v317
    %v322 = vmul.f32 %v318, %v318
    %v323 = vsel %vm297, %v319, 0.0
    %324 = vadd.xlane.f32.xlu0 %v323
    %v325 = vpop.xlane.xlu0 %324
    %v326 = vsel %vm297, %v320, 0.0
    %327 = vadd.xlane.f32.xlu0 %v326
    %v328 = vpop.xlane.xlu0 %327
    %v329 = vsel %vm297, %v321, 0.0
    %330 = vadd.xlane.f32.xlu0 %v329
    %v331 = vpop.xlane.xlu0 %330
    %v332 = vsel %vm297, %v322, 0.0
    %333 = vadd.xlane.f32.xlu0 %v332
    %v334 = vpop.xlane.xlu0 %333
    %v335 = vmul.f32 %v325, %v310
    %v336 = vmul.f32 %v328, %v310
    %v337 = vmul.f32 %v331, %v310
    %v338 = vmul.f32 %v334, %v310
    %v339 = vadd.f32 %v335, 1e-05
    %v340 = vadd.f32 %v336, 1e-05
    %v341 = vadd.f32 %v337, 1e-05
    %v342 = vadd.f32 %v338, 1e-05
    %v343 = vrsqrt.pop %v339
    %v344 = vrsqrt.pop %v340
    %v345 = vrsqrt.pop %v341
    %v346 = vrsqrt.pop %v342
    %v347 = vmul.f32 %v315, %v343
    %v348 = vmul.f32 %v316, %v344
    %v349 = vmul.f32 %v317, %v345
    %v350 = vmul.f32 %v318, %v346
    %v352 = vlaneseq
    %v353 = vshrl.u32 %v352, 7
    %v354 = vsub.s32 0, %v353
    %v355 = vrot.slane %v295, %v354
    %v357 = vmul.f32 %v347, %v355
    %v358 = vmul.f32 %v348, %v355
    %v359 = vmul.f32 %v349, %v355
    %v360 = vmul.f32 %v350, %v355
    %v362 = vlaneseq
    %v363 = vshrl.u32 %v362, 7
    %v364 = vsub.s32 0, %v363
    %v365 = vrot.slane %v296, %v364
    %v367 = vadd.f32 %v357, %v365
    %v368 = vadd.f32 %v358, %v365
    %v369 = vadd.f32 %v359, %v365
    %v370 = vadd.f32 %v360, %v365
    %v371 = vld [vmem:[%s5] sm:$0x1f]
    %v372 = vlaneseq
    %v373 = vshrl.u32 %v372, 7
    %v374 = vsub.s32 2, %v373
    %v375 = vrot.slane %v371, %v374
    %v376 = vmul.f32 %v367, %v375
    %v377 = vmul.f32 %v368, %v375
    %v378 = vmul.f32 %v369, %v375
    %v379 = vmul.f32 %v370, %v375
    %v380 = vrot.slane %v367, 6
    %v381 = vrot.slane %v368, 6
    %v382 = vrot.slane %v369, 6
    %v383 = vrot.slane %v370, 6
    %vm384 = vcmp.lt.s32.totalorder %v195, 2
    %v385 = vsel %vm384, %v382, %v383
    %v386 = vsel %vm384, %v381, %v382
    %v387 = vsel %vm384, %v380, %v381
    %v388 = vsel %vm384, %v383, %v380
    %v389 = vlaneseq
    %v390 = vshrl.u32 %v389, 7
    %v391 = vsub.s32 0, %v390
    %v392 = vrot.slane %v371, %v391
    %v393 = vmul.f32 %v388, %v392
    %v394 = vmul.f32 %v387, %v392
    %v395 = vmul.f32 %v386, %v392
    %v396 = vmul.f32 %v385, %v392
    %v397 = vmul.f32 %v393, %v255
    %v398 = vmul.f32 %v394, %v256
    %v399 = vmul.f32 %v395, %v257
    %v400 = vmul.f32 %v396, %v258
    %v401 = vadd.f32 %v376, %v397
    %v402 = vadd.f32 %v377, %v398
    %v403 = vadd.f32 %v378, %v399
    %v404 = vadd.f32 %v379, %v400
    %v405 = vrot.slane %v367, 7
    %v406 = vrot.slane %v368, 7
    %v407 = vrot.slane %v369, 7
    %v408 = vrot.slane %v370, 7
    %vm409 = vcmp.lt.s32.totalorder %v195, 1
    %v410 = vsel %vm409, %v407, %v408
    %v411 = vsel %vm409, %v406, %v407
    %v412 = vsel %vm409, %v405, %v406
    %v413 = vsel %vm409, %v408, %v405
    %v414 = vlaneseq
    %v415 = vshrl.u32 %v414, 7
    %v416 = vsub.s32 1, %v415
    %v417 = vrot.slane %v371, %v416
    %v418 = vmul.f32 %v413, %v417
    %v419 = vmul.f32 %v412, %v417
    %v420 = vmul.f32 %v411, %v417
    %v421 = vmul.f32 %v410, %v417
    %v422 = vmul.f32 %v418, %v267
    %v423 = vmul.f32 %v419, %v268
    %v424 = vmul.f32 %v420, %v269
    %v425 = vmul.f32 %v421, %v270
    %v426 = vadd.f32 %v401, %v422
    %v427 = vadd.f32 %v402, %v423
    %v428 = vadd.f32 %v403, %v424
    %v429 = vadd.f32 %v404, %v425
    %v430 = vrot.slane %v367, 1
    %v431 = vrot.slane %v368, 1
    %v432 = vrot.slane %v369, 1
    %v433 = vrot.slane %v370, 1
    %vm434 = vcmp.lt.s32.totalorder %v195, 7
    %v435 = vsel %vm434, %v432, %v433
    %v436 = vsel %vm434, %v431, %v432
    %v437 = vsel %vm434, %v430, %v431
    %v438 = vsel %vm434, %v433, %v430
    %v439 = vlaneseq
    %v440 = vshrl.u32 %v439, 7
    %v441 = vsub.s32 3, %v440
    %v442 = vrot.slane %v371, %v441
    %v443 = vmul.f32 %v437, %v442
    %v444 = vmul.f32 %v436, %v442
    %v445 = vmul.f32 %v435, %v442
    %v446 = vmul.f32 %v438, %v442
    %v447 = vmul.f32 %v443, %v279
    %v448 = vmul.f32 %v444, %v280
    %v449 = vmul.f32 %v445, %v281
    %v450 = vmul.f32 %v446, %v282
    %v451 = vadd.f32 %v426, %v447
    %v452 = vadd.f32 %v427, %v448
    %v453 = vadd.f32 %v428, %v449
    %v454 = vadd.f32 %v429, %v450
    %v455 = vrot.slane %v367, 2
    %v456 = vrot.slane %v368, 2
    %v457 = vrot.slane %v369, 2
    %v458 = vrot.slane %v370, 2
    %vm459 = vcmp.lt.s32.totalorder %v195, 6
    %v460 = vsel %vm459, %v457, %v458
    %v461 = vsel %vm459, %v456, %v457
    %v462 = vsel %vm459, %v455, %v456
    %v463 = vsel %vm459, %v458, %v455
    %v464 = vlaneseq
    %v465 = vshrl.u32 %v464, 7
    %v466 = vsub.s32 4, %v465
    %v467 = vrot.slane %v371, %v466
    %v468 = vmul.f32 %v462, %v467
    %v469 = vmul.f32 %v461, %v467
    %v470 = vmul.f32 %v460, %v467
    %v471 = vmul.f32 %v463, %v467
    %v472 = vmul.f32 %v468, %v291
    %v473 = vmul.f32 %v469, %v292
    %v474 = vmul.f32 %v470, %v293
    %v475 = vmul.f32 %v471, %v294
    %v476 = vadd.f32 %v451, %v472
    %v477 = vadd.f32 %v452, %v473
    %v478 = vadd.f32 %v453, %v474
    %v479 = vadd.f32 %v454, %v475
    %v480 = vpack.c.bf16 %v477, %v476
    %v481 = vpack.c.bf16 %v479, %v478
    %v482 = vld [vmem:[%s6] sm:$0xf]
    %v483 = vld [vmem:[%s6 + $0x4] sm:$0xf]
    %v484 = vld [vmem:[%s6 + $0x8] sm:$0xf]
    %v485 = vld [vmem:[%s6 + $0xc] sm:$0xf]
    %v486 = vld [vmem:[%s7] sm:$0x1]
    %v488 = vlaneseq
    %v489 = vshrl.u32 %v488, 7
    %v490 = vsub.s32 0, %v489
    %v491 = vrot.slane %v486, %v490
    %v497 = vunpack.c.l.b16 %v482
    %v498 = vunpack.c.l.b16 %v483
    %v499 = vunpack.c.l.b16 %v484
    %v500 = vunpack.c.l.b16 %v485
    %v501 = vpack.c.b16 %v498, %v497
    %v502 = vpack.c.b16 %v500, %v499
    %v506 = vsel %vm297, %v480, 0
    %v509 = vsel %vm297, %v481, 0
    %511 = vmatprep.subr.bf16.mxu0 0
    %512 = vmatpush1.bf16.msra.mxu0 %v501
    %513 = vmatprep.subr.bf16.mxu0 0
    %514 = vmatpush1.bf16.msra.mxu0 %v502
    %515 = vmatprep.subr.bf16.mxu0 0
    %516 = vmatpush1.bf16.msra.mxu0 0
    %517 = vmatprep.subr.bf16.mxu0 0
    %518 = vmatpush1.bf16.msra.mxu0 0
    %519 = vmatprep.subr.bf16.mxu0 0
    %520 = vmatpush1.bf16.msra.mxu0 0
    %521 = vmatprep.subr.bf16.mxu0 0
    %522 = vmatpush1.bf16.msra.mxu0 0
    %523 = vmatprep.subr.bf16.mxu0 0
    %524 = vmatpush1.bf16.msra.mxu0 0
    %525 = vmatprep.subr.bf16.mxu0 0
    %526 = vmatpush1.bf16.msra.mxu0 0
    %527 = vmatprep.subr.bf16.mxu0 0
    %528 = vmatpush1.bf16.msra.mxu0 0
    %529 = vmatprep.subr.bf16.mxu0 0
    %530 = vmatpush1.bf16.msra.mxu0 0
    %531 = vmatprep.subr.bf16.mxu0 0
    %532 = vmatpush1.bf16.msra.mxu0 0
    %533 = vmatprep.subr.bf16.mxu0 0
    %534 = vmatpush1.bf16.msra.mxu0 0
    %535 = vmatprep.subr.bf16.mxu0 0
    %536 = vmatpush1.bf16.msra.mxu0 0
    %537 = vmatprep.subr.bf16.mxu0 0
    %538 = vmatpush1.bf16.msra.mxu0 0
    %539 = vmatprep.subr.bf16.mxu0 0
    %540 = vmatpush1.bf16.msra.mxu0 0
    %541 = vmatprep.subr.bf16.mxu0 0
    %542 = vmatpush1.bf16.msra.mxu0 0
    %543 = vmatprep.mubr.bf16.mxu0 0
    %544 = vmatmul.mubr.bf16.gmra.mrb[0].mxu0 %v506
    %v545 = vpop.f32.mrb[0].mxu0
    %v546 = vadd.f32 %v491, %v545
    %v547 = vpop.f32.mrb[0].mxu0
    %v548 = vpop.f32.mrb[0].mxu0
    %v549 = vadd.f32 %v491, %v548
    %v550 = vpop.f32.mrb[0].mxu0
    %551 = vmatprep.mubr.bf16.mxu0 0
    %552 = vmatmul.mubr.bf16.gmra.mrb[0].mxu0 %v509
    %v553 = vpop.f32.mrb[0].mxu0
    %v554 = vadd.f32 %v491, %v553
    %v555 = vpop.f32.mrb[0].mxu0
    %v556 = vpop.f32.mrb[0].mxu0
    %v557 = vadd.f32 %v491, %v556
    %v558 = vpop.f32.mrb[0].mxu0
    %559 = vdwg.mxu0
    %v560 = vmax.f32 %v546, 0.0
    %v561 = vmax.f32 %v549, 0.0
    %v562 = vmax.f32 %v554, 0.0
    %v563 = vmax.f32 %v557, 0.0
    %v564 = vadd.f32 %v560, %v190
    %v565 = vadd.f32 %v561, %v191
    %v566 = vadd.f32 %v562, %v192
    %v567 = vadd.f32 %v563, %v193
    %s568 = scalar_lea.vmem [#allocation7], 1
    %v569 = vld [vmem:[%s568] sm:$0x1]
    %s570 = scalar_lea.vmem [#allocation8], 1
    %v571 = vld [vmem:[%s570] sm:$0x1]
    %v572 = vsel %vm297, %v564, 0.0
    %573 = vadd.xlane.f32.xlu0 %v572
    %v574 = vpop.xlane.xlu0 %573
    %v575 = vsel %vm297, %v565, 0.0
    %576 = vadd.xlane.f32.xlu0 %v575
    %v577 = vpop.xlane.xlu0 %576
    %v578 = vsel %vm297, %v566, 0.0
    %579 = vadd.xlane.f32.xlu0 %v578
    %v580 = vpop.xlane.xlu0 %579
    %v581 = vsel %vm297, %v567, 0.0
    %582 = vadd.xlane.f32.xlu0 %v581
    %v583 = vpop.xlane.xlu0 %582
    %v584 = vmul.f32 %v574, %v310
    %v585 = vmul.f32 %v577, %v310
    %v586 = vmul.f32 %v580, %v310
    %v587 = vmul.f32 %v583, %v310
    %v588 = vsub.f32 %v564, %v584
    %v589 = vsub.f32 %v565, %v585
    %v590 = vsub.f32 %v566, %v586
    %v591 = vsub.f32 %v567, %v587
    %v592 = vmul.f32 %v588, %v588
    %v593 = vmul.f32 %v589, %v589
    %v594 = vmul.f32 %v590, %v590
    %v595 = vmul.f32 %v591, %v591
    %v596 = vsel %vm297, %v592, 0.0
    %597 = vadd.xlane.f32.xlu0 %v596
    %v598 = vpop.xlane.xlu0 %597
    %v599 = vsel %vm297, %v593, 0.0
    %600 = vadd.xlane.f32.xlu0 %v599
    %v601 = vpop.xlane.xlu0 %600
    %v602 = vsel %vm297, %v594, 0.0
    %603 = vadd.xlane.f32.xlu0 %v602
    %v604 = vpop.xlane.xlu0 %603
    %v605 = vsel %vm297, %v595, 0.0
    %606 = vadd.xlane.f32.xlu0 %v605
    %v607 = vpop.xlane.xlu0 %606
    %v608 = vmul.f32 %v598, %v310
    %v609 = vmul.f32 %v601, %v310
    %v610 = vmul.f32 %v604, %v310
    %v611 = vmul.f32 %v607, %v310
    %v612 = vadd.f32 %v608, 1e-05
    %v613 = vadd.f32 %v609, 1e-05
    %v614 = vadd.f32 %v610, 1e-05
    %v615 = vadd.f32 %v611, 1e-05
    %v616 = vrsqrt.pop %v612
    %v617 = vrsqrt.pop %v613
    %v618 = vrsqrt.pop %v614
    %v619 = vrsqrt.pop %v615
    %v620 = vmul.f32 %v588, %v616
    %v621 = vmul.f32 %v589, %v617
    %v622 = vmul.f32 %v590, %v618
    %v623 = vmul.f32 %v591, %v619
    %v625 = vlaneseq
    %v626 = vshrl.u32 %v625, 7
    %v627 = vsub.s32 0, %v626
    %v628 = vrot.slane %v569, %v627
    %v630 = vmul.f32 %v620, %v628
    %v631 = vmul.f32 %v621, %v628
    %v632 = vmul.f32 %v622, %v628
    %v633 = vmul.f32 %v623, %v628
    %v635 = vlaneseq
    %v636 = vshrl.u32 %v635, 7
    %v637 = vsub.s32 0, %v636
    %v638 = vrot.slane %v571, %v637
    %v640 = vadd.f32 %v630, %v638
    %v641 = vadd.f32 %v631, %v638
    %v642 = vadd.f32 %v632, %v638
    %v643 = vadd.f32 %v633, %v638
    %s644 = scalar_lea.vmem %s5, 8
    %v645 = vld [vmem:[%s644] sm:$0x1f]
    %v646 = vlaneseq
    %v647 = vshrl.u32 %v646, 7
    %v648 = vsub.s32 2, %v647
    %v649 = vrot.slane %v645, %v648
    %v650 = vmul.f32 %v640, %v649
    %v651 = vmul.f32 %v641, %v649
    %v652 = vmul.f32 %v642, %v649
    %v653 = vmul.f32 %v643, %v649
    %v654 = vrot.slane %v640, 6
    %v655 = vrot.slane %v641, 6
    %v656 = vrot.slane %v642, 6
    %v657 = vrot.slane %v643, 6
    %v658 = vsel %vm384, %v656, %v657
    %v659 = vsel %vm384, %v655, %v656
    %v660 = vsel %vm384, %v654, %v655
    %v661 = vsel %vm384, %v657, %v654
    %v662 = vlaneseq
    %v663 = vshrl.u32 %v662, 7
    %v664 = vsub.s32 0, %v663
    %v665 = vrot.slane %v645, %v664
    %v666 = vmul.f32 %v661, %v665
    %v667 = vmul.f32 %v660, %v665
    %v668 = vmul.f32 %v659, %v665
    %v669 = vmul.f32 %v658, %v665
    %v670 = vmul.f32 %v666, %v255
    %v671 = vmul.f32 %v667, %v256
    %v672 = vmul.f32 %v668, %v257
    %v673 = vmul.f32 %v669, %v258
    %v674 = vadd.f32 %v650, %v670
    %v675 = vadd.f32 %v651, %v671
    %v676 = vadd.f32 %v652, %v672
    %v677 = vadd.f32 %v653, %v673
    %v678 = vrot.slane %v640, 7
    %v679 = vrot.slane %v641, 7
    %v680 = vrot.slane %v642, 7
    %v681 = vrot.slane %v643, 7
    %v682 = vsel %vm409, %v680, %v681
    %v683 = vsel %vm409, %v679, %v680
    %v684 = vsel %vm409, %v678, %v679
    %v685 = vsel %vm409, %v681, %v678
    %v686 = vlaneseq
    %v687 = vshrl.u32 %v686, 7
    %v688 = vsub.s32 1, %v687
    %v689 = vrot.slane %v645, %v688
    %v690 = vmul.f32 %v685, %v689
    %v691 = vmul.f32 %v684, %v689
    %v692 = vmul.f32 %v683, %v689
    %v693 = vmul.f32 %v682, %v689
    %v694 = vmul.f32 %v690, %v267
    %v695 = vmul.f32 %v691, %v268
    %v696 = vmul.f32 %v692, %v269
    %v697 = vmul.f32 %v693, %v270
    %v698 = vadd.f32 %v674, %v694
    %v699 = vadd.f32 %v675, %v695
    %v700 = vadd.f32 %v676, %v696
    %v701 = vadd.f32 %v677, %v697
    %v702 = vrot.slane %v640, 1
    %v703 = vrot.slane %v641, 1
    %v704 = vrot.slane %v642, 1
    %v705 = vrot.slane %v643, 1
    %v706 = vsel %vm434, %v704, %v705
    %v707 = vsel %vm434, %v703, %v704
    %v708 = vsel %vm434, %v702, %v703
    %v709 = vsel %vm434, %v705, %v702
    %v710 = vlaneseq
    %v711 = vshrl.u32 %v710, 7
    %v712 = vsub.s32 3, %v711
    %v713 = vrot.slane %v645, %v712
    %v714 = vmul.f32 %v708, %v713
    %v715 = vmul.f32 %v707, %v713
    %v716 = vmul.f32 %v706, %v713
    %v717 = vmul.f32 %v709, %v713
    %v718 = vmul.f32 %v714, %v279
    %v719 = vmul.f32 %v715, %v280
    %v720 = vmul.f32 %v716, %v281
    %v721 = vmul.f32 %v717, %v282
    %v722 = vadd.f32 %v698, %v718
    %v723 = vadd.f32 %v699, %v719
    %v724 = vadd.f32 %v700, %v720
    %v725 = vadd.f32 %v701, %v721
    %v726 = vrot.slane %v640, 2
    %v727 = vrot.slane %v641, 2
    %v728 = vrot.slane %v642, 2
    %v729 = vrot.slane %v643, 2
    %v730 = vsel %vm459, %v728, %v729
    %v731 = vsel %vm459, %v727, %v728
    %v732 = vsel %vm459, %v726, %v727
    %v733 = vsel %vm459, %v729, %v726
    %v734 = vlaneseq
    %v735 = vshrl.u32 %v734, 7
    %v736 = vsub.s32 4, %v735
    %v737 = vrot.slane %v645, %v736
    %v738 = vmul.f32 %v732, %v737
    %v739 = vmul.f32 %v731, %v737
    %v740 = vmul.f32 %v730, %v737
    %v741 = vmul.f32 %v733, %v737
    %v742 = vmul.f32 %v738, %v291
    %v743 = vmul.f32 %v739, %v292
    %v744 = vmul.f32 %v740, %v293
    %v745 = vmul.f32 %v741, %v294
    %v746 = vadd.f32 %v722, %v742
    %v747 = vadd.f32 %v723, %v743
    %v748 = vadd.f32 %v724, %v744
    %v749 = vadd.f32 %v725, %v745
    %v750 = vpack.c.bf16 %v747, %v746
    %v751 = vpack.c.bf16 %v749, %v748
    %s752 = scalar_lea.vmem %s6, 16
    %v753 = vld [vmem:[%s752] sm:$0xf]
    %v754 = vld [vmem:[%s752 + $0x4] sm:$0xf]
    %v755 = vld [vmem:[%s752 + $0x8] sm:$0xf]
    %v756 = vld [vmem:[%s752 + $0xc] sm:$0xf]
    %s757 = scalar_lea.vmem %s7, 1
    %v758 = vld [vmem:[%s757] sm:$0x1]
    %v760 = vlaneseq
    %v761 = vshrl.u32 %v760, 7
    %v762 = vsub.s32 0, %v761
    %v763 = vrot.slane %v758, %v762
    %v769 = vunpack.c.l.b16 %v753
    %v770 = vunpack.c.l.b16 %v754
    %v771 = vunpack.c.l.b16 %v755
    %v772 = vunpack.c.l.b16 %v756
    %v773 = vpack.c.b16 %v770, %v769
    %v774 = vpack.c.b16 %v772, %v771
    %v778 = vsel %vm297, %v750, 0
    %v781 = vsel %vm297, %v751, 0
    %783 = vmatprep.subr.bf16.mxu0 0
    %784 = vmatpush1.bf16.msra.mxu0 %v773
    %785 = vmatprep.subr.bf16.mxu0 0
    %786 = vmatpush1.bf16.msra.mxu0 %v774
    %787 = vmatprep.subr.bf16.mxu0 0
    %788 = vmatpush1.bf16.msra.mxu0 0
    %789 = vmatprep.subr.bf16.mxu0 0
    %790 = vmatpush1.bf16.msra.mxu0 0
    %791 = vmatprep.subr.bf16.mxu0 0
    %792 = vmatpush1.bf16.msra.mxu0 0
    %793 = vmatprep.subr.bf16.mxu0 0
    %794 = vmatpush1.bf16.msra.mxu0 0
    %795 = vmatprep.subr.bf16.mxu0 0
    %796 = vmatpush1.bf16.msra.mxu0 0
    %797 = vmatprep.subr.bf16.mxu0 0
    %798 = vmatpush1.bf16.msra.mxu0 0
    %799 = vmatprep.subr.bf16.mxu0 0
    %800 = vmatpush1.bf16.msra.mxu0 0
    %801 = vmatprep.subr.bf16.mxu0 0
    %802 = vmatpush1.bf16.msra.mxu0 0
    %803 = vmatprep.subr.bf16.mxu0 0
    %804 = vmatpush1.bf16.msra.mxu0 0
    %805 = vmatprep.subr.bf16.mxu0 0
    %806 = vmatpush1.bf16.msra.mxu0 0
    %807 = vmatprep.subr.bf16.mxu0 0
    %808 = vmatpush1.bf16.msra.mxu0 0
    %809 = vmatprep.subr.bf16.mxu0 0
    %810 = vmatpush1.bf16.msra.mxu0 0
    %811 = vmatprep.subr.bf16.mxu0 0
    %812 = vmatpush1.bf16.msra.mxu0 0
    %813 = vmatprep.subr.bf16.mxu0 0
    %814 = vmatpush1.bf16.msra.mxu0 0
    %815 = vmatprep.mubr.bf16.mxu0 0
    %816 = vmatmul.mubr.bf16.gmra.mrb[0].mxu0 %v778
    %v817 = vpop.f32.mrb[0].mxu0
    %v818 = vadd.f32 %v763, %v817
    %v819 = vpop.f32.mrb[0].mxu0
    %v820 = vpop.f32.mrb[0].mxu0
    %v821 = vadd.f32 %v763, %v820
    %v822 = vpop.f32.mrb[0].mxu0
    %823 = vmatprep.mubr.bf16.mxu0 0
    %824 = vmatmul.mubr.bf16.gmra.mrb[0].mxu0 %v781
    %v825 = vpop.f32.mrb[0].mxu0
    %v826 = vadd.f32 %v763, %v825
    %v827 = vpop.f32.mrb[0].mxu0
    %v828 = vpop.f32.mrb[0].mxu0
    %v829 = vadd.f32 %v763, %v828
    %v830 = vpop.f32.mrb[0].mxu0
    %831 = vdwg.mxu0
    %v832 = vmax.f32 %v818, 0.0
    %v833 = vmax.f32 %v821, 0.0
    %v834 = vmax.f32 %v826, 0.0
    %v835 = vmax.f32 %v829, 0.0
    %v836 = vadd.f32 %v832, %v564
    %v837 = vadd.f32 %v833, %v565
    %v838 = vadd.f32 %v834, %v566
    %v839 = vadd.f32 %v835, %v567
    %v840 = vld [vmem:[#allocation10] sm:$0x1]
    %v841 = vld [vmem:[#allocation11] sm:$0x1]
    %v842 = vsel %vm297, %v836, 0.0
    %843 = vadd.xlane.f32.xlu0 %v842
    %v844 = vpop.xlane.xlu0 %843
    %v845 = vsel %vm297, %v837, 0.0
    %846 = vadd.xlane.f32.xlu0 %v845
    %v847 = vpop.xlane.xlu0 %846
    %v848 = vsel %vm297, %v838, 0.0
    %849 = vadd.xlane.f32.xlu0 %v848
    %v850 = vpop.xlane.xlu0 %849
    %v851 = vsel %vm297, %v839, 0.0
    %852 = vadd.xlane.f32.xlu0 %v851
    %v853 = vpop.xlane.xlu0 %852
    %v854 = vmul.f32 %v844, %v310
    %v855 = vmul.f32 %v847, %v310
    %v856 = vmul.f32 %v850, %v310
    %v857 = vmul.f32 %v853, %v310
    %v858 = vsub.f32 %v836, %v854
    %v859 = vsub.f32 %v837, %v855
    %v860 = vsub.f32 %v838, %v856
    %v861 = vsub.f32 %v839, %v857
    %v862 = vmul.f32 %v858, %v858
    %v863 = vmul.f32 %v859, %v859
    %v864 = vmul.f32 %v860, %v860
    %v865 = vmul.f32 %v861, %v861
    %v866 = vsel %vm297, %v862, 0.0
    %867 = vadd.xlane.f32.xlu0 %v866
    %v868 = vpop.xlane.xlu0 %867
    %v869 = vsel %vm297, %v863, 0.0
    %870 = vadd.xlane.f32.xlu0 %v869
    %v871 = vpop.xlane.xlu0 %870
    %v872 = vsel %vm297, %v864, 0.0
    %873 = vadd.xlane.f32.xlu0 %v872
    %v874 = vpop.xlane.xlu0 %873
    %v875 = vsel %vm297, %v865, 0.0
    %876 = vadd.xlane.f32.xlu0 %v875
    %v877 = vpop.xlane.xlu0 %876
    %v878 = vmul.f32 %v868, %v310
    %v879 = vmul.f32 %v871, %v310
    %v880 = vmul.f32 %v874, %v310
    %v881 = vmul.f32 %v877, %v310
    %v882 = vadd.f32 %v878, 1e-05
    %v883 = vadd.f32 %v879, 1e-05
    %v884 = vadd.f32 %v880, 1e-05
    %v885 = vadd.f32 %v881, 1e-05
    %v886 = vrsqrt.pop %v882
    %v887 = vrsqrt.pop %v883
    %v888 = vrsqrt.pop %v884
    %v889 = vrsqrt.pop %v885
    %v890 = vmul.f32 %v858, %v886
    %v891 = vmul.f32 %v859, %v887
    %v892 = vmul.f32 %v860, %v888
    %v893 = vmul.f32 %v861, %v889
    %v895 = vlaneseq
    %v896 = vshrl.u32 %v895, 7
    %v897 = vsub.s32 0, %v896
    %v898 = vrot.slane %v840, %v897
    %v900 = vmul.f32 %v890, %v898
    %v901 = vmul.f32 %v891, %v898
    %v902 = vmul.f32 %v892, %v898
    %v903 = vmul.f32 %v893, %v898
    %v905 = vlaneseq
    %v906 = vshrl.u32 %v905, 7
    %v907 = vsub.s32 0, %v906
    %v908 = vrot.slane %v841, %v907
    %v910 = vadd.f32 %v900, %v908
    %v911 = vadd.f32 %v901, %v908
    %v912 = vadd.f32 %v902, %v908
    %v913 = vadd.f32 %v903, %v908
    %v914 = vpack.c.bf16 %v911, %v910
    %v915 = vpack.c.bf16 %v913, %v912
    %v916 = vld [vmem:[#allocation13] sm:$0xf]
    %v917 = vld [vmem:[#allocation13 + $0x4] sm:$0xf]
    %v918 = vld [vmem:[#allocation13 + $0x8] sm:$0xf]
    %v919 = vld [vmem:[#allocation13 + $0xc] sm:$0xf]
    %v924 = vunpack.c.l.b16 %v916
    %v925 = vunpack.c.l.b16 %v917
    %v926 = vunpack.c.l.b16 %v918
    %v927 = vunpack.c.l.b16 %v919
    %v928 = vpack.c.b16 %v925, %v924
    %v929 = vpack.c.b16 %v927, %v926
    %v933 = vsel %vm297, %v914, 0
    %v936 = vsel %vm297, %v915, 0
    %938 = vmatprep.subr.bf16.mxu0 0
    %939 = vmatpush1.bf16.msra.mxu0 %v928
    %940 = vmatprep.subr.bf16.mxu0 0
    %941 = vmatpush1.bf16.msra.mxu0 %v929
    %942 = vmatprep.subr.bf16.mxu0 0
    %943 = vmatpush1.bf16.msra.mxu0 0
    %944 = vmatprep.subr.bf16.mxu0 0
    %945 = vmatpush1.bf16.msra.mxu0 0
    %946 = vmatprep.subr.bf16.mxu0 0
    %947 = vmatpush1.bf16.msra.mxu0 0
    %948 = vmatprep.subr.bf16.mxu0 0
    %949 = vmatpush1.bf16.msra.mxu0 0
    %950 = vmatprep.subr.bf16.mxu0 0
    %951 = vmatpush1.bf16.msra.mxu0 0
    %952 = vmatprep.subr.bf16.mxu0 0
    %953 = vmatpush1.bf16.msra.mxu0 0
    %954 = vmatprep.subr.bf16.mxu0 0
    %955 = vmatpush1.bf16.msra.mxu0 0
    %956 = vmatprep.subr.bf16.mxu0 0
    %957 = vmatpush1.bf16.msra.mxu0 0
    %958 = vmatprep.subr.bf16.mxu0 0
    %959 = vmatpush1.bf16.msra.mxu0 0
    %960 = vmatprep.subr.bf16.mxu0 0
    %961 = vmatpush1.bf16.msra.mxu0 0
    %962 = vmatprep.subr.bf16.mxu0 0
    %963 = vmatpush1.bf16.msra.mxu0 0
    %964 = vmatprep.subr.bf16.mxu0 0
    %965 = vmatpush1.bf16.msra.mxu0 0
    %966 = vmatprep.subr.bf16.mxu0 0
    %967 = vmatpush1.bf16.msra.mxu0 0
    %968 = vmatprep.subr.bf16.mxu0 0
    %969 = vmatpush1.bf16.msra.mxu0 0
    %970 = vmatprep.mubr.bf16.mxu0 0
    %971 = vmatmul.mubr.bf16.gmra.mrb[0].mxu0 %v933
    %v972 = vpop.f32.mrb[0].mxu0
    %v973 = vadd.f32 0.0, %v972
    %v974 = vpop.f32.mrb[0].mxu0
    %v975 = vpop.f32.mrb[0].mxu0
    %v976 = vadd.f32 0.0, %v975
    %v977 = vpop.f32.mrb[0].mxu0
    %978 = vmatprep.mubr.bf16.mxu0 0
    %979 = vmatmul.mubr.bf16.gmra.mrb[0].mxu0 %v936
    %v980 = vpop.f32.mrb[0].mxu0
    %v981 = vadd.f32 0.0, %v980
    %v982 = vpop.f32.mrb[0].mxu0
    %v983 = vpop.f32.mrb[0].mxu0
    %v984 = vadd.f32 0.0, %v983
    %v985 = vpop.f32.mrb[0].mxu0
    %986 = vdwg.mxu0
    %v987 = vpack.c.bf16 %v976, %v973
    %v988 = vpack.c.bf16 %v984, %v981
    %v989 = vld [vmem:[#allocation5] sm:$0x1]
    %v990 = vsub.f32 1.0, %v989
    %v991 = vmul.f32 %v990, -1e+30
    %993 = vrot.lane.b32.xlu0 %v987, 120
    %v994 = vpop.permute.xlu0 %993
    %995 = vrot.lane.b32.xlu0 %v987, 112
    %v996 = vpop.permute.xlu0 %995
    %997 = vrot.lane.b32.xlu0 %v987, 104
    %v998 = vpop.permute.xlu0 %997
    %999 = vrot.lane.b32.xlu0 %v987, 96
    %v1000 = vpop.permute.xlu0 %999
    %vm1001 = vcmask 64512
    %v1003 = vsel %vm1001, %v987, 0
    %v1006 = vsel %vm1001, %v1000, 0
    %1008 = vmatprep.subr.bf16.mxu0 0
    %1009 = vmatpush1.bf16.xpose.msra.mxu0 %v1006
    %1010 = vmatprep.subr.bf16.mxu0 0
    %1011 = vmatpush1.bf16.xpose.msra.mxu0 0
    %1012 = vmatprep.subr.bf16.mxu0 0
    %1013 = vmatpush1.bf16.xpose.msra.mxu0 0
    %1014 = vmatprep.subr.bf16.mxu0 0
    %1015 = vmatpush1.bf16.xpose.msra.mxu0 0
    %1016 = vmatprep.subr.bf16.mxu0 0
    %1017 = vmatpush1.bf16.xpose.msra.mxu0 0
    %1018 = vmatprep.subr.bf16.mxu0 0
    %1019 = vmatpush1.bf16.xpose.msra.mxu0 0
    %1020 = vmatprep.subr.bf16.mxu0 0
    %1021 = vmatpush1.bf16.xpose.msra.mxu0 0
    %1022 = vmatprep.subr.bf16.mxu0 0
    %1023 = vmatpush1.bf16.xpose.msra.mxu0 0
    %1024 = vmatprep.subr.bf16.mxu0 0
    %1025 = vmatpush1.bf16.xpose.msra.mxu0 0
    %1026 = vmatprep.subr.bf16.mxu0 0
    %1027 = vmatpush1.bf16.xpose.msra.mxu0 0
    %1028 = vmatprep.subr.bf16.mxu0 0
    %1029 = vmatpush1.bf16.xpose.msra.mxu0 0
    %1030 = vmatprep.subr.bf16.mxu0 0
    %1031 = vmatpush1.bf16.xpose.msra.mxu0 0
    %1032 = vmatprep.subr.bf16.mxu0 0
    %1033 = vmatpush1.bf16.xpose.msra.mxu0 0
    %1034 = vmatprep.subr.bf16.mxu0 0
    %1035 = vmatpush1.bf16.xpose.msra.mxu0 0
    %1036 = vmatprep.subr.bf16.mxu0 0
    %1037 = vmatpush1.bf16.xpose.msra.mxu0 0
    %1038 = vmatprep.subr.bf16.mxu0 0
    %1039 = vmatpush1.bf16.xpose.msra.mxu0 0
    %1040 = vmatprep.mubr.bf16.mxu0 0
    %1041 = vmatmul.mubr.bf16.gmra.mrb[0].mxu0 %v1003
    %v1042 = vpop.f32.mrb[0].mxu0
    %v1043 = vadd.f32 0.0, %v1042
    %v1044 = vpop.f32.mrb[0].mxu0
    %v1045 = vpop.f32.mrb[0].mxu0
    %v1046 = vadd.f32 0.0, %v1045
    %v1047 = vpop.f32.mrb[0].mxu0
    %1048 = vdwg.mxu0
    %1049 = vrot.lane.b32.xlu0 %v994, 96
    %v1050 = vpop.permute.xlu0 %1049
    %v1052 = vsel %vm1001, %v994, 0
    %v1055 = vsel %vm1001, %v1050, 0
    %1057 = vmatprep.subr.bf16.mxu0 0
    %1058 = vmatpush1.bf16.xpose.msra.mxu0 %v1055
    %1059 = vmatprep.subr.bf16.mxu0 0
    %1060 = vmatpush1.bf16.xpose.msra.mxu0 0
    %1061 = vmatprep.subr.bf16.mxu0 0
    %1062 = vmatpush1.bf16.xpose.msra.mxu0 0
    %1063 = vmatprep.subr.bf16.mxu0 0
    %1064 = vmatpush1.bf16.xpose.msra.mxu0 0
    %1065 = vmatprep.subr.bf16.mxu0 0
    %1066 = vmatpush1.bf16.xpose.msra.mxu0 0
    %1067 = vmatprep.subr.bf16.mxu0 0
    %1068 = vmatpush1.bf16.xpose.msra.mxu0 0
    %1069 = vmatprep.subr.bf16.mxu0 0
    %1070 = vmatpush1.bf16.xpose.msra.mxu0 0
    %1071 = vmatprep.subr.bf16.mxu0 0
    %1072 = vmatpush1.bf16.xpose.msra.mxu0 0
    %1073 = vmatprep.subr.bf16.mxu0 0
    %1074 = vmatpush1.bf16.xpose.msra.mxu0 0
    %1075 = vmatprep.subr.bf16.mxu0 0
    %1076 = vmatpush1.bf16.xpose.msra.mxu0 0
    %1077 = vmatprep.subr.bf16.mxu0 0
    %1078 = vmatpush1.bf16.xpose.msra.mxu0 0
    %1079 = vmatprep.subr.bf16.mxu0 0
    %1080 = vmatpush1.bf16.xpose.msra.mxu0 0
    %1081 = vmatprep.subr.bf16.mxu0 0
    %1082 = vmatpush1.bf16.xpose.msra.mxu0 0
    %1083 = vmatprep.subr.bf16.mxu0 0
    %1084 = vmatpush1.bf16.xpose.msra.mxu0 0
    %1085 = vmatprep.subr.bf16.mxu0 0
    %1086 = vmatpush1.bf16.xpose.msra.mxu0 0
    %1087 = vmatprep.subr.bf16.mxu0 0
    %1088 = vmatpush1.bf16.xpose.msra.mxu0 0
    %1089 = vmatprep.mubr.bf16.mxu0 0
    %1090 = vmatmul.mubr.bf16.gmra.mrb[0].mxu0 %v1052
    %v1091 = vpop.f32.mrb[0].mxu0
    %v1092 = vadd.f32 0.0, %v1091
    %v1093 = vpop.f32.mrb[0].mxu0
    %v1094 = vpop.f32.mrb[0].mxu0
    %v1095 = vadd.f32 0.0, %v1094
    %v1096 = vpop.f32.mrb[0].mxu0
    %1097 = vdwg.mxu0
    %1098 = vrot.lane.b32.xlu0 %v996, 96
    %v1099 = vpop.permute.xlu0 %1098
    %v1101 = vsel %vm1001, %v996, 0
    %v1104 = vsel %vm1001, %v1099, 0
    %1106 = vmatprep.subr.bf16.mxu0 0
    %1107 = vmatpush1.bf16.xpose.msra.mxu0 %v1104
    %1108 = vmatprep.subr.bf16.mxu0 0
    %1109 = vmatpush1.bf16.xpose.msra.mxu0 0
    %1110 = vmatprep.subr.bf16.mxu0 0
    %1111 = vmatpush1.bf16.xpose.msra.mxu0 0
    %1112 = vmatprep.subr.bf16.mxu0 0
    %1113 = vmatpush1.bf16.xpose.msra.mxu0 0
    %1114 = vmatprep.subr.bf16.mxu0 0
    %1115 = vmatpush1.bf16.xpose.msra.mxu0 0
    %1116 = vmatprep.subr.bf16.mxu0 0
    %1117 = vmatpush1.bf16.xpose.msra.mxu0 0
    %1118 = vmatprep.subr.bf16.mxu0 0
    %1119 = vmatpush1.bf16.xpose.msra.mxu0 0
    %1120 = vmatprep.subr.bf16.mxu0 0
    %1121 = vmatpush1.bf16.xpose.msra.mxu0 0
    %1122 = vmatprep.subr.bf16.mxu0 0
    %1123 = vmatpush1.bf16.xpose.msra.mxu0 0
    %1124 = vmatprep.subr.bf16.mxu0 0
    %1125 = vmatpush1.bf16.xpose.msra.mxu0 0
    %1126 = vmatprep.subr.bf16.mxu0 0
    %1127 = vmatpush1.bf16.xpose.msra.mxu0 0
    %1128 = vmatprep.subr.bf16.mxu0 0
    %1129 = vmatpush1.bf16.xpose.msra.mxu0 0
    %1130 = vmatprep.subr.bf16.mxu0 0
    %1131 = vmatpush1.bf16.xpose.msra.mxu0 0
    %1132 = vmatprep.subr.bf16.mxu0 0
    %1133 = vmatpush1.bf16.xpose.msra.mxu0 0
    %1134 = vmatprep.subr.bf16.mxu0 0
    %1135 = vmatpush1.bf16.xpose.msra.mxu0 0
    %1136 = vmatprep.subr.bf16.mxu0 0
    %1137 = vmatpush1.bf16.xpose.msra.mxu0 0
    %1138 = vmatprep.mubr.bf16.mxu0 0
    %1139 = vmatmul.mubr.bf16.gmra.mrb[0].mxu0 %v1101
    %v1140 = vpop.f32.mrb[0].mxu0
    %v1141 = vadd.f32 0.0, %v1140
    %v1142 = vpop.f32.mrb[0].mxu0
    %v1143 = vpop.f32.mrb[0].mxu0
    %v1144 = vadd.f32 0.0, %v1143
    %v1145 = vpop.f32.mrb[0].mxu0
    %1146 = vdwg.mxu0
    %1147 = vrot.lane.b32.xlu0 %v998, 96
    %v1148 = vpop.permute.xlu0 %1147
    %v1150 = vsel %vm1001, %v998, 0
    %v1153 = vsel %vm1001, %v1148, 0
    %1155 = vmatprep.subr.bf16.mxu0 0
    %1156 = vmatpush1.bf16.xpose.msra.mxu0 %v1153
    %1157 = vmatprep.subr.bf16.mxu0 0
    %1158 = vmatpush1.bf16.xpose.msra.mxu0 0
    %1159 = vmatprep.subr.bf16.mxu0 0
    %1160 = vmatpush1.bf16.xpose.msra.mxu0 0
    %1161 = vmatprep.subr.bf16.mxu0 0
    %1162 = vmatpush1.bf16.xpose.msra.mxu0 0
    %1163 = vmatprep.subr.bf16.mxu0 0
    %1164 = vmatpush1.bf16.xpose.msra.mxu0 0
    %1165 = vmatprep.subr.bf16.mxu0 0
    %1166 = vmatpush1.bf16.xpose.msra.mxu0 0
    %1167 = vmatprep.subr.bf16.mxu0 0
    %1168 = vmatpush1.bf16.xpose.msra.mxu0 0
    %1169 = vmatprep.subr.bf16.mxu0 0
    %1170 = vmatpush1.bf16.xpose.msra.mxu0 0
    %1171 = vmatprep.subr.bf16.mxu0 0
    %1172 = vmatpush1.bf16.xpose.msra.mxu0 0
    %1173 = vmatprep.subr.bf16.mxu0 0
    %1174 = vmatpush1.bf16.xpose.msra.mxu0 0
    %1175 = vmatprep.subr.bf16.mxu0 0
    %1176 = vmatpush1.bf16.xpose.msra.mxu0 0
    %1177 = vmatprep.subr.bf16.mxu0 0
    %1178 = vmatpush1.bf16.xpose.msra.mxu0 0
    %1179 = vmatprep.subr.bf16.mxu0 0
    %1180 = vmatpush1.bf16.xpose.msra.mxu0 0
    %1181 = vmatprep.subr.bf16.mxu0 0
    %1182 = vmatpush1.bf16.xpose.msra.mxu0 0
    %1183 = vmatprep.subr.bf16.mxu0 0
    %1184 = vmatpush1.bf16.xpose.msra.mxu0 0
    %1185 = vmatprep.subr.bf16.mxu0 0
    %1186 = vmatpush1.bf16.xpose.msra.mxu0 0
    %1187 = vmatprep.mubr.bf16.mxu0 0
    %1188 = vmatmul.mubr.bf16.gmra.mrb[0].mxu0 %v1150
    %v1189 = vpop.f32.mrb[0].mxu0
    %v1190 = vadd.f32 0.0, %v1189
    %v1191 = vpop.f32.mrb[0].mxu0
    %v1192 = vpop.f32.mrb[0].mxu0
    %v1193 = vadd.f32 0.0, %v1192
    %v1194 = vpop.f32.mrb[0].mxu0
    %1195 = vdwg.mxu0
    %v1197 = vlaneseq
    %v1198 = vshrl.u32 %v1197, 7
    %v1199 = vsub.s32 0, %v1198
    %v1200 = vrot.slane %v989, %v1199
    %v1202 = vmul.f32 %v1043, %v1200
    %v1203 = vmul.f32 %v1046, %v1200
    %v1204 = vmul.f32 %v1092, %v1200
    %v1205 = vmul.f32 %v1095, %v1200
    %v1206 = vmul.f32 %v1141, %v1200
    %v1207 = vmul.f32 %v1144, %v1200
    %v1208 = vmul.f32 %v1190, %v1200
    %v1209 = vmul.f32 %v1193, %v1200
    %v1211 = vlaneseq
    %v1212 = vshrl.u32 %v1211, 7
    %v1213 = vsub.s32 0, %v1212
    %v1214 = vrot.slane %v991, %v1213
    %v1216 = vadd.f32 %v1202, %v1214
    %v1217 = vadd.f32 %v1203, %v1214
    %v1218 = vadd.f32 %v1204, %v1214
    %v1219 = vadd.f32 %v1205, %v1214
    %v1220 = vadd.f32 %v1206, %v1214
    %v1221 = vadd.f32 %v1207, %v1214
    %v1222 = vadd.f32 %v1208, %v1214
    %v1223 = vadd.f32 %v1209, %v1214
    %vm1224 = vcmask 130048
    %v1225 = vsel %vm1224, %v1216, -inf
    %1226 = vmax.xlane.f32.xlu0 %v1225
    %v1227 = vpop.xlane.xlu0 %1226
    %v1228 = vsel %vm1224, %v1217, -inf
    %1229 = vmax.xlane.f32.xlu0 %v1228
    %v1230 = vpop.xlane.xlu0 %1229
    %v1231 = vsel %vm1224, %v1218, -inf
    %1232 = vmax.xlane.f32.xlu0 %v1231
    %v1233 = vpop.xlane.xlu0 %1232
    %v1234 = vsel %vm1224, %v1219, -inf
    %1235 = vmax.xlane.f32.xlu0 %v1234
    %v1236 = vpop.xlane.xlu0 %1235
    %v1237 = vsel %vm1224, %v1220, -inf
    %1238 = vmax.xlane.f32.xlu0 %v1237
    %v1239 = vpop.xlane.xlu0 %1238
    %v1240 = vsel %vm1224, %v1221, -inf
    %1241 = vmax.xlane.f32.xlu0 %v1240
    %v1242 = vpop.xlane.xlu0 %1241
    %v1243 = vsel %vm1224, %v1222, -inf
    %1244 = vmax.xlane.f32.xlu0 %v1243
    %v1245 = vpop.xlane.xlu0 %1244
    %v1246 = vsel %vm1224, %v1223, -inf
    %1247 = vmax.xlane.f32.xlu0 %v1246
    %v1248 = vpop.xlane.xlu0 %1247
    %v1249 = vsub.f32 %v1216, %v1227
    %v1250 = vsub.f32 %v1217, %v1230
    %v1251 = vsub.f32 %v1218, %v1233
    %v1252 = vsub.f32 %v1219, %v1236
    %v1253 = vsub.f32 %v1220, %v1239
    %v1254 = vsub.f32 %v1221, %v1242
    %v1255 = vsub.f32 %v1222, %v1245
    %v1256 = vsub.f32 %v1223, %v1248
    %v1257 = vmul.f32 %v1249, 1.442695
    %v1258 = vpow.pop %v1257
    %v1259 = vmul.f32 %v1250, 1.442695
    %v1260 = vpow.pop %v1259
    %v1261 = vmul.f32 %v1251, 1.442695
    %v1262 = vpow.pop %v1261
    %v1263 = vmul.f32 %v1252, 1.442695
    %v1264 = vpow.pop %v1263
    %v1265 = vmul.f32 %v1253, 1.442695
    %v1266 = vpow.pop %v1265
    %v1267 = vmul.f32 %v1254, 1.442695
    %v1268 = vpow.pop %v1267
    %v1269 = vmul.f32 %v1255, 1.442695
    %v1270 = vpow.pop %v1269
    %v1271 = vmul.f32 %v1256, 1.442695
    %v1272 = vpow.pop %v1271
    %v1273 = vsel %vm1224, %v1258, 0.0
    %1274 = vadd.xlane.f32.xlu0 %v1273
    %v1275 = vpop.xlane.xlu0 %1274
    %v1276 = vsel %vm1224, %v1260, 0.0
    %1277 = vadd.xlane.f32.xlu0 %v1276
    %v1278 = vpop.xlane.xlu0 %1277
    %v1279 = vsel %vm1224, %v1262, 0.0
    %1280 = vadd.xlane.f32.xlu0 %v1279
    %v1281 = vpop.xlane.xlu0 %1280
    %v1282 = vsel %vm1224, %v1264, 0.0
    %1283 = vadd.xlane.f32.xlu0 %v1282
    %v1284 = vpop.xlane.xlu0 %1283
    %v1285 = vsel %vm1224, %v1266, 0.0
    %1286 = vadd.xlane.f32.xlu0 %v1285
    %v1287 = vpop.xlane.xlu0 %1286
    %v1288 = vsel %vm1224, %v1268, 0.0
    %1289 = vadd.xlane.f32.xlu0 %v1288
    %v1290 = vpop.xlane.xlu0 %1289
    %v1291 = vsel %vm1224, %v1270, 0.0
    %1292 = vadd.xlane.f32.xlu0 %v1291
    %v1293 = vpop.xlane.xlu0 %1292
    %v1294 = vsel %vm1224, %v1272, 0.0
    %1295 = vadd.xlane.f32.xlu0 %v1294
    %v1296 = vpop.xlane.xlu0 %1295
    %v1297 = vrcp.pop %v1275
    %v1298 = vrcp.pop %v1278
    %v1299 = vrcp.pop %v1281
    %v1300 = vrcp.pop %v1284
    %v1301 = vrcp.pop %v1287
    %v1302 = vrcp.pop %v1290
    %v1303 = vrcp.pop %v1293
    %v1304 = vrcp.pop %v1296
    %v1305 = vmul.f32 %v1258, %v1297
    %v1306 = vmul.f32 %v1260, %v1298
    %v1307 = vmul.f32 %v1262, %v1299
    %v1308 = vmul.f32 %v1264, %v1300
    %v1309 = vmul.f32 %v1266, %v1301
    %v1310 = vmul.f32 %v1268, %v1302
    %v1311 = vmul.f32 %v1270, %v1303
    %v1312 = vmul.f32 %v1272, %v1304
    %v1313 = vpack.c.bf16 %v1306, %v1305
    %v1314 = vpack.c.bf16 %v1308, %v1307
    %v1315 = vpack.c.bf16 %v1310, %v1309
    %v1316 = vpack.c.bf16 %v1312, %v1311
    %1317 = vrot.lane.b32.xlu0 %v987, 64
    %v1318 = vpop.permute.xlu0 %1317
    %v1321 = vsel %vm1224, %v1313, 0
    %1323 = vmatprep.subr.bf16.mxu0 0
    %1324 = vmatpush1.bf16.msra.mxu0 %v1318
    %1325 = vmatprep.subr.bf16.mxu0 0
    %1326 = vmatpush1.bf16.msra.mxu0 0
    %1327 = vmatprep.subr.bf16.mxu0 0
    %1328 = vmatpush1.bf16.msra.mxu0 0
    %1329 = vmatprep.subr.bf16.mxu0 0
    %1330 = vmatpush1.bf16.msra.mxu0 0
    %1331 = vmatprep.subr.bf16.mxu0 0
    %1332 = vmatpush1.bf16.msra.mxu0 0
    %1333 = vmatprep.subr.bf16.mxu0 0
    %1334 = vmatpush1.bf16.msra.mxu0 0
    %1335 = vmatprep.subr.bf16.mxu0 0
    %1336 = vmatpush1.bf16.msra.mxu0 0
    %1337 = vmatprep.subr.bf16.mxu0 0
    %1338 = vmatpush1.bf16.msra.mxu0 0
    %1339 = vmatprep.subr.bf16.mxu0 0
    %1340 = vmatpush1.bf16.msra.mxu0 0
    %1341 = vmatprep.subr.bf16.mxu0 0
    %1342 = vmatpush1.bf16.msra.mxu0 0
    %1343 = vmatprep.subr.bf16.mxu0 0
    %1344 = vmatpush1.bf16.msra.mxu0 0
    %1345 = vmatprep.subr.bf16.mxu0 0
    %1346 = vmatpush1.bf16.msra.mxu0 0
    %1347 = vmatprep.subr.bf16.mxu0 0
    %1348 = vmatpush1.bf16.msra.mxu0 0
    %1349 = vmatprep.subr.bf16.mxu0 0
    %1350 = vmatpush1.bf16.msra.mxu0 0
    %1351 = vmatprep.subr.bf16.mxu0 0
    %1352 = vmatpush1.bf16.msra.mxu0 0
    %1353 = vmatprep.subr.bf16.mxu0 0
    %1354 = vmatpush1.bf16.msra.mxu0 0
    %1355 = vmatprep.mubr.bf16.mxu0 0
    %1356 = vmatmul.mubr.bf16.gmra.mrb[0].mxu0 %v1321
    %v1357 = vpop.f32.mrb[0].mxu0
    %v1358 = vadd.f32 0.0, %v1357
    %v1359 = vpop.f32.mrb[0].mxu0
    %v1360 = vpop.f32.mrb[0].mxu0
    %v1361 = vadd.f32 0.0, %v1360
    %v1362 = vpop.f32.mrb[0].mxu0
    %1363 = vdwg.mxu0
    %1364 = vrot.lane.b32.xlu0 %v994, 64
    %v1365 = vpop.permute.xlu0 %1364
    %v1368 = vsel %vm1224, %v1314, 0
    %1370 = vmatprep.subr.bf16.mxu0 0
    %1371 = vmatpush1.bf16.msra.mxu0 %v1365
    %1372 = vmatprep.subr.bf16.mxu0 0
    %1373 = vmatpush1.bf16.msra.mxu0 0
    %1374 = vmatprep.subr.bf16.mxu0 0
    %1375 = vmatpush1.bf16.msra.mxu0 0
    %1376 = vmatprep.subr.bf16.mxu0 0
    %1377 = vmatpush1.bf16.msra.mxu0 0
    %1378 = vmatprep.subr.bf16.mxu0 0
    %1379 = vmatpush1.bf16.msra.mxu0 0
    %1380 = vmatprep.subr.bf16.mxu0 0
    %1381 = vmatpush1.bf16.msra.mxu0 0
    %1382 = vmatprep.subr.bf16.mxu0 0
    %1383 = vmatpush1.bf16.msra.mxu0 0
    %1384 = vmatprep.subr.bf16.mxu0 0
    %1385 = vmatpush1.bf16.msra.mxu0 0
    %1386 = vmatprep.subr.bf16.mxu0 0
    %1387 = vmatpush1.bf16.msra.mxu0 0
    %1388 = vmatprep.subr.bf16.mxu0 0
    %1389 = vmatpush1.bf16.msra.mxu0 0
    %1390 = vmatprep.subr.bf16.mxu0 0
    %1391 = vmatpush1.bf16.msra.mxu0 0
    %1392 = vmatprep.subr.bf16.mxu0 0
    %1393 = vmatpush1.bf16.msra.mxu0 0
    %1394 = vmatprep.subr.bf16.mxu0 0
    %1395 = vmatpush1.bf16.msra.mxu0 0
    %1396 = vmatprep.subr.bf16.mxu0 0
    %1397 = vmatpush1.bf16.msra.mxu0 0
    %1398 = vmatprep.subr.bf16.mxu0 0
    %1399 = vmatpush1.bf16.msra.mxu0 0
    %1400 = vmatprep.subr.bf16.mxu0 0
    %1401 = vmatpush1.bf16.msra.mxu0 0
    %1402 = vmatprep.mubr.bf16.mxu0 0
    %1403 = vmatmul.mubr.bf16.gmra.mrb[0].mxu0 %v1368
    %v1404 = vpop.f32.mrb[0].mxu0
    %v1405 = vadd.f32 0.0, %v1404
    %v1406 = vpop.f32.mrb[0].mxu0
    %v1407 = vpop.f32.mrb[0].mxu0
    %v1408 = vadd.f32 0.0, %v1407
    %v1409 = vpop.f32.mrb[0].mxu0
    %1410 = vdwg.mxu0
    %1411 = vrot.lane.b32.xlu0 %v996, 64
    %v1412 = vpop.permute.xlu0 %1411
    %v1415 = vsel %vm1224, %v1315, 0
    %1417 = vmatprep.subr.bf16.mxu0 0
    %1418 = vmatpush1.bf16.msra.mxu0 %v1412
    %1419 = vmatprep.subr.bf16.mxu0 0
    %1420 = vmatpush1.bf16.msra.mxu0 0
    %1421 = vmatprep.subr.bf16.mxu0 0
    %1422 = vmatpush1.bf16.msra.mxu0 0
    %1423 = vmatprep.subr.bf16.mxu0 0
    %1424 = vmatpush1.bf16.msra.mxu0 0
    %1425 = vmatprep.subr.bf16.mxu0 0
    %1426 = vmatpush1.bf16.msra.mxu0 0
    %1427 = vmatprep.subr.bf16.mxu0 0
    %1428 = vmatpush1.bf16.msra.mxu0 0
    %1429 = vmatprep.subr.bf16.mxu0 0
    %1430 = vmatpush1.bf16.msra.mxu0 0
    %1431 = vmatprep.subr.bf16.mxu0 0
    %1432 = vmatpush1.bf16.msra.mxu0 0
    %1433 = vmatprep.subr.bf16.mxu0 0
    %1434 = vmatpush1.bf16.msra.mxu0 0
    %1435 = vmatprep.subr.bf16.mxu0 0
    %1436 = vmatpush1.bf16.msra.mxu0 0
    %1437 = vmatprep.subr.bf16.mxu0 0
    %1438 = vmatpush1.bf16.msra.mxu0 0
    %1439 = vmatprep.subr.bf16.mxu0 0
    %1440 = vmatpush1.bf16.msra.mxu0 0
    %1441 = vmatprep.subr.bf16.mxu0 0
    %1442 = vmatpush1.bf16.msra.mxu0 0
    %1443 = vmatprep.subr.bf16.mxu0 0
    %1444 = vmatpush1.bf16.msra.mxu0 0
    %1445 = vmatprep.subr.bf16.mxu0 0
    %1446 = vmatpush1.bf16.msra.mxu0 0
    %1447 = vmatprep.subr.bf16.mxu0 0
    %1448 = vmatpush1.bf16.msra.mxu0 0
    %1449 = vmatprep.mubr.bf16.mxu0 0
    %1450 = vmatmul.mubr.bf16.gmra.mrb[0].mxu0 %v1415
    %v1451 = vpop.f32.mrb[0].mxu0
    %v1452 = vadd.f32 0.0, %v1451
    %v1453 = vpop.f32.mrb[0].mxu0
    %v1454 = vpop.f32.mrb[0].mxu0
    %v1455 = vadd.f32 0.0, %v1454
    %v1456 = vpop.f32.mrb[0].mxu0
    %1457 = vdwg.mxu0
    %1458 = vrot.lane.b32.xlu0 %v998, 64
    %v1459 = vpop.permute.xlu0 %1458
    %v1462 = vsel %vm1224, %v1316, 0
    %1464 = vmatprep.subr.bf16.mxu0 0
    %1465 = vmatpush1.bf16.msra.mxu0 %v1459
    %1466 = vmatprep.subr.bf16.mxu0 0
    %1467 = vmatpush1.bf16.msra.mxu0 0
    %1468 = vmatprep.subr.bf16.mxu0 0
    %1469 = vmatpush1.bf16.msra.mxu0 0
    %1470 = vmatprep.subr.bf16.mxu0 0
    %1471 = vmatpush1.bf16.msra.mxu0 0
    %1472 = vmatprep.subr.bf16.mxu0 0
    %1473 = vmatpush1.bf16.msra.mxu0 0
    %1474 = vmatprep.subr.bf16.mxu0 0
    %1475 = vmatpush1.bf16.msra.mxu0 0
    %1476 = vmatprep.subr.bf16.mxu0 0
    %1477 = vmatpush1.bf16.msra.mxu0 0
    %1478 = vmatprep.subr.bf16.mxu0 0
    %1479 = vmatpush1.bf16.msra.mxu0 0
    %1480 = vmatprep.subr.bf16.mxu0 0
    %1481 = vmatpush1.bf16.msra.mxu0 0
    %1482 = vmatprep.subr.bf16.mxu0 0
    %1483 = vmatpush1.bf16.msra.mxu0 0
    %1484 = vmatprep.subr.bf16.mxu0 0
    %1485 = vmatpush1.bf16.msra.mxu0 0
    %1486 = vmatprep.subr.bf16.mxu0 0
    %1487 = vmatpush1.bf16.msra.mxu0 0
    %1488 = vmatprep.subr.bf16.mxu0 0
    %1489 = vmatpush1.bf16.msra.mxu0 0
    %1490 = vmatprep.subr.bf16.mxu0 0
    %1491 = vmatpush1.bf16.msra.mxu0 0
    %1492 = vmatprep.subr.bf16.mxu0 0
    %1493 = vmatpush1.bf16.msra.mxu0 0
    %1494 = vmatprep.subr.bf16.mxu0 0
    %1495 = vmatpush1.bf16.msra.mxu0 0
    %1496 = vmatprep.mubr.bf16.mxu0 0
    %1497 = vmatmul.mubr.bf16.gmra.mrb[0].mxu0 %v1462
    %v1498 = vpop.f32.mrb[0].mxu0
    %v1499 = vadd.f32 0.0, %v1498
    %v1500 = vpop.f32.mrb[0].mxu0
    %v1501 = vpop.f32.mrb[0].mxu0
    %v1502 = vadd.f32 0.0, %v1501
    %v1503 = vpop.f32.mrb[0].mxu0
    %1504 = vdwg.mxu0
    %1507 = vrot.lane.b32.xlu0 %v1405, 8
    %v1508 = vpop.permute.xlu0 %1507
    %1509 = vrot.lane.b32.xlu0 %v1408, 8
    %v1510 = vpop.permute.xlu0 %1509
    %1515 = vrot.lane.b32.xlu0 %v1452, 16
    %v1516 = vpop.permute.xlu0 %1515
    %1517 = vrot.lane.b32.xlu0 %v1455, 16
    %v1518 = vpop.permute.xlu0 %1517
    %1523 = vrot.lane.b32.xlu0 %v1499, 24
    %v1524 = vpop.permute.xlu0 %1523
    %1525 = vrot.lane.b32.xlu0 %v1502, 24
    %v1526 = vpop.permute.xlu0 %1525
    %v1529 = vsel %vm1001, %v1358, %v1508
    %v1530 = vsel %vm1001, %v1361, %v1510
    %v1531 = vsel %vm1224, %v1529, %v1516
    %v1532 = vsel %vm1224, %v1530, %v1518
    %vm1533 = vcmask 195584
    %v1534 = vsel %vm1533, %v1531, %v1524
    %v1535 = vsel %vm1533, %v1532, %v1526
    %s1536 = scalar_lea.vmem [#allocation5], 1
    %v1537 = vld [vmem:[%s1536] sm:$0x1]
    %v1538 = vsub.f32 1.0, %v1537
    %v1539 = vmul.f32 %v1538, -1e+30
    %1541 = vrot.lane.b32.xlu0 %v988, 120
    %v1542 = vpop.permute.xlu0 %1541
    %1543 = vrot.lane.b32.xlu0 %v988, 112
    %v1544 = vpop.permute.xlu0 %1543
    %1545 = vrot.lane.b32.xlu0 %v988, 104
    %v1546 = vpop.permute.xlu0 %1545
    %1547 = vrot.lane.b32.xlu0 %v988, 96
    %v1548 = vpop.permute.xlu0 %1547
    %v1550 = vsel %vm1001, %v988, 0
    %v1553 = vsel %vm1001, %v1548, 0
    %1555 = vmatprep.subr.bf16.mxu0 0
    %1556 = vmatpush1.bf16.xpose.msra.mxu0 %v1553
    %1557 = vmatprep.subr.bf16.mxu0 0
    %1558 = vmatpush1.bf16.xpose.msra.mxu0 0
    %1559 = vmatprep.subr.bf16.mxu0 0
    %1560 = vmatpush1.bf16.xpose.msra.mxu0 0
    %1561 = vmatprep.subr.bf16.mxu0 0
    %1562 = vmatpush1.bf16.xpose.msra.mxu0 0
    %1563 = vmatprep.subr.bf16.mxu0 0
    %1564 = vmatpush1.bf16.xpose.msra.mxu0 0
    %1565 = vmatprep.subr.bf16.mxu0 0
    %1566 = vmatpush1.bf16.xpose.msra.mxu0 0
    %1567 = vmatprep.subr.bf16.mxu0 0
    %1568 = vmatpush1.bf16.xpose.msra.mxu0 0
    %1569 = vmatprep.subr.bf16.mxu0 0
    %1570 = vmatpush1.bf16.xpose.msra.mxu0 0
    %1571 = vmatprep.subr.bf16.mxu0 0
    %1572 = vmatpush1.bf16.xpose.msra.mxu0 0
    %1573 = vmatprep.subr.bf16.mxu0 0
    %1574 = vmatpush1.bf16.xpose.msra.mxu0 0
    %1575 = vmatprep.subr.bf16.mxu0 0
    %1576 = vmatpush1.bf16.xpose.msra.mxu0 0
    %1577 = vmatprep.subr.bf16.mxu0 0
    %1578 = vmatpush1.bf16.xpose.msra.mxu0 0
    %1579 = vmatprep.subr.bf16.mxu0 0
    %1580 = vmatpush1.bf16.xpose.msra.mxu0 0
    %1581 = vmatprep.subr.bf16.mxu0 0
    %1582 = vmatpush1.bf16.xpose.msra.mxu0 0
    %1583 = vmatprep.subr.bf16.mxu0 0
    %1584 = vmatpush1.bf16.xpose.msra.mxu0 0
    %1585 = vmatprep.subr.bf16.mxu0 0
    %1586 = vmatpush1.bf16.xpose.msra.mxu0 0
    %1587 = vmatprep.mubr.bf16.mxu0 0
    %1588 = vmatmul.mubr.bf16.gmra.mrb[0].mxu0 %v1550
    %v1589 = vpop.f32.mrb[0].mxu0
    %v1590 = vadd.f32 0.0, %v1589
    %v1591 = vpop.f32.mrb[0].mxu0
    %v1592 = vpop.f32.mrb[0].mxu0
    %v1593 = vadd.f32 0.0, %v1592
    %v1594 = vpop.f32.mrb[0].mxu0
    %1595 = vdwg.mxu0
    %1596 = vrot.lane.b32.xlu0 %v1542, 96
    %v1597 = vpop.permute.xlu0 %1596
    %v1599 = vsel %vm1001, %v1542, 0
    %v1602 = vsel %vm1001, %v1597, 0
    %1604 = vmatprep.subr.bf16.mxu0 0
    %1605 = vmatpush1.bf16.xpose.msra.mxu0 %v1602
    %1606 = vmatprep.subr.bf16.mxu0 0
    %1607 = vmatpush1.bf16.xpose.msra.mxu0 0
    %1608 = vmatprep.subr.bf16.mxu0 0
    %1609 = vmatpush1.bf16.xpose.msra.mxu0 0
    %1610 = vmatprep.subr.bf16.mxu0 0
    %1611 = vmatpush1.bf16.xpose.msra.mxu0 0
    %1612 = vmatprep.subr.bf16.mxu0 0
    %1613 = vmatpush1.bf16.xpose.msra.mxu0 0
    %1614 = vmatprep.subr.bf16.mxu0 0
    %1615 = vmatpush1.bf16.xpose.msra.mxu0 0
    %1616 = vmatprep.subr.bf16.mxu0 0
    %1617 = vmatpush1.bf16.xpose.msra.mxu0 0
    %1618 = vmatprep.subr.bf16.mxu0 0
    %1619 = vmatpush1.bf16.xpose.msra.mxu0 0
    %1620 = vmatprep.subr.bf16.mxu0 0
    %1621 = vmatpush1.bf16.xpose.msra.mxu0 0
    %1622 = vmatprep.subr.bf16.mxu0 0
    %1623 = vmatpush1.bf16.xpose.msra.mxu0 0
    %1624 = vmatprep.subr.bf16.mxu0 0
    %1625 = vmatpush1.bf16.xpose.msra.mxu0 0
    %1626 = vmatprep.subr.bf16.mxu0 0
    %1627 = vmatpush1.bf16.xpose.msra.mxu0 0
    %1628 = vmatprep.subr.bf16.mxu0 0
    %1629 = vmatpush1.bf16.xpose.msra.mxu0 0
    %1630 = vmatprep.subr.bf16.mxu0 0
    %1631 = vmatpush1.bf16.xpose.msra.mxu0 0
    %1632 = vmatprep.subr.bf16.mxu0 0
    %1633 = vmatpush1.bf16.xpose.msra.mxu0 0
    %1634 = vmatprep.subr.bf16.mxu0 0
    %1635 = vmatpush1.bf16.xpose.msra.mxu0 0
    %1636 = vmatprep.mubr.bf16.mxu0 0
    %1637 = vmatmul.mubr.bf16.gmra.mrb[0].mxu0 %v1599
    %v1638 = vpop.f32.mrb[0].mxu0
    %v1639 = vadd.f32 0.0, %v1638
    %v1640 = vpop.f32.mrb[0].mxu0
    %v1641 = vpop.f32.mrb[0].mxu0
    %v1642 = vadd.f32 0.0, %v1641
    %v1643 = vpop.f32.mrb[0].mxu0
    %1644 = vdwg.mxu0
    %1645 = vrot.lane.b32.xlu0 %v1544, 96
    %v1646 = vpop.permute.xlu0 %1645
    %v1648 = vsel %vm1001, %v1544, 0
    %v1651 = vsel %vm1001, %v1646, 0
    %1653 = vmatprep.subr.bf16.mxu0 0
    %1654 = vmatpush1.bf16.xpose.msra.mxu0 %v1651
    %1655 = vmatprep.subr.bf16.mxu0 0
    %1656 = vmatpush1.bf16.xpose.msra.mxu0 0
    %1657 = vmatprep.subr.bf16.mxu0 0
    %1658 = vmatpush1.bf16.xpose.msra.mxu0 0
    %1659 = vmatprep.subr.bf16.mxu0 0
    %1660 = vmatpush1.bf16.xpose.msra.mxu0 0
    %1661 = vmatprep.subr.bf16.mxu0 0
    %1662 = vmatpush1.bf16.xpose.msra.mxu0 0
    %1663 = vmatprep.subr.bf16.mxu0 0
    %1664 = vmatpush1.bf16.xpose.msra.mxu0 0
    %1665 = vmatprep.subr.bf16.mxu0 0
    %1666 = vmatpush1.bf16.xpose.msra.mxu0 0
    %1667 = vmatprep.subr.bf16.mxu0 0
    %1668 = vmatpush1.bf16.xpose.msra.mxu0 0
    %1669 = vmatprep.subr.bf16.mxu0 0
    %1670 = vmatpush1.bf16.xpose.msra.mxu0 0
    %1671 = vmatprep.subr.bf16.mxu0 0
    %1672 = vmatpush1.bf16.xpose.msra.mxu0 0
    %1673 = vmatprep.subr.bf16.mxu0 0
    %1674 = vmatpush1.bf16.xpose.msra.mxu0 0
    %1675 = vmatprep.subr.bf16.mxu0 0
    %1676 = vmatpush1.bf16.xpose.msra.mxu0 0
    %1677 = vmatprep.subr.bf16.mxu0 0
    %1678 = vmatpush1.bf16.xpose.msra.mxu0 0
    %1679 = vmatprep.subr.bf16.mxu0 0
    %1680 = vmatpush1.bf16.xpose.msra.mxu0 0
    %1681 = vmatprep.subr.bf16.mxu0 0
    %1682 = vmatpush1.bf16.xpose.msra.mxu0 0
    %1683 = vmatprep.subr.bf16.mxu0 0
    %1684 = vmatpush1.bf16.xpose.msra.mxu0 0
    %1685 = vmatprep.mubr.bf16.mxu0 0
    %1686 = vmatmul.mubr.bf16.gmra.mrb[0].mxu0 %v1648
    %v1687 = vpop.f32.mrb[0].mxu0
    %v1688 = vadd.f32 0.0, %v1687
    %v1689 = vpop.f32.mrb[0].mxu0
    %v1690 = vpop.f32.mrb[0].mxu0
    %v1691 = vadd.f32 0.0, %v1690
    %v1692 = vpop.f32.mrb[0].mxu0
    %1693 = vdwg.mxu0
    %1694 = vrot.lane.b32.xlu0 %v1546, 96
    %v1695 = vpop.permute.xlu0 %1694
    %v1697 = vsel %vm1001, %v1546, 0
    %v1700 = vsel %vm1001, %v1695, 0
    %1702 = vmatprep.subr.bf16.mxu0 0
    %1703 = vmatpush1.bf16.xpose.msra.mxu0 %v1700
    %1704 = vmatprep.subr.bf16.mxu0 0
    %1705 = vmatpush1.bf16.xpose.msra.mxu0 0
    %1706 = vmatprep.subr.bf16.mxu0 0
    %1707 = vmatpush1.bf16.xpose.msra.mxu0 0
    %1708 = vmatprep.subr.bf16.mxu0 0
    %1709 = vmatpush1.bf16.xpose.msra.mxu0 0
    %1710 = vmatprep.subr.bf16.mxu0 0
    %1711 = vmatpush1.bf16.xpose.msra.mxu0 0
    %1712 = vmatprep.subr.bf16.mxu0 0
    %1713 = vmatpush1.bf16.xpose.msra.mxu0 0
    %1714 = vmatprep.subr.bf16.mxu0 0
    %1715 = vmatpush1.bf16.xpose.msra.mxu0 0
    %1716 = vmatprep.subr.bf16.mxu0 0
    %1717 = vmatpush1.bf16.xpose.msra.mxu0 0
    %1718 = vmatprep.subr.bf16.mxu0 0
    %1719 = vmatpush1.bf16.xpose.msra.mxu0 0
    %1720 = vmatprep.subr.bf16.mxu0 0
    %1721 = vmatpush1.bf16.xpose.msra.mxu0 0
    %1722 = vmatprep.subr.bf16.mxu0 0
    %1723 = vmatpush1.bf16.xpose.msra.mxu0 0
    %1724 = vmatprep.subr.bf16.mxu0 0
    %1725 = vmatpush1.bf16.xpose.msra.mxu0 0
    %1726 = vmatprep.subr.bf16.mxu0 0
    %1727 = vmatpush1.bf16.xpose.msra.mxu0 0
    %1728 = vmatprep.subr.bf16.mxu0 0
    %1729 = vmatpush1.bf16.xpose.msra.mxu0 0
    %1730 = vmatprep.subr.bf16.mxu0 0
    %1731 = vmatpush1.bf16.xpose.msra.mxu0 0
    %1732 = vmatprep.subr.bf16.mxu0 0
    %1733 = vmatpush1.bf16.xpose.msra.mxu0 0
    %1734 = vmatprep.mubr.bf16.mxu0 0
    %1735 = vmatmul.mubr.bf16.gmra.mrb[0].mxu0 %v1697
    %v1736 = vpop.f32.mrb[0].mxu0
    %v1737 = vadd.f32 0.0, %v1736
    %v1738 = vpop.f32.mrb[0].mxu0
    %v1739 = vpop.f32.mrb[0].mxu0
    %v1740 = vadd.f32 0.0, %v1739
    %v1741 = vpop.f32.mrb[0].mxu0
    %1742 = vdwg.mxu0
    %v1744 = vlaneseq
    %v1745 = vshrl.u32 %v1744, 7
    %v1746 = vsub.s32 0, %v1745
    %v1747 = vrot.slane %v1537, %v1746
    %v1749 = vmul.f32 %v1590, %v1747
    %v1750 = vmul.f32 %v1593, %v1747
    %v1751 = vmul.f32 %v1639, %v1747
    %v1752 = vmul.f32 %v1642, %v1747
    %v1753 = vmul.f32 %v1688, %v1747
    %v1754 = vmul.f32 %v1691, %v1747
    %v1755 = vmul.f32 %v1737, %v1747
    %v1756 = vmul.f32 %v1740, %v1747
    %v1758 = vlaneseq
    %v1759 = vshrl.u32 %v1758, 7
    %v1760 = vsub.s32 0, %v1759
    %v1761 = vrot.slane %v1539, %v1760
    %v1763 = vadd.f32 %v1749, %v1761
    %v1764 = vadd.f32 %v1750, %v1761
    %v1765 = vadd.f32 %v1751, %v1761
    %v1766 = vadd.f32 %v1752, %v1761
    %v1767 = vadd.f32 %v1753, %v1761
    %v1768 = vadd.f32 %v1754, %v1761
    %v1769 = vadd.f32 %v1755, %v1761
    %v1770 = vadd.f32 %v1756, %v1761
    %v1771 = vsel %vm1224, %v1763, -inf
    %1772 = vmax.xlane.f32.xlu0 %v1771
    %v1773 = vpop.xlane.xlu0 %1772
    %v1774 = vsel %vm1224, %v1764, -inf
    %1775 = vmax.xlane.f32.xlu0 %v1774
    %v1776 = vpop.xlane.xlu0 %1775
    %v1777 = vsel %vm1224, %v1765, -inf
    %1778 = vmax.xlane.f32.xlu0 %v1777
    %v1779 = vpop.xlane.xlu0 %1778
    %v1780 = vsel %vm1224, %v1766, -inf
    %1781 = vmax.xlane.f32.xlu0 %v1780
    %v1782 = vpop.xlane.xlu0 %1781
    %v1783 = vsel %vm1224, %v1767, -inf
    %1784 = vmax.xlane.f32.xlu0 %v1783
    %v1785 = vpop.xlane.xlu0 %1784
    %v1786 = vsel %vm1224, %v1768, -inf
    %1787 = vmax.xlane.f32.xlu0 %v1786
    %v1788 = vpop.xlane.xlu0 %1787
    %v1789 = vsel %vm1224, %v1769, -inf
    %1790 = vmax.xlane.f32.xlu0 %v1789
    %v1791 = vpop.xlane.xlu0 %1790
    %v1792 = vsel %vm1224, %v1770, -inf
    %1793 = vmax.xlane.f32.xlu0 %v1792
    %v1794 = vpop.xlane.xlu0 %1793
    %v1795 = vsub.f32 %v1763, %v1773
    %v1796 = vsub.f32 %v1764, %v1776
    %v1797 = vsub.f32 %v1765, %v1779
    %v1798 = vsub.f32 %v1766, %v1782
    %v1799 = vsub.f32 %v1767, %v1785
    %v1800 = vsub.f32 %v1768, %v1788
    %v1801 = vsub.f32 %v1769, %v1791
    %v1802 = vsub.f32 %v1770, %v1794
    %v1803 = vmul.f32 %v1795, 1.442695
    %v1804 = vpow.pop %v1803
    %v1805 = vmul.f32 %v1796, 1.442695
    %v1806 = vpow.pop %v1805
    %v1807 = vmul.f32 %v1797, 1.442695
    %v1808 = vpow.pop %v1807
    %v1809 = vmul.f32 %v1798, 1.442695
    %v1810 = vpow.pop %v1809
    %v1811 = vmul.f32 %v1799, 1.442695
    %v1812 = vpow.pop %v1811
    %v1813 = vmul.f32 %v1800, 1.442695
    %v1814 = vpow.pop %v1813
    %v1815 = vmul.f32 %v1801, 1.442695
    %v1816 = vpow.pop %v1815
    %v1817 = vmul.f32 %v1802, 1.442695
    %v1818 = vpow.pop %v1817
    %v1819 = vsel %vm1224, %v1804, 0.0
    %1820 = vadd.xlane.f32.xlu0 %v1819
    %v1821 = vpop.xlane.xlu0 %1820
    %v1822 = vsel %vm1224, %v1806, 0.0
    %1823 = vadd.xlane.f32.xlu0 %v1822
    %v1824 = vpop.xlane.xlu0 %1823
    %v1825 = vsel %vm1224, %v1808, 0.0
    %1826 = vadd.xlane.f32.xlu0 %v1825
    %v1827 = vpop.xlane.xlu0 %1826
    %v1828 = vsel %vm1224, %v1810, 0.0
    %1829 = vadd.xlane.f32.xlu0 %v1828
    %v1830 = vpop.xlane.xlu0 %1829
    %v1831 = vsel %vm1224, %v1812, 0.0
    %1832 = vadd.xlane.f32.xlu0 %v1831
    %v1833 = vpop.xlane.xlu0 %1832
    %v1834 = vsel %vm1224, %v1814, 0.0
    %1835 = vadd.xlane.f32.xlu0 %v1834
    %v1836 = vpop.xlane.xlu0 %1835
    %v1837 = vsel %vm1224, %v1816, 0.0
    %1838 = vadd.xlane.f32.xlu0 %v1837
    %v1839 = vpop.xlane.xlu0 %1838
    %v1840 = vsel %vm1224, %v1818, 0.0
    %1841 = vadd.xlane.f32.xlu0 %v1840
    %v1842 = vpop.xlane.xlu0 %1841
    %v1843 = vrcp.pop %v1821
    %v1844 = vrcp.pop %v1824
    %v1845 = vrcp.pop %v1827
    %v1846 = vrcp.pop %v1830
    %v1847 = vrcp.pop %v1833
    %v1848 = vrcp.pop %v1836
    %v1849 = vrcp.pop %v1839
    %v1850 = vrcp.pop %v1842
    %v1851 = vmul.f32 %v1804, %v1843
    %v1852 = vmul.f32 %v1806, %v1844
    %v1853 = vmul.f32 %v1808, %v1845
    %v1854 = vmul.f32 %v1810, %v1846
    %v1855 = vmul.f32 %v1812, %v1847
    %v1856 = vmul.f32 %v1814, %v1848
    %v1857 = vmul.f32 %v1816, %v1849
    %v1858 = vmul.f32 %v1818, %v1850
    %v1859 = vpack.c.bf16 %v1852, %v1851
    %v1860 = vpack.c.bf16 %v1854, %v1853
    %v1861 = vpack.c.bf16 %v1856, %v1855
    %v1862 = vpack.c.bf16 %v1858, %v1857
    %1863 = vrot.lane.b32.xlu0 %v988, 64
    %v1864 = vpop.permute.xlu0 %1863
    %v1867 = vsel %vm1224, %v1859, 0
    %1869 = vmatprep.subr.bf16.mxu0 0
    %1870 = vmatpush1.bf16.msra.mxu0 %v1864
    %1871 = vmatprep.subr.bf16.mxu0 0
    %1872 = vmatpush1.bf16.msra.mxu0 0
    %1873 = vmatprep.subr.bf16.mxu0 0
    %1874 = vmatpush1.bf16.msra.mxu0 0
    %1875 = vmatprep.subr.bf16.mxu0 0
    %1876 = vmatpush1.bf16.msra.mxu0 0
    %1877 = vmatprep.subr.bf16.mxu0 0
    %1878 = vmatpush1.bf16.msra.mxu0 0
    %1879 = vmatprep.subr.bf16.mxu0 0
    %1880 = vmatpush1.bf16.msra.mxu0 0
    %1881 = vmatprep.subr.bf16.mxu0 0
    %1882 = vmatpush1.bf16.msra.mxu0 0
    %1883 = vmatprep.subr.bf16.mxu0 0
    %1884 = vmatpush1.bf16.msra.mxu0 0
    %1885 = vmatprep.subr.bf16.mxu0 0
    %1886 = vmatpush1.bf16.msra.mxu0 0
    %1887 = vmatprep.subr.bf16.mxu0 0
    %1888 = vmatpush1.bf16.msra.mxu0 0
    %1889 = vmatprep.subr.bf16.mxu0 0
    %1890 = vmatpush1.bf16.msra.mxu0 0
    %1891 = vmatprep.subr.bf16.mxu0 0
    %1892 = vmatpush1.bf16.msra.mxu0 0
    %1893 = vmatprep.subr.bf16.mxu0 0
    %1894 = vmatpush1.bf16.msra.mxu0 0
    %1895 = vmatprep.subr.bf16.mxu0 0
    %1896 = vmatpush1.bf16.msra.mxu0 0
    %1897 = vmatprep.subr.bf16.mxu0 0
    %1898 = vmatpush1.bf16.msra.mxu0 0
    %1899 = vmatprep.subr.bf16.mxu0 0
    %1900 = vmatpush1.bf16.msra.mxu0 0
    %1901 = vmatprep.mubr.bf16.mxu0 0
    %1902 = vmatmul.mubr.bf16.gmra.mrb[0].mxu0 %v1867
    %v1903 = vpop.f32.mrb[0].mxu0
    %v1904 = vadd.f32 0.0, %v1903
    %v1905 = vpop.f32.mrb[0].mxu0
    %v1906 = vpop.f32.mrb[0].mxu0
    %v1907 = vadd.f32 0.0, %v1906
    %v1908 = vpop.f32.mrb[0].mxu0
    %1909 = vdwg.mxu0
    %1910 = vrot.lane.b32.xlu0 %v1542, 64
    %v1911 = vpop.permute.xlu0 %1910
    %v1914 = vsel %vm1224, %v1860, 0
    %1916 = vmatprep.subr.bf16.mxu0 0
    %1917 = vmatpush1.bf16.msra.mxu0 %v1911
    %1918 = vmatprep.subr.bf16.mxu0 0
    %1919 = vmatpush1.bf16.msra.mxu0 0
    %1920 = vmatprep.subr.bf16.mxu0 0
    %1921 = vmatpush1.bf16.msra.mxu0 0
    %1922 = vmatprep.subr.bf16.mxu0 0
    %1923 = vmatpush1.bf16.msra.mxu0 0
    %1924 = vmatprep.subr.bf16.mxu0 0
    %1925 = vmatpush1.bf16.msra.mxu0 0
    %1926 = vmatprep.subr.bf16.mxu0 0
    %1927 = vmatpush1.bf16.msra.mxu0 0
    %1928 = vmatprep.subr.bf16.mxu0 0
    %1929 = vmatpush1.bf16.msra.mxu0 0
    %1930 = vmatprep.subr.bf16.mxu0 0
    %1931 = vmatpush1.bf16.msra.mxu0 0
    %1932 = vmatprep.subr.bf16.mxu0 0
    %1933 = vmatpush1.bf16.msra.mxu0 0
    %1934 = vmatprep.subr.bf16.mxu0 0
    %1935 = vmatpush1.bf16.msra.mxu0 0
    %1936 = vmatprep.subr.bf16.mxu0 0
    %1937 = vmatpush1.bf16.msra.mxu0 0
    %1938 = vmatprep.subr.bf16.mxu0 0
    %1939 = vmatpush1.bf16.msra.mxu0 0
    %1940 = vmatprep.subr.bf16.mxu0 0
    %1941 = vmatpush1.bf16.msra.mxu0 0
    %1942 = vmatprep.subr.bf16.mxu0 0
    %1943 = vmatpush1.bf16.msra.mxu0 0
    %1944 = vmatprep.subr.bf16.mxu0 0
    %1945 = vmatpush1.bf16.msra.mxu0 0
    %1946 = vmatprep.subr.bf16.mxu0 0
    %1947 = vmatpush1.bf16.msra.mxu0 0
    %1948 = vmatprep.mubr.bf16.mxu0 0
    %1949 = vmatmul.mubr.bf16.gmra.mrb[0].mxu0 %v1914
    %v1950 = vpop.f32.mrb[0].mxu0
    %v1951 = vadd.f32 0.0, %v1950
    %v1952 = vpop.f32.mrb[0].mxu0
    %v1953 = vpop.f32.mrb[0].mxu0
    %v1954 = vadd.f32 0.0, %v1953
    %v1955 = vpop.f32.mrb[0].mxu0
    %1956 = vdwg.mxu0
    %1957 = vrot.lane.b32.xlu0 %v1544, 64
    %v1958 = vpop.permute.xlu0 %1957
    %v1961 = vsel %vm1224, %v1861, 0
    %1963 = vmatprep.subr.bf16.mxu0 0
    %1964 = vmatpush1.bf16.msra.mxu0 %v1958
    %1965 = vmatprep.subr.bf16.mxu0 0
    %1966 = vmatpush1.bf16.msra.mxu0 0
    %1967 = vmatprep.subr.bf16.mxu0 0
    %1968 = vmatpush1.bf16.msra.mxu0 0
    %1969 = vmatprep.subr.bf16.mxu0 0
    %1970 = vmatpush1.bf16.msra.mxu0 0
    %1971 = vmatprep.subr.bf16.mxu0 0
    %1972 = vmatpush1.bf16.msra.mxu0 0
    %1973 = vmatprep.subr.bf16.mxu0 0
    %1974 = vmatpush1.bf16.msra.mxu0 0
    %1975 = vmatprep.subr.bf16.mxu0 0
    %1976 = vmatpush1.bf16.msra.mxu0 0
    %1977 = vmatprep.subr.bf16.mxu0 0
    %1978 = vmatpush1.bf16.msra.mxu0 0
    %1979 = vmatprep.subr.bf16.mxu0 0
    %1980 = vmatpush1.bf16.msra.mxu0 0
    %1981 = vmatprep.subr.bf16.mxu0 0
    %1982 = vmatpush1.bf16.msra.mxu0 0
    %1983 = vmatprep.subr.bf16.mxu0 0
    %1984 = vmatpush1.bf16.msra.mxu0 0
    %1985 = vmatprep.subr.bf16.mxu0 0
    %1986 = vmatpush1.bf16.msra.mxu0 0
    %1987 = vmatprep.subr.bf16.mxu0 0
    %1988 = vmatpush1.bf16.msra.mxu0 0
    %1989 = vmatprep.subr.bf16.mxu0 0
    %1990 = vmatpush1.bf16.msra.mxu0 0
    %1991 = vmatprep.subr.bf16.mxu0 0
    %1992 = vmatpush1.bf16.msra.mxu0 0
    %1993 = vmatprep.subr.bf16.mxu0 0
    %1994 = vmatpush1.bf16.msra.mxu0 0
    %1995 = vmatprep.mubr.bf16.mxu0 0
    %1996 = vmatmul.mubr.bf16.gmra.mrb[0].mxu0 %v1961
    %v1997 = vpop.f32.mrb[0].mxu0
    %v1998 = vadd.f32 0.0, %v1997
    %v1999 = vpop.f32.mrb[0].mxu0
    %v2000 = vpop.f32.mrb[0].mxu0
    %v2001 = vadd.f32 0.0, %v2000
    %v2002 = vpop.f32.mrb[0].mxu0
    %2003 = vdwg.mxu0
    %2004 = vrot.lane.b32.xlu0 %v1546, 64
    %v2005 = vpop.permute.xlu0 %2004
    %v2008 = vsel %vm1224, %v1862, 0
    %2010 = vmatprep.subr.bf16.mxu0 0
    %2011 = vmatpush1.bf16.msra.mxu0 %v2005
    %2012 = vmatprep.subr.bf16.mxu0 0
    %2013 = vmatpush1.bf16.msra.mxu0 0
    %2014 = vmatprep.subr.bf16.mxu0 0
    %2015 = vmatpush1.bf16.msra.mxu0 0
    %2016 = vmatprep.subr.bf16.mxu0 0
    %2017 = vmatpush1.bf16.msra.mxu0 0
    %2018 = vmatprep.subr.bf16.mxu0 0
    %2019 = vmatpush1.bf16.msra.mxu0 0
    %2020 = vmatprep.subr.bf16.mxu0 0
    %2021 = vmatpush1.bf16.msra.mxu0 0
    %2022 = vmatprep.subr.bf16.mxu0 0
    %2023 = vmatpush1.bf16.msra.mxu0 0
    %2024 = vmatprep.subr.bf16.mxu0 0
    %2025 = vmatpush1.bf16.msra.mxu0 0
    %2026 = vmatprep.subr.bf16.mxu0 0
    %2027 = vmatpush1.bf16.msra.mxu0 0
    %2028 = vmatprep.subr.bf16.mxu0 0
    %2029 = vmatpush1.bf16.msra.mxu0 0
    %2030 = vmatprep.subr.bf16.mxu0 0
    %2031 = vmatpush1.bf16.msra.mxu0 0
    %2032 = vmatprep.subr.bf16.mxu0 0
    %2033 = vmatpush1.bf16.msra.mxu0 0
    %2034 = vmatprep.subr.bf16.mxu0 0
    %2035 = vmatpush1.bf16.msra.mxu0 0
    %2036 = vmatprep.subr.bf16.mxu0 0
    %2037 = vmatpush1.bf16.msra.mxu0 0
    %2038 = vmatprep.subr.bf16.mxu0 0
    %2039 = vmatpush1.bf16.msra.mxu0 0
    %2040 = vmatprep.subr.bf16.mxu0 0
    %2041 = vmatpush1.bf16.msra.mxu0 0
    %2042 = vmatprep.mubr.bf16.mxu0 0
    %2043 = vmatmul.mubr.bf16.gmra.mrb[0].mxu0 %v2008
    %v2044 = vpop.f32.mrb[0].mxu0
    %v2045 = vadd.f32 0.0, %v2044
    %v2046 = vpop.f32.mrb[0].mxu0
    %v2047 = vpop.f32.mrb[0].mxu0
    %v2048 = vadd.f32 0.0, %v2047
    %v2049 = vpop.f32.mrb[0].mxu0
    %2050 = vdwg.mxu0
    %2053 = vrot.lane.b32.xlu0 %v1951, 8
    %v2054 = vpop.permute.xlu0 %2053
    %2055 = vrot.lane.b32.xlu0 %v1954, 8
    %v2056 = vpop.permute.xlu0 %2055
    %2061 = vrot.lane.b32.xlu0 %v1998, 16
    %v2062 = vpop.permute.xlu0 %2061
    %2063 = vrot.lane.b32.xlu0 %v2001, 16
    %v2064 = vpop.permute.xlu0 %2063
    %2069 = vrot.lane.b32.xlu0 %v2045, 24
    %v2070 = vpop.permute.xlu0 %2069
    %2071 = vrot.lane.b32.xlu0 %v2048, 24
    %v2072 = vpop.permute.xlu0 %2071
    %v2075 = vsel %vm1001, %v1904, %v2054
    %v2076 = vsel %vm1001, %v1907, %v2056
    %v2077 = vsel %vm1224, %v2075, %v2062
    %v2078 = vsel %vm1224, %v2076, %v2064
    %v2079 = vsel %vm1533, %v2077, %v2070
    %v2080 = vsel %vm1533, %v2078, %v2072
    %v2081 = vadd.f32 %v1534, %v836
    %v2082 = vadd.f32 %v1535, %v837
    %v2083 = vadd.f32 %v2079, %v838
    %v2084 = vadd.f32 %v2080, %v839
    %v2085 = vld [vmem:[#allocation14] sm:$0x1]
    %v2086 = vld [vmem:[#allocation16] sm:$0x1]
    %v2087 = vsel %vm297, %v2081, 0.0
    %2088 = vadd.xlane.f32.xlu0 %v2087
    %v2089 = vpop.xlane.xlu0 %2088
    %v2090 = vsel %vm297, %v2082, 0.0
    %2091 = vadd.xlane.f32.xlu0 %v2090
    %v2092 = vpop.xlane.xlu0 %2091
    %v2093 = vsel %vm297, %v2083, 0.0
    %2094 = vadd.xlane.f32.xlu0 %v2093
    %v2095 = vpop.xlane.xlu0 %2094
    %v2096 = vsel %vm297, %v2084, 0.0
    %2097 = vadd.xlane.f32.xlu0 %v2096
    %v2098 = vpop.xlane.xlu0 %2097
    %v2099 = vmul.f32 %v2089, %v310
    %v2100 = vmul.f32 %v2092, %v310
    %v2101 = vmul.f32 %v2095, %v310
    %v2102 = vmul.f32 %v2098, %v310
    %v2103 = vsub.f32 %v2081, %v2099
    %v2104 = vsub.f32 %v2082, %v2100
    %v2105 = vsub.f32 %v2083, %v2101
    %v2106 = vsub.f32 %v2084, %v2102
    %v2107 = vmul.f32 %v2103, %v2103
    %v2108 = vmul.f32 %v2104, %v2104
    %v2109 = vmul.f32 %v2105, %v2105
    %v2110 = vmul.f32 %v2106, %v2106
    %v2111 = vsel %vm297, %v2107, 0.0
    %2112 = vadd.xlane.f32.xlu0 %v2111
    %v2113 = vpop.xlane.xlu0 %2112
    %v2114 = vsel %vm297, %v2108, 0.0
    %2115 = vadd.xlane.f32.xlu0 %v2114
    %v2116 = vpop.xlane.xlu0 %2115
    %v2117 = vsel %vm297, %v2109, 0.0
    %2118 = vadd.xlane.f32.xlu0 %v2117
    %v2119 = vpop.xlane.xlu0 %2118
    %v2120 = vsel %vm297, %v2110, 0.0
    %2121 = vadd.xlane.f32.xlu0 %v2120
    %v2122 = vpop.xlane.xlu0 %2121
    %v2123 = vmul.f32 %v2113, %v310
    %v2124 = vmul.f32 %v2116, %v310
    %v2125 = vmul.f32 %v2119, %v310
    %v2126 = vmul.f32 %v2122, %v310
    %v2127 = vadd.f32 %v2123, 1e-05
    %v2128 = vadd.f32 %v2124, 1e-05
    %v2129 = vadd.f32 %v2125, 1e-05
    %v2130 = vadd.f32 %v2126, 1e-05
    %v2131 = vrsqrt.pop %v2127
    %v2132 = vrsqrt.pop %v2128
    %v2133 = vrsqrt.pop %v2129
    %v2134 = vrsqrt.pop %v2130
    %v2135 = vmul.f32 %v2103, %v2131
    %v2136 = vmul.f32 %v2104, %v2132
    %v2137 = vmul.f32 %v2105, %v2133
    %v2138 = vmul.f32 %v2106, %v2134
    %v2140 = vlaneseq
    %v2141 = vshrl.u32 %v2140, 7
    %v2142 = vsub.s32 0, %v2141
    %v2143 = vrot.slane %v2085, %v2142
    %v2145 = vmul.f32 %v2135, %v2143
    %v2146 = vmul.f32 %v2136, %v2143
    %v2147 = vmul.f32 %v2137, %v2143
    %v2148 = vmul.f32 %v2138, %v2143
    %v2150 = vlaneseq
    %v2151 = vshrl.u32 %v2150, 7
    %v2152 = vsub.s32 0, %v2151
    %v2153 = vrot.slane %v2086, %v2152
    %v2155 = vadd.f32 %v2145, %v2153
    %v2156 = vadd.f32 %v2146, %v2153
    %v2157 = vadd.f32 %v2147, %v2153
    %v2158 = vadd.f32 %v2148, %v2153
    %v2159 = vpack.c.bf16 %v2156, %v2155
    %v2160 = vpack.c.bf16 %v2158, %v2157
    %v2161 = vld [vmem:[%s13] sm:$0xf]
    %v2162 = vld [vmem:[%s13 + $0x4] sm:$0xf]
    %v2163 = vld [vmem:[%s13 + $0x8] sm:$0xf]
    %v2164 = vld [vmem:[%s13 + $0xc] sm:$0xf]
    %v2165 = vld [vmem:[#allocation17] sm:$0x1]
    %v2167 = vlaneseq
    %v2168 = vshrl.u32 %v2167, 7
    %v2169 = vsub.s32 0, %v2168
    %v2170 = vrot.slane %v2165, %v2169
    %v2176 = vunpack.c.l.b16 %v2161
    %v2177 = vunpack.c.l.b16 %v2162
    %v2178 = vunpack.c.l.b16 %v2163
    %v2179 = vunpack.c.l.b16 %v2164
    %v2180 = vpack.c.b16 %v2177, %v2176
    %v2181 = vpack.c.b16 %v2179, %v2178
    %v2185 = vsel %vm297, %v2159, 0
    %v2188 = vsel %vm297, %v2160, 0
    %2190 = vmatprep.subr.bf16.mxu0 0
    %2191 = vmatpush1.bf16.msra.mxu0 %v2180
    %2192 = vmatprep.subr.bf16.mxu0 0
    %2193 = vmatpush1.bf16.msra.mxu0 %v2181
    %2194 = vmatprep.subr.bf16.mxu0 0
    %2195 = vmatpush1.bf16.msra.mxu0 0
    %2196 = vmatprep.subr.bf16.mxu0 0
    %2197 = vmatpush1.bf16.msra.mxu0 0
    %2198 = vmatprep.subr.bf16.mxu0 0
    %2199 = vmatpush1.bf16.msra.mxu0 0
    %2200 = vmatprep.subr.bf16.mxu0 0
    %2201 = vmatpush1.bf16.msra.mxu0 0
    %2202 = vmatprep.subr.bf16.mxu0 0
    %2203 = vmatpush1.bf16.msra.mxu0 0
    %2204 = vmatprep.subr.bf16.mxu0 0
    %2205 = vmatpush1.bf16.msra.mxu0 0
    %2206 = vmatprep.subr.bf16.mxu0 0
    %2207 = vmatpush1.bf16.msra.mxu0 0
    %2208 = vmatprep.subr.bf16.mxu0 0
    %2209 = vmatpush1.bf16.msra.mxu0 0
    %2210 = vmatprep.subr.bf16.mxu0 0
    %2211 = vmatpush1.bf16.msra.mxu0 0
    %2212 = vmatprep.subr.bf16.mxu0 0
    %2213 = vmatpush1.bf16.msra.mxu0 0
    %2214 = vmatprep.subr.bf16.mxu0 0
    %2215 = vmatpush1.bf16.msra.mxu0 0
    %2216 = vmatprep.subr.bf16.mxu0 0
    %2217 = vmatpush1.bf16.msra.mxu0 0
    %2218 = vmatprep.subr.bf16.mxu0 0
    %2219 = vmatpush1.bf16.msra.mxu0 0
    %2220 = vmatprep.subr.bf16.mxu0 0
    %2221 = vmatpush1.bf16.msra.mxu0 0
    %2222 = vmatprep.mubr.bf16.mxu0 0
    %2223 = vmatmul.mubr.bf16.gmra.mrb[0].mxu0 %v2185
    %v2224 = vpop.f32.mrb[0].mxu0
    %v2225 = vadd.f32 %v2170, %v2224
    %v2226 = vpop.f32.mrb[0].mxu0
    %v2227 = vpop.f32.mrb[0].mxu0
    %v2228 = vadd.f32 %v2170, %v2227
    %v2229 = vpop.f32.mrb[0].mxu0
    %2230 = vmatprep.mubr.bf16.mxu0 0
    %2231 = vmatmul.mubr.bf16.gmra.mrb[0].mxu0 %v2188
    %v2232 = vpop.f32.mrb[0].mxu0
    %v2233 = vadd.f32 %v2170, %v2232
    %v2234 = vpop.f32.mrb[0].mxu0
    %v2235 = vpop.f32.mrb[0].mxu0
    %v2236 = vadd.f32 %v2170, %v2235
    %v2237 = vpop.f32.mrb[0].mxu0
    %2238 = vdwg.mxu0
    %v2239 = vmax.f32 %v2225, 0.0
    %v2240 = vmax.f32 %v2228, 0.0
    %v2241 = vmax.f32 %v2233, 0.0
    %v2242 = vmax.f32 %v2236, 0.0
    %v2243 = vpack.c.bf16 %v2240, %v2239
    %v2244 = vpack.c.bf16 %v2242, %v2241
    %v2245 = vld [vmem:[%s15] sm:$0xf]
    %v2246 = vld [vmem:[%s15 + $0x4] sm:$0xf]
    %v2247 = vld [vmem:[%s15 + $0x8] sm:$0xf]
    %v2248 = vld [vmem:[%s15 + $0xc] sm:$0xf]
    %v2249 = vld [vmem:[%s16] sm:$0x1]
    %v2251 = vlaneseq
    %v2252 = vshrl.u32 %v2251, 7
    %v2253 = vsub.s32 0, %v2252
    %v2254 = vrot.slane %v2249, %v2253
    %v2260 = vunpack.c.l.b16 %v2245
    %v2261 = vunpack.c.l.b16 %v2246
    %v2262 = vunpack.c.l.b16 %v2247
    %v2263 = vunpack.c.l.b16 %v2248
    %v2264 = vpack.c.b16 %v2261, %v2260
    %v2265 = vpack.c.b16 %v2263, %v2262
    %v2269 = vsel %vm297, %v2243, 0
    %v2272 = vsel %vm297, %v2244, 0
    %2274 = vmatprep.subr.bf16.mxu0 0
    %2275 = vmatpush1.bf16.msra.mxu0 %v2264
    %2276 = vmatprep.subr.bf16.mxu0 0
    %2277 = vmatpush1.bf16.msra.mxu0 %v2265
    %2278 = vmatprep.subr.bf16.mxu0 0
    %2279 = vmatpush1.bf16.msra.mxu0 0
    %2280 = vmatprep.subr.bf16.mxu0 0
    %2281 = vmatpush1.bf16.msra.mxu0 0
    %2282 = vmatprep.subr.bf16.mxu0 0
    %2283 = vmatpush1.bf16.msra.mxu0 0
    %2284 = vmatprep.subr.bf16.mxu0 0
    %2285 = vmatpush1.bf16.msra.mxu0 0
    %2286 = vmatprep.subr.bf16.mxu0 0
    %2287 = vmatpush1.bf16.msra.mxu0 0
    %2288 = vmatprep.subr.bf16.mxu0 0
    %2289 = vmatpush1.bf16.msra.mxu0 0
    %2290 = vmatprep.subr.bf16.mxu0 0
    %2291 = vmatpush1.bf16.msra.mxu0 0
    %2292 = vmatprep.subr.bf16.mxu0 0
    %2293 = vmatpush1.bf16.msra.mxu0 0
    %2294 = vmatprep.subr.bf16.mxu0 0
    %2295 = vmatpush1.bf16.msra.mxu0 0
    %2296 = vmatprep.subr.bf16.mxu0 0
    %2297 = vmatpush1.bf16.msra.mxu0 0
    %2298 = vmatprep.subr.bf16.mxu0 0
    %2299 = vmatpush1.bf16.msra.mxu0 0
    %2300 = vmatprep.subr.bf16.mxu0 0
    %2301 = vmatpush1.bf16.msra.mxu0 0
    %2302 = vmatprep.subr.bf16.mxu0 0
    %2303 = vmatpush1.bf16.msra.mxu0 0
    %2304 = vmatprep.subr.bf16.mxu0 0
    %2305 = vmatpush1.bf16.msra.mxu0 0
    %2306 = vmatprep.mubr.bf16.mxu0 0
    %2307 = vmatmul.mubr.bf16.gmra.mrb[0].mxu0 %v2269
    %v2308 = vpop.f32.mrb[0].mxu0
    %v2309 = vadd.f32 %v2254, %v2308
    %v2310 = vpop.f32.mrb[0].mxu0
    %v2311 = vpop.f32.mrb[0].mxu0
    %v2312 = vadd.f32 %v2254, %v2311
    %v2313 = vpop.f32.mrb[0].mxu0
    %2314 = vmatprep.mubr.bf16.mxu0 0
    %2315 = vmatmul.mubr.bf16.gmra.mrb[0].mxu0 %v2272
    %v2316 = vpop.f32.mrb[0].mxu0
    %v2317 = vadd.f32 %v2254, %v2316
    %v2318 = vpop.f32.mrb[0].mxu0
    %v2319 = vpop.f32.mrb[0].mxu0
    %v2320 = vadd.f32 %v2254, %v2319
    %v2321 = vpop.f32.mrb[0].mxu0
    %2322 = vdwg.mxu0
    %v2323 = vadd.f32 %v2309, %v2081
    %v2324 = vadd.f32 %v2312, %v2082
    %v2325 = vadd.f32 %v2317, %v2083
    %v2326 = vadd.f32 %v2320, %v2084
    %2327 = vst.msk [vmem:[#allocation19] sm:$0xff] %vm297, %v2323
    %2328 = vst.msk [vmem:[#allocation19 + $0x8] sm:$0xff] %vm297, %v2324
    %2329 = vst.msk [vmem:[#allocation19 + $0x10] sm:$0xff] %vm297, %v2325
    %2330 = vst.msk [vmem:[#allocation19 + $0x18] sm:$0xff] %vm297, %v2326
    // Predicated region
    $region110: #{tpu_custom_call.1} parent=1 // pred_check
      _
    $region111: #{tpu_custom_call.1} parent=1 // pred_check_branch
      %2332 = sbr.rel (0) target = $region113
    $region112: #{tpu_custom_call.1} parent=1 // pred_region
      %s2334 = ssub.s32 512, 512
      %2335 = vsyncadd [#allocation4], %s2334
      %s2336 = sshll.u32 [#allocation19], 4
      %s2337 = int_to_ptr.vmem [resolvable:$true] %s2336
      %2342 = dma.vmem_to_hbm [thread:$0]  %s2337, 512, %s17, [#allocation4], 128, 128, 8
    $region113: #{tpu_custom_call.1} parent=1 // pred_fallthru
      _
    // Predicated region
    $region114: #{tpu_custom_call.1} parent=1 // pred_check
      _
    $region115: #{tpu_custom_call.1} parent=1 // pred_check_branch
      %2344 = sbr.rel (0) target = $region117
    $region116: #{tpu_custom_call.1} parent=1 // pred_region
      %2345 = dma.done [#allocation4], 512
    $region117: #{tpu_custom_call.1} parent=1 // pred_fallthru
      _
    %2346 = vsyncpa [#allocation3], 1
    %2347 = vsyncpa [#allocation6], 1
    %2348 = vsyncpa [#allocation9], 1
    %2349 = vsyncpa [#allocation12], 1
    %2350 = vsyncpa [#allocation15], 1
    %2351 = vsyncpa [#allocation18], 1
    %2352 = vsyncpa [#allocation4], 1

</llo_original>
